<compile_context>
chip_gen: v5e
topology: v5e:2x2
jax: 0.10.0
libtpu: 0.0.40
codegen_flags: <defaults>
</compile_context>

<pallas_src>
import jax
import jax.numpy as jnp
from jax.experimental import pallas as pl
from jax.experimental.pallas import tpu as pltpu


# Layer widths from the PyTorch module and their 128-lane padded versions.
DIMS = [784, 512, 256, 158, 64, 32, 10]
LANE = 128


def _round_up(v, m):
    return (v + m - 1) // m * m


PADDED = [_round_up(d, LANE) for d in DIMS]   # [896, 512, 256, 256, 128, 128, 128]


def mlp_kernel(x_ref,
               w1_ref, b1_ref,
               w2_ref, b2_ref,
               w3_ref, b3_ref,
               w4_ref, b4_ref,
               w5_ref, b5_ref,
               w6_ref, b6_ref,
               out_ref):
    """Full 6-layer MLP forward for one batch tile.

    Weights are pre-transposed/padded to (in_pad, out_pad) bf16; biases are
    (1, out_pad) f32.  MXU matmuls accumulate in f32; intermediate activations
    are cast back to bf16 to feed the next matmul.
    """

    def layer(h, w_ref, b_ref, last=False):
        y = jnp.dot(h, w_ref[...], preferred_element_type=jnp.float32)
        y = jnp.maximum(y + b_ref[...], 0.0)
        return y if last else y.astype(jnp.bfloat16)

    h = x_ref[...]
    h = layer(h, w1_ref, b1_ref)
    h = layer(h, w2_ref, b2_ref)
    h = layer(h, w3_ref, b3_ref)
    h = layer(h, w4_ref, b4_ref)
    h = layer(h, w5_ref, b5_ref)
    h = layer(h, w6_ref, b6_ref, last=True)
    out_ref[...] = h.astype(out_ref.dtype)


def prepare_params(params):
    """One-time host/XLA prep: W (out,in) -> (in_pad,out_pad) bf16 (zero-padded,
    transposed), b -> (1, out_pad) f32 (zero-padded)."""
    prepared = []
    for i, (w, b) in enumerate(params):
        in_d, out_d = DIMS[i], DIMS[i + 1]
        in_p, out_p = PADDED[i], PADDED[i + 1]
        wt = jnp.zeros((in_p, out_p), jnp.float32)
        wt = wt.at[:in_d, :out_d].set(w.T.astype(jnp.float32))
        bp = jnp.zeros((1, out_p), jnp.float32)
        bp = bp.at[0, :out_d].set(b.astype(jnp.float32))
        prepared.append((wt.astype(jnp.bfloat16), bp))
    return prepared


def net_forward(x, prepared_params, tile_n=256):
    """x: (N, 1, 28, 28) or (N, 784); prepared_params: output of prepare_params."""
    x2d = jnp.asarray(x, jnp.float32).reshape(-1, DIMS[0])
    n = x2d.shape[0]
    n_pad = _round_up(max(n, 1), tile_n)

    in_p = PADDED[0]
    out_p = PADDED[-1]

    # Zero-pad batch rows and input features; cast activations to bf16.
    x_p = jnp.zeros((n_pad, in_p), jnp.bfloat16)
    x_p = x_p.at[:n, :DIMS[0]].set(x2d.astype(jnp.bfloat16))

    grid = (n_pad // tile_n,)

    in_specs = [pl.BlockSpec((tile_n, in_p), lambda i: (i, 0))]
    flat_args = [x_p]
    for w, b in prepared_params:
        flat_args += [w, b]
        # Full-array blocks, constant index -> weights/biases stay resident in
        # VMEM across all batch tiles.
        in_specs += [
            pl.BlockSpec(w.shape, lambda i: (0, 0)),
            pl.BlockSpec(b.shape, lambda i: (0, 0)),
        ]

    out = pl.pallas_call(
        mlp_kernel,
        out_shape=jax.ShapeDtypeStruct((n_pad, out_p), jnp.float32),
        grid=grid,
        in_specs=in_specs,
        out_specs=pl.BlockSpec((tile_n, out_p), lambda i: (i, 0)),
        compiler_params=pltpu.CompilerParams(
            dimension_semantics=("parallel",)),
    )(*flat_args)

    # Slice back to the logical (N, 10) result.
    return out[:n, :DIMS[-1]]


def init_params(key):
    """Deterministic init matching PyTorch Linear shapes: W (out, in), b (out,)."""
    params = []
    for i in range(len(DIMS) - 1):
        fan_in, fan_out = DIMS[i], DIMS[i + 1]
        key, kw, kb = jax.random.split(key, 3)
        bound = 1.0 / (fan_in ** 0.5)
        w = jax.random.uniform(kw, (fan_out, fan_in), jnp.float32, -bound, bound)
        b = jax.random.uniform(kb, (fan_out,), jnp.float32, -bound, bound)
        params.append((w, b))
    return params


if __name__ == "__main__":
    key = jax.random.PRNGKey(0)
    key, kx = jax.random.split(key)

    params = init_params(key)
    prepared = prepare_params(params)

    # Small batch of MNIST-like inputs in NCHW, flattened inside net_forward.
    x = jax.random.normal(kx, (2, 1, 28, 28), jnp.float32)

    out = net_forward(x, prepared, tile_n=256)
    out = jax.block_until_ready(out)

    # Reference in plain f32 JAX (exact PyTorch semantics).  Kernel uses bf16
    # inputs/weights with f32 accumulation, so compare with relaxed tolerance.
    ref = x.reshape(-1, 784)
    for w, b in params:
        ref = jnp.maximum(ref @ w.T + b, 0.0)

    assert out.shape == (2, 10), out.shape
    assert jnp.allclose(out, ref, atol=5e-2, rtol=5e-2), (
        float(jnp.max(jnp.abs(out - ref))))

    print("KERNEL_OK")
</pallas_src>

<mosaic_0001>
module attributes {stable_mosaic.version = 11 : i64} {
  func.func @mlp_kernel(%arg0: i32, %arg1: memref<256x896xbf16, #tpu.memory_space<vmem>>, %arg2: memref<896x512xbf16, #tpu.memory_space<vmem>>, %arg3: memref<1x512xf32, #tpu.memory_space<vmem>>, %arg4: memref<512x256xbf16, #tpu.memory_space<vmem>>, %arg5: memref<1x256xf32, #tpu.memory_space<vmem>>, %arg6: memref<256x256xbf16, #tpu.memory_space<vmem>>, %arg7: memref<1x256xf32, #tpu.memory_space<vmem>>, %arg8: memref<256x128xbf16, #tpu.memory_space<vmem>>, %arg9: memref<1x128xf32, #tpu.memory_space<vmem>>, %arg10: memref<128x128xbf16, #tpu.memory_space<vmem>>, %arg11: memref<1x128xf32, #tpu.memory_space<vmem>>, %arg12: memref<128x128xbf16, #tpu.memory_space<vmem>>, %arg13: memref<1x128xf32, #tpu.memory_space<vmem>>, %arg14: memref<256x128xf32, #tpu.memory_space<vmem>>) attributes {dimension_semantics = [#tpu.dimension_semantics<parallel>], iteration_bounds = array<i64: 1>, scalar_prefetch = 0 : i64, scratch_operands = 0 : i64, tpu.core_type = #tpu.core_type<tc>, window_params = [{transform_indices = @transform_0, window_bounds = array<i64: 256, 896>}, {pipeline_mode = #tpu.pipeline_mode<synchronous>, transform_indices = @transform_1, window_bounds = array<i64: 896, 512>}, {pipeline_mode = #tpu.pipeline_mode<synchronous>, transform_indices = @transform_2, window_bounds = array<i64: 1, 512>}, {pipeline_mode = #tpu.pipeline_mode<synchronous>, transform_indices = @transform_3, window_bounds = array<i64: 512, 256>}, {pipeline_mode = #tpu.pipeline_mode<synchronous>, transform_indices = @transform_4, window_bounds = array<i64: 1, 256>}, {pipeline_mode = #tpu.pipeline_mode<synchronous>, transform_indices = @transform_5, window_bounds = array<i64: 256, 256>}, {pipeline_mode = #tpu.pipeline_mode<synchronous>, transform_indices = @transform_6, window_bounds = array<i64: 1, 256>}, {pipeline_mode = #tpu.pipeline_mode<synchronous>, transform_indices = @transform_7, window_bounds = array<i64: 256, 128>}, {pipeline_mode = #tpu.pipeline_mode<synchronous>, transform_indices = @transform_8, window_bounds = array<i64: 1, 128>}, {pipeline_mode = #tpu.pipeline_mode<synchronous>, transform_indices = @transform_9, window_bounds = array<i64: 128, 128>}, {pipeline_mode = #tpu.pipeline_mode<synchronous>, transform_indices = @transform_10, window_bounds = array<i64: 1, 128>}, {pipeline_mode = #tpu.pipeline_mode<synchronous>, transform_indices = @transform_11, window_bounds = array<i64: 128, 128>}, {pipeline_mode = #tpu.pipeline_mode<synchronous>, transform_indices = @transform_12, window_bounds = array<i64: 1, 128>}, {transform_indices = @transform_13, window_bounds = array<i64: 256, 128>}]} {
    %c0 = arith.constant 0 : index
    %c0_0 = arith.constant 0 : index
    %0 = vector.load %arg1[%c0, %c0_0] : memref<256x896xbf16, #tpu.memory_space<vmem>>, vector<256x896xbf16>
    %c0_1 = arith.constant 0 : index
    %c0_2 = arith.constant 0 : index
    %1 = vector.load %arg2[%c0_1, %c0_2] : memref<896x512xbf16, #tpu.memory_space<vmem>>, vector<896x512xbf16>
    %cst = arith.constant dense<0.000000e+00> : vector<256x512xf32>
    %2 = tpu.matmul %0, %1, %cst {dimension_numbers = #tpu.dot_dimension_numbers<[1], [0], [0], [1], [0, 0, 1, 1], [], []>} : vector<256x896xbf16>, vector<896x512xbf16>, vector<256x512xf32> -> vector<256x512xf32>
    %c0_3 = arith.constant 0 : index
    %c0_4 = arith.constant 0 : index
    %3 = vector.load %arg3[%c0_3, %c0_4] : memref<1x512xf32, #tpu.memory_space<vmem>>, vector<1x512xf32>
    %4 = vector.broadcast %3 : vector<1x512xf32> to vector<256x512xf32>
    %5 = arith.addf %2, %4 : vector<256x512xf32>
    %cst_5 = arith.constant 0.000000e+00 : f32
    %6 = vector.broadcast %cst_5 : f32 to vector<256x512xf32>
    %7 = arith.maximumf %5, %6 : vector<256x512xf32>
    %8 = arith.truncf %7 : vector<256x512xf32> to vector<256x512xbf16>
    %c0_6 = arith.constant 0 : index
    %c0_7 = arith.constant 0 : index
    %9 = vector.load %arg4[%c0_6, %c0_7] : memref<512x256xbf16, #tpu.memory_space<vmem>>, vector<512x256xbf16>
    %cst_8 = arith.constant dense<0.000000e+00> : vector<256x256xf32>
    %10 = tpu.matmul %8, %9, %cst_8 {dimension_numbers = #tpu.dot_dimension_numbers<[1], [0], [0], [1], [0, 0, 1, 1], [], []>} : vector<256x512xbf16>, vector<512x256xbf16>, vector<256x256xf32> -> vector<256x256xf32>
    %c0_9 = arith.constant 0 : index
    %c0_10 = arith.constant 0 : index
    %11 = vector.load %arg5[%c0_9, %c0_10] : memref<1x256xf32, #tpu.memory_space<vmem>>, vector<1x256xf32>
    %12 = vector.broadcast %11 : vector<1x256xf32> to vector<256x256xf32>
    %13 = arith.addf %10, %12 : vector<256x256xf32>
    %cst_11 = arith.constant 0.000000e+00 : f32
    %14 = vector.broadcast %cst_11 : f32 to vector<256x256xf32>
    %15 = arith.maximumf %13, %14 : vector<256x256xf32>
    %16 = arith.truncf %15 : vector<256x256xf32> to vector<256x256xbf16>
    %c0_12 = arith.constant 0 : index
    %c0_13 = arith.constant 0 : index
    %17 = vector.load %arg6[%c0_12, %c0_13] : memref<256x256xbf16, #tpu.memory_space<vmem>>, vector<256x256xbf16>
    %cst_14 = arith.constant dense<0.000000e+00> : vector<256x256xf32>
    %18 = tpu.matmul %16, %17, %cst_14 {dimension_numbers = #tpu.dot_dimension_numbers<[1], [0], [0], [1], [0, 0, 1, 1], [], []>} : vector<256x256xbf16>, vector<256x256xbf16>, vector<256x256xf32> -> vector<256x256xf32>
    %c0_15 = arith.constant 0 : index
    %c0_16 = arith.constant 0 : index
    %19 = vector.load %arg7[%c0_15, %c0_16] : memref<1x256xf32, #tpu.memory_space<vmem>>, vector<1x256xf32>
    %20 = vector.broadcast %19 : vector<1x256xf32> to vector<256x256xf32>
    %21 = arith.addf %18, %20 : vector<256x256xf32>
    %cst_17 = arith.constant 0.000000e+00 : f32
    %22 = vector.broadcast %cst_17 : f32 to vector<256x256xf32>
    %23 = arith.maximumf %21, %22 : vector<256x256xf32>
    %24 = arith.truncf %23 : vector<256x256xf32> to vector<256x256xbf16>
    %c0_18 = arith.constant 0 : index
    %c0_19 = arith.constant 0 : index
    %25 = vector.load %arg8[%c0_18, %c0_19] : memref<256x128xbf16, #tpu.memory_space<vmem>>, vector<256x128xbf16>
    %cst_20 = arith.constant dense<0.000000e+00> : vector<256x128xf32>
    %26 = tpu.matmul %24, %25, %cst_20 {dimension_numbers = #tpu.dot_dimension_numbers<[1], [0], [0], [1], [0, 0, 1, 1], [], []>} : vector<256x256xbf16>, vector<256x128xbf16>, vector<256x128xf32> -> vector<256x128xf32>
    %c0_21 = arith.constant 0 : index
    %c0_22 = arith.constant 0 : index
    %27 = vector.load %arg9[%c0_21, %c0_22] : memref<1x128xf32, #tpu.memory_space<vmem>>, vector<1x128xf32>
    %28 = vector.broadcast %27 : vector<1x128xf32> to vector<256x128xf32>
    %29 = arith.addf %26, %28 : vector<256x128xf32>
    %cst_23 = arith.constant 0.000000e+00 : f32
    %30 = vector.broadcast %cst_23 : f32 to vector<256x128xf32>
    %31 = arith.maximumf %29, %30 : vector<256x128xf32>
    %32 = arith.truncf %31 : vector<256x128xf32> to vector<256x128xbf16>
    %c0_24 = arith.constant 0 : index
    %c0_25 = arith.constant 0 : index
    %33 = vector.load %arg10[%c0_24, %c0_25] : memref<128x128xbf16, #tpu.memory_space<vmem>>, vector<128x128xbf16>
    %cst_26 = arith.constant dense<0.000000e+00> : vector<256x128xf32>
    %34 = tpu.matmul %32, %33, %cst_26 {dimension_numbers = #tpu.dot_dimension_numbers<[1], [0], [0], [1], [0, 0, 1, 1], [], []>} : vector<256x128xbf16>, vector<128x128xbf16>, vector<256x128xf32> -> vector<256x128xf32>
    %c0_27 = arith.constant 0 : index
    %c0_28 = arith.constant 0 : index
    %35 = vector.load %arg11[%c0_27, %c0_28] : memref<1x128xf32, #tpu.memory_space<vmem>>, vector<1x128xf32>
    %36 = vector.broadcast %35 : vector<1x128xf32> to vector<256x128xf32>
    %37 = arith.addf %34, %36 : vector<256x128xf32>
    %cst_29 = arith.constant 0.000000e+00 : f32
    %38 = vector.broadcast %cst_29 : f32 to vector<256x128xf32>
    %39 = arith.maximumf %37, %38 : vector<256x128xf32>
    %40 = arith.truncf %39 : vector<256x128xf32> to vector<256x128xbf16>
    %c0_30 = arith.constant 0 : index
    %c0_31 = arith.constant 0 : index
    %41 = vector.load %arg12[%c0_30, %c0_31] : memref<128x128xbf16, #tpu.memory_space<vmem>>, vector<128x128xbf16>
    %cst_32 = arith.constant dense<0.000000e+00> : vector<256x128xf32>
    %42 = tpu.matmul %40, %41, %cst_32 {dimension_numbers = #tpu.dot_dimension_numbers<[1], [0], [0], [1], [0, 0, 1, 1], [], []>} : vector<256x128xbf16>, vector<128x128xbf16>, vector<256x128xf32> -> vector<256x128xf32>
    %c0_33 = arith.constant 0 : index
    %c0_34 = arith.constant 0 : index
    %43 = vector.load %arg13[%c0_33, %c0_34] : memref<1x128xf32, #tpu.memory_space<vmem>>, vector<1x128xf32>
    %44 = vector.broadcast %43 : vector<1x128xf32> to vector<256x128xf32>
    %45 = arith.addf %42, %44 : vector<256x128xf32>
    %cst_35 = arith.constant 0.000000e+00 : f32
    %46 = vector.broadcast %cst_35 : f32 to vector<256x128xf32>
    %47 = arith.maximumf %45, %46 : vector<256x128xf32>
    %c0_36 = arith.constant 0 : index
    %c0_37 = arith.constant 0 : index
    %48 = vector.load %arg14[%c0_36, %c0_37] : memref<256x128xf32, #tpu.memory_space<vmem>>, vector<256x128xf32>
    tpu.vector_store %arg14[%c0_36, %c0_37], %47 {strides = array<i32>} : memref<256x128xf32, #tpu.memory_space<vmem>>, vector<256x128xf32>,
    return
  }
  func.func @transform_0(%arg0: i32) -> (i32, i32) {
    %c0_i32 = arith.constant 0 : i32
    %c0_i32_0 = arith.constant 0 : i32
    return %arg0, %c0_i32 : i32, i32
  }
  func.func @transform_1(%arg0: i32) -> (i32, i32) {
    %c0_i32 = arith.constant 0 : i32
    %c0_i32_0 = arith.constant 0 : i32
    %c0_i32_1 = arith.constant 0 : i32
    return %c0_i32, %c0_i32_0 : i32, i32
  }
  func.func @transform_2(%arg0: i32) -> (i32, i32) {
    %c0_i32 = arith.constant 0 : i32
    %c0_i32_0 = arith.constant 0 : i32
    %c0_i32_1 = arith.constant 0 : i32
    return %c0_i32, %c0_i32_0 : i32, i32
  }
  func.func @transform_3(%arg0: i32) -> (i32, i32) {
    %c0_i32 = arith.constant 0 : i32
    %c0_i32_0 = arith.constant 0 : i32
    %c0_i32_1 = arith.constant 0 : i32
    return %c0_i32, %c0_i32_0 : i32, i32
  }
  func.func @transform_4(%arg0: i32) -> (i32, i32) {
    %c0_i32 = arith.constant 0 : i32
    %c0_i32_0 = arith.constant 0 : i32
    %c0_i32_1 = arith.constant 0 : i32
    return %c0_i32, %c0_i32_0 : i32, i32
  }
  func.func @transform_5(%arg0: i32) -> (i32, i32) {
    %c0_i32 = arith.constant 0 : i32
    %c0_i32_0 = arith.constant 0 : i32
    %c0_i32_1 = arith.constant 0 : i32
    return %c0_i32, %c0_i32_0 : i32, i32
  }
  func.func @transform_6(%arg0: i32) -> (i32, i32) {
    %c0_i32 = arith.constant 0 : i32
    %c0_i32_0 = arith.constant 0 : i32
    %c0_i32_1 = arith.constant 0 : i32
    return %c0_i32, %c0_i32_0 : i32, i32
  }
  func.func @transform_7(%arg0: i32) -> (i32, i32) {
    %c0_i32 = arith.constant 0 : i32
    %c0_i32_0 = arith.constant 0 : i32
    %c0_i32_1 = arith.constant 0 : i32
    return %c0_i32, %c0_i32_0 : i32, i32
  }
  func.func @transform_8(%arg0: i32) -> (i32, i32) {
    %c0_i32 = arith.constant 0 : i32
    %c0_i32_0 = arith.constant 0 : i32
    %c0_i32_1 = arith.constant 0 : i32
    return %c0_i32, %c0_i32_0 : i32, i32
  }
  func.func @transform_9(%arg0: i32) -> (i32, i32) {
    %c0_i32 = arith.constant 0 : i32
    %c0_i32_0 = arith.constant 0 : i32
    %c0_i32_1 = arith.constant 0 : i32
    return %c0_i32, %c0_i32_0 : i32, i32
  }
  func.func @transform_10(%arg0: i32) -> (i32, i32) {
    %c0_i32 = arith.constant 0 : i32
    %c0_i32_0 = arith.constant 0 : i32
    %c0_i32_1 = arith.constant 0 : i32
    return %c0_i32, %c0_i32_0 : i32, i32
  }
  func.func @transform_11(%arg0: i32) -> (i32, i32) {
    %c0_i32 = arith.constant 0 : i32
    %c0_i32_0 = arith.constant 0 : i32
    %c0_i32_1 = arith.constant 0 : i32
    return %c0_i32, %c0_i32_0 : i32, i32
  }
  func.func @transform_12(%arg0: i32) -> (i32, i32) {
    %c0_i32 = arith.constant 0 : i32
    %c0_i32_0 = arith.constant 0 : i32
    %c0_i32_1 = arith.constant 0 : i32
    return %c0_i32, %c0_i32_0 : i32, i32
  }
  func.func @transform_13(%arg0: i32) -> (i32, i32) {
    %c0_i32 = arith.constant 0 : i32
    %c0_i32_0 = arith.constant 0 : i32
    return %arg0, %c0_i32 : i32, i32
  }
}

</mosaic_0001>

<llo_original>
// kernel: tpu_custom_call.1
$region0: #{tpu_custom_call.1}
  #allocation0 [shape = 'u32[]', space=smem, size = 0x4, offset = 0x4, fixed_abs, tag = 'smem constant byte address 0x4 - core index']
  #allocation1 [shape = 'u32[72,128]{1,0:T(1,128)}', space=vmem, size = 0x9000, scoped, tag = 'internal scratch']
  %s0 = inlined_call_operand.hbm [shape: bf16[256,896], index: 0, kind: input, shape index: {}]
  %s1 = inlined_call_operand.hbm [shape: bf16[896,512], index: 1, kind: input, shape index: {}]
  %s2 = inlined_call_operand.hbm [shape: f32[1,512], index: 2, kind: input, shape index: {}]
  %s3 = inlined_call_operand.hbm [shape: bf16[512,256], index: 3, kind: input, shape index: {}]
  %s4 = inlined_call_operand.vmem [shape: f32[1,256], index: 4, kind: input, shape index: {}]
  %s5 = inlined_call_operand.hbm [shape: bf16[256,256], index: 5, kind: input, shape index: {}]
  %s6 = inlined_call_operand.vmem [shape: f32[1,256], index: 6, kind: input, shape index: {}]
  %s7 = inlined_call_operand.hbm [shape: bf16[256,128], index: 7, kind: input, shape index: {}]
  %s8 = inlined_call_operand.vmem [shape: f32[1,128], index: 8, kind: input, shape index: {}]
  %s9 = inlined_call_operand.hbm [shape: bf16[128,128], index: 9, kind: input, shape index: {}]
  %s10 = inlined_call_operand.vmem [shape: f32[1,128], index: 10, kind: input, shape index: {}]
  %s11 = inlined_call_operand.hbm [shape: bf16[128,128], index: 11, kind: input, shape index: {}]
  %s12 = inlined_call_operand.vmem [shape: f32[1,128], index: 12, kind: input, shape index: {}]
  %s13 = inlined_call_operand.hbm [shape: f32[256,128], index: 13, kind: output, shape index: {}]
  %s14 = sld [smem:[#allocation0]]
  $region94: #{tpu_custom_call.1} parent=0
    _
  %s16 = ssub.s32 1, %s14
  %s17 = scalar_select 0, %s16, %s14
  $region1: #{tpu_custom_call.1} parent=0
    #allocation2 [shape = 'u8[458752]{0}', space=vmem, size = 0x70000, scoped, tag = 'input window, operand 0, single buffered']
    #allocation3 [shape = 's32[1]{0}', space=sflag, size = 0x4, scoped, tag = 'scoped memory for tpu_custom_call.1']
    #allocation4 [shape = 's32[1]{0}', space=sflag, size = 0x4, scoped, tag = 'scoped memory for tpu_custom_call.1']
    #allocation5 [shape = 'u8[917504]{0}', space=vmem, size = 0xe0000, scoped, tag = 'input window, operand 1, single buffered']
    #allocation6 [shape = 's32[1]{0}', space=sflag, size = 0x4, scoped, tag = 'scoped memory for tpu_custom_call.1']
    #allocation7 [shape = 'u8[2048]{0}', space=vmem, size = 0x800, scoped, tag = 'input window, operand 2, single buffered']
    #allocation8 [shape = 'u8[262144]{0}', space=vmem, size = 0x40000, scoped, tag = 'input window, operand 3, single buffered']
    #allocation9 [shape = 's32[1]{0}', space=sflag, size = 0x4, scoped, tag = 'scoped memory for tpu_custom_call.1']
    #allocation10 [shape = 'u8[131072]{0}', space=vmem, size = 0x20000, scoped, tag = 'input window, operand 5, single buffered']
    #allocation11 [shape = 'u8[65536]{0}', space=vmem, size = 0x10000, scoped, tag = 'input window, operand 7, single buffered']
    #allocation12 [shape = 's32[1]{0}', space=sflag, size = 0x4, scoped, tag = 'scoped memory for tpu_custom_call.1']
    #allocation13 [shape = 'u8[32768]{0}', space=vmem, size = 0x8000, scoped, tag = 'input window, operand 9, single buffered']
    #allocation14 [shape = 'u8[32768]{0}', space=vmem, size = 0x8000, scoped, tag = 'input window, operand 11, single buffered']
    #allocation15 [shape = 's32[1]{0}', space=sflag, size = 0x4, scoped, tag = 'scoped memory for tpu_custom_call.1']
    #allocation16 [shape = 'u8[131072]{0}', space=vmem, size = 0x20000, scoped, tag = 'output window, operand 0, single buffered']
    %18 = vsyncpa [#allocation3], 0
    %19 = vsyncpa [#allocation6], 0
    %20 = vsyncpa [#allocation9], 0
    %21 = vsyncpa [#allocation12], 0
    %22 = vsyncpa [#allocation15], 0
    %23 = vsyncpa [#allocation4], 0
    // Predicated region
    $region2: #{tpu_custom_call.1} parent=1 // pred_check
      _
    $region3: #{tpu_custom_call.1} parent=1 // pred_check_branch
      %25 = sbr.rel (0) target = $region5
    $region4: #{tpu_custom_call.1} parent=1 // pred_region
      %27 = vsyncadd [#allocation3], 0
      %s28 = sshll.u32 %s0, 4
      %s29 = int_to_ptr.hbm [resolvable:$true] %s28
      %s30 = sshll.u32 [#allocation2], 4
      %s31 = int_to_ptr.vmem [resolvable:$true] %s30
      %36 = dma.hbm_to_vmem [thread:$0]  %s29, 14336, %s31, [#allocation3], 448, 448, 28
    $region5: #{tpu_custom_call.1} parent=1 // pred_fallthru
      _
    // Predicated region
    $region6: #{tpu_custom_call.1} parent=1 // pred_check
      _
    $region7: #{tpu_custom_call.1} parent=1 // pred_check_branch
      %38 = sbr.rel (0) target = $region9
    $region8: #{tpu_custom_call.1} parent=1 // pred_region
      %40 = vsyncadd [#allocation6], 0
      %s41 = sshll.u32 %s1, 4
      %s42 = int_to_ptr.hbm [resolvable:$true] %s41
      %s43 = sshll.u32 [#allocation5], 4
      %s44 = int_to_ptr.vmem [resolvable:$true] %s43
      %49 = dma.hbm_to_vmem [thread:$0]  %s42, 28672, %s44, [#allocation6], 256, 256, 16
    $region9: #{tpu_custom_call.1} parent=1 // pred_fallthru
      _
    // Predicated region
    $region10: #{tpu_custom_call.1} parent=1 // pred_check
      _
    $region11: #{tpu_custom_call.1} parent=1 // pred_check_branch
      %51 = sbr.rel (0) target = $region13
    $region12: #{tpu_custom_call.1} parent=1 // pred_region
      %53 = vsyncadd [#allocation6], 0
      %s55 = sshll.u32 %s2, 4
      %s56 = int_to_ptr.hbm [resolvable:$true] %s55
      %s57 = sshll.u32 [#allocation7], 4
      %s58 = int_to_ptr.vmem [resolvable:$true] %s57
      %60 = dma.hbm_to_vmem [thread:$0]  %s56, 64, %s58, [#allocation6]
    $region13: #{tpu_custom_call.1} parent=1 // pred_fallthru
      _
    // Predicated region
    $region14: #{tpu_custom_call.1} parent=1 // pred_check
      _
    $region15: #{tpu_custom_call.1} parent=1 // pred_check_branch
      %62 = sbr.rel (0) target = $region17
    $region16: #{tpu_custom_call.1} parent=1 // pred_region
      %64 = vsyncadd [#allocation9], 0
      %s65 = sshll.u32 %s3, 4
      %s66 = int_to_ptr.hbm [resolvable:$true] %s65
      %s67 = sshll.u32 [#allocation8], 4
      %s68 = int_to_ptr.vmem [resolvable:$true] %s67
      %73 = dma.hbm_to_vmem [thread:$0]  %s66, 8192, %s68, [#allocation9], 128, 128, 8
    $region17: #{tpu_custom_call.1} parent=1 // pred_fallthru
      _
    // Predicated region
    $region18: #{tpu_custom_call.1} parent=1 // pred_check
      _
    $region19: #{tpu_custom_call.1} parent=1 // pred_check_branch
      %75 = sbr.rel (0) target = $region21
    $region20: #{tpu_custom_call.1} parent=1 // pred_region
      _
    $region21: #{tpu_custom_call.1} parent=1 // pred_fallthru
      _
    // Predicated region
    $region22: #{tpu_custom_call.1} parent=1 // pred_check
      _
    $region23: #{tpu_custom_call.1} parent=1 // pred_check_branch
      %77 = sbr.rel (0) target = $region25
    $region24: #{tpu_custom_call.1} parent=1 // pred_region
      %79 = vsyncadd [#allocation9], 0
      %s80 = sshll.u32 %s5, 4
      %s81 = int_to_ptr.hbm [resolvable:$true] %s80
      %s82 = sshll.u32 [#allocation10], 4
      %s83 = int_to_ptr.vmem [resolvable:$true] %s82
      %88 = dma.hbm_to_vmem [thread:$0]  %s81, 4096, %s83, [#allocation9], 128, 128, 8
    $region25: #{tpu_custom_call.1} parent=1 // pred_fallthru
      _
    // Predicated region
    $region26: #{tpu_custom_call.1} parent=1 // pred_check
      _
    $region27: #{tpu_custom_call.1} parent=1 // pred_check_branch
      %90 = sbr.rel (0) target = $region29
    $region28: #{tpu_custom_call.1} parent=1 // pred_region
      _
    $region29: #{tpu_custom_call.1} parent=1 // pred_fallthru
      _
    // Predicated region
    $region30: #{tpu_custom_call.1} parent=1 // pred_check
      _
    $region31: #{tpu_custom_call.1} parent=1 // pred_check_branch
      %92 = sbr.rel (0) target = $region33
    $region32: #{tpu_custom_call.1} parent=1 // pred_region
      %94 = vsyncadd [#allocation12], 0
      %s95 = sshll.u32 %s7, 4
      %s96 = int_to_ptr.hbm [resolvable:$true] %s95
      %s97 = sshll.u32 [#allocation11], 4
      %s98 = int_to_ptr.vmem [resolvable:$true] %s97
      %103 = dma.hbm_to_vmem [thread:$0]  %s96, 2048, %s98, [#allocation12], 64, 64, 4
    $region33: #{tpu_custom_call.1} parent=1 // pred_fallthru
      _
    // Predicated region
    $region34: #{tpu_custom_call.1} parent=1 // pred_check
      _
    $region35: #{tpu_custom_call.1} parent=1 // pred_check_branch
      %105 = sbr.rel (0) target = $region37
    $region36: #{tpu_custom_call.1} parent=1 // pred_region
      _
    $region37: #{tpu_custom_call.1} parent=1 // pred_fallthru
      _
    // Predicated region
    $region38: #{tpu_custom_call.1} parent=1 // pred_check
      _
    $region39: #{tpu_custom_call.1} parent=1 // pred_check_branch
      %107 = sbr.rel (0) target = $region41
    $region40: #{tpu_custom_call.1} parent=1 // pred_region
      %109 = vsyncadd [#allocation12], 0
      %s110 = sshll.u32 %s9, 4
      %s111 = int_to_ptr.hbm [resolvable:$true] %s110
      %s112 = sshll.u32 [#allocation13], 4
      %s113 = int_to_ptr.vmem [resolvable:$true] %s112
      %118 = dma.hbm_to_vmem [thread:$0]  %s111, 1024, %s113, [#allocation12], 64, 64, 4
    $region41: #{tpu_custom_call.1} parent=1 // pred_fallthru
      _
    // Predicated region
    $region42: #{tpu_custom_call.1} parent=1 // pred_check
      _
    $region43: #{tpu_custom_call.1} parent=1 // pred_check_branch
      %120 = sbr.rel (0) target = $region45
    $region44: #{tpu_custom_call.1} parent=1 // pred_region
      _
    $region45: #{tpu_custom_call.1} parent=1 // pred_fallthru
      _
    // Predicated region
    $region46: #{tpu_custom_call.1} parent=1 // pred_check
      _
    $region47: #{tpu_custom_call.1} parent=1 // pred_check_branch
      %122 = sbr.rel (0) target = $region49
    $region48: #{tpu_custom_call.1} parent=1 // pred_region
      %124 = vsyncadd [#allocation15], 0
      %s125 = sshll.u32 %s11, 4
      %s126 = int_to_ptr.hbm [resolvable:$true] %s125
      %s127 = sshll.u32 [#allocation14], 4
      %s128 = int_to_ptr.vmem [resolvable:$true] %s127
      %133 = dma.hbm_to_vmem [thread:$0]  %s126, 1024, %s128, [#allocation15], 64, 64, 4
    $region49: #{tpu_custom_call.1} parent=1 // pred_fallthru
      _
    // Predicated region
    $region50: #{tpu_custom_call.1} parent=1 // pred_check
      _
    $region51: #{tpu_custom_call.1} parent=1 // pred_check_branch
      %135 = sbr.rel (0) target = $region53
    $region52: #{tpu_custom_call.1} parent=1 // pred_region
      _
    $region53: #{tpu_custom_call.1} parent=1 // pred_fallthru
      _
    // Predicated region
    $region54: #{tpu_custom_call.1} parent=1 // pred_check
      _
    $region55: #{tpu_custom_call.1} parent=1 // pred_check_branch
      %137 = sbr.rel (0) target = $region57
    $region56: #{tpu_custom_call.1} parent=1 // pred_region
      %139 = dma.done [#allocation3], 14336
    $region57: #{tpu_custom_call.1} parent=1 // pred_fallthru
      _
    // Predicated region
    $region58: #{tpu_custom_call.1} parent=1 // pred_check
      _
    $region59: #{tpu_custom_call.1} parent=1 // pred_check_branch
      %141 = sbr.rel (0) target = $region61
    $region60: #{tpu_custom_call.1} parent=1 // pred_region
      %143 = dma.done [#allocation6], 28672
    $region61: #{tpu_custom_call.1} parent=1 // pred_fallthru
      _
    // Predicated region
    $region62: #{tpu_custom_call.1} parent=1 // pred_check
      _
    $region63: #{tpu_custom_call.1} parent=1 // pred_check_branch
      %145 = sbr.rel (0) target = $region65
    $region64: #{tpu_custom_call.1} parent=1 // pred_region
      %147 = dma.done [#allocation6], 64
    $region65: #{tpu_custom_call.1} parent=1 // pred_fallthru
      _
    // Predicated region
    $region66: #{tpu_custom_call.1} parent=1 // pred_check
      _
    $region67: #{tpu_custom_call.1} parent=1 // pred_check_branch
      %149 = sbr.rel (0) target = $region69
    $region68: #{tpu_custom_call.1} parent=1 // pred_region
      %151 = dma.done [#allocation9], 8192
    $region69: #{tpu_custom_call.1} parent=1 // pred_fallthru
      _
    // Predicated region
    $region70: #{tpu_custom_call.1} parent=1 // pred_check
      _
    $region71: #{tpu_custom_call.1} parent=1 // pred_check_branch
      %153 = sbr.rel (0) target = $region73
    $region72: #{tpu_custom_call.1} parent=1 // pred_region
      %155 = dma.done [#allocation9], 4096
    $region73: #{tpu_custom_call.1} parent=1 // pred_fallthru
      _
    // Predicated region
    $region74: #{tpu_custom_call.1} parent=1 // pred_check
      _
    $region75: #{tpu_custom_call.1} parent=1 // pred_check_branch
      %157 = sbr.rel (0) target = $region77
    $region76: #{tpu_custom_call.1} parent=1 // pred_region
      %159 = dma.done [#allocation12], 2048
    $region77: #{tpu_custom_call.1} parent=1 // pred_fallthru
      _
    // Predicated region
    $region78: #{tpu_custom_call.1} parent=1 // pred_check
      _
    $region79: #{tpu_custom_call.1} parent=1 // pred_check_branch
      %161 = sbr.rel (0) target = $region81
    $region80: #{tpu_custom_call.1} parent=1 // pred_region
      %163 = dma.done [#allocation12], 1024
    $region81: #{tpu_custom_call.1} parent=1 // pred_fallthru
      _
    // Predicated region
    $region82: #{tpu_custom_call.1} parent=1 // pred_check
      _
    $region83: #{tpu_custom_call.1} parent=1 // pred_check_branch
      %165 = sbr.rel (0) target = $region85
    $region84: #{tpu_custom_call.1} parent=1 // pred_region
      %167 = dma.done [#allocation15], 1024
    $region85: #{tpu_custom_call.1} parent=1 // pred_fallthru
      _
    %v168 = vld [vmem:[#allocation2] sm:$0xff]
    %v169 = vld [vmem:[#allocation2 + $0x8] sm:$0xff]
    %v170 = vld [vmem:[#allocation2 + $0x10] sm:$0xff]
    %v171 = vld [vmem:[#allocation2 + $0x18] sm:$0xf]
    %v172 = vld [vmem:[#allocation2 + $0x1c] sm:$0xff]
    %v173 = vld [vmem:[#allocation2 + $0x24] sm:$0xff]
    %v174 = vld [vmem:[#allocation2 + $0x2c] sm:$0xff]
    %v175 = vld [vmem:[#allocation2 + $0x34] sm:$0xf]
    %v176 = vld [vmem:[#allocation2 + $0x38] sm:$0xff]
    %v177 = vld [vmem:[#allocation2 + $0x40] sm:$0xff]
    %v178 = vld [vmem:[#allocation2 + $0x48] sm:$0xff]
    %v179 = vld [vmem:[#allocation2 + $0x50] sm:$0xf]
    %v180 = vld [vmem:[#allocation2 + $0x54] sm:$0xff]
    %v181 = vld [vmem:[#allocation2 + $0x5c] sm:$0xff]
    %v182 = vld [vmem:[#allocation2 + $0x64] sm:$0xff]
    %v183 = vld [vmem:[#allocation2 + $0x6c] sm:$0xf]
    %v184 = vld [vmem:[#allocation2 + $0x70] sm:$0xff]
    %v185 = vld [vmem:[#allocation2 + $0x78] sm:$0xff]
    %v186 = vld [vmem:[#allocation2 + $0x80] sm:$0xff]
    %v187 = vld [vmem:[#allocation2 + $0x88] sm:$0xf]
    %v188 = vld [vmem:[#allocation2 + $0x8c] sm:$0xff]
    %v189 = vld [vmem:[#allocation2 + $0x94] sm:$0xff]
    %v190 = vld [vmem:[#allocation2 + $0x9c] sm:$0xff]
    %v191 = vld [vmem:[#allocation2 + $0xa4] sm:$0xf]
    %v192 = vld [vmem:[#allocation2 + $0xa8] sm:$0xff]
    %v193 = vld [vmem:[#allocation2 + $0xb0] sm:$0xff]
    %v194 = vld [vmem:[#allocation2 + $0xb8] sm:$0xff]
    %v195 = vld [vmem:[#allocation2 + $0xc0] sm:$0xf]
    %v196 = vld [vmem:[#allocation2 + $0xc4] sm:$0xff]
    %v197 = vld [vmem:[#allocation2 + $0xcc] sm:$0xff]
    %v198 = vld [vmem:[#allocation2 + $0xd4] sm:$0xff]
    %v199 = vld [vmem:[#allocation2 + $0xdc] sm:$0xf]
    %v200 = vld [vmem:[#allocation2 + $0xe0] sm:$0xff]
    %v201 = vld [vmem:[#allocation2 + $0xe8] sm:$0xff]
    %v202 = vld [vmem:[#allocation2 + $0xf0] sm:$0xff]
    %v203 = vld [vmem:[#allocation2 + $0xf8] sm:$0xf]
    %v204 = vld [vmem:[#allocation2 + $0xfc] sm:$0xff]
    %v205 = vld [vmem:[#allocation2 + $0x104] sm:$0xff]
    %v206 = vld [vmem:[#allocation2 + $0x10c] sm:$0xff]
    %v207 = vld [vmem:[#allocation2 + $0x114] sm:$0xf]
    %v208 = vld [vmem:[#allocation2 + $0x118] sm:$0xff]
    %v209 = vld [vmem:[#allocation2 + $0x120] sm:$0xff]
    %v210 = vld [vmem:[#allocation2 + $0x128] sm:$0xff]
    %v211 = vld [vmem:[#allocation2 + $0x130] sm:$0xf]
    %v212 = vld [vmem:[#allocation2 + $0x134] sm:$0xff]
    %v213 = vld [vmem:[#allocation2 + $0x13c] sm:$0xff]
    %v214 = vld [vmem:[#allocation2 + $0x144] sm:$0xff]
    %v215 = vld [vmem:[#allocation2 + $0x14c] sm:$0xf]
    %v216 = vld [vmem:[#allocation2 + $0x150] sm:$0xff]
    %v217 = vld [vmem:[#allocation2 + $0x158] sm:$0xff]
    %v218 = vld [vmem:[#allocation2 + $0x160] sm:$0xff]
    %v219 = vld [vmem:[#allocation2 + $0x168] sm:$0xf]
    %v220 = vld [vmem:[#allocation2 + $0x16c] sm:$0xff]
    %v221 = vld [vmem:[#allocation2 + $0x174] sm:$0xff]
    %v222 = vld [vmem:[#allocation2 + $0x17c] sm:$0xff]
    %v223 = vld [vmem:[#allocation2 + $0x184] sm:$0xf]
    %v224 = vld [vmem:[#allocation2 + $0x188] sm:$0xff]
    %v225 = vld [vmem:[#allocation2 + $0x190] sm:$0xff]
    %v226 = vld [vmem:[#allocation2 + $0x198] sm:$0xff]
    %v227 = vld [vmem:[#allocation2 + $0x1a0] sm:$0xf]
    %v228 = vld [vmem:[#allocation2 + $0x1a4] sm:$0xff]
    %v229 = vld [vmem:[#allocation2 + $0x1ac] sm:$0xff]
    %v230 = vld [vmem:[#allocation2 + $0x1b4] sm:$0xff]
    %v231 = vld [vmem:[#allocation2 + $0x1bc] sm:$0xf]
    %v232 = vld [vmem:[#allocation2 + $0x1c0] sm:$0xff]
    %v233 = vld [vmem:[#allocation2 + $0x1c8] sm:$0xff]
    %v234 = vld [vmem:[#allocation2 + $0x1d0] sm:$0xff]
    %v235 = vld [vmem:[#allocation2 + $0x1d8] sm:$0xf]
    %v236 = vld [vmem:[#allocation2 + $0x1dc] sm:$0xff]
    %v237 = vld [vmem:[#allocation2 + $0x1e4] sm:$0xff]
    %v238 = vld [vmem:[#allocation2 + $0x1ec] sm:$0xff]
    %v239 = vld [vmem:[#allocation2 + $0x1f4] sm:$0xf]
    %v240 = vld [vmem:[#allocation2 + $0x1f8] sm:$0xff]
    %v241 = vld [vmem:[#allocation2 + $0x200] sm:$0xff]
    %v242 = vld [vmem:[#allocation2 + $0x208] sm:$0xff]
    %v243 = vld [vmem:[#allocation2 + $0x210] sm:$0xf]
    %v244 = vld [vmem:[#allocation2 + $0x214] sm:$0xff]
    %v245 = vld [vmem:[#allocation2 + $0x21c] sm:$0xff]
    %v246 = vld [vmem:[#allocation2 + $0x224] sm:$0xff]
    %v247 = vld [vmem:[#allocation2 + $0x22c] sm:$0xf]
    %v248 = vld [vmem:[#allocation2 + $0x230] sm:$0xff]
    %v249 = vld [vmem:[#allocation2 + $0x238] sm:$0xff]
    %v250 = vld [vmem:[#allocation2 + $0x240] sm:$0xff]
    %v251 = vld [vmem:[#allocation2 + $0x248] sm:$0xf]
    %v252 = vld [vmem:[#allocation2 + $0x24c] sm:$0xff]
    %v253 = vld [vmem:[#allocation2 + $0x254] sm:$0xff]
    %v254 = vld [vmem:[#allocation2 + $0x25c] sm:$0xff]
    %v255 = vld [vmem:[#allocation2 + $0x264] sm:$0xf]
    %v256 = vld [vmem:[#allocation2 + $0x268] sm:$0xff]
    %v257 = vld [vmem:[#allocation2 + $0x270] sm:$0xff]
    %v258 = vld [vmem:[#allocation2 + $0x278] sm:$0xff]
    %v259 = vld [vmem:[#allocation2 + $0x280] sm:$0xf]
    %v260 = vld [vmem:[#allocation2 + $0x284] sm:$0xff]
    %v261 = vld [vmem:[#allocation2 + $0x28c] sm:$0xff]
    %v262 = vld [vmem:[#allocation2 + $0x294] sm:$0xff]
    %v263 = vld [vmem:[#allocation2 + $0x29c] sm:$0xf]
    %v264 = vld [vmem:[#allocation2 + $0x2a0] sm:$0xff]
    %v265 = vld [vmem:[#allocation2 + $0x2a8] sm:$0xff]
    %v266 = vld [vmem:[#allocation2 + $0x2b0] sm:$0xff]
    %v267 = vld [vmem:[#allocation2 + $0x2b8] sm:$0xf]
    %v268 = vld [vmem:[#allocation2 + $0x2bc] sm:$0xff]
    %v269 = vld [vmem:[#allocation2 + $0x2c4] sm:$0xff]
    %v270 = vld [vmem:[#allocation2 + $0x2cc] sm:$0xff]
    %v271 = vld [vmem:[#allocation2 + $0x2d4] sm:$0xf]
    %v272 = vld [vmem:[#allocation2 + $0x2d8] sm:$0xff]
    %v273 = vld [vmem:[#allocation2 + $0x2e0] sm:$0xff]
    %v274 = vld [vmem:[#allocation2 + $0x2e8] sm:$0xff]
    %v275 = vld [vmem:[#allocation2 + $0x2f0] sm:$0xf]
    %v276 = vld [vmem:[#allocation2 + $0x2f4] sm:$0xff]
    %v277 = vld [vmem:[#allocation2 + $0x2fc] sm:$0xff]
    %v278 = vld [vmem:[#allocation2 + $0x304] sm:$0xff]
    %v279 = vld [vmem:[#allocation2 + $0x30c] sm:$0xf]
    %v280 = vld [vmem:[#allocation2 + $0x310] sm:$0xff]
    %v281 = vld [vmem:[#allocation2 + $0x318] sm:$0xff]
    %v282 = vld [vmem:[#allocation2 + $0x320] sm:$0xff]
    %v283 = vld [vmem:[#allocation2 + $0x328] sm:$0xf]
    %v284 = vld [vmem:[#allocation2 + $0x32c] sm:$0xff]
    %v285 = vld [vmem:[#allocation2 + $0x334] sm:$0xff]
    %v286 = vld [vmem:[#allocation2 + $0x33c] sm:$0xff]
    %v287 = vld [vmem:[#allocation2 + $0x344] sm:$0xf]
    %v288 = vld [vmem:[#allocation2 + $0x348] sm:$0xff]
    %v289 = vld [vmem:[#allocation2 + $0x350] sm:$0xff]
    %v290 = vld [vmem:[#allocation2 + $0x358] sm:$0xff]
    %v291 = vld [vmem:[#allocation2 + $0x360] sm:$0xf]
    %v292 = vld [vmem:[#allocation2 + $0x364] sm:$0xff]
    %v293 = vld [vmem:[#allocation2 + $0x36c] sm:$0xff]
    %v294 = vld [vmem:[#allocation2 + $0x374] sm:$0xff]
    %v295 = vld [vmem:[#allocation2 + $0x37c] sm:$0xf]
    %v296 = vld [vmem:[#allocation5] sm:$0xff]
    %v297 = vld [vmem:[#allocation5 + $0x8] sm:$0xff]
    %v298 = vld [vmem:[#allocation5 + $0x10] sm:$0xff]
    %v299 = vld [vmem:[#allocation5 + $0x18] sm:$0xff]
    %v300 = vld [vmem:[#allocation5 + $0x20] sm:$0xff]
    %v301 = vld [vmem:[#allocation5 + $0x28] sm:$0xff]
    %v302 = vld [vmem:[#allocation5 + $0x30] sm:$0xff]
    %v303 = vld [vmem:[#allocation5 + $0x38] sm:$0xff]
    %v304 = vld [vmem:[#allocation5 + $0x40] sm:$0xff]
    %v305 = vld [vmem:[#allocation5 + $0x48] sm:$0xff]
    %v306 = vld [vmem:[#allocation5 + $0x50] sm:$0xff]
    %v307 = vld [vmem:[#allocation5 + $0x58] sm:$0xff]
    %v308 = vld [vmem:[#allocation5 + $0x60] sm:$0xff]
    %v309 = vld [vmem:[#allocation5 + $0x68] sm:$0xff]
    %v310 = vld [vmem:[#allocation5 + $0x70] sm:$0xff]
    %v311 = vld [vmem:[#allocation5 + $0x78] sm:$0xff]
    %v312 = vld [vmem:[#allocation5 + $0x80] sm:$0xff]
    %v313 = vld [vmem:[#allocation5 + $0x88] sm:$0xff]
    %v314 = vld [vmem:[#allocation5 + $0x90] sm:$0xff]
    %v315 = vld [vmem:[#allocation5 + $0x98] sm:$0xff]
    %v316 = vld [vmem:[#allocation5 + $0xa0] sm:$0xff]
    %v317 = vld [vmem:[#allocation5 + $0xa8] sm:$0xff]
    %v318 = vld [vmem:[#allocation5 + $0xb0] sm:$0xff]
    %v319 = vld [vmem:[#allocation5 + $0xb8] sm:$0xff]
    %v320 = vld [vmem:[#allocation5 + $0xc0] sm:$0xff]
    %v321 = vld [vmem:[#allocation5 + $0xc8] sm:$0xff]
    %v322 = vld [vmem:[#allocation5 + $0xd0] sm:$0xff]
    %v323 = vld [vmem:[#allocation5 + $0xd8] sm:$0xff]
    %v324 = vld [vmem:[#allocation5 + $0xe0] sm:$0xff]
    %v325 = vld [vmem:[#allocation5 + $0xe8] sm:$0xff]
    %v326 = vld [vmem:[#allocation5 + $0xf0] sm:$0xff]
    %v327 = vld [vmem:[#allocation5 + $0xf8] sm:$0xff]
    %v328 = vld [vmem:[#allocation5 + $0x100] sm:$0xff]
    %v329 = vld [vmem:[#allocation5 + $0x108] sm:$0xff]
    %v330 = vld [vmem:[#allocation5 + $0x110] sm:$0xff]
    %v331 = vld [vmem:[#allocation5 + $0x118] sm:$0xff]
    %v332 = vld [vmem:[#allocation5 + $0x120] sm:$0xff]
    %v333 = vld [vmem:[#allocation5 + $0x128] sm:$0xff]
    %v334 = vld [vmem:[#allocation5 + $0x130] sm:$0xff]
    %v335 = vld [vmem:[#allocation5 + $0x138] sm:$0xff]
    %v336 = vld [vmem:[#allocation5 + $0x140] sm:$0xff]
    %v337 = vld [vmem:[#allocation5 + $0x148] sm:$0xff]
    %v338 = vld [vmem:[#allocation5 + $0x150] sm:$0xff]
    %v339 = vld [vmem:[#allocation5 + $0x158] sm:$0xff]
    %v340 = vld [vmem:[#allocation5 + $0x160] sm:$0xff]
    %v341 = vld [vmem:[#allocation5 + $0x168] sm:$0xff]
    %v342 = vld [vmem:[#allocation5 + $0x170] sm:$0xff]
    %v343 = vld [vmem:[#allocation5 + $0x178] sm:$0xff]
    %v344 = vld [vmem:[#allocation5 + $0x180] sm:$0xff]
    %v345 = vld [vmem:[#allocation5 + $0x188] sm:$0xff]
    %v346 = vld [vmem:[#allocation5 + $0x190] sm:$0xff]
    %v347 = vld [vmem:[#allocation5 + $0x198] sm:$0xff]
    %v348 = vld [vmem:[#allocation5 + $0x1a0] sm:$0xff]
    %v349 = vld [vmem:[#allocation5 + $0x1a8] sm:$0xff]
    %v350 = vld [vmem:[#allocation5 + $0x1b0] sm:$0xff]
    %v351 = vld [vmem:[#allocation5 + $0x1b8] sm:$0xff]
    %v352 = vld [vmem:[#allocation5 + $0x1c0] sm:$0xff]
    %v353 = vld [vmem:[#allocation5 + $0x1c8] sm:$0xff]
    %v354 = vld [vmem:[#allocation5 + $0x1d0] sm:$0xff]
    %v355 = vld [vmem:[#allocation5 + $0x1d8] sm:$0xff]
    %v356 = vld [vmem:[#allocation5 + $0x1e0] sm:$0xff]
    %v357 = vld [vmem:[#allocation5 + $0x1e8] sm:$0xff]
    %v358 = vld [vmem:[#allocation5 + $0x1f0] sm:$0xff]
    %v359 = vld [vmem:[#allocation5 + $0x1f8] sm:$0xff]
    %v360 = vld [vmem:[#allocation5 + $0x200] sm:$0xff]
    %v361 = vld [vmem:[#allocation5 + $0x208] sm:$0xff]
    %v362 = vld [vmem:[#allocation5 + $0x210] sm:$0xff]
    %v363 = vld [vmem:[#allocation5 + $0x218] sm:$0xff]
    %v364 = vld [vmem:[#allocation5 + $0x220] sm:$0xff]
    %v365 = vld [vmem:[#allocation5 + $0x228] sm:$0xff]
    %v366 = vld [vmem:[#allocation5 + $0x230] sm:$0xff]
    %v367 = vld [vmem:[#allocation5 + $0x238] sm:$0xff]
    %v368 = vld [vmem:[#allocation5 + $0x240] sm:$0xff]
    %v369 = vld [vmem:[#allocation5 + $0x248] sm:$0xff]
    %v370 = vld [vmem:[#allocation5 + $0x250] sm:$0xff]
    %v371 = vld [vmem:[#allocation5 + $0x258] sm:$0xff]
    %v372 = vld [vmem:[#allocation5 + $0x260] sm:$0xff]
    %v373 = vld [vmem:[#allocation5 + $0x268] sm:$0xff]
    %v374 = vld [vmem:[#allocation5 + $0x270] sm:$0xff]
    %v375 = vld [vmem:[#allocation5 + $0x278] sm:$0xff]
    %v376 = vld [vmem:[#allocation5 + $0x280] sm:$0xff]
    %v377 = vld [vmem:[#allocation5 + $0x288] sm:$0xff]
    %v378 = vld [vmem:[#allocation5 + $0x290] sm:$0xff]
    %v379 = vld [vmem:[#allocation5 + $0x298] sm:$0xff]
    %v380 = vld [vmem:[#allocation5 + $0x2a0] sm:$0xff]
    %v381 = vld [vmem:[#allocation5 + $0x2a8] sm:$0xff]
    %v382 = vld [vmem:[#allocation5 + $0x2b0] sm:$0xff]
    %v383 = vld [vmem:[#allocation5 + $0x2b8] sm:$0xff]
    %v384 = vld [vmem:[#allocation5 + $0x2c0] sm:$0xff]
    %v385 = vld [vmem:[#allocation5 + $0x2c8] sm:$0xff]
    %v386 = vld [vmem:[#allocation5 + $0x2d0] sm:$0xff]
    %v387 = vld [vmem:[#allocation5 + $0x2d8] sm:$0xff]
    %v388 = vld [vmem:[#allocation5 + $0x2e0] sm:$0xff]
    %v389 = vld [vmem:[#allocation5 + $0x2e8] sm:$0xff]
    %v390 = vld [vmem:[#allocation5 + $0x2f0] sm:$0xff]
    %v391 = vld [vmem:[#allocation5 + $0x2f8] sm:$0xff]
    %v392 = vld [vmem:[#allocation5 + $0x300] sm:$0xff]
    %v393 = vld [vmem:[#allocation5 + $0x308] sm:$0xff]
    %v394 = vld [vmem:[#allocation5 + $0x310] sm:$0xff]
    %v395 = vld [vmem:[#allocation5 + $0x318] sm:$0xff]
    %v396 = vld [vmem:[#allocation5 + $0x320] sm:$0xff]
    %v397 = vld [vmem:[#allocation5 + $0x328] sm:$0xff]
    %v398 = vld [vmem:[#allocation5 + $0x330] sm:$0xff]
    %v399 = vld [vmem:[#allocation5 + $0x338] sm:$0xff]
    %v400 = vld [vmem:[#allocation5 + $0x340] sm:$0xff]
    %v401 = vld [vmem:[#allocation5 + $0x348] sm:$0xff]
    %v402 = vld [vmem:[#allocation5 + $0x350] sm:$0xff]
    %v403 = vld [vmem:[#allocation5 + $0x358] sm:$0xff]
    %v404 = vld [vmem:[#allocation5 + $0x360] sm:$0xff]
    %v405 = vld [vmem:[#allocation5 + $0x368] sm:$0xff]
    %v406 = vld [vmem:[#allocation5 + $0x370] sm:$0xff]
    %v407 = vld [vmem:[#allocation5 + $0x378] sm:$0xff]
    %v408 = vld [vmem:[#allocation5 + $0x380] sm:$0xff]
    %v409 = vld [vmem:[#allocation5 + $0x388] sm:$0xff]
    %v410 = vld [vmem:[#allocation5 + $0x390] sm:$0xff]
    %v411 = vld [vmem:[#allocation5 + $0x398] sm:$0xff]
    %v412 = vld [vmem:[#allocation5 + $0x3a0] sm:$0xff]
    %v413 = vld [vmem:[#allocation5 + $0x3a8] sm:$0xff]
    %v414 = vld [vmem:[#allocation5 + $0x3b0] sm:$0xff]
    %v415 = vld [vmem:[#allocation5 + $0x3b8] sm:$0xff]
    %v416 = vld [vmem:[#allocation5 + $0x3c0] sm:$0xff]
    %v417 = vld [vmem:[#allocation5 + $0x3c8] sm:$0xff]
    %v418 = vld [vmem:[#allocation5 + $0x3d0] sm:$0xff]
    %v419 = vld [vmem:[#allocation5 + $0x3d8] sm:$0xff]
    %v420 = vld [vmem:[#allocation5 + $0x3e0] sm:$0xff]
    %v421 = vld [vmem:[#allocation5 + $0x3e8] sm:$0xff]
    %v422 = vld [vmem:[#allocation5 + $0x3f0] sm:$0xff]
    %v423 = vld [vmem:[#allocation5 + $0x3f8] sm:$0xff]
    %v424 = vld [vmem:[#allocation5 + $0x400] sm:$0xff]
    %v425 = vld [vmem:[#allocation5 + $0x408] sm:$0xff]
    %v426 = vld [vmem:[#allocation5 + $0x410] sm:$0xff]
    %v427 = vld [vmem:[#allocation5 + $0x418] sm:$0xff]
    %v428 = vld [vmem:[#allocation5 + $0x420] sm:$0xff]
    %v429 = vld [vmem:[#allocation5 + $0x428] sm:$0xff]
    %v430 = vld [vmem:[#allocation5 + $0x430] sm:$0xff]
    %v431 = vld [vmem:[#allocation5 + $0x438] sm:$0xff]
    %v432 = vld [vmem:[#allocation5 + $0x440] sm:$0xff]
    %v433 = vld [vmem:[#allocation5 + $0x448] sm:$0xff]
    %v434 = vld [vmem:[#allocation5 + $0x450] sm:$0xff]
    %v435 = vld [vmem:[#allocation5 + $0x458] sm:$0xff]
    %v436 = vld [vmem:[#allocation5 + $0x460] sm:$0xff]
    %v437 = vld [vmem:[#allocation5 + $0x468] sm:$0xff]
    %v438 = vld [vmem:[#allocation5 + $0x470] sm:$0xff]
    %v439 = vld [vmem:[#allocation5 + $0x478] sm:$0xff]
    %v440 = vld [vmem:[#allocation5 + $0x480] sm:$0xff]
    %v441 = vld [vmem:[#allocation5 + $0x488] sm:$0xff]
    %v442 = vld [vmem:[#allocation5 + $0x490] sm:$0xff]
    %v443 = vld [vmem:[#allocation5 + $0x498] sm:$0xff]
    %v444 = vld [vmem:[#allocation5 + $0x4a0] sm:$0xff]
    %v445 = vld [vmem:[#allocation5 + $0x4a8] sm:$0xff]
    %v446 = vld [vmem:[#allocation5 + $0x4b0] sm:$0xff]
    %v447 = vld [vmem:[#allocation5 + $0x4b8] sm:$0xff]
    %v448 = vld [vmem:[#allocation5 + $0x4c0] sm:$0xff]
    %v449 = vld [vmem:[#allocation5 + $0x4c8] sm:$0xff]
    %v450 = vld [vmem:[#allocation5 + $0x4d0] sm:$0xff]
    %v451 = vld [vmem:[#allocation5 + $0x4d8] sm:$0xff]
    %v452 = vld [vmem:[#allocation5 + $0x4e0] sm:$0xff]
    %v453 = vld [vmem:[#allocation5 + $0x4e8] sm:$0xff]
    %v454 = vld [vmem:[#allocation5 + $0x4f0] sm:$0xff]
    %v455 = vld [vmem:[#allocation5 + $0x4f8] sm:$0xff]
    %v456 = vld [vmem:[#allocation5 + $0x500] sm:$0xff]
    %v457 = vld [vmem:[#allocation5 + $0x508] sm:$0xff]
    %v458 = vld [vmem:[#allocation5 + $0x510] sm:$0xff]
    %v459 = vld [vmem:[#allocation5 + $0x518] sm:$0xff]
    %v460 = vld [vmem:[#allocation5 + $0x520] sm:$0xff]
    %v461 = vld [vmem:[#allocation5 + $0x528] sm:$0xff]
    %v462 = vld [vmem:[#allocation5 + $0x530] sm:$0xff]
    %v463 = vld [vmem:[#allocation5 + $0x538] sm:$0xff]
    %v464 = vld [vmem:[#allocation5 + $0x540] sm:$0xff]
    %v465 = vld [vmem:[#allocation5 + $0x548] sm:$0xff]
    %v466 = vld [vmem:[#allocation5 + $0x550] sm:$0xff]
    %v467 = vld [vmem:[#allocation5 + $0x558] sm:$0xff]
    %v468 = vld [vmem:[#allocation5 + $0x560] sm:$0xff]
    %v469 = vld [vmem:[#allocation5 + $0x568] sm:$0xff]
    %v470 = vld [vmem:[#allocation5 + $0x570] sm:$0xff]
    %v471 = vld [vmem:[#allocation5 + $0x578] sm:$0xff]
    %v472 = vld [vmem:[#allocation5 + $0x580] sm:$0xff]
    %v473 = vld [vmem:[#allocation5 + $0x588] sm:$0xff]
    %v474 = vld [vmem:[#allocation5 + $0x590] sm:$0xff]
    %v475 = vld [vmem:[#allocation5 + $0x598] sm:$0xff]
    %v476 = vld [vmem:[#allocation5 + $0x5a0] sm:$0xff]
    %v477 = vld [vmem:[#allocation5 + $0x5a8] sm:$0xff]
    %v478 = vld [vmem:[#allocation5 + $0x5b0] sm:$0xff]
    %v479 = vld [vmem:[#allocation5 + $0x5b8] sm:$0xff]
    %v480 = vld [vmem:[#allocation5 + $0x5c0] sm:$0xff]
    %v481 = vld [vmem:[#allocation5 + $0x5c8] sm:$0xff]
    %v482 = vld [vmem:[#allocation5 + $0x5d0] sm:$0xff]
    %v483 = vld [vmem:[#allocation5 + $0x5d8] sm:$0xff]
    %v484 = vld [vmem:[#allocation5 + $0x5e0] sm:$0xff]
    %v485 = vld [vmem:[#allocation5 + $0x5e8] sm:$0xff]
    %v486 = vld [vmem:[#allocation5 + $0x5f0] sm:$0xff]
    %v487 = vld [vmem:[#allocation5 + $0x5f8] sm:$0xff]
    %v488 = vld [vmem:[#allocation5 + $0x600] sm:$0xff]
    %v489 = vld [vmem:[#allocation5 + $0x608] sm:$0xff]
    %v490 = vld [vmem:[#allocation5 + $0x610] sm:$0xff]
    %v491 = vld [vmem:[#allocation5 + $0x618] sm:$0xff]
    %v492 = vld [vmem:[#allocation5 + $0x620] sm:$0xff]
    %v493 = vld [vmem:[#allocation5 + $0x628] sm:$0xff]
    %v494 = vld [vmem:[#allocation5 + $0x630] sm:$0xff]
    %v495 = vld [vmem:[#allocation5 + $0x638] sm:$0xff]
    %v496 = vld [vmem:[#allocation5 + $0x640] sm:$0xff]
    %v497 = vld [vmem:[#allocation5 + $0x648] sm:$0xff]
    %v498 = vld [vmem:[#allocation5 + $0x650] sm:$0xff]
    %v499 = vld [vmem:[#allocation5 + $0x658] sm:$0xff]
    %v500 = vld [vmem:[#allocation5 + $0x660] sm:$0xff]
    %v501 = vld [vmem:[#allocation5 + $0x668] sm:$0xff]
    %v502 = vld [vmem:[#allocation5 + $0x670] sm:$0xff]
    %v503 = vld [vmem:[#allocation5 + $0x678] sm:$0xff]
    %v504 = vld [vmem:[#allocation5 + $0x680] sm:$0xff]
    %v505 = vld [vmem:[#allocation5 + $0x688] sm:$0xff]
    %v506 = vld [vmem:[#allocation5 + $0x690] sm:$0xff]
    %v507 = vld [vmem:[#allocation5 + $0x698] sm:$0xff]
    %v508 = vld [vmem:[#allocation5 + $0x6a0] sm:$0xff]
    %v509 = vld [vmem:[#allocation5 + $0x6a8] sm:$0xff]
    %v510 = vld [vmem:[#allocation5 + $0x6b0] sm:$0xff]
    %v511 = vld [vmem:[#allocation5 + $0x6b8] sm:$0xff]
    %v512 = vld [vmem:[#allocation5 + $0x6c0] sm:$0xff]
    %v513 = vld [vmem:[#allocation5 + $0x6c8] sm:$0xff]
    %v514 = vld [vmem:[#allocation5 + $0x6d0] sm:$0xff]
    %v515 = vld [vmem:[#allocation5 + $0x6d8] sm:$0xff]
    %v516 = vld [vmem:[#allocation5 + $0x6e0] sm:$0xff]
    %v517 = vld [vmem:[#allocation5 + $0x6e8] sm:$0xff]
    %v518 = vld [vmem:[#allocation5 + $0x6f0] sm:$0xff]
    %v519 = vld [vmem:[#allocation5 + $0x6f8] sm:$0xff]
    %v520 = vld [vmem:[#allocation7] sm:$0xf]
    %v522 = vperm.slane %v520, 0
    %v523 = vperm.slane %v520, 1
    %v524 = vperm.slane %v520, 2
    %v525 = vperm.slane %v520, 3
    %v658 = vunpack.c.l.b16 %v168
    %v659 = vunpack.c.h.b16 %v168
    %v660 = vunpack.c.l.b16 %v169
    %v661 = vunpack.c.h.b16 %v169
    %v662 = vunpack.c.l.b16 %v170
    %v663 = vunpack.c.h.b16 %v170
    %v664 = vunpack.c.l.b16 %v171
    %v665 = vunpack.c.l.b16 %v172
    %v666 = vunpack.c.h.b16 %v172
    %v667 = vunpack.c.l.b16 %v173
    %v668 = vunpack.c.h.b16 %v173
    %v669 = vunpack.c.l.b16 %v174
    %v670 = vunpack.c.h.b16 %v174
    %v671 = vunpack.c.l.b16 %v175
    %v672 = vunpack.c.l.b16 %v176
    %v673 = vunpack.c.h.b16 %v176
    %v674 = vunpack.c.l.b16 %v177
    %v675 = vunpack.c.h.b16 %v177
    %v676 = vunpack.c.l.b16 %v178
    %v677 = vunpack.c.h.b16 %v178
    %v678 = vunpack.c.l.b16 %v179
    %v679 = vunpack.c.l.b16 %v180
    %v680 = vunpack.c.h.b16 %v180
    %v681 = vunpack.c.l.b16 %v181
    %v682 = vunpack.c.h.b16 %v181
    %v683 = vunpack.c.l.b16 %v182
    %v684 = vunpack.c.h.b16 %v182
    %v685 = vunpack.c.l.b16 %v183
    %v686 = vunpack.c.l.b16 %v184
    %v687 = vunpack.c.h.b16 %v184
    %v688 = vunpack.c.l.b16 %v185
    %v689 = vunpack.c.h.b16 %v185
    %v690 = vunpack.c.l.b16 %v186
    %v691 = vunpack.c.h.b16 %v186
    %v692 = vunpack.c.l.b16 %v187
    %v693 = vunpack.c.l.b16 %v188
    %v694 = vunpack.c.h.b16 %v188
    %v695 = vunpack.c.l.b16 %v189
    %v696 = vunpack.c.h.b16 %v189
    %v697 = vunpack.c.l.b16 %v190
    %v698 = vunpack.c.h.b16 %v190
    %v699 = vunpack.c.l.b16 %v191
    %v700 = vunpack.c.l.b16 %v192
    %v701 = vunpack.c.h.b16 %v192
    %v702 = vunpack.c.l.b16 %v193
    %v703 = vunpack.c.h.b16 %v193
    %v704 = vunpack.c.l.b16 %v194
    %v705 = vunpack.c.h.b16 %v194
    %v706 = vunpack.c.l.b16 %v195
    %v707 = vunpack.c.l.b16 %v196
    %v708 = vunpack.c.h.b16 %v196
    %v709 = vunpack.c.l.b16 %v197
    %v710 = vunpack.c.h.b16 %v197
    %v711 = vunpack.c.l.b16 %v198
    %v712 = vunpack.c.h.b16 %v198
    %v713 = vunpack.c.l.b16 %v199
    %v714 = vunpack.c.l.b16 %v200
    %v715 = vunpack.c.h.b16 %v200
    %v716 = vunpack.c.l.b16 %v201
    %v717 = vunpack.c.h.b16 %v201
    %v718 = vunpack.c.l.b16 %v202
    %v719 = vunpack.c.h.b16 %v202
    %v720 = vunpack.c.l.b16 %v203
    %v721 = vunpack.c.l.b16 %v204
    %v722 = vunpack.c.h.b16 %v204
    %v723 = vunpack.c.l.b16 %v205
    %v724 = vunpack.c.h.b16 %v205
    %v725 = vunpack.c.l.b16 %v206
    %v726 = vunpack.c.h.b16 %v206
    %v727 = vunpack.c.l.b16 %v207
    %v728 = vunpack.c.l.b16 %v208
    %v729 = vunpack.c.h.b16 %v208
    %v730 = vunpack.c.l.b16 %v209
    %v731 = vunpack.c.h.b16 %v209
    %v732 = vunpack.c.l.b16 %v210
    %v733 = vunpack.c.h.b16 %v210
    %v734 = vunpack.c.l.b16 %v211
    %v735 = vunpack.c.l.b16 %v212
    %v736 = vunpack.c.h.b16 %v212
    %v737 = vunpack.c.l.b16 %v213
    %v738 = vunpack.c.h.b16 %v213
    %v739 = vunpack.c.l.b16 %v214
    %v740 = vunpack.c.h.b16 %v214
    %v741 = vunpack.c.l.b16 %v215
    %v742 = vunpack.c.l.b16 %v216
    %v743 = vunpack.c.h.b16 %v216
    %v744 = vunpack.c.l.b16 %v217
    %v745 = vunpack.c.h.b16 %v217
    %v746 = vunpack.c.l.b16 %v218
    %v747 = vunpack.c.h.b16 %v218
    %v748 = vunpack.c.l.b16 %v219
    %v749 = vunpack.c.l.b16 %v220
    %v750 = vunpack.c.h.b16 %v220
    %v751 = vunpack.c.l.b16 %v221
    %v752 = vunpack.c.h.b16 %v221
    %v753 = vunpack.c.l.b16 %v222
    %v754 = vunpack.c.h.b16 %v222
    %v755 = vunpack.c.l.b16 %v223
    %v756 = vunpack.c.l.b16 %v224
    %v757 = vunpack.c.h.b16 %v224
    %v758 = vunpack.c.l.b16 %v225
    %v759 = vunpack.c.h.b16 %v225
    %v760 = vunpack.c.l.b16 %v226
    %v761 = vunpack.c.h.b16 %v226
    %v762 = vunpack.c.l.b16 %v227
    %v763 = vunpack.c.l.b16 %v228
    %v764 = vunpack.c.h.b16 %v228
    %v765 = vunpack.c.l.b16 %v229
    %v766 = vunpack.c.h.b16 %v229
    %v767 = vunpack.c.l.b16 %v230
    %v768 = vunpack.c.h.b16 %v230
    %v769 = vunpack.c.l.b16 %v231
    %v770 = vunpack.c.l.b16 %v232
    %v771 = vunpack.c.h.b16 %v232
    %v772 = vunpack.c.l.b16 %v233
    %v773 = vunpack.c.h.b16 %v233
    %v774 = vunpack.c.l.b16 %v234
    %v775 = vunpack.c.h.b16 %v234
    %v776 = vunpack.c.l.b16 %v235
    %v777 = vunpack.c.l.b16 %v236
    %v778 = vunpack.c.h.b16 %v236
    %v779 = vunpack.c.l.b16 %v237
    %v780 = vunpack.c.h.b16 %v237
    %v781 = vunpack.c.l.b16 %v238
    %v782 = vunpack.c.h.b16 %v238
    %v783 = vunpack.c.l.b16 %v239
    %v784 = vunpack.c.l.b16 %v240
    %v785 = vunpack.c.h.b16 %v240
    %v786 = vunpack.c.l.b16 %v241
    %v787 = vunpack.c.h.b16 %v241
    %v788 = vunpack.c.l.b16 %v242
    %v789 = vunpack.c.h.b16 %v242
    %v790 = vunpack.c.l.b16 %v243
    %v791 = vunpack.c.l.b16 %v244
    %v792 = vunpack.c.h.b16 %v244
    %v793 = vunpack.c.l.b16 %v245
    %v794 = vunpack.c.h.b16 %v245
    %v795 = vunpack.c.l.b16 %v246
    %v796 = vunpack.c.h.b16 %v246
    %v797 = vunpack.c.l.b16 %v247
    %v798 = vunpack.c.l.b16 %v248
    %v799 = vunpack.c.h.b16 %v248
    %v800 = vunpack.c.l.b16 %v249
    %v801 = vunpack.c.h.b16 %v249
    %v802 = vunpack.c.l.b16 %v250
    %v803 = vunpack.c.h.b16 %v250
    %v804 = vunpack.c.l.b16 %v251
    %v805 = vunpack.c.l.b16 %v252
    %v806 = vunpack.c.h.b16 %v252
    %v807 = vunpack.c.l.b16 %v253
    %v808 = vunpack.c.h.b16 %v253
    %v809 = vunpack.c.l.b16 %v254
    %v810 = vunpack.c.h.b16 %v254
    %v811 = vunpack.c.l.b16 %v255
    %v812 = vunpack.c.l.b16 %v256
    %v813 = vunpack.c.h.b16 %v256
    %v814 = vunpack.c.l.b16 %v257
    %v815 = vunpack.c.h.b16 %v257
    %v816 = vunpack.c.l.b16 %v258
    %v817 = vunpack.c.h.b16 %v258
    %v818 = vunpack.c.l.b16 %v259
    %v819 = vunpack.c.l.b16 %v260
    %v820 = vunpack.c.h.b16 %v260
    %v821 = vunpack.c.l.b16 %v261
    %v822 = vunpack.c.h.b16 %v261
    %v823 = vunpack.c.l.b16 %v262
    %v824 = vunpack.c.h.b16 %v262
    %v825 = vunpack.c.l.b16 %v263
    %v826 = vunpack.c.l.b16 %v264
    %v827 = vunpack.c.h.b16 %v264
    %v828 = vunpack.c.l.b16 %v265
    %v829 = vunpack.c.h.b16 %v265
    %v830 = vunpack.c.l.b16 %v266
    %v831 = vunpack.c.h.b16 %v266
    %v832 = vunpack.c.l.b16 %v267
    %v833 = vunpack.c.l.b16 %v268
    %v834 = vunpack.c.h.b16 %v268
    %v835 = vunpack.c.l.b16 %v269
    %v836 = vunpack.c.h.b16 %v269
    %v837 = vunpack.c.l.b16 %v270
    %v838 = vunpack.c.h.b16 %v270
    %v839 = vunpack.c.l.b16 %v271
    %v840 = vunpack.c.l.b16 %v272
    %v841 = vunpack.c.h.b16 %v272
    %v842 = vunpack.c.l.b16 %v273
    %v843 = vunpack.c.h.b16 %v273
    %v844 = vunpack.c.l.b16 %v274
    %v845 = vunpack.c.h.b16 %v274
    %v846 = vunpack.c.l.b16 %v275
    %v847 = vunpack.c.l.b16 %v276
    %v848 = vunpack.c.h.b16 %v276
    %v849 = vunpack.c.l.b16 %v277
    %v850 = vunpack.c.h.b16 %v277
    %v851 = vunpack.c.l.b16 %v278
    %v852 = vunpack.c.h.b16 %v278
    %v853 = vunpack.c.l.b16 %v279
    %v854 = vunpack.c.l.b16 %v280
    %v855 = vunpack.c.h.b16 %v280
    %v856 = vunpack.c.l.b16 %v281
    %v857 = vunpack.c.h.b16 %v281
    %v858 = vunpack.c.l.b16 %v282
    %v859 = vunpack.c.h.b16 %v282
    %v860 = vunpack.c.l.b16 %v283
    %v861 = vunpack.c.l.b16 %v284
    %v862 = vunpack.c.h.b16 %v284
    %v863 = vunpack.c.l.b16 %v285
    %v864 = vunpack.c.h.b16 %v285
    %v865 = vunpack.c.l.b16 %v286
    %v866 = vunpack.c.h.b16 %v286
    %v867 = vunpack.c.l.b16 %v287
    %v868 = vunpack.c.l.b16 %v288
    %v869 = vunpack.c.h.b16 %v288
    %v870 = vunpack.c.l.b16 %v289
    %v871 = vunpack.c.h.b16 %v289
    %v872 = vunpack.c.l.b16 %v290
    %v873 = vunpack.c.h.b16 %v290
    %v874 = vunpack.c.l.b16 %v291
    %v875 = vunpack.c.l.b16 %v292
    %v876 = vunpack.c.h.b16 %v292
    %v877 = vunpack.c.l.b16 %v293
    %v878 = vunpack.c.h.b16 %v293
    %v879 = vunpack.c.l.b16 %v294
    %v880 = vunpack.c.h.b16 %v294
    %v881 = vunpack.c.l.b16 %v295
    %v882 = vpack.c.b16 %v665, %v658
    %v883 = vpack.c.b16 %v666, %v659
    %v884 = vpack.c.b16 %v667, %v660
    %v885 = vpack.c.b16 %v668, %v661
    %v886 = vpack.c.b16 %v669, %v662
    %v887 = vpack.c.b16 %v670, %v663
    %v888 = vpack.c.b16 %v671, %v664
    %v889 = vpack.c.b16 %v679, %v672
    %v890 = vpack.c.b16 %v680, %v673
    %v891 = vpack.c.b16 %v681, %v674
    %v892 = vpack.c.b16 %v682, %v675
    %v893 = vpack.c.b16 %v683, %v676
    %v894 = vpack.c.b16 %v684, %v677
    %v895 = vpack.c.b16 %v685, %v678
    %v896 = vpack.c.b16 %v693, %v686
    %v897 = vpack.c.b16 %v694, %v687
    %v898 = vpack.c.b16 %v695, %v688
    %v899 = vpack.c.b16 %v696, %v689
    %v900 = vpack.c.b16 %v697, %v690
    %v901 = vpack.c.b16 %v698, %v691
    %v902 = vpack.c.b16 %v699, %v692
    %v903 = vpack.c.b16 %v707, %v700
    %v904 = vpack.c.b16 %v708, %v701
    %v905 = vpack.c.b16 %v709, %v702
    %v906 = vpack.c.b16 %v710, %v703
    %v907 = vpack.c.b16 %v711, %v704
    %v908 = vpack.c.b16 %v712, %v705
    %v909 = vpack.c.b16 %v713, %v706
    %v910 = vpack.c.b16 %v721, %v714
    %v911 = vpack.c.b16 %v722, %v715
    %v912 = vpack.c.b16 %v723, %v716
    %v913 = vpack.c.b16 %v724, %v717
    %v914 = vpack.c.b16 %v725, %v718
    %v915 = vpack.c.b16 %v726, %v719
    %v916 = vpack.c.b16 %v727, %v720
    %v917 = vpack.c.b16 %v735, %v728
    %v918 = vpack.c.b16 %v736, %v729
    %v919 = vpack.c.b16 %v737, %v730
    %v920 = vpack.c.b16 %v738, %v731
    %v921 = vpack.c.b16 %v739, %v732
    %v922 = vpack.c.b16 %v740, %v733
    %v923 = vpack.c.b16 %v741, %v734
    %v924 = vpack.c.b16 %v749, %v742
    %v925 = vpack.c.b16 %v750, %v743
    %v926 = vpack.c.b16 %v751, %v744
    %v927 = vpack.c.b16 %v752, %v745
    %v928 = vpack.c.b16 %v753, %v746
    %v929 = vpack.c.b16 %v754, %v747
    %v930 = vpack.c.b16 %v755, %v748
    %v931 = vpack.c.b16 %v763, %v756
    %v932 = vpack.c.b16 %v764, %v757
    %v933 = vpack.c.b16 %v765, %v758
    %v934 = vpack.c.b16 %v766, %v759
    %v935 = vpack.c.b16 %v767, %v760
    %v936 = vpack.c.b16 %v768, %v761
    %v937 = vpack.c.b16 %v769, %v762
    %v938 = vpack.c.b16 %v777, %v770
    %v939 = vpack.c.b16 %v778, %v771
    %v940 = vpack.c.b16 %v779, %v772
    %v941 = vpack.c.b16 %v780, %v773
    %v942 = vpack.c.b16 %v781, %v774
    %v943 = vpack.c.b16 %v782, %v775
    %v944 = vpack.c.b16 %v783, %v776
    %v945 = vpack.c.b16 %v791, %v784
    %v946 = vpack.c.b16 %v792, %v785
    %v947 = vpack.c.b16 %v793, %v786
    %v948 = vpack.c.b16 %v794, %v787
    %v949 = vpack.c.b16 %v795, %v788
    %v950 = vpack.c.b16 %v796, %v789
    %v951 = vpack.c.b16 %v797, %v790
    %v952 = vpack.c.b16 %v805, %v798
    %v953 = vpack.c.b16 %v806, %v799
    %v954 = vpack.c.b16 %v807, %v800
    %v955 = vpack.c.b16 %v808, %v801
    %v956 = vpack.c.b16 %v809, %v802
    %v957 = vpack.c.b16 %v810, %v803
    %v958 = vpack.c.b16 %v811, %v804
    %v959 = vpack.c.b16 %v819, %v812
    %v960 = vpack.c.b16 %v820, %v813
    %v961 = vpack.c.b16 %v821, %v814
    %v962 = vpack.c.b16 %v822, %v815
    %v963 = vpack.c.b16 %v823, %v816
    %v964 = vpack.c.b16 %v824, %v817
    %v965 = vpack.c.b16 %v825, %v818
    %v966 = vpack.c.b16 %v833, %v826
    %v967 = vpack.c.b16 %v834, %v827
    %v968 = vpack.c.b16 %v835, %v828
    %v969 = vpack.c.b16 %v836, %v829
    %v970 = vpack.c.b16 %v837, %v830
    %v971 = vpack.c.b16 %v838, %v831
    %v972 = vpack.c.b16 %v839, %v832
    %v973 = vpack.c.b16 %v847, %v840
    %v974 = vpack.c.b16 %v848, %v841
    %v975 = vpack.c.b16 %v849, %v842
    %v976 = vpack.c.b16 %v850, %v843
    %v977 = vpack.c.b16 %v851, %v844
    %v978 = vpack.c.b16 %v852, %v845
    %v979 = vpack.c.b16 %v853, %v846
    %v980 = vpack.c.b16 %v861, %v854
    %v981 = vpack.c.b16 %v862, %v855
    %v982 = vpack.c.b16 %v863, %v856
    %v983 = vpack.c.b16 %v864, %v857
    %v984 = vpack.c.b16 %v865, %v858
    %v985 = vpack.c.b16 %v866, %v859
    %v986 = vpack.c.b16 %v867, %v860
    %v987 = vpack.c.b16 %v875, %v868
    %v988 = vpack.c.b16 %v876, %v869
    %v989 = vpack.c.b16 %v877, %v870
    %v990 = vpack.c.b16 %v878, %v871
    %v991 = vpack.c.b16 %v879, %v872
    %v992 = vpack.c.b16 %v880, %v873
    %v993 = vpack.c.b16 %v881, %v874
    %v1330 = vunpack.c.l.b16 %v296
    %v1331 = vunpack.c.h.b16 %v296
    %v1332 = vunpack.c.l.b16 %v297
    %v1333 = vunpack.c.h.b16 %v297
    %v1334 = vunpack.c.l.b16 %v298
    %v1335 = vunpack.c.h.b16 %v298
    %v1336 = vunpack.c.l.b16 %v299
    %v1337 = vunpack.c.h.b16 %v299
    %v1338 = vunpack.c.l.b16 %v300
    %v1339 = vunpack.c.h.b16 %v300
    %v1340 = vunpack.c.l.b16 %v301
    %v1341 = vunpack.c.h.b16 %v301
    %v1342 = vunpack.c.l.b16 %v302
    %v1343 = vunpack.c.h.b16 %v302
    %v1344 = vunpack.c.l.b16 %v303
    %v1345 = vunpack.c.h.b16 %v303
    %v1346 = vunpack.c.l.b16 %v304
    %v1347 = vunpack.c.h.b16 %v304
    %v1348 = vunpack.c.l.b16 %v305
    %v1349 = vunpack.c.h.b16 %v305
    %v1350 = vunpack.c.l.b16 %v306
    %v1351 = vunpack.c.h.b16 %v306
    %v1352 = vunpack.c.l.b16 %v307
    %v1353 = vunpack.c.h.b16 %v307
    %v1354 = vunpack.c.l.b16 %v308
    %v1355 = vunpack.c.h.b16 %v308
    %v1356 = vunpack.c.l.b16 %v309
    %v1357 = vunpack.c.h.b16 %v309
    %v1358 = vunpack.c.l.b16 %v310
    %v1359 = vunpack.c.h.b16 %v310
    %v1360 = vunpack.c.l.b16 %v311
    %v1361 = vunpack.c.h.b16 %v311
    %v1362 = vunpack.c.l.b16 %v312
    %v1363 = vunpack.c.h.b16 %v312
    %v1364 = vunpack.c.l.b16 %v313
    %v1365 = vunpack.c.h.b16 %v313
    %v1366 = vunpack.c.l.b16 %v314
    %v1367 = vunpack.c.h.b16 %v314
    %v1368 = vunpack.c.l.b16 %v315
    %v1369 = vunpack.c.h.b16 %v315
    %v1370 = vunpack.c.l.b16 %v316
    %v1371 = vunpack.c.h.b16 %v316
    %v1372 = vunpack.c.l.b16 %v317
    %v1373 = vunpack.c.h.b16 %v317
    %v1374 = vunpack.c.l.b16 %v318
    %v1375 = vunpack.c.h.b16 %v318
    %v1376 = vunpack.c.l.b16 %v319
    %v1377 = vunpack.c.h.b16 %v319
    %v1378 = vunpack.c.l.b16 %v320
    %v1379 = vunpack.c.h.b16 %v320
    %v1380 = vunpack.c.l.b16 %v321
    %v1381 = vunpack.c.h.b16 %v321
    %v1382 = vunpack.c.l.b16 %v322
    %v1383 = vunpack.c.h.b16 %v322
    %v1384 = vunpack.c.l.b16 %v323
    %v1385 = vunpack.c.h.b16 %v323
    %v1386 = vunpack.c.l.b16 %v324
    %v1387 = vunpack.c.h.b16 %v324
    %v1388 = vunpack.c.l.b16 %v325
    %v1389 = vunpack.c.h.b16 %v325
    %v1390 = vunpack.c.l.b16 %v326
    %v1391 = vunpack.c.h.b16 %v326
    %v1392 = vunpack.c.l.b16 %v327
    %v1393 = vunpack.c.h.b16 %v327
    %v1394 = vunpack.c.l.b16 %v328
    %v1395 = vunpack.c.h.b16 %v328
    %v1396 = vunpack.c.l.b16 %v329
    %v1397 = vunpack.c.h.b16 %v329
    %v1398 = vunpack.c.l.b16 %v330
    %v1399 = vunpack.c.h.b16 %v330
    %v1400 = vunpack.c.l.b16 %v331
    %v1401 = vunpack.c.h.b16 %v331
    %v1402 = vunpack.c.l.b16 %v332
    %v1403 = vunpack.c.h.b16 %v332
    %v1404 = vunpack.c.l.b16 %v333
    %v1405 = vunpack.c.h.b16 %v333
    %v1406 = vunpack.c.l.b16 %v334
    %v1407 = vunpack.c.h.b16 %v334
    %v1408 = vunpack.c.l.b16 %v335
    %v1409 = vunpack.c.h.b16 %v335
    %v1410 = vunpack.c.l.b16 %v336
    %v1411 = vunpack.c.h.b16 %v336
    %v1412 = vunpack.c.l.b16 %v337
    %v1413 = vunpack.c.h.b16 %v337
    %v1414 = vunpack.c.l.b16 %v338
    %v1415 = vunpack.c.h.b16 %v338
    %v1416 = vunpack.c.l.b16 %v339
    %v1417 = vunpack.c.h.b16 %v339
    %v1418 = vunpack.c.l.b16 %v340
    %v1419 = vunpack.c.h.b16 %v340
    %v1420 = vunpack.c.l.b16 %v341
    %v1421 = vunpack.c.h.b16 %v341
    %v1422 = vunpack.c.l.b16 %v342
    %v1423 = vunpack.c.h.b16 %v342
    %v1424 = vunpack.c.l.b16 %v343
    %v1425 = vunpack.c.h.b16 %v343
    %v1426 = vunpack.c.l.b16 %v344
    %v1427 = vunpack.c.h.b16 %v344
    %v1428 = vunpack.c.l.b16 %v345
    %v1429 = vunpack.c.h.b16 %v345
    %v1430 = vunpack.c.l.b16 %v346
    %v1431 = vunpack.c.h.b16 %v346
    %v1432 = vunpack.c.l.b16 %v347
    %v1433 = vunpack.c.h.b16 %v347
    %v1434 = vunpack.c.l.b16 %v348
    %v1435 = vunpack.c.h.b16 %v348
    %v1436 = vunpack.c.l.b16 %v349
    %v1437 = vunpack.c.h.b16 %v349
    %v1438 = vunpack.c.l.b16 %v350
    %v1439 = vunpack.c.h.b16 %v350
    %v1440 = vunpack.c.l.b16 %v351
    %v1441 = vunpack.c.h.b16 %v351
    %v1442 = vunpack.c.l.b16 %v352
    %v1443 = vunpack.c.h.b16 %v352
    %v1444 = vunpack.c.l.b16 %v353
    %v1445 = vunpack.c.h.b16 %v353
    %v1446 = vunpack.c.l.b16 %v354
    %v1447 = vunpack.c.h.b16 %v354
    %v1448 = vunpack.c.l.b16 %v355
    %v1449 = vunpack.c.h.b16 %v355
    %v1450 = vunpack.c.l.b16 %v356
    %v1451 = vunpack.c.h.b16 %v356
    %v1452 = vunpack.c.l.b16 %v357
    %v1453 = vunpack.c.h.b16 %v357
    %v1454 = vunpack.c.l.b16 %v358
    %v1455 = vunpack.c.h.b16 %v358
    %v1456 = vunpack.c.l.b16 %v359
    %v1457 = vunpack.c.h.b16 %v359
    %v1458 = vunpack.c.l.b16 %v360
    %v1459 = vunpack.c.h.b16 %v360
    %v1460 = vunpack.c.l.b16 %v361
    %v1461 = vunpack.c.h.b16 %v361
    %v1462 = vunpack.c.l.b16 %v362
    %v1463 = vunpack.c.h.b16 %v362
    %v1464 = vunpack.c.l.b16 %v363
    %v1465 = vunpack.c.h.b16 %v363
    %v1466 = vunpack.c.l.b16 %v364
    %v1467 = vunpack.c.h.b16 %v364
    %v1468 = vunpack.c.l.b16 %v365
    %v1469 = vunpack.c.h.b16 %v365
    %v1470 = vunpack.c.l.b16 %v366
    %v1471 = vunpack.c.h.b16 %v366
    %v1472 = vunpack.c.l.b16 %v367
    %v1473 = vunpack.c.h.b16 %v367
    %v1474 = vunpack.c.l.b16 %v368
    %v1475 = vunpack.c.h.b16 %v368
    %v1476 = vunpack.c.l.b16 %v369
    %v1477 = vunpack.c.h.b16 %v369
    %v1478 = vunpack.c.l.b16 %v370
    %v1479 = vunpack.c.h.b16 %v370
    %v1480 = vunpack.c.l.b16 %v371
    %v1481 = vunpack.c.h.b16 %v371
    %v1482 = vunpack.c.l.b16 %v372
    %v1483 = vunpack.c.h.b16 %v372
    %v1484 = vunpack.c.l.b16 %v373
    %v1485 = vunpack.c.h.b16 %v373
    %v1486 = vunpack.c.l.b16 %v374
    %v1487 = vunpack.c.h.b16 %v374
    %v1488 = vunpack.c.l.b16 %v375
    %v1489 = vunpack.c.h.b16 %v375
    %v1490 = vunpack.c.l.b16 %v376
    %v1491 = vunpack.c.h.b16 %v376
    %v1492 = vunpack.c.l.b16 %v377
    %v1493 = vunpack.c.h.b16 %v377
    %v1494 = vunpack.c.l.b16 %v378
    %v1495 = vunpack.c.h.b16 %v378
    %v1496 = vunpack.c.l.b16 %v379
    %v1497 = vunpack.c.h.b16 %v379
    %v1498 = vunpack.c.l.b16 %v380
    %v1499 = vunpack.c.h.b16 %v380
    %v1500 = vunpack.c.l.b16 %v381
    %v1501 = vunpack.c.h.b16 %v381
    %v1502 = vunpack.c.l.b16 %v382
    %v1503 = vunpack.c.h.b16 %v382
    %v1504 = vunpack.c.l.b16 %v383
    %v1505 = vunpack.c.h.b16 %v383
    %v1506 = vunpack.c.l.b16 %v384
    %v1507 = vunpack.c.h.b16 %v384
    %v1508 = vunpack.c.l.b16 %v385
    %v1509 = vunpack.c.h.b16 %v385
    %v1510 = vunpack.c.l.b16 %v386
    %v1511 = vunpack.c.h.b16 %v386
    %v1512 = vunpack.c.l.b16 %v387
    %v1513 = vunpack.c.h.b16 %v387
    %v1514 = vunpack.c.l.b16 %v388
    %v1515 = vunpack.c.h.b16 %v388
    %v1516 = vunpack.c.l.b16 %v389
    %v1517 = vunpack.c.h.b16 %v389
    %v1518 = vunpack.c.l.b16 %v390
    %v1519 = vunpack.c.h.b16 %v390
    %v1520 = vunpack.c.l.b16 %v391
    %v1521 = vunpack.c.h.b16 %v391
    %v1522 = vunpack.c.l.b16 %v392
    %v1523 = vunpack.c.h.b16 %v392
    %v1524 = vunpack.c.l.b16 %v393
    %v1525 = vunpack.c.h.b16 %v393
    %v1526 = vunpack.c.l.b16 %v394
    %v1527 = vunpack.c.h.b16 %v394
    %v1528 = vunpack.c.l.b16 %v395
    %v1529 = vunpack.c.h.b16 %v395
    %v1530 = vunpack.c.l.b16 %v396
    %v1531 = vunpack.c.h.b16 %v396
    %v1532 = vunpack.c.l.b16 %v397
    %v1533 = vunpack.c.h.b16 %v397
    %v1534 = vunpack.c.l.b16 %v398
    %v1535 = vunpack.c.h.b16 %v398
    %v1536 = vunpack.c.l.b16 %v399
    %v1537 = vunpack.c.h.b16 %v399
    %v1538 = vunpack.c.l.b16 %v400
    %v1539 = vunpack.c.h.b16 %v400
    %v1540 = vunpack.c.l.b16 %v401
    %v1541 = vunpack.c.h.b16 %v401
    %v1542 = vunpack.c.l.b16 %v402
    %v1543 = vunpack.c.h.b16 %v402
    %v1544 = vunpack.c.l.b16 %v403
    %v1545 = vunpack.c.h.b16 %v403
    %v1546 = vunpack.c.l.b16 %v404
    %v1547 = vunpack.c.h.b16 %v404
    %v1548 = vunpack.c.l.b16 %v405
    %v1549 = vunpack.c.h.b16 %v405
    %v1550 = vunpack.c.l.b16 %v406
    %v1551 = vunpack.c.h.b16 %v406
    %v1552 = vunpack.c.l.b16 %v407
    %v1553 = vunpack.c.h.b16 %v407
    %v1554 = vunpack.c.l.b16 %v408
    %v1555 = vunpack.c.h.b16 %v408
    %v1556 = vunpack.c.l.b16 %v409
    %v1557 = vunpack.c.h.b16 %v409
    %v1558 = vunpack.c.l.b16 %v410
    %v1559 = vunpack.c.h.b16 %v410
    %v1560 = vunpack.c.l.b16 %v411
    %v1561 = vunpack.c.h.b16 %v411
    %v1562 = vunpack.c.l.b16 %v412
    %v1563 = vunpack.c.h.b16 %v412
    %v1564 = vunpack.c.l.b16 %v413
    %v1565 = vunpack.c.h.b16 %v413
    %v1566 = vunpack.c.l.b16 %v414
    %v1567 = vunpack.c.h.b16 %v414
    %v1568 = vunpack.c.l.b16 %v415
    %v1569 = vunpack.c.h.b16 %v415
    %v1570 = vunpack.c.l.b16 %v416
    %v1571 = vunpack.c.h.b16 %v416
    %v1572 = vunpack.c.l.b16 %v417
    %v1573 = vunpack.c.h.b16 %v417
    %v1574 = vunpack.c.l.b16 %v418
    %v1575 = vunpack.c.h.b16 %v418
    %v1576 = vunpack.c.l.b16 %v419
    %v1577 = vunpack.c.h.b16 %v419
    %v1578 = vunpack.c.l.b16 %v420
    %v1579 = vunpack.c.h.b16 %v420
    %v1580 = vunpack.c.l.b16 %v421
    %v1581 = vunpack.c.h.b16 %v421
    %v1582 = vunpack.c.l.b16 %v422
    %v1583 = vunpack.c.h.b16 %v422
    %v1584 = vunpack.c.l.b16 %v423
    %v1585 = vunpack.c.h.b16 %v423
    %v1586 = vunpack.c.l.b16 %v424
    %v1587 = vunpack.c.h.b16 %v424
    %v1588 = vunpack.c.l.b16 %v425
    %v1589 = vunpack.c.h.b16 %v425
    %v1590 = vunpack.c.l.b16 %v426
    %v1591 = vunpack.c.h.b16 %v426
    %v1592 = vunpack.c.l.b16 %v427
    %v1593 = vunpack.c.h.b16 %v427
    %v1594 = vunpack.c.l.b16 %v428
    %v1595 = vunpack.c.h.b16 %v428
    %v1596 = vunpack.c.l.b16 %v429
    %v1597 = vunpack.c.h.b16 %v429
    %v1598 = vunpack.c.l.b16 %v430
    %v1599 = vunpack.c.h.b16 %v430
    %v1600 = vunpack.c.l.b16 %v431
    %v1601 = vunpack.c.h.b16 %v431
    %v1602 = vunpack.c.l.b16 %v432
    %v1603 = vunpack.c.h.b16 %v432
    %v1604 = vunpack.c.l.b16 %v433
    %v1605 = vunpack.c.h.b16 %v433
    %v1606 = vunpack.c.l.b16 %v434
    %v1607 = vunpack.c.h.b16 %v434
    %v1608 = vunpack.c.l.b16 %v435
    %v1609 = vunpack.c.h.b16 %v435
    %v1610 = vunpack.c.l.b16 %v436
    %v1611 = vunpack.c.h.b16 %v436
    %v1612 = vunpack.c.l.b16 %v437
    %v1613 = vunpack.c.h.b16 %v437
    %v1614 = vunpack.c.l.b16 %v438
    %v1615 = vunpack.c.h.b16 %v438
    %v1616 = vunpack.c.l.b16 %v439
    %v1617 = vunpack.c.h.b16 %v439
    %v1618 = vunpack.c.l.b16 %v440
    %v1619 = vunpack.c.h.b16 %v440
    %v1620 = vunpack.c.l.b16 %v441
    %v1621 = vunpack.c.h.b16 %v441
    %v1622 = vunpack.c.l.b16 %v442
    %v1623 = vunpack.c.h.b16 %v442
    %v1624 = vunpack.c.l.b16 %v443
    %v1625 = vunpack.c.h.b16 %v443
    %v1626 = vunpack.c.l.b16 %v444
    %v1627 = vunpack.c.h.b16 %v444
    %v1628 = vunpack.c.l.b16 %v445
    %v1629 = vunpack.c.h.b16 %v445
    %v1630 = vunpack.c.l.b16 %v446
    %v1631 = vunpack.c.h.b16 %v446
    %v1632 = vunpack.c.l.b16 %v447
    %v1633 = vunpack.c.h.b16 %v447
    %v1634 = vunpack.c.l.b16 %v448
    %v1635 = vunpack.c.h.b16 %v448
    %v1636 = vunpack.c.l.b16 %v449
    %v1637 = vunpack.c.h.b16 %v449
    %v1638 = vunpack.c.l.b16 %v450
    %v1639 = vunpack.c.h.b16 %v450
    %v1640 = vunpack.c.l.b16 %v451
    %v1641 = vunpack.c.h.b16 %v451
    %v1642 = vunpack.c.l.b16 %v452
    %v1643 = vunpack.c.h.b16 %v452
    %v1644 = vunpack.c.l.b16 %v453
    %v1645 = vunpack.c.h.b16 %v453
    %v1646 = vunpack.c.l.b16 %v454
    %v1647 = vunpack.c.h.b16 %v454
    %v1648 = vunpack.c.l.b16 %v455
    %v1649 = vunpack.c.h.b16 %v455
    %v1650 = vunpack.c.l.b16 %v456
    %v1651 = vunpack.c.h.b16 %v456
    %v1652 = vunpack.c.l.b16 %v457
    %v1653 = vunpack.c.h.b16 %v457
    %v1654 = vunpack.c.l.b16 %v458
    %v1655 = vunpack.c.h.b16 %v458
    %v1656 = vunpack.c.l.b16 %v459
    %v1657 = vunpack.c.h.b16 %v459
    %v1658 = vunpack.c.l.b16 %v460
    %v1659 = vunpack.c.h.b16 %v460
    %v1660 = vunpack.c.l.b16 %v461
    %v1661 = vunpack.c.h.b16 %v461
    %v1662 = vunpack.c.l.b16 %v462
    %v1663 = vunpack.c.h.b16 %v462
    %v1664 = vunpack.c.l.b16 %v463
    %v1665 = vunpack.c.h.b16 %v463
    %v1666 = vunpack.c.l.b16 %v464
    %v1667 = vunpack.c.h.b16 %v464
    %v1668 = vunpack.c.l.b16 %v465
    %v1669 = vunpack.c.h.b16 %v465
    %v1670 = vunpack.c.l.b16 %v466
    %v1671 = vunpack.c.h.b16 %v466
    %v1672 = vunpack.c.l.b16 %v467
    %v1673 = vunpack.c.h.b16 %v467
    %v1674 = vunpack.c.l.b16 %v468
    %v1675 = vunpack.c.h.b16 %v468
    %v1676 = vunpack.c.l.b16 %v469
    %v1677 = vunpack.c.h.b16 %v469
    %v1678 = vunpack.c.l.b16 %v470
    %v1679 = vunpack.c.h.b16 %v470
    %v1680 = vunpack.c.l.b16 %v471
    %v1681 = vunpack.c.h.b16 %v471
    %v1682 = vunpack.c.l.b16 %v472
    %v1683 = vunpack.c.h.b16 %v472
    %v1684 = vunpack.c.l.b16 %v473
    %v1685 = vunpack.c.h.b16 %v473
    %v1686 = vunpack.c.l.b16 %v474
    %v1687 = vunpack.c.h.b16 %v474
    %v1688 = vunpack.c.l.b16 %v475
    %v1689 = vunpack.c.h.b16 %v475
    %v1690 = vunpack.c.l.b16 %v476
    %v1691 = vunpack.c.h.b16 %v476
    %v1692 = vunpack.c.l.b16 %v477
    %v1693 = vunpack.c.h.b16 %v477
    %v1694 = vunpack.c.l.b16 %v478
    %v1695 = vunpack.c.h.b16 %v478
    %v1696 = vunpack.c.l.b16 %v479
    %v1697 = vunpack.c.h.b16 %v479
    %v1698 = vunpack.c.l.b16 %v480
    %v1699 = vunpack.c.h.b16 %v480
    %v1700 = vunpack.c.l.b16 %v481
    %v1701 = vunpack.c.h.b16 %v481
    %v1702 = vunpack.c.l.b16 %v482
    %v1703 = vunpack.c.h.b16 %v482
    %v1704 = vunpack.c.l.b16 %v483
    %v1705 = vunpack.c.h.b16 %v483
    %v1706 = vunpack.c.l.b16 %v484
    %v1707 = vunpack.c.h.b16 %v484
    %v1708 = vunpack.c.l.b16 %v485
    %v1709 = vunpack.c.h.b16 %v485
    %v1710 = vunpack.c.l.b16 %v486
    %v1711 = vunpack.c.h.b16 %v486
    %v1712 = vunpack.c.l.b16 %v487
    %v1713 = vunpack.c.h.b16 %v487
    %v1714 = vunpack.c.l.b16 %v488
    %v1715 = vunpack.c.h.b16 %v488
    %v1716 = vunpack.c.l.b16 %v489
    %v1717 = vunpack.c.h.b16 %v489
    %v1718 = vunpack.c.l.b16 %v490
    %v1719 = vunpack.c.h.b16 %v490
    %v1720 = vunpack.c.l.b16 %v491
    %v1721 = vunpack.c.h.b16 %v491
    %v1722 = vunpack.c.l.b16 %v492
    %v1723 = vunpack.c.h.b16 %v492
    %v1724 = vunpack.c.l.b16 %v493
    %v1725 = vunpack.c.h.b16 %v493
    %v1726 = vunpack.c.l.b16 %v494
    %v1727 = vunpack.c.h.b16 %v494
    %v1728 = vunpack.c.l.b16 %v495
    %v1729 = vunpack.c.h.b16 %v495
    %v1730 = vunpack.c.l.b16 %v496
    %v1731 = vunpack.c.h.b16 %v496
    %v1732 = vunpack.c.l.b16 %v497
    %v1733 = vunpack.c.h.b16 %v497
    %v1734 = vunpack.c.l.b16 %v498
    %v1735 = vunpack.c.h.b16 %v498
    %v1736 = vunpack.c.l.b16 %v499
    %v1737 = vunpack.c.h.b16 %v499
    %v1738 = vunpack.c.l.b16 %v500
    %v1739 = vunpack.c.h.b16 %v500
    %v1740 = vunpack.c.l.b16 %v501
    %v1741 = vunpack.c.h.b16 %v501
    %v1742 = vunpack.c.l.b16 %v502
    %v1743 = vunpack.c.h.b16 %v502
    %v1744 = vunpack.c.l.b16 %v503
    %v1745 = vunpack.c.h.b16 %v503
    %v1746 = vunpack.c.l.b16 %v504
    %v1747 = vunpack.c.h.b16 %v504
    %v1748 = vunpack.c.l.b16 %v505
    %v1749 = vunpack.c.h.b16 %v505
    %v1750 = vunpack.c.l.b16 %v506
    %v1751 = vunpack.c.h.b16 %v506
    %v1752 = vunpack.c.l.b16 %v507
    %v1753 = vunpack.c.h.b16 %v507
    %v1754 = vunpack.c.l.b16 %v508
    %v1755 = vunpack.c.h.b16 %v508
    %v1756 = vunpack.c.l.b16 %v509
    %v1757 = vunpack.c.h.b16 %v509
    %v1758 = vunpack.c.l.b16 %v510
    %v1759 = vunpack.c.h.b16 %v510
    %v1760 = vunpack.c.l.b16 %v511
    %v1761 = vunpack.c.h.b16 %v511
    %v1762 = vunpack.c.l.b16 %v512
    %v1763 = vunpack.c.h.b16 %v512
    %v1764 = vunpack.c.l.b16 %v513
    %v1765 = vunpack.c.h.b16 %v513
    %v1766 = vunpack.c.l.b16 %v514
    %v1767 = vunpack.c.h.b16 %v514
    %v1768 = vunpack.c.l.b16 %v515
    %v1769 = vunpack.c.h.b16 %v515
    %v1770 = vunpack.c.l.b16 %v516
    %v1771 = vunpack.c.h.b16 %v516
    %v1772 = vunpack.c.l.b16 %v517
    %v1773 = vunpack.c.h.b16 %v517
    %v1774 = vunpack.c.l.b16 %v518
    %v1775 = vunpack.c.h.b16 %v518
    %v1776 = vunpack.c.l.b16 %v519
    %v1777 = vunpack.c.h.b16 %v519
    %v1778 = vpack.c.b16 %v1334, %v1330
    %v1779 = vpack.c.b16 %v1335, %v1331
    %v1780 = vpack.c.b16 %v1336, %v1332
    %v1781 = vpack.c.b16 %v1337, %v1333
    %v1782 = vpack.c.b16 %v1342, %v1338
    %v1783 = vpack.c.b16 %v1343, %v1339
    %v1784 = vpack.c.b16 %v1344, %v1340
    %v1785 = vpack.c.b16 %v1345, %v1341
    %v1786 = vpack.c.b16 %v1350, %v1346
    %v1787 = vpack.c.b16 %v1351, %v1347
    %v1788 = vpack.c.b16 %v1352, %v1348
    %v1789 = vpack.c.b16 %v1353, %v1349
    %v1790 = vpack.c.b16 %v1358, %v1354
    %v1791 = vpack.c.b16 %v1359, %v1355
    %v1792 = vpack.c.b16 %v1360, %v1356
    %v1793 = vpack.c.b16 %v1361, %v1357
    %v1794 = vpack.c.b16 %v1366, %v1362
    %v1795 = vpack.c.b16 %v1367, %v1363
    %v1796 = vpack.c.b16 %v1368, %v1364
    %v1797 = vpack.c.b16 %v1369, %v1365
    %v1798 = vpack.c.b16 %v1374, %v1370
    %v1799 = vpack.c.b16 %v1375, %v1371
    %v1800 = vpack.c.b16 %v1376, %v1372
    %v1801 = vpack.c.b16 %v1377, %v1373
    %v1802 = vpack.c.b16 %v1382, %v1378
    %v1803 = vpack.c.b16 %v1383, %v1379
    %v1804 = vpack.c.b16 %v1384, %v1380
    %v1805 = vpack.c.b16 %v1385, %v1381
    %v1806 = vpack.c.b16 %v1390, %v1386
    %v1807 = vpack.c.b16 %v1391, %v1387
    %v1808 = vpack.c.b16 %v1392, %v1388
    %v1809 = vpack.c.b16 %v1393, %v1389
    %v1810 = vpack.c.b16 %v1398, %v1394
    %v1811 = vpack.c.b16 %v1399, %v1395
    %v1812 = vpack.c.b16 %v1400, %v1396
    %v1813 = vpack.c.b16 %v1401, %v1397
    %v1814 = vpack.c.b16 %v1406, %v1402
    %v1815 = vpack.c.b16 %v1407, %v1403
    %v1816 = vpack.c.b16 %v1408, %v1404
    %v1817 = vpack.c.b16 %v1409, %v1405
    %v1818 = vpack.c.b16 %v1414, %v1410
    %v1819 = vpack.c.b16 %v1415, %v1411
    %v1820 = vpack.c.b16 %v1416, %v1412
    %v1821 = vpack.c.b16 %v1417, %v1413
    %v1822 = vpack.c.b16 %v1422, %v1418
    %v1823 = vpack.c.b16 %v1423, %v1419
    %v1824 = vpack.c.b16 %v1424, %v1420
    %v1825 = vpack.c.b16 %v1425, %v1421
    %v1826 = vpack.c.b16 %v1430, %v1426
    %v1827 = vpack.c.b16 %v1431, %v1427
    %v1828 = vpack.c.b16 %v1432, %v1428
    %v1829 = vpack.c.b16 %v1433, %v1429
    %v1830 = vpack.c.b16 %v1438, %v1434
    %v1831 = vpack.c.b16 %v1439, %v1435
    %v1832 = vpack.c.b16 %v1440, %v1436
    %v1833 = vpack.c.b16 %v1441, %v1437
    %v1834 = vpack.c.b16 %v1446, %v1442
    %v1835 = vpack.c.b16 %v1447, %v1443
    %v1836 = vpack.c.b16 %v1448, %v1444
    %v1837 = vpack.c.b16 %v1449, %v1445
    %v1838 = vpack.c.b16 %v1454, %v1450
    %v1839 = vpack.c.b16 %v1455, %v1451
    %v1840 = vpack.c.b16 %v1456, %v1452
    %v1841 = vpack.c.b16 %v1457, %v1453
    %v1842 = vpack.c.b16 %v1462, %v1458
    %v1843 = vpack.c.b16 %v1463, %v1459
    %v1844 = vpack.c.b16 %v1464, %v1460
    %v1845 = vpack.c.b16 %v1465, %v1461
    %v1846 = vpack.c.b16 %v1470, %v1466
    %v1847 = vpack.c.b16 %v1471, %v1467
    %v1848 = vpack.c.b16 %v1472, %v1468
    %v1849 = vpack.c.b16 %v1473, %v1469
    %v1850 = vpack.c.b16 %v1478, %v1474
    %v1851 = vpack.c.b16 %v1479, %v1475
    %v1852 = vpack.c.b16 %v1480, %v1476
    %v1853 = vpack.c.b16 %v1481, %v1477
    %v1854 = vpack.c.b16 %v1486, %v1482
    %v1855 = vpack.c.b16 %v1487, %v1483
    %v1856 = vpack.c.b16 %v1488, %v1484
    %v1857 = vpack.c.b16 %v1489, %v1485
    %v1858 = vpack.c.b16 %v1494, %v1490
    %v1859 = vpack.c.b16 %v1495, %v1491
    %v1860 = vpack.c.b16 %v1496, %v1492
    %v1861 = vpack.c.b16 %v1497, %v1493
    %v1862 = vpack.c.b16 %v1502, %v1498
    %v1863 = vpack.c.b16 %v1503, %v1499
    %v1864 = vpack.c.b16 %v1504, %v1500
    %v1865 = vpack.c.b16 %v1505, %v1501
    %v1866 = vpack.c.b16 %v1510, %v1506
    %v1867 = vpack.c.b16 %v1511, %v1507
    %v1868 = vpack.c.b16 %v1512, %v1508
    %v1869 = vpack.c.b16 %v1513, %v1509
    %v1870 = vpack.c.b16 %v1518, %v1514
    %v1871 = vpack.c.b16 %v1519, %v1515
    %v1872 = vpack.c.b16 %v1520, %v1516
    %v1873 = vpack.c.b16 %v1521, %v1517
    %v1874 = vpack.c.b16 %v1526, %v1522
    %v1875 = vpack.c.b16 %v1527, %v1523
    %v1876 = vpack.c.b16 %v1528, %v1524
    %v1877 = vpack.c.b16 %v1529, %v1525
    %v1878 = vpack.c.b16 %v1534, %v1530
    %v1879 = vpack.c.b16 %v1535, %v1531
    %v1880 = vpack.c.b16 %v1536, %v1532
    %v1881 = vpack.c.b16 %v1537, %v1533
    %v1882 = vpack.c.b16 %v1542, %v1538
    %v1883 = vpack.c.b16 %v1543, %v1539
    %v1884 = vpack.c.b16 %v1544, %v1540
    %v1885 = vpack.c.b16 %v1545, %v1541
    %v1886 = vpack.c.b16 %v1550, %v1546
    %v1887 = vpack.c.b16 %v1551, %v1547
    %v1888 = vpack.c.b16 %v1552, %v1548
    %v1889 = vpack.c.b16 %v1553, %v1549
    %v1890 = vpack.c.b16 %v1558, %v1554
    %v1891 = vpack.c.b16 %v1559, %v1555
    %v1892 = vpack.c.b16 %v1560, %v1556
    %v1893 = vpack.c.b16 %v1561, %v1557
    %v1894 = vpack.c.b16 %v1566, %v1562
    %v1895 = vpack.c.b16 %v1567, %v1563
    %v1896 = vpack.c.b16 %v1568, %v1564
    %v1897 = vpack.c.b16 %v1569, %v1565
    %v1898 = vpack.c.b16 %v1574, %v1570
    %v1899 = vpack.c.b16 %v1575, %v1571
    %v1900 = vpack.c.b16 %v1576, %v1572
    %v1901 = vpack.c.b16 %v1577, %v1573
    %v1902 = vpack.c.b16 %v1582, %v1578
    %v1903 = vpack.c.b16 %v1583, %v1579
    %v1904 = vpack.c.b16 %v1584, %v1580
    %v1905 = vpack.c.b16 %v1585, %v1581
    %v1906 = vpack.c.b16 %v1590, %v1586
    %v1907 = vpack.c.b16 %v1591, %v1587
    %v1908 = vpack.c.b16 %v1592, %v1588
    %v1909 = vpack.c.b16 %v1593, %v1589
    %v1910 = vpack.c.b16 %v1598, %v1594
    %v1911 = vpack.c.b16 %v1599, %v1595
    %v1912 = vpack.c.b16 %v1600, %v1596
    %v1913 = vpack.c.b16 %v1601, %v1597
    %v1914 = vpack.c.b16 %v1606, %v1602
    %v1915 = vpack.c.b16 %v1607, %v1603
    %v1916 = vpack.c.b16 %v1608, %v1604
    %v1917 = vpack.c.b16 %v1609, %v1605
    %v1918 = vpack.c.b16 %v1614, %v1610
    %v1919 = vpack.c.b16 %v1615, %v1611
    %v1920 = vpack.c.b16 %v1616, %v1612
    %v1921 = vpack.c.b16 %v1617, %v1613
    %v1922 = vpack.c.b16 %v1622, %v1618
    %v1923 = vpack.c.b16 %v1623, %v1619
    %v1924 = vpack.c.b16 %v1624, %v1620
    %v1925 = vpack.c.b16 %v1625, %v1621
    %v1926 = vpack.c.b16 %v1630, %v1626
    %v1927 = vpack.c.b16 %v1631, %v1627
    %v1928 = vpack.c.b16 %v1632, %v1628
    %v1929 = vpack.c.b16 %v1633, %v1629
    %v1930 = vpack.c.b16 %v1638, %v1634
    %v1931 = vpack.c.b16 %v1639, %v1635
    %v1932 = vpack.c.b16 %v1640, %v1636
    %v1933 = vpack.c.b16 %v1641, %v1637
    %v1934 = vpack.c.b16 %v1646, %v1642
    %v1935 = vpack.c.b16 %v1647, %v1643
    %v1936 = vpack.c.b16 %v1648, %v1644
    %v1937 = vpack.c.b16 %v1649, %v1645
    %v1938 = vpack.c.b16 %v1654, %v1650
    %v1939 = vpack.c.b16 %v1655, %v1651
    %v1940 = vpack.c.b16 %v1656, %v1652
    %v1941 = vpack.c.b16 %v1657, %v1653
    %v1942 = vpack.c.b16 %v1662, %v1658
    %v1943 = vpack.c.b16 %v1663, %v1659
    %v1944 = vpack.c.b16 %v1664, %v1660
    %v1945 = vpack.c.b16 %v1665, %v1661
    %v1946 = vpack.c.b16 %v1670, %v1666
    %v1947 = vpack.c.b16 %v1671, %v1667
    %v1948 = vpack.c.b16 %v1672, %v1668
    %v1949 = vpack.c.b16 %v1673, %v1669
    %v1950 = vpack.c.b16 %v1678, %v1674
    %v1951 = vpack.c.b16 %v1679, %v1675
    %v1952 = vpack.c.b16 %v1680, %v1676
    %v1953 = vpack.c.b16 %v1681, %v1677
    %v1954 = vpack.c.b16 %v1686, %v1682
    %v1955 = vpack.c.b16 %v1687, %v1683
    %v1956 = vpack.c.b16 %v1688, %v1684
    %v1957 = vpack.c.b16 %v1689, %v1685
    %v1958 = vpack.c.b16 %v1694, %v1690
    %v1959 = vpack.c.b16 %v1695, %v1691
    %v1960 = vpack.c.b16 %v1696, %v1692
    %v1961 = vpack.c.b16 %v1697, %v1693
    %v1962 = vpack.c.b16 %v1702, %v1698
    %v1963 = vpack.c.b16 %v1703, %v1699
    %v1964 = vpack.c.b16 %v1704, %v1700
    %v1965 = vpack.c.b16 %v1705, %v1701
    %v1966 = vpack.c.b16 %v1710, %v1706
    %v1967 = vpack.c.b16 %v1711, %v1707
    %v1968 = vpack.c.b16 %v1712, %v1708
    %v1969 = vpack.c.b16 %v1713, %v1709
    %v1970 = vpack.c.b16 %v1718, %v1714
    %v1971 = vpack.c.b16 %v1719, %v1715
    %v1972 = vpack.c.b16 %v1720, %v1716
    %v1973 = vpack.c.b16 %v1721, %v1717
    %v1974 = vpack.c.b16 %v1726, %v1722
    %v1975 = vpack.c.b16 %v1727, %v1723
    %v1976 = vpack.c.b16 %v1728, %v1724
    %v1977 = vpack.c.b16 %v1729, %v1725
    %v1978 = vpack.c.b16 %v1734, %v1730
    %v1979 = vpack.c.b16 %v1735, %v1731
    %v1980 = vpack.c.b16 %v1736, %v1732
    %v1981 = vpack.c.b16 %v1737, %v1733
    %v1982 = vpack.c.b16 %v1742, %v1738
    %v1983 = vpack.c.b16 %v1743, %v1739
    %v1984 = vpack.c.b16 %v1744, %v1740
    %v1985 = vpack.c.b16 %v1745, %v1741
    %v1986 = vpack.c.b16 %v1750, %v1746
    %v1987 = vpack.c.b16 %v1751, %v1747
    %v1988 = vpack.c.b16 %v1752, %v1748
    %v1989 = vpack.c.b16 %v1753, %v1749
    %v1990 = vpack.c.b16 %v1758, %v1754
    %v1991 = vpack.c.b16 %v1759, %v1755
    %v1992 = vpack.c.b16 %v1760, %v1756
    %v1993 = vpack.c.b16 %v1761, %v1757
    %v1994 = vpack.c.b16 %v1766, %v1762
    %v1995 = vpack.c.b16 %v1767, %v1763
    %v1996 = vpack.c.b16 %v1768, %v1764
    %v1997 = vpack.c.b16 %v1769, %v1765
    %v1998 = vpack.c.b16 %v1774, %v1770
    %v1999 = vpack.c.b16 %v1775, %v1771
    %v2000 = vpack.c.b16 %v1776, %v1772
    %v2001 = vpack.c.b16 %v1777, %v1773
    %2226 = vmatpush.bf16.msra.mxu0 %v1806
    %2227 = vmatpush.bf16.msra.mxu0 %v1802
    %2228 = vmatpush.bf16.msra.mxu0 %v1798
    %2229 = vmatpush.bf16.msra.mxu0 %v1794
    %2230 = vmatpush.bf16.msra.mxu0 %v1790
    %2231 = vmatpush.bf16.msra.mxu0 %v1786
    %2232 = vmatpush.bf16.msra.mxu0 %v1782
    %2233 = vmatpush.bf16.msra.mxu0 %v1778
    %2234 = vmatmul.bf16.gmra.mxu0 %v882
    %v2235 = vpop.f32.mrf.mxu0
    %v2236 = vadd.f32 %v522, %v2235
    %v2237 = vpop.f32.mrf.mxu0
    %v2238 = vadd.f32 %v522, %v2237
    %2239 = vmatmul.bf16.gmra.mxu0 %v889
    %v2240 = vpop.f32.mrf.mxu0
    %v2241 = vadd.f32 %v522, %v2240
    %v2242 = vpop.f32.mrf.mxu0
    %v2243 = vadd.f32 %v522, %v2242
    %2244 = vmatmul.bf16.gmra.mxu0 %v896
    %v2245 = vpop.f32.mrf.mxu0
    %v2246 = vadd.f32 %v522, %v2245
    %v2247 = vpop.f32.mrf.mxu0
    %v2248 = vadd.f32 %v522, %v2247
    %2249 = vmatmul.bf16.gmra.mxu0 %v903
    %v2250 = vpop.f32.mrf.mxu0
    %v2251 = vadd.f32 %v522, %v2250
    %v2252 = vpop.f32.mrf.mxu0
    %v2253 = vadd.f32 %v522, %v2252
    %2254 = vmatmul.bf16.gmra.mxu0 %v910
    %v2255 = vpop.f32.mrf.mxu0
    %v2256 = vadd.f32 %v522, %v2255
    %v2257 = vpop.f32.mrf.mxu0
    %v2258 = vadd.f32 %v522, %v2257
    %2259 = vmatmul.bf16.gmra.mxu0 %v917
    %v2260 = vpop.f32.mrf.mxu0
    %v2261 = vadd.f32 %v522, %v2260
    %v2262 = vpop.f32.mrf.mxu0
    %v2263 = vadd.f32 %v522, %v2262
    %2264 = vmatmul.bf16.gmra.mxu0 %v924
    %v2265 = vpop.f32.mrf.mxu0
    %v2266 = vadd.f32 %v522, %v2265
    %v2267 = vpop.f32.mrf.mxu0
    %v2268 = vadd.f32 %v522, %v2267
    %2269 = vmatmul.bf16.gmra.mxu0 %v931
    %v2270 = vpop.f32.mrf.mxu0
    %v2271 = vadd.f32 %v522, %v2270
    %v2272 = vpop.f32.mrf.mxu0
    %v2273 = vadd.f32 %v522, %v2272
    %2274 = vmatmul.bf16.gmra.mxu0 %v938
    %v2275 = vpop.f32.mrf.mxu0
    %v2276 = vadd.f32 %v522, %v2275
    %v2277 = vpop.f32.mrf.mxu0
    %v2278 = vadd.f32 %v522, %v2277
    %2279 = vmatmul.bf16.gmra.mxu0 %v945
    %v2280 = vpop.f32.mrf.mxu0
    %v2281 = vadd.f32 %v522, %v2280
    %v2282 = vpop.f32.mrf.mxu0
    %v2283 = vadd.f32 %v522, %v2282
    %2284 = vmatmul.bf16.gmra.mxu0 %v952
    %v2285 = vpop.f32.mrf.mxu0
    %v2286 = vadd.f32 %v522, %v2285
    %v2287 = vpop.f32.mrf.mxu0
    %v2288 = vadd.f32 %v522, %v2287
    %2289 = vmatmul.bf16.gmra.mxu0 %v959
    %v2290 = vpop.f32.mrf.mxu0
    %v2291 = vadd.f32 %v522, %v2290
    %v2292 = vpop.f32.mrf.mxu0
    %v2293 = vadd.f32 %v522, %v2292
    %2294 = vmatmul.bf16.gmra.mxu0 %v966
    %v2295 = vpop.f32.mrf.mxu0
    %v2296 = vadd.f32 %v522, %v2295
    %v2297 = vpop.f32.mrf.mxu0
    %v2298 = vadd.f32 %v522, %v2297
    %2299 = vmatmul.bf16.gmra.mxu0 %v973
    %v2300 = vpop.f32.mrf.mxu0
    %v2301 = vadd.f32 %v522, %v2300
    %v2302 = vpop.f32.mrf.mxu0
    %v2303 = vadd.f32 %v522, %v2302
    %2304 = vmatmul.bf16.gmra.mxu0 %v980
    %v2305 = vpop.f32.mrf.mxu0
    %v2306 = vadd.f32 %v522, %v2305
    %v2307 = vpop.f32.mrf.mxu0
    %v2308 = vadd.f32 %v522, %v2307
    %2309 = vmatmul.bf16.gmra.mxu0 %v987
    %v2310 = vpop.f32.mrf.mxu0
    %v2311 = vadd.f32 %v522, %v2310
    %v2312 = vpop.f32.mrf.mxu0
    %v2313 = vadd.f32 %v522, %v2312
    %2314 = vdwg.mxu0
    %2315 = vmatpush.bf16.msra.mxu0 %v1838
    %2316 = vmatpush.bf16.msra.mxu0 %v1834
    %2317 = vmatpush.bf16.msra.mxu0 %v1830
    %2318 = vmatpush.bf16.msra.mxu0 %v1826
    %2319 = vmatpush.bf16.msra.mxu0 %v1822
    %2320 = vmatpush.bf16.msra.mxu0 %v1818
    %2321 = vmatpush.bf16.msra.mxu0 %v1814
    %2322 = vmatpush.bf16.msra.mxu0 %v1810
    %2323 = vmatmul.bf16.gmra.mxu0 %v883
    %v2324 = vpop.f32.mrf.mxu0
    %v2325 = vadd.f32 %v2236, %v2324
    %v2326 = vpop.f32.mrf.mxu0
    %v2327 = vadd.f32 %v2238, %v2326
    %2328 = vmatmul.bf16.gmra.mxu0 %v890
    %v2329 = vpop.f32.mrf.mxu0
    %v2330 = vadd.f32 %v2241, %v2329
    %v2331 = vpop.f32.mrf.mxu0
    %v2332 = vadd.f32 %v2243, %v2331
    %2333 = vmatmul.bf16.gmra.mxu0 %v897
    %v2334 = vpop.f32.mrf.mxu0
    %v2335 = vadd.f32 %v2246, %v2334
    %v2336 = vpop.f32.mrf.mxu0
    %v2337 = vadd.f32 %v2248, %v2336
    %2338 = vmatmul.bf16.gmra.mxu0 %v904
    %v2339 = vpop.f32.mrf.mxu0
    %v2340 = vadd.f32 %v2251, %v2339
    %v2341 = vpop.f32.mrf.mxu0
    %v2342 = vadd.f32 %v2253, %v2341
    %2343 = vmatmul.bf16.gmra.mxu0 %v911
    %v2344 = vpop.f32.mrf.mxu0
    %v2345 = vadd.f32 %v2256, %v2344
    %v2346 = vpop.f32.mrf.mxu0
    %v2347 = vadd.f32 %v2258, %v2346
    %2348 = vmatmul.bf16.gmra.mxu0 %v918
    %v2349 = vpop.f32.mrf.mxu0
    %v2350 = vadd.f32 %v2261, %v2349
    %v2351 = vpop.f32.mrf.mxu0
    %v2352 = vadd.f32 %v2263, %v2351
    %2353 = vmatmul.bf16.gmra.mxu0 %v925
    %v2354 = vpop.f32.mrf.mxu0
    %v2355 = vadd.f32 %v2266, %v2354
    %v2356 = vpop.f32.mrf.mxu0
    %v2357 = vadd.f32 %v2268, %v2356
    %2358 = vmatmul.bf16.gmra.mxu0 %v932
    %v2359 = vpop.f32.mrf.mxu0
    %v2360 = vadd.f32 %v2271, %v2359
    %v2361 = vpop.f32.mrf.mxu0
    %v2362 = vadd.f32 %v2273, %v2361
    %2363 = vmatmul.bf16.gmra.mxu0 %v939
    %v2364 = vpop.f32.mrf.mxu0
    %v2365 = vadd.f32 %v2276, %v2364
    %v2366 = vpop.f32.mrf.mxu0
    %v2367 = vadd.f32 %v2278, %v2366
    %2368 = vmatmul.bf16.gmra.mxu0 %v946
    %v2369 = vpop.f32.mrf.mxu0
    %v2370 = vadd.f32 %v2281, %v2369
    %v2371 = vpop.f32.mrf.mxu0
    %v2372 = vadd.f32 %v2283, %v2371
    %2373 = vmatmul.bf16.gmra.mxu0 %v953
    %v2374 = vpop.f32.mrf.mxu0
    %v2375 = vadd.f32 %v2286, %v2374
    %v2376 = vpop.f32.mrf.mxu0
    %v2377 = vadd.f32 %v2288, %v2376
    %2378 = vmatmul.bf16.gmra.mxu0 %v960
    %v2379 = vpop.f32.mrf.mxu0
    %v2380 = vadd.f32 %v2291, %v2379
    %v2381 = vpop.f32.mrf.mxu0
    %v2382 = vadd.f32 %v2293, %v2381
    %2383 = vmatmul.bf16.gmra.mxu0 %v967
    %v2384 = vpop.f32.mrf.mxu0
    %v2385 = vadd.f32 %v2296, %v2384
    %v2386 = vpop.f32.mrf.mxu0
    %v2387 = vadd.f32 %v2298, %v2386
    %2388 = vmatmul.bf16.gmra.mxu0 %v974
    %v2389 = vpop.f32.mrf.mxu0
    %v2390 = vadd.f32 %v2301, %v2389
    %v2391 = vpop.f32.mrf.mxu0
    %v2392 = vadd.f32 %v2303, %v2391
    %2393 = vmatmul.bf16.gmra.mxu0 %v981
    %v2394 = vpop.f32.mrf.mxu0
    %v2395 = vadd.f32 %v2306, %v2394
    %v2396 = vpop.f32.mrf.mxu0
    %v2397 = vadd.f32 %v2308, %v2396
    %2398 = vmatmul.bf16.gmra.mxu0 %v988
    %v2399 = vpop.f32.mrf.mxu0
    %v2400 = vadd.f32 %v2311, %v2399
    %v2401 = vpop.f32.mrf.mxu0
    %v2402 = vadd.f32 %v2313, %v2401
    %2403 = vdwg.mxu0
    %2404 = vmatpush.bf16.msra.mxu0 %v1870
    %2405 = vmatpush.bf16.msra.mxu0 %v1866
    %2406 = vmatpush.bf16.msra.mxu0 %v1862
    %2407 = vmatpush.bf16.msra.mxu0 %v1858
    %2408 = vmatpush.bf16.msra.mxu0 %v1854
    %2409 = vmatpush.bf16.msra.mxu0 %v1850
    %2410 = vmatpush.bf16.msra.mxu0 %v1846
    %2411 = vmatpush.bf16.msra.mxu0 %v1842
    %2412 = vmatmul.bf16.gmra.mxu0 %v884
    %v2413 = vpop.f32.mrf.mxu0
    %v2414 = vadd.f32 %v2325, %v2413
    %v2415 = vpop.f32.mrf.mxu0
    %v2416 = vadd.f32 %v2327, %v2415
    %2417 = vmatmul.bf16.gmra.mxu0 %v891
    %v2418 = vpop.f32.mrf.mxu0
    %v2419 = vadd.f32 %v2330, %v2418
    %v2420 = vpop.f32.mrf.mxu0
    %v2421 = vadd.f32 %v2332, %v2420
    %2422 = vmatmul.bf16.gmra.mxu0 %v898
    %v2423 = vpop.f32.mrf.mxu0
    %v2424 = vadd.f32 %v2335, %v2423
    %v2425 = vpop.f32.mrf.mxu0
    %v2426 = vadd.f32 %v2337, %v2425
    %2427 = vmatmul.bf16.gmra.mxu0 %v905
    %v2428 = vpop.f32.mrf.mxu0
    %v2429 = vadd.f32 %v2340, %v2428
    %v2430 = vpop.f32.mrf.mxu0
    %v2431 = vadd.f32 %v2342, %v2430
    %2432 = vmatmul.bf16.gmra.mxu0 %v912
    %v2433 = vpop.f32.mrf.mxu0
    %v2434 = vadd.f32 %v2345, %v2433
    %v2435 = vpop.f32.mrf.mxu0
    %v2436 = vadd.f32 %v2347, %v2435
    %2437 = vmatmul.bf16.gmra.mxu0 %v919
    %v2438 = vpop.f32.mrf.mxu0
    %v2439 = vadd.f32 %v2350, %v2438
    %v2440 = vpop.f32.mrf.mxu0
    %v2441 = vadd.f32 %v2352, %v2440
    %2442 = vmatmul.bf16.gmra.mxu0 %v926
    %v2443 = vpop.f32.mrf.mxu0
    %v2444 = vadd.f32 %v2355, %v2443
    %v2445 = vpop.f32.mrf.mxu0
    %v2446 = vadd.f32 %v2357, %v2445
    %2447 = vmatmul.bf16.gmra.mxu0 %v933
    %v2448 = vpop.f32.mrf.mxu0
    %v2449 = vadd.f32 %v2360, %v2448
    %v2450 = vpop.f32.mrf.mxu0
    %v2451 = vadd.f32 %v2362, %v2450
    %2452 = vmatmul.bf16.gmra.mxu0 %v940
    %v2453 = vpop.f32.mrf.mxu0
    %v2454 = vadd.f32 %v2365, %v2453
    %v2455 = vpop.f32.mrf.mxu0
    %v2456 = vadd.f32 %v2367, %v2455
    %2457 = vmatmul.bf16.gmra.mxu0 %v947
    %v2458 = vpop.f32.mrf.mxu0
    %v2459 = vadd.f32 %v2370, %v2458
    %v2460 = vpop.f32.mrf.mxu0
    %v2461 = vadd.f32 %v2372, %v2460
    %2462 = vmatmul.bf16.gmra.mxu0 %v954
    %v2463 = vpop.f32.mrf.mxu0
    %v2464 = vadd.f32 %v2375, %v2463
    %v2465 = vpop.f32.mrf.mxu0
    %v2466 = vadd.f32 %v2377, %v2465
    %2467 = vmatmul.bf16.gmra.mxu0 %v961
    %v2468 = vpop.f32.mrf.mxu0
    %v2469 = vadd.f32 %v2380, %v2468
    %v2470 = vpop.f32.mrf.mxu0
    %v2471 = vadd.f32 %v2382, %v2470
    %2472 = vmatmul.bf16.gmra.mxu0 %v968
    %v2473 = vpop.f32.mrf.mxu0
    %v2474 = vadd.f32 %v2385, %v2473
    %v2475 = vpop.f32.mrf.mxu0
    %v2476 = vadd.f32 %v2387, %v2475
    %2477 = vmatmul.bf16.gmra.mxu0 %v975
    %v2478 = vpop.f32.mrf.mxu0
    %v2479 = vadd.f32 %v2390, %v2478
    %v2480 = vpop.f32.mrf.mxu0
    %v2481 = vadd.f32 %v2392, %v2480
    %2482 = vmatmul.bf16.gmra.mxu0 %v982
    %v2483 = vpop.f32.mrf.mxu0
    %v2484 = vadd.f32 %v2395, %v2483
    %v2485 = vpop.f32.mrf.mxu0
    %v2486 = vadd.f32 %v2397, %v2485
    %2487 = vmatmul.bf16.gmra.mxu0 %v989
    %v2488 = vpop.f32.mrf.mxu0
    %v2489 = vadd.f32 %v2400, %v2488
    %v2490 = vpop.f32.mrf.mxu0
    %v2491 = vadd.f32 %v2402, %v2490
    %2492 = vdwg.mxu0
    %2493 = vmatpush.bf16.msra.mxu0 %v1902
    %2494 = vmatpush.bf16.msra.mxu0 %v1898
    %2495 = vmatpush.bf16.msra.mxu0 %v1894
    %2496 = vmatpush.bf16.msra.mxu0 %v1890
    %2497 = vmatpush.bf16.msra.mxu0 %v1886
    %2498 = vmatpush.bf16.msra.mxu0 %v1882
    %2499 = vmatpush.bf16.msra.mxu0 %v1878
    %2500 = vmatpush.bf16.msra.mxu0 %v1874
    %2501 = vmatmul.bf16.gmra.mxu0 %v885
    %v2502 = vpop.f32.mrf.mxu0
    %v2503 = vadd.f32 %v2414, %v2502
    %v2504 = vpop.f32.mrf.mxu0
    %v2505 = vadd.f32 %v2416, %v2504
    %2506 = vmatmul.bf16.gmra.mxu0 %v892
    %v2507 = vpop.f32.mrf.mxu0
    %v2508 = vadd.f32 %v2419, %v2507
    %v2509 = vpop.f32.mrf.mxu0
    %v2510 = vadd.f32 %v2421, %v2509
    %2511 = vmatmul.bf16.gmra.mxu0 %v899
    %v2512 = vpop.f32.mrf.mxu0
    %v2513 = vadd.f32 %v2424, %v2512
    %v2514 = vpop.f32.mrf.mxu0
    %v2515 = vadd.f32 %v2426, %v2514
    %2516 = vmatmul.bf16.gmra.mxu0 %v906
    %v2517 = vpop.f32.mrf.mxu0
    %v2518 = vadd.f32 %v2429, %v2517
    %v2519 = vpop.f32.mrf.mxu0
    %v2520 = vadd.f32 %v2431, %v2519
    %2521 = vmatmul.bf16.gmra.mxu0 %v913
    %v2522 = vpop.f32.mrf.mxu0
    %v2523 = vadd.f32 %v2434, %v2522
    %v2524 = vpop.f32.mrf.mxu0
    %v2525 = vadd.f32 %v2436, %v2524
    %2526 = vmatmul.bf16.gmra.mxu0 %v920
    %v2527 = vpop.f32.mrf.mxu0
    %v2528 = vadd.f32 %v2439, %v2527
    %v2529 = vpop.f32.mrf.mxu0
    %v2530 = vadd.f32 %v2441, %v2529
    %2531 = vmatmul.bf16.gmra.mxu0 %v927
    %v2532 = vpop.f32.mrf.mxu0
    %v2533 = vadd.f32 %v2444, %v2532
    %v2534 = vpop.f32.mrf.mxu0
    %v2535 = vadd.f32 %v2446, %v2534
    %2536 = vmatmul.bf16.gmra.mxu0 %v934
    %v2537 = vpop.f32.mrf.mxu0
    %v2538 = vadd.f32 %v2449, %v2537
    %v2539 = vpop.f32.mrf.mxu0
    %v2540 = vadd.f32 %v2451, %v2539
    %2541 = vmatmul.bf16.gmra.mxu0 %v941
    %v2542 = vpop.f32.mrf.mxu0
    %v2543 = vadd.f32 %v2454, %v2542
    %v2544 = vpop.f32.mrf.mxu0
    %v2545 = vadd.f32 %v2456, %v2544
    %2546 = vmatmul.bf16.gmra.mxu0 %v948
    %v2547 = vpop.f32.mrf.mxu0
    %v2548 = vadd.f32 %v2459, %v2547
    %v2549 = vpop.f32.mrf.mxu0
    %v2550 = vadd.f32 %v2461, %v2549
    %2551 = vmatmul.bf16.gmra.mxu0 %v955
    %v2552 = vpop.f32.mrf.mxu0
    %v2553 = vadd.f32 %v2464, %v2552
    %v2554 = vpop.f32.mrf.mxu0
    %v2555 = vadd.f32 %v2466, %v2554
    %2556 = vmatmul.bf16.gmra.mxu0 %v962
    %v2557 = vpop.f32.mrf.mxu0
    %v2558 = vadd.f32 %v2469, %v2557
    %v2559 = vpop.f32.mrf.mxu0
    %v2560 = vadd.f32 %v2471, %v2559
    %2561 = vmatmul.bf16.gmra.mxu0 %v969
    %v2562 = vpop.f32.mrf.mxu0
    %v2563 = vadd.f32 %v2474, %v2562
    %v2564 = vpop.f32.mrf.mxu0
    %v2565 = vadd.f32 %v2476, %v2564
    %2566 = vmatmul.bf16.gmra.mxu0 %v976
    %v2567 = vpop.f32.mrf.mxu0
    %v2568 = vadd.f32 %v2479, %v2567
    %v2569 = vpop.f32.mrf.mxu0
    %v2570 = vadd.f32 %v2481, %v2569
    %2571 = vmatmul.bf16.gmra.mxu0 %v983
    %v2572 = vpop.f32.mrf.mxu0
    %v2573 = vadd.f32 %v2484, %v2572
    %v2574 = vpop.f32.mrf.mxu0
    %v2575 = vadd.f32 %v2486, %v2574
    %2576 = vmatmul.bf16.gmra.mxu0 %v990
    %v2577 = vpop.f32.mrf.mxu0
    %v2578 = vadd.f32 %v2489, %v2577
    %v2579 = vpop.f32.mrf.mxu0
    %v2580 = vadd.f32 %v2491, %v2579
    %2581 = vdwg.mxu0
    %2582 = vmatpush.bf16.msra.mxu0 %v1934
    %2583 = vmatpush.bf16.msra.mxu0 %v1930
    %2584 = vmatpush.bf16.msra.mxu0 %v1926
    %2585 = vmatpush.bf16.msra.mxu0 %v1922
    %2586 = vmatpush.bf16.msra.mxu0 %v1918
    %2587 = vmatpush.bf16.msra.mxu0 %v1914
    %2588 = vmatpush.bf16.msra.mxu0 %v1910
    %2589 = vmatpush.bf16.msra.mxu0 %v1906
    %2590 = vmatmul.bf16.gmra.mxu0 %v886
    %v2591 = vpop.f32.mrf.mxu0
    %v2592 = vadd.f32 %v2503, %v2591
    %v2593 = vpop.f32.mrf.mxu0
    %v2594 = vadd.f32 %v2505, %v2593
    %2595 = vmatmul.bf16.gmra.mxu0 %v893
    %v2596 = vpop.f32.mrf.mxu0
    %v2597 = vadd.f32 %v2508, %v2596
    %v2598 = vpop.f32.mrf.mxu0
    %v2599 = vadd.f32 %v2510, %v2598
    %2600 = vmatmul.bf16.gmra.mxu0 %v900
    %v2601 = vpop.f32.mrf.mxu0
    %v2602 = vadd.f32 %v2513, %v2601
    %v2603 = vpop.f32.mrf.mxu0
    %v2604 = vadd.f32 %v2515, %v2603
    %2605 = vmatmul.bf16.gmra.mxu0 %v907
    %v2606 = vpop.f32.mrf.mxu0
    %v2607 = vadd.f32 %v2518, %v2606
    %v2608 = vpop.f32.mrf.mxu0
    %v2609 = vadd.f32 %v2520, %v2608
    %2610 = vmatmul.bf16.gmra.mxu0 %v914
    %v2611 = vpop.f32.mrf.mxu0
    %v2612 = vadd.f32 %v2523, %v2611
    %v2613 = vpop.f32.mrf.mxu0
    %v2614 = vadd.f32 %v2525, %v2613
    %2615 = vmatmul.bf16.gmra.mxu0 %v921
    %v2616 = vpop.f32.mrf.mxu0
    %v2617 = vadd.f32 %v2528, %v2616
    %v2618 = vpop.f32.mrf.mxu0
    %v2619 = vadd.f32 %v2530, %v2618
    %2620 = vmatmul.bf16.gmra.mxu0 %v928
    %v2621 = vpop.f32.mrf.mxu0
    %v2622 = vadd.f32 %v2533, %v2621
    %v2623 = vpop.f32.mrf.mxu0
    %v2624 = vadd.f32 %v2535, %v2623
    %2625 = vmatmul.bf16.gmra.mxu0 %v935
    %v2626 = vpop.f32.mrf.mxu0
    %v2627 = vadd.f32 %v2538, %v2626
    %v2628 = vpop.f32.mrf.mxu0
    %v2629 = vadd.f32 %v2540, %v2628
    %2630 = vmatmul.bf16.gmra.mxu0 %v942
    %v2631 = vpop.f32.mrf.mxu0
    %v2632 = vadd.f32 %v2543, %v2631
    %v2633 = vpop.f32.mrf.mxu0
    %v2634 = vadd.f32 %v2545, %v2633
    %2635 = vmatmul.bf16.gmra.mxu0 %v949
    %v2636 = vpop.f32.mrf.mxu0
    %v2637 = vadd.f32 %v2548, %v2636
    %v2638 = vpop.f32.mrf.mxu0
    %v2639 = vadd.f32 %v2550, %v2638
    %2640 = vmatmul.bf16.gmra.mxu0 %v956
    %v2641 = vpop.f32.mrf.mxu0
    %v2642 = vadd.f32 %v2553, %v2641
    %v2643 = vpop.f32.mrf.mxu0
    %v2644 = vadd.f32 %v2555, %v2643
    %2645 = vmatmul.bf16.gmra.mxu0 %v963
    %v2646 = vpop.f32.mrf.mxu0
    %v2647 = vadd.f32 %v2558, %v2646
    %v2648 = vpop.f32.mrf.mxu0
    %v2649 = vadd.f32 %v2560, %v2648
    %2650 = vmatmul.bf16.gmra.mxu0 %v970
    %v2651 = vpop.f32.mrf.mxu0
    %v2652 = vadd.f32 %v2563, %v2651
    %v2653 = vpop.f32.mrf.mxu0
    %v2654 = vadd.f32 %v2565, %v2653
    %2655 = vmatmul.bf16.gmra.mxu0 %v977
    %v2656 = vpop.f32.mrf.mxu0
    %v2657 = vadd.f32 %v2568, %v2656
    %v2658 = vpop.f32.mrf.mxu0
    %v2659 = vadd.f32 %v2570, %v2658
    %2660 = vmatmul.bf16.gmra.mxu0 %v984
    %v2661 = vpop.f32.mrf.mxu0
    %v2662 = vadd.f32 %v2573, %v2661
    %v2663 = vpop.f32.mrf.mxu0
    %v2664 = vadd.f32 %v2575, %v2663
    %2665 = vmatmul.bf16.gmra.mxu0 %v991
    %v2666 = vpop.f32.mrf.mxu0
    %v2667 = vadd.f32 %v2578, %v2666
    %v2668 = vpop.f32.mrf.mxu0
    %v2669 = vadd.f32 %v2580, %v2668
    %2670 = vdwg.mxu0
    %2671 = vmatpush.bf16.msra.mxu0 %v1966
    %2672 = vmatpush.bf16.msra.mxu0 %v1962
    %2673 = vmatpush.bf16.msra.mxu0 %v1958
    %2674 = vmatpush.bf16.msra.mxu0 %v1954
    %2675 = vmatpush.bf16.msra.mxu0 %v1950
    %2676 = vmatpush.bf16.msra.mxu0 %v1946
    %2677 = vmatpush.bf16.msra.mxu0 %v1942
    %2678 = vmatpush.bf16.msra.mxu0 %v1938
    %2679 = vmatmul.bf16.gmra.mxu0 %v887
    %v2680 = vpop.f32.mrf.mxu0
    %v2681 = vadd.f32 %v2592, %v2680
    %v2682 = vpop.f32.mrf.mxu0
    %v2683 = vadd.f32 %v2594, %v2682
    %2684 = vmatmul.bf16.gmra.mxu0 %v894
    %v2685 = vpop.f32.mrf.mxu0
    %v2686 = vadd.f32 %v2597, %v2685
    %v2687 = vpop.f32.mrf.mxu0
    %v2688 = vadd.f32 %v2599, %v2687
    %2689 = vmatmul.bf16.gmra.mxu0 %v901
    %v2690 = vpop.f32.mrf.mxu0
    %v2691 = vadd.f32 %v2602, %v2690
    %v2692 = vpop.f32.mrf.mxu0
    %v2693 = vadd.f32 %v2604, %v2692
    %2694 = vmatmul.bf16.gmra.mxu0 %v908
    %v2695 = vpop.f32.mrf.mxu0
    %v2696 = vadd.f32 %v2607, %v2695
    %v2697 = vpop.f32.mrf.mxu0
    %v2698 = vadd.f32 %v2609, %v2697
    %2699 = vmatmul.bf16.gmra.mxu0 %v915
    %v2700 = vpop.f32.mrf.mxu0
    %v2701 = vadd.f32 %v2612, %v2700
    %v2702 = vpop.f32.mrf.mxu0
    %v2703 = vadd.f32 %v2614, %v2702
    %2704 = vmatmul.bf16.gmra.mxu0 %v922
    %v2705 = vpop.f32.mrf.mxu0
    %v2706 = vadd.f32 %v2617, %v2705
    %v2707 = vpop.f32.mrf.mxu0
    %v2708 = vadd.f32 %v2619, %v2707
    %2709 = vmatmul.bf16.gmra.mxu0 %v929
    %v2710 = vpop.f32.mrf.mxu0
    %v2711 = vadd.f32 %v2622, %v2710
    %v2712 = vpop.f32.mrf.mxu0
    %v2713 = vadd.f32 %v2624, %v2712
    %2714 = vmatmul.bf16.gmra.mxu0 %v936
    %v2715 = vpop.f32.mrf.mxu0
    %v2716 = vadd.f32 %v2627, %v2715
    %v2717 = vpop.f32.mrf.mxu0
    %v2718 = vadd.f32 %v2629, %v2717
    %2719 = vmatmul.bf16.gmra.mxu0 %v943
    %v2720 = vpop.f32.mrf.mxu0
    %v2721 = vadd.f32 %v2632, %v2720
    %v2722 = vpop.f32.mrf.mxu0
    %v2723 = vadd.f32 %v2634, %v2722
    %2724 = vmatmul.bf16.gmra.mxu0 %v950
    %v2725 = vpop.f32.mrf.mxu0
    %v2726 = vadd.f32 %v2637, %v2725
    %v2727 = vpop.f32.mrf.mxu0
    %v2728 = vadd.f32 %v2639, %v2727
    %2729 = vmatmul.bf16.gmra.mxu0 %v957
    %v2730 = vpop.f32.mrf.mxu0
    %v2731 = vadd.f32 %v2642, %v2730
    %v2732 = vpop.f32.mrf.mxu0
    %v2733 = vadd.f32 %v2644, %v2732
    %2734 = vmatmul.bf16.gmra.mxu0 %v964
    %v2735 = vpop.f32.mrf.mxu0
    %v2736 = vadd.f32 %v2647, %v2735
    %v2737 = vpop.f32.mrf.mxu0
    %v2738 = vadd.f32 %v2649, %v2737
    %2739 = vmatmul.bf16.gmra.mxu0 %v971
    %v2740 = vpop.f32.mrf.mxu0
    %v2741 = vadd.f32 %v2652, %v2740
    %v2742 = vpop.f32.mrf.mxu0
    %v2743 = vadd.f32 %v2654, %v2742
    %2744 = vmatmul.bf16.gmra.mxu0 %v978
    %v2745 = vpop.f32.mrf.mxu0
    %v2746 = vadd.f32 %v2657, %v2745
    %v2747 = vpop.f32.mrf.mxu0
    %v2748 = vadd.f32 %v2659, %v2747
    %2749 = vmatmul.bf16.gmra.mxu0 %v985
    %v2750 = vpop.f32.mrf.mxu0
    %v2751 = vadd.f32 %v2662, %v2750
    %v2752 = vpop.f32.mrf.mxu0
    %v2753 = vadd.f32 %v2664, %v2752
    %2754 = vmatmul.bf16.gmra.mxu0 %v992
    %v2755 = vpop.f32.mrf.mxu0
    %v2756 = vadd.f32 %v2667, %v2755
    %v2757 = vpop.f32.mrf.mxu0
    %v2758 = vadd.f32 %v2669, %v2757
    %2759 = vdwg.mxu0
    %2760 = vmatpush.bf16.msra.mxu0 %v1998
    %2761 = vmatpush.bf16.msra.mxu0 %v1994
    %2762 = vmatpush.bf16.msra.mxu0 %v1990
    %2763 = vmatpush.bf16.msra.mxu0 %v1986
    %2764 = vmatpush.bf16.msra.mxu0 %v1982
    %2765 = vmatpush.bf16.msra.mxu0 %v1978
    %2766 = vmatpush.bf16.msra.mxu0 %v1974
    %2767 = vmatpush.bf16.msra.mxu0 %v1970
    %2768 = vmatmul.bf16.gmra.mxu0 %v888
    %v2769 = vpop.f32.mrf.mxu0
    %v2770 = vadd.f32 %v2681, %v2769
    %v2771 = vpop.f32.mrf.mxu0
    %v2772 = vadd.f32 %v2683, %v2771
    %2773 = vmatmul.bf16.gmra.mxu0 %v895
    %v2774 = vpop.f32.mrf.mxu0
    %v2775 = vadd.f32 %v2686, %v2774
    %v2776 = vpop.f32.mrf.mxu0
    %v2777 = vadd.f32 %v2688, %v2776
    %2778 = vmatmul.bf16.gmra.mxu0 %v902
    %v2779 = vpop.f32.mrf.mxu0
    %v2780 = vadd.f32 %v2691, %v2779
    %v2781 = vpop.f32.mrf.mxu0
    %v2782 = vadd.f32 %v2693, %v2781
    %2783 = vmatmul.bf16.gmra.mxu0 %v909
    %v2784 = vpop.f32.mrf.mxu0
    %v2785 = vadd.f32 %v2696, %v2784
    %v2786 = vpop.f32.mrf.mxu0
    %v2787 = vadd.f32 %v2698, %v2786
    %2788 = vmatmul.bf16.gmra.mxu0 %v916
    %v2789 = vpop.f32.mrf.mxu0
    %v2790 = vadd.f32 %v2701, %v2789
    %v2791 = vpop.f32.mrf.mxu0
    %v2792 = vadd.f32 %v2703, %v2791
    %2793 = vmatmul.bf16.gmra.mxu0 %v923
    %v2794 = vpop.f32.mrf.mxu0
    %v2795 = vadd.f32 %v2706, %v2794
    %v2796 = vpop.f32.mrf.mxu0
    %v2797 = vadd.f32 %v2708, %v2796
    %2798 = vmatmul.bf16.gmra.mxu0 %v930
    %v2799 = vpop.f32.mrf.mxu0
    %v2800 = vadd.f32 %v2711, %v2799
    %v2801 = vpop.f32.mrf.mxu0
    %v2802 = vadd.f32 %v2713, %v2801
    %2803 = vmatmul.bf16.gmra.mxu0 %v937
    %v2804 = vpop.f32.mrf.mxu0
    %v2805 = vadd.f32 %v2716, %v2804
    %v2806 = vpop.f32.mrf.mxu0
    %v2807 = vadd.f32 %v2718, %v2806
    %2808 = vmatmul.bf16.gmra.mxu0 %v944
    %v2809 = vpop.f32.mrf.mxu0
    %v2810 = vadd.f32 %v2721, %v2809
    %v2811 = vpop.f32.mrf.mxu0
    %v2812 = vadd.f32 %v2723, %v2811
    %2813 = vmatmul.bf16.gmra.mxu0 %v951
    %v2814 = vpop.f32.mrf.mxu0
    %v2815 = vadd.f32 %v2726, %v2814
    %v2816 = vpop.f32.mrf.mxu0
    %v2817 = vadd.f32 %v2728, %v2816
    %2818 = vmatmul.bf16.gmra.mxu0 %v958
    %v2819 = vpop.f32.mrf.mxu0
    %v2820 = vadd.f32 %v2731, %v2819
    %v2821 = vpop.f32.mrf.mxu0
    %v2822 = vadd.f32 %v2733, %v2821
    %2823 = vmatmul.bf16.gmra.mxu0 %v965
    %v2824 = vpop.f32.mrf.mxu0
    %v2825 = vadd.f32 %v2736, %v2824
    %v2826 = vpop.f32.mrf.mxu0
    %v2827 = vadd.f32 %v2738, %v2826
    %2828 = vmatmul.bf16.gmra.mxu0 %v972
    %v2829 = vpop.f32.mrf.mxu0
    %v2830 = vadd.f32 %v2741, %v2829
    %v2831 = vpop.f32.mrf.mxu0
    %v2832 = vadd.f32 %v2743, %v2831
    %2833 = vmatmul.bf16.gmra.mxu0 %v979
    %v2834 = vpop.f32.mrf.mxu0
    %v2835 = vadd.f32 %v2746, %v2834
    %v2836 = vpop.f32.mrf.mxu0
    %v2837 = vadd.f32 %v2748, %v2836
    %2838 = vmatmul.bf16.gmra.mxu0 %v986
    %v2839 = vpop.f32.mrf.mxu0
    %v2840 = vadd.f32 %v2751, %v2839
    %v2841 = vpop.f32.mrf.mxu0
    %v2842 = vadd.f32 %v2753, %v2841
    %2843 = vmatmul.bf16.gmra.mxu0 %v993
    %v2844 = vpop.f32.mrf.mxu0
    %v2845 = vadd.f32 %v2756, %v2844
    %v2846 = vpop.f32.mrf.mxu0
    %v2847 = vadd.f32 %v2758, %v2846
    %2848 = vdwg.mxu0
    %2849 = vmatpush.bf16.msra.mxu0 %v1807
    %2850 = vmatpush.bf16.msra.mxu0 %v1803
    %2851 = vmatpush.bf16.msra.mxu0 %v1799
    %2852 = vmatpush.bf16.msra.mxu0 %v1795
    %2853 = vmatpush.bf16.msra.mxu0 %v1791
    %2854 = vmatpush.bf16.msra.mxu0 %v1787
    %2855 = vmatpush.bf16.msra.mxu0 %v1783
    %2856 = vmatpush.bf16.msra.mxu0 %v1779
    %2857 = vmatmul.bf16.gmra.mxu0 %v882
    %v2858 = vpop.f32.mrf.mxu0
    %v2859 = vadd.f32 %v523, %v2858
    %v2860 = vpop.f32.mrf.mxu0
    %v2861 = vadd.f32 %v523, %v2860
    %2862 = vmatmul.bf16.gmra.mxu0 %v889
    %v2863 = vpop.f32.mrf.mxu0
    %v2864 = vadd.f32 %v523, %v2863
    %v2865 = vpop.f32.mrf.mxu0
    %v2866 = vadd.f32 %v523, %v2865
    %2867 = vmatmul.bf16.gmra.mxu0 %v896
    %v2868 = vpop.f32.mrf.mxu0
    %v2869 = vadd.f32 %v523, %v2868
    %v2870 = vpop.f32.mrf.mxu0
    %v2871 = vadd.f32 %v523, %v2870
    %2872 = vmatmul.bf16.gmra.mxu0 %v903
    %v2873 = vpop.f32.mrf.mxu0
    %v2874 = vadd.f32 %v523, %v2873
    %v2875 = vpop.f32.mrf.mxu0
    %v2876 = vadd.f32 %v523, %v2875
    %2877 = vmatmul.bf16.gmra.mxu0 %v910
    %v2878 = vpop.f32.mrf.mxu0
    %v2879 = vadd.f32 %v523, %v2878
    %v2880 = vpop.f32.mrf.mxu0
    %v2881 = vadd.f32 %v523, %v2880
    %2882 = vmatmul.bf16.gmra.mxu0 %v917
    %v2883 = vpop.f32.mrf.mxu0
    %v2884 = vadd.f32 %v523, %v2883
    %v2885 = vpop.f32.mrf.mxu0
    %v2886 = vadd.f32 %v523, %v2885
    %2887 = vmatmul.bf16.gmra.mxu0 %v924
    %v2888 = vpop.f32.mrf.mxu0
    %v2889 = vadd.f32 %v523, %v2888
    %v2890 = vpop.f32.mrf.mxu0
    %v2891 = vadd.f32 %v523, %v2890
    %2892 = vmatmul.bf16.gmra.mxu0 %v931
    %v2893 = vpop.f32.mrf.mxu0
    %v2894 = vadd.f32 %v523, %v2893
    %v2895 = vpop.f32.mrf.mxu0
    %v2896 = vadd.f32 %v523, %v2895
    %2897 = vmatmul.bf16.gmra.mxu0 %v938
    %v2898 = vpop.f32.mrf.mxu0
    %v2899 = vadd.f32 %v523, %v2898
    %v2900 = vpop.f32.mrf.mxu0
    %v2901 = vadd.f32 %v523, %v2900
    %2902 = vmatmul.bf16.gmra.mxu0 %v945
    %v2903 = vpop.f32.mrf.mxu0
    %v2904 = vadd.f32 %v523, %v2903
    %v2905 = vpop.f32.mrf.mxu0
    %v2906 = vadd.f32 %v523, %v2905
    %2907 = vmatmul.bf16.gmra.mxu0 %v952
    %v2908 = vpop.f32.mrf.mxu0
    %v2909 = vadd.f32 %v523, %v2908
    %v2910 = vpop.f32.mrf.mxu0
    %v2911 = vadd.f32 %v523, %v2910
    %2912 = vmatmul.bf16.gmra.mxu0 %v959
    %v2913 = vpop.f32.mrf.mxu0
    %v2914 = vadd.f32 %v523, %v2913
    %v2915 = vpop.f32.mrf.mxu0
    %v2916 = vadd.f32 %v523, %v2915
    %2917 = vmatmul.bf16.gmra.mxu0 %v966
    %v2918 = vpop.f32.mrf.mxu0
    %v2919 = vadd.f32 %v523, %v2918
    %v2920 = vpop.f32.mrf.mxu0
    %v2921 = vadd.f32 %v523, %v2920
    %2922 = vmatmul.bf16.gmra.mxu0 %v973
    %v2923 = vpop.f32.mrf.mxu0
    %v2924 = vadd.f32 %v523, %v2923
    %v2925 = vpop.f32.mrf.mxu0
    %v2926 = vadd.f32 %v523, %v2925
    %2927 = vmatmul.bf16.gmra.mxu0 %v980
    %v2928 = vpop.f32.mrf.mxu0
    %v2929 = vadd.f32 %v523, %v2928
    %v2930 = vpop.f32.mrf.mxu0
    %v2931 = vadd.f32 %v523, %v2930
    %2932 = vmatmul.bf16.gmra.mxu0 %v987
    %v2933 = vpop.f32.mrf.mxu0
    %v2934 = vadd.f32 %v523, %v2933
    %v2935 = vpop.f32.mrf.mxu0
    %v2936 = vadd.f32 %v523, %v2935
    %2937 = vdwg.mxu0
    %2938 = vmatpush.bf16.msra.mxu0 %v1839
    %2939 = vmatpush.bf16.msra.mxu0 %v1835
    %2940 = vmatpush.bf16.msra.mxu0 %v1831
    %2941 = vmatpush.bf16.msra.mxu0 %v1827
    %2942 = vmatpush.bf16.msra.mxu0 %v1823
    %2943 = vmatpush.bf16.msra.mxu0 %v1819
    %2944 = vmatpush.bf16.msra.mxu0 %v1815
    %2945 = vmatpush.bf16.msra.mxu0 %v1811
    %2946 = vmatmul.bf16.gmra.mxu0 %v883
    %v2947 = vpop.f32.mrf.mxu0
    %v2948 = vadd.f32 %v2859, %v2947
    %v2949 = vpop.f32.mrf.mxu0
    %v2950 = vadd.f32 %v2861, %v2949
    %2951 = vmatmul.bf16.gmra.mxu0 %v890
    %v2952 = vpop.f32.mrf.mxu0
    %v2953 = vadd.f32 %v2864, %v2952
    %v2954 = vpop.f32.mrf.mxu0
    %v2955 = vadd.f32 %v2866, %v2954
    %2956 = vmatmul.bf16.gmra.mxu0 %v897
    %v2957 = vpop.f32.mrf.mxu0
    %v2958 = vadd.f32 %v2869, %v2957
    %v2959 = vpop.f32.mrf.mxu0
    %v2960 = vadd.f32 %v2871, %v2959
    %2961 = vmatmul.bf16.gmra.mxu0 %v904
    %v2962 = vpop.f32.mrf.mxu0
    %v2963 = vadd.f32 %v2874, %v2962
    %v2964 = vpop.f32.mrf.mxu0
    %v2965 = vadd.f32 %v2876, %v2964
    %2966 = vmatmul.bf16.gmra.mxu0 %v911
    %v2967 = vpop.f32.mrf.mxu0
    %v2968 = vadd.f32 %v2879, %v2967
    %v2969 = vpop.f32.mrf.mxu0
    %v2970 = vadd.f32 %v2881, %v2969
    %2971 = vmatmul.bf16.gmra.mxu0 %v918
    %v2972 = vpop.f32.mrf.mxu0
    %v2973 = vadd.f32 %v2884, %v2972
    %v2974 = vpop.f32.mrf.mxu0
    %v2975 = vadd.f32 %v2886, %v2974
    %2976 = vmatmul.bf16.gmra.mxu0 %v925
    %v2977 = vpop.f32.mrf.mxu0
    %v2978 = vadd.f32 %v2889, %v2977
    %v2979 = vpop.f32.mrf.mxu0
    %v2980 = vadd.f32 %v2891, %v2979
    %2981 = vmatmul.bf16.gmra.mxu0 %v932
    %v2982 = vpop.f32.mrf.mxu0
    %v2983 = vadd.f32 %v2894, %v2982
    %v2984 = vpop.f32.mrf.mxu0
    %v2985 = vadd.f32 %v2896, %v2984
    %2986 = vmatmul.bf16.gmra.mxu0 %v939
    %v2987 = vpop.f32.mrf.mxu0
    %v2988 = vadd.f32 %v2899, %v2987
    %v2989 = vpop.f32.mrf.mxu0
    %v2990 = vadd.f32 %v2901, %v2989
    %2991 = vmatmul.bf16.gmra.mxu0 %v946
    %v2992 = vpop.f32.mrf.mxu0
    %v2993 = vadd.f32 %v2904, %v2992
    %v2994 = vpop.f32.mrf.mxu0
    %v2995 = vadd.f32 %v2906, %v2994
    %2996 = vmatmul.bf16.gmra.mxu0 %v953
    %v2997 = vpop.f32.mrf.mxu0
    %v2998 = vadd.f32 %v2909, %v2997
    %v2999 = vpop.f32.mrf.mxu0
    %v3000 = vadd.f32 %v2911, %v2999
    %3001 = vmatmul.bf16.gmra.mxu0 %v960
    %v3002 = vpop.f32.mrf.mxu0
    %v3003 = vadd.f32 %v2914, %v3002
    %v3004 = vpop.f32.mrf.mxu0
    %v3005 = vadd.f32 %v2916, %v3004
    %3006 = vmatmul.bf16.gmra.mxu0 %v967
    %v3007 = vpop.f32.mrf.mxu0
    %v3008 = vadd.f32 %v2919, %v3007
    %v3009 = vpop.f32.mrf.mxu0
    %v3010 = vadd.f32 %v2921, %v3009
    %3011 = vmatmul.bf16.gmra.mxu0 %v974
    %v3012 = vpop.f32.mrf.mxu0
    %v3013 = vadd.f32 %v2924, %v3012
    %v3014 = vpop.f32.mrf.mxu0
    %v3015 = vadd.f32 %v2926, %v3014
    %3016 = vmatmul.bf16.gmra.mxu0 %v981
    %v3017 = vpop.f32.mrf.mxu0
    %v3018 = vadd.f32 %v2929, %v3017
    %v3019 = vpop.f32.mrf.mxu0
    %v3020 = vadd.f32 %v2931, %v3019
    %3021 = vmatmul.bf16.gmra.mxu0 %v988
    %v3022 = vpop.f32.mrf.mxu0
    %v3023 = vadd.f32 %v2934, %v3022
    %v3024 = vpop.f32.mrf.mxu0
    %v3025 = vadd.f32 %v2936, %v3024
    %3026 = vdwg.mxu0
    %3027 = vmatpush.bf16.msra.mxu0 %v1871
    %3028 = vmatpush.bf16.msra.mxu0 %v1867
    %3029 = vmatpush.bf16.msra.mxu0 %v1863
    %3030 = vmatpush.bf16.msra.mxu0 %v1859
    %3031 = vmatpush.bf16.msra.mxu0 %v1855
    %3032 = vmatpush.bf16.msra.mxu0 %v1851
    %3033 = vmatpush.bf16.msra.mxu0 %v1847
    %3034 = vmatpush.bf16.msra.mxu0 %v1843
    %3035 = vmatmul.bf16.gmra.mxu0 %v884
    %v3036 = vpop.f32.mrf.mxu0
    %v3037 = vadd.f32 %v2948, %v3036
    %v3038 = vpop.f32.mrf.mxu0
    %v3039 = vadd.f32 %v2950, %v3038
    %3040 = vmatmul.bf16.gmra.mxu0 %v891
    %v3041 = vpop.f32.mrf.mxu0
    %v3042 = vadd.f32 %v2953, %v3041
    %v3043 = vpop.f32.mrf.mxu0
    %v3044 = vadd.f32 %v2955, %v3043
    %3045 = vmatmul.bf16.gmra.mxu0 %v898
    %v3046 = vpop.f32.mrf.mxu0
    %v3047 = vadd.f32 %v2958, %v3046
    %v3048 = vpop.f32.mrf.mxu0
    %v3049 = vadd.f32 %v2960, %v3048
    %3050 = vmatmul.bf16.gmra.mxu0 %v905
    %v3051 = vpop.f32.mrf.mxu0
    %v3052 = vadd.f32 %v2963, %v3051
    %v3053 = vpop.f32.mrf.mxu0
    %v3054 = vadd.f32 %v2965, %v3053
    %3055 = vmatmul.bf16.gmra.mxu0 %v912
    %v3056 = vpop.f32.mrf.mxu0
    %v3057 = vadd.f32 %v2968, %v3056
    %v3058 = vpop.f32.mrf.mxu0
    %v3059 = vadd.f32 %v2970, %v3058
    %3060 = vmatmul.bf16.gmra.mxu0 %v919
    %v3061 = vpop.f32.mrf.mxu0
    %v3062 = vadd.f32 %v2973, %v3061
    %v3063 = vpop.f32.mrf.mxu0
    %v3064 = vadd.f32 %v2975, %v3063
    %3065 = vmatmul.bf16.gmra.mxu0 %v926
    %v3066 = vpop.f32.mrf.mxu0
    %v3067 = vadd.f32 %v2978, %v3066
    %v3068 = vpop.f32.mrf.mxu0
    %v3069 = vadd.f32 %v2980, %v3068
    %3070 = vmatmul.bf16.gmra.mxu0 %v933
    %v3071 = vpop.f32.mrf.mxu0
    %v3072 = vadd.f32 %v2983, %v3071
    %v3073 = vpop.f32.mrf.mxu0
    %v3074 = vadd.f32 %v2985, %v3073
    %3075 = vmatmul.bf16.gmra.mxu0 %v940
    %v3076 = vpop.f32.mrf.mxu0
    %v3077 = vadd.f32 %v2988, %v3076
    %v3078 = vpop.f32.mrf.mxu0
    %v3079 = vadd.f32 %v2990, %v3078
    %3080 = vmatmul.bf16.gmra.mxu0 %v947
    %v3081 = vpop.f32.mrf.mxu0
    %v3082 = vadd.f32 %v2993, %v3081
    %v3083 = vpop.f32.mrf.mxu0
    %v3084 = vadd.f32 %v2995, %v3083
    %3085 = vmatmul.bf16.gmra.mxu0 %v954
    %v3086 = vpop.f32.mrf.mxu0
    %v3087 = vadd.f32 %v2998, %v3086
    %v3088 = vpop.f32.mrf.mxu0
    %v3089 = vadd.f32 %v3000, %v3088
    %3090 = vmatmul.bf16.gmra.mxu0 %v961
    %v3091 = vpop.f32.mrf.mxu0
    %v3092 = vadd.f32 %v3003, %v3091
    %v3093 = vpop.f32.mrf.mxu0
    %v3094 = vadd.f32 %v3005, %v3093
    %3095 = vmatmul.bf16.gmra.mxu0 %v968
    %v3096 = vpop.f32.mrf.mxu0
    %v3097 = vadd.f32 %v3008, %v3096
    %v3098 = vpop.f32.mrf.mxu0
    %v3099 = vadd.f32 %v3010, %v3098
    %3100 = vmatmul.bf16.gmra.mxu0 %v975
    %v3101 = vpop.f32.mrf.mxu0
    %v3102 = vadd.f32 %v3013, %v3101
    %v3103 = vpop.f32.mrf.mxu0
    %v3104 = vadd.f32 %v3015, %v3103
    %3105 = vmatmul.bf16.gmra.mxu0 %v982
    %v3106 = vpop.f32.mrf.mxu0
    %v3107 = vadd.f32 %v3018, %v3106
    %v3108 = vpop.f32.mrf.mxu0
    %v3109 = vadd.f32 %v3020, %v3108
    %3110 = vmatmul.bf16.gmra.mxu0 %v989
    %v3111 = vpop.f32.mrf.mxu0
    %v3112 = vadd.f32 %v3023, %v3111
    %v3113 = vpop.f32.mrf.mxu0
    %v3114 = vadd.f32 %v3025, %v3113
    %3115 = vdwg.mxu0
    %3116 = vmatpush.bf16.msra.mxu0 %v1903
    %3117 = vmatpush.bf16.msra.mxu0 %v1899
    %3118 = vmatpush.bf16.msra.mxu0 %v1895
    %3119 = vmatpush.bf16.msra.mxu0 %v1891
    %3120 = vmatpush.bf16.msra.mxu0 %v1887
    %3121 = vmatpush.bf16.msra.mxu0 %v1883
    %3122 = vmatpush.bf16.msra.mxu0 %v1879
    %3123 = vmatpush.bf16.msra.mxu0 %v1875
    %3124 = vmatmul.bf16.gmra.mxu0 %v885
    %v3125 = vpop.f32.mrf.mxu0
    %v3126 = vadd.f32 %v3037, %v3125
    %v3127 = vpop.f32.mrf.mxu0
    %v3128 = vadd.f32 %v3039, %v3127
    %3129 = vmatmul.bf16.gmra.mxu0 %v892
    %v3130 = vpop.f32.mrf.mxu0
    %v3131 = vadd.f32 %v3042, %v3130
    %v3132 = vpop.f32.mrf.mxu0
    %v3133 = vadd.f32 %v3044, %v3132
    %3134 = vmatmul.bf16.gmra.mxu0 %v899
    %v3135 = vpop.f32.mrf.mxu0
    %v3136 = vadd.f32 %v3047, %v3135
    %v3137 = vpop.f32.mrf.mxu0
    %v3138 = vadd.f32 %v3049, %v3137
    %3139 = vmatmul.bf16.gmra.mxu0 %v906
    %v3140 = vpop.f32.mrf.mxu0
    %v3141 = vadd.f32 %v3052, %v3140
    %v3142 = vpop.f32.mrf.mxu0
    %v3143 = vadd.f32 %v3054, %v3142
    %3144 = vmatmul.bf16.gmra.mxu0 %v913
    %v3145 = vpop.f32.mrf.mxu0
    %v3146 = vadd.f32 %v3057, %v3145
    %v3147 = vpop.f32.mrf.mxu0
    %v3148 = vadd.f32 %v3059, %v3147
    %3149 = vmatmul.bf16.gmra.mxu0 %v920
    %v3150 = vpop.f32.mrf.mxu0
    %v3151 = vadd.f32 %v3062, %v3150
    %v3152 = vpop.f32.mrf.mxu0
    %v3153 = vadd.f32 %v3064, %v3152
    %3154 = vmatmul.bf16.gmra.mxu0 %v927
    %v3155 = vpop.f32.mrf.mxu0
    %v3156 = vadd.f32 %v3067, %v3155
    %v3157 = vpop.f32.mrf.mxu0
    %v3158 = vadd.f32 %v3069, %v3157
    %3159 = vmatmul.bf16.gmra.mxu0 %v934
    %v3160 = vpop.f32.mrf.mxu0
    %v3161 = vadd.f32 %v3072, %v3160
    %v3162 = vpop.f32.mrf.mxu0
    %v3163 = vadd.f32 %v3074, %v3162
    %3164 = vmatmul.bf16.gmra.mxu0 %v941
    %v3165 = vpop.f32.mrf.mxu0
    %v3166 = vadd.f32 %v3077, %v3165
    %v3167 = vpop.f32.mrf.mxu0
    %v3168 = vadd.f32 %v3079, %v3167
    %3169 = vmatmul.bf16.gmra.mxu0 %v948
    %v3170 = vpop.f32.mrf.mxu0
    %v3171 = vadd.f32 %v3082, %v3170
    %v3172 = vpop.f32.mrf.mxu0
    %v3173 = vadd.f32 %v3084, %v3172
    %3174 = vmatmul.bf16.gmra.mxu0 %v955
    %v3175 = vpop.f32.mrf.mxu0
    %v3176 = vadd.f32 %v3087, %v3175
    %v3177 = vpop.f32.mrf.mxu0
    %v3178 = vadd.f32 %v3089, %v3177
    %3179 = vmatmul.bf16.gmra.mxu0 %v962
    %v3180 = vpop.f32.mrf.mxu0
    %v3181 = vadd.f32 %v3092, %v3180
    %v3182 = vpop.f32.mrf.mxu0
    %v3183 = vadd.f32 %v3094, %v3182
    %3184 = vmatmul.bf16.gmra.mxu0 %v969
    %v3185 = vpop.f32.mrf.mxu0
    %v3186 = vadd.f32 %v3097, %v3185
    %v3187 = vpop.f32.mrf.mxu0
    %v3188 = vadd.f32 %v3099, %v3187
    %3189 = vmatmul.bf16.gmra.mxu0 %v976
    %v3190 = vpop.f32.mrf.mxu0
    %v3191 = vadd.f32 %v3102, %v3190
    %v3192 = vpop.f32.mrf.mxu0
    %v3193 = vadd.f32 %v3104, %v3192
    %3194 = vmatmul.bf16.gmra.mxu0 %v983
    %v3195 = vpop.f32.mrf.mxu0
    %v3196 = vadd.f32 %v3107, %v3195
    %v3197 = vpop.f32.mrf.mxu0
    %v3198 = vadd.f32 %v3109, %v3197
    %3199 = vmatmul.bf16.gmra.mxu0 %v990
    %v3200 = vpop.f32.mrf.mxu0
    %v3201 = vadd.f32 %v3112, %v3200
    %v3202 = vpop.f32.mrf.mxu0
    %v3203 = vadd.f32 %v3114, %v3202
    %3204 = vdwg.mxu0
    %3205 = vmatpush.bf16.msra.mxu0 %v1935
    %3206 = vmatpush.bf16.msra.mxu0 %v1931
    %3207 = vmatpush.bf16.msra.mxu0 %v1927
    %3208 = vmatpush.bf16.msra.mxu0 %v1923
    %3209 = vmatpush.bf16.msra.mxu0 %v1919
    %3210 = vmatpush.bf16.msra.mxu0 %v1915
    %3211 = vmatpush.bf16.msra.mxu0 %v1911
    %3212 = vmatpush.bf16.msra.mxu0 %v1907
    %3213 = vmatmul.bf16.gmra.mxu0 %v886
    %v3214 = vpop.f32.mrf.mxu0
    %v3215 = vadd.f32 %v3126, %v3214
    %v3216 = vpop.f32.mrf.mxu0
    %v3217 = vadd.f32 %v3128, %v3216
    %3218 = vmatmul.bf16.gmra.mxu0 %v893
    %v3219 = vpop.f32.mrf.mxu0
    %v3220 = vadd.f32 %v3131, %v3219
    %v3221 = vpop.f32.mrf.mxu0
    %v3222 = vadd.f32 %v3133, %v3221
    %3223 = vmatmul.bf16.gmra.mxu0 %v900
    %v3224 = vpop.f32.mrf.mxu0
    %v3225 = vadd.f32 %v3136, %v3224
    %v3226 = vpop.f32.mrf.mxu0
    %v3227 = vadd.f32 %v3138, %v3226
    %3228 = vmatmul.bf16.gmra.mxu0 %v907
    %v3229 = vpop.f32.mrf.mxu0
    %v3230 = vadd.f32 %v3141, %v3229
    %v3231 = vpop.f32.mrf.mxu0
    %v3232 = vadd.f32 %v3143, %v3231
    %3233 = vmatmul.bf16.gmra.mxu0 %v914
    %v3234 = vpop.f32.mrf.mxu0
    %v3235 = vadd.f32 %v3146, %v3234
    %v3236 = vpop.f32.mrf.mxu0
    %v3237 = vadd.f32 %v3148, %v3236
    %3238 = vmatmul.bf16.gmra.mxu0 %v921
    %v3239 = vpop.f32.mrf.mxu0
    %v3240 = vadd.f32 %v3151, %v3239
    %v3241 = vpop.f32.mrf.mxu0
    %v3242 = vadd.f32 %v3153, %v3241
    %3243 = vmatmul.bf16.gmra.mxu0 %v928
    %v3244 = vpop.f32.mrf.mxu0
    %v3245 = vadd.f32 %v3156, %v3244
    %v3246 = vpop.f32.mrf.mxu0
    %v3247 = vadd.f32 %v3158, %v3246
    %3248 = vmatmul.bf16.gmra.mxu0 %v935
    %v3249 = vpop.f32.mrf.mxu0
    %v3250 = vadd.f32 %v3161, %v3249
    %v3251 = vpop.f32.mrf.mxu0
    %v3252 = vadd.f32 %v3163, %v3251
    %3253 = vmatmul.bf16.gmra.mxu0 %v942
    %v3254 = vpop.f32.mrf.mxu0
    %v3255 = vadd.f32 %v3166, %v3254
    %v3256 = vpop.f32.mrf.mxu0
    %v3257 = vadd.f32 %v3168, %v3256
    %3258 = vmatmul.bf16.gmra.mxu0 %v949
    %v3259 = vpop.f32.mrf.mxu0
    %v3260 = vadd.f32 %v3171, %v3259
    %v3261 = vpop.f32.mrf.mxu0
    %v3262 = vadd.f32 %v3173, %v3261
    %3263 = vmatmul.bf16.gmra.mxu0 %v956
    %v3264 = vpop.f32.mrf.mxu0
    %v3265 = vadd.f32 %v3176, %v3264
    %v3266 = vpop.f32.mrf.mxu0
    %v3267 = vadd.f32 %v3178, %v3266
    %3268 = vmatmul.bf16.gmra.mxu0 %v963
    %v3269 = vpop.f32.mrf.mxu0
    %v3270 = vadd.f32 %v3181, %v3269
    %v3271 = vpop.f32.mrf.mxu0
    %v3272 = vadd.f32 %v3183, %v3271
    %3273 = vmatmul.bf16.gmra.mxu0 %v970
    %v3274 = vpop.f32.mrf.mxu0
    %v3275 = vadd.f32 %v3186, %v3274
    %v3276 = vpop.f32.mrf.mxu0
    %v3277 = vadd.f32 %v3188, %v3276
    %3278 = vmatmul.bf16.gmra.mxu0 %v977
    %v3279 = vpop.f32.mrf.mxu0
    %v3280 = vadd.f32 %v3191, %v3279
    %v3281 = vpop.f32.mrf.mxu0
    %v3282 = vadd.f32 %v3193, %v3281
    %3283 = vmatmul.bf16.gmra.mxu0 %v984
    %v3284 = vpop.f32.mrf.mxu0
    %v3285 = vadd.f32 %v3196, %v3284
    %v3286 = vpop.f32.mrf.mxu0
    %v3287 = vadd.f32 %v3198, %v3286
    %3288 = vmatmul.bf16.gmra.mxu0 %v991
    %v3289 = vpop.f32.mrf.mxu0
    %v3290 = vadd.f32 %v3201, %v3289
    %v3291 = vpop.f32.mrf.mxu0
    %v3292 = vadd.f32 %v3203, %v3291
    %3293 = vdwg.mxu0
    %3294 = vmatpush.bf16.msra.mxu0 %v1967
    %3295 = vmatpush.bf16.msra.mxu0 %v1963
    %3296 = vmatpush.bf16.msra.mxu0 %v1959
    %3297 = vmatpush.bf16.msra.mxu0 %v1955
    %3298 = vmatpush.bf16.msra.mxu0 %v1951
    %3299 = vmatpush.bf16.msra.mxu0 %v1947
    %3300 = vmatpush.bf16.msra.mxu0 %v1943
    %3301 = vmatpush.bf16.msra.mxu0 %v1939
    %3302 = vmatmul.bf16.gmra.mxu0 %v887
    %v3303 = vpop.f32.mrf.mxu0
    %v3304 = vadd.f32 %v3215, %v3303
    %v3305 = vpop.f32.mrf.mxu0
    %v3306 = vadd.f32 %v3217, %v3305
    %3307 = vmatmul.bf16.gmra.mxu0 %v894
    %v3308 = vpop.f32.mrf.mxu0
    %v3309 = vadd.f32 %v3220, %v3308
    %v3310 = vpop.f32.mrf.mxu0
    %v3311 = vadd.f32 %v3222, %v3310
    %3312 = vmatmul.bf16.gmra.mxu0 %v901
    %v3313 = vpop.f32.mrf.mxu0
    %v3314 = vadd.f32 %v3225, %v3313
    %v3315 = vpop.f32.mrf.mxu0
    %v3316 = vadd.f32 %v3227, %v3315
    %3317 = vmatmul.bf16.gmra.mxu0 %v908
    %v3318 = vpop.f32.mrf.mxu0
    %v3319 = vadd.f32 %v3230, %v3318
    %v3320 = vpop.f32.mrf.mxu0
    %v3321 = vadd.f32 %v3232, %v3320
    %3322 = vmatmul.bf16.gmra.mxu0 %v915
    %v3323 = vpop.f32.mrf.mxu0
    %v3324 = vadd.f32 %v3235, %v3323
    %v3325 = vpop.f32.mrf.mxu0
    %v3326 = vadd.f32 %v3237, %v3325
    %3327 = vmatmul.bf16.gmra.mxu0 %v922
    %v3328 = vpop.f32.mrf.mxu0
    %v3329 = vadd.f32 %v3240, %v3328
    %v3330 = vpop.f32.mrf.mxu0
    %v3331 = vadd.f32 %v3242, %v3330
    %3332 = vmatmul.bf16.gmra.mxu0 %v929
    %v3333 = vpop.f32.mrf.mxu0
    %v3334 = vadd.f32 %v3245, %v3333
    %v3335 = vpop.f32.mrf.mxu0
    %v3336 = vadd.f32 %v3247, %v3335
    %3337 = vmatmul.bf16.gmra.mxu0 %v936
    %v3338 = vpop.f32.mrf.mxu0
    %v3339 = vadd.f32 %v3250, %v3338
    %v3340 = vpop.f32.mrf.mxu0
    %v3341 = vadd.f32 %v3252, %v3340
    %3342 = vmatmul.bf16.gmra.mxu0 %v943
    %v3343 = vpop.f32.mrf.mxu0
    %v3344 = vadd.f32 %v3255, %v3343
    %v3345 = vpop.f32.mrf.mxu0
    %v3346 = vadd.f32 %v3257, %v3345
    %3347 = vmatmul.bf16.gmra.mxu0 %v950
    %v3348 = vpop.f32.mrf.mxu0
    %v3349 = vadd.f32 %v3260, %v3348
    %v3350 = vpop.f32.mrf.mxu0
    %v3351 = vadd.f32 %v3262, %v3350
    %3352 = vmatmul.bf16.gmra.mxu0 %v957
    %v3353 = vpop.f32.mrf.mxu0
    %v3354 = vadd.f32 %v3265, %v3353
    %v3355 = vpop.f32.mrf.mxu0
    %v3356 = vadd.f32 %v3267, %v3355
    %3357 = vmatmul.bf16.gmra.mxu0 %v964
    %v3358 = vpop.f32.mrf.mxu0
    %v3359 = vadd.f32 %v3270, %v3358
    %v3360 = vpop.f32.mrf.mxu0
    %v3361 = vadd.f32 %v3272, %v3360
    %3362 = vmatmul.bf16.gmra.mxu0 %v971
    %v3363 = vpop.f32.mrf.mxu0
    %v3364 = vadd.f32 %v3275, %v3363
    %v3365 = vpop.f32.mrf.mxu0
    %v3366 = vadd.f32 %v3277, %v3365
    %3367 = vmatmul.bf16.gmra.mxu0 %v978
    %v3368 = vpop.f32.mrf.mxu0
    %v3369 = vadd.f32 %v3280, %v3368
    %v3370 = vpop.f32.mrf.mxu0
    %v3371 = vadd.f32 %v3282, %v3370
    %3372 = vmatmul.bf16.gmra.mxu0 %v985
    %v3373 = vpop.f32.mrf.mxu0
    %v3374 = vadd.f32 %v3285, %v3373
    %v3375 = vpop.f32.mrf.mxu0
    %v3376 = vadd.f32 %v3287, %v3375
    %3377 = vmatmul.bf16.gmra.mxu0 %v992
    %v3378 = vpop.f32.mrf.mxu0
    %v3379 = vadd.f32 %v3290, %v3378
    %v3380 = vpop.f32.mrf.mxu0
    %v3381 = vadd.f32 %v3292, %v3380
    %3382 = vdwg.mxu0
    %3383 = vmatpush.bf16.msra.mxu0 %v1999
    %3384 = vmatpush.bf16.msra.mxu0 %v1995
    %3385 = vmatpush.bf16.msra.mxu0 %v1991
    %3386 = vmatpush.bf16.msra.mxu0 %v1987
    %3387 = vmatpush.bf16.msra.mxu0 %v1983
    %3388 = vmatpush.bf16.msra.mxu0 %v1979
    %3389 = vmatpush.bf16.msra.mxu0 %v1975
    %3390 = vmatpush.bf16.msra.mxu0 %v1971
    %3391 = vmatmul.bf16.gmra.mxu0 %v888
    %v3392 = vpop.f32.mrf.mxu0
    %v3393 = vadd.f32 %v3304, %v3392
    %v3394 = vpop.f32.mrf.mxu0
    %v3395 = vadd.f32 %v3306, %v3394
    %3396 = vmatmul.bf16.gmra.mxu0 %v895
    %v3397 = vpop.f32.mrf.mxu0
    %v3398 = vadd.f32 %v3309, %v3397
    %v3399 = vpop.f32.mrf.mxu0
    %v3400 = vadd.f32 %v3311, %v3399
    %3401 = vmatmul.bf16.gmra.mxu0 %v902
    %v3402 = vpop.f32.mrf.mxu0
    %v3403 = vadd.f32 %v3314, %v3402
    %v3404 = vpop.f32.mrf.mxu0
    %v3405 = vadd.f32 %v3316, %v3404
    %3406 = vmatmul.bf16.gmra.mxu0 %v909
    %v3407 = vpop.f32.mrf.mxu0
    %v3408 = vadd.f32 %v3319, %v3407
    %v3409 = vpop.f32.mrf.mxu0
    %v3410 = vadd.f32 %v3321, %v3409
    %3411 = vmatmul.bf16.gmra.mxu0 %v916
    %v3412 = vpop.f32.mrf.mxu0
    %v3413 = vadd.f32 %v3324, %v3412
    %v3414 = vpop.f32.mrf.mxu0
    %v3415 = vadd.f32 %v3326, %v3414
    %3416 = vmatmul.bf16.gmra.mxu0 %v923
    %v3417 = vpop.f32.mrf.mxu0
    %v3418 = vadd.f32 %v3329, %v3417
    %v3419 = vpop.f32.mrf.mxu0
    %v3420 = vadd.f32 %v3331, %v3419
    %3421 = vmatmul.bf16.gmra.mxu0 %v930
    %v3422 = vpop.f32.mrf.mxu0
    %v3423 = vadd.f32 %v3334, %v3422
    %v3424 = vpop.f32.mrf.mxu0
    %v3425 = vadd.f32 %v3336, %v3424
    %3426 = vmatmul.bf16.gmra.mxu0 %v937
    %v3427 = vpop.f32.mrf.mxu0
    %v3428 = vadd.f32 %v3339, %v3427
    %v3429 = vpop.f32.mrf.mxu0
    %v3430 = vadd.f32 %v3341, %v3429
    %3431 = vmatmul.bf16.gmra.mxu0 %v944
    %v3432 = vpop.f32.mrf.mxu0
    %v3433 = vadd.f32 %v3344, %v3432
    %v3434 = vpop.f32.mrf.mxu0
    %v3435 = vadd.f32 %v3346, %v3434
    %3436 = vmatmul.bf16.gmra.mxu0 %v951
    %v3437 = vpop.f32.mrf.mxu0
    %v3438 = vadd.f32 %v3349, %v3437
    %v3439 = vpop.f32.mrf.mxu0
    %v3440 = vadd.f32 %v3351, %v3439
    %3441 = vmatmul.bf16.gmra.mxu0 %v958
    %v3442 = vpop.f32.mrf.mxu0
    %v3443 = vadd.f32 %v3354, %v3442
    %v3444 = vpop.f32.mrf.mxu0
    %v3445 = vadd.f32 %v3356, %v3444
    %3446 = vmatmul.bf16.gmra.mxu0 %v965
    %v3447 = vpop.f32.mrf.mxu0
    %v3448 = vadd.f32 %v3359, %v3447
    %v3449 = vpop.f32.mrf.mxu0
    %v3450 = vadd.f32 %v3361, %v3449
    %3451 = vmatmul.bf16.gmra.mxu0 %v972
    %v3452 = vpop.f32.mrf.mxu0
    %v3453 = vadd.f32 %v3364, %v3452
    %v3454 = vpop.f32.mrf.mxu0
    %v3455 = vadd.f32 %v3366, %v3454
    %3456 = vmatmul.bf16.gmra.mxu0 %v979
    %v3457 = vpop.f32.mrf.mxu0
    %v3458 = vadd.f32 %v3369, %v3457
    %v3459 = vpop.f32.mrf.mxu0
    %v3460 = vadd.f32 %v3371, %v3459
    %3461 = vmatmul.bf16.gmra.mxu0 %v986
    %v3462 = vpop.f32.mrf.mxu0
    %v3463 = vadd.f32 %v3374, %v3462
    %v3464 = vpop.f32.mrf.mxu0
    %v3465 = vadd.f32 %v3376, %v3464
    %3466 = vmatmul.bf16.gmra.mxu0 %v993
    %v3467 = vpop.f32.mrf.mxu0
    %v3468 = vadd.f32 %v3379, %v3467
    %v3469 = vpop.f32.mrf.mxu0
    %v3470 = vadd.f32 %v3381, %v3469
    %3471 = vdwg.mxu0
    %3472 = vmatpush.bf16.msra.mxu0 %v1808
    %3473 = vmatpush.bf16.msra.mxu0 %v1804
    %3474 = vmatpush.bf16.msra.mxu0 %v1800
    %3475 = vmatpush.bf16.msra.mxu0 %v1796
    %3476 = vmatpush.bf16.msra.mxu0 %v1792
    %3477 = vmatpush.bf16.msra.mxu0 %v1788
    %3478 = vmatpush.bf16.msra.mxu0 %v1784
    %3479 = vmatpush.bf16.msra.mxu0 %v1780
    %3480 = vmatmul.bf16.gmra.mxu0 %v882
    %v3481 = vpop.f32.mrf.mxu0
    %v3482 = vadd.f32 %v524, %v3481
    %v3483 = vpop.f32.mrf.mxu0
    %v3484 = vadd.f32 %v524, %v3483
    %3485 = vmatmul.bf16.gmra.mxu0 %v889
    %v3486 = vpop.f32.mrf.mxu0
    %v3487 = vadd.f32 %v524, %v3486
    %v3488 = vpop.f32.mrf.mxu0
    %v3489 = vadd.f32 %v524, %v3488
    %3490 = vmatmul.bf16.gmra.mxu0 %v896
    %v3491 = vpop.f32.mrf.mxu0
    %v3492 = vadd.f32 %v524, %v3491
    %v3493 = vpop.f32.mrf.mxu0
    %v3494 = vadd.f32 %v524, %v3493
    %3495 = vmatmul.bf16.gmra.mxu0 %v903
    %v3496 = vpop.f32.mrf.mxu0
    %v3497 = vadd.f32 %v524, %v3496
    %v3498 = vpop.f32.mrf.mxu0
    %v3499 = vadd.f32 %v524, %v3498
    %3500 = vmatmul.bf16.gmra.mxu0 %v910
    %v3501 = vpop.f32.mrf.mxu0
    %v3502 = vadd.f32 %v524, %v3501
    %v3503 = vpop.f32.mrf.mxu0
    %v3504 = vadd.f32 %v524, %v3503
    %3505 = vmatmul.bf16.gmra.mxu0 %v917
    %v3506 = vpop.f32.mrf.mxu0
    %v3507 = vadd.f32 %v524, %v3506
    %v3508 = vpop.f32.mrf.mxu0
    %v3509 = vadd.f32 %v524, %v3508
    %3510 = vmatmul.bf16.gmra.mxu0 %v924
    %v3511 = vpop.f32.mrf.mxu0
    %v3512 = vadd.f32 %v524, %v3511
    %v3513 = vpop.f32.mrf.mxu0
    %v3514 = vadd.f32 %v524, %v3513
    %3515 = vmatmul.bf16.gmra.mxu0 %v931
    %v3516 = vpop.f32.mrf.mxu0
    %v3517 = vadd.f32 %v524, %v3516
    %v3518 = vpop.f32.mrf.mxu0
    %v3519 = vadd.f32 %v524, %v3518
    %3520 = vmatmul.bf16.gmra.mxu0 %v938
    %v3521 = vpop.f32.mrf.mxu0
    %v3522 = vadd.f32 %v524, %v3521
    %v3523 = vpop.f32.mrf.mxu0
    %v3524 = vadd.f32 %v524, %v3523
    %3525 = vmatmul.bf16.gmra.mxu0 %v945
    %v3526 = vpop.f32.mrf.mxu0
    %v3527 = vadd.f32 %v524, %v3526
    %v3528 = vpop.f32.mrf.mxu0
    %v3529 = vadd.f32 %v524, %v3528
    %3530 = vmatmul.bf16.gmra.mxu0 %v952
    %v3531 = vpop.f32.mrf.mxu0
    %v3532 = vadd.f32 %v524, %v3531
    %v3533 = vpop.f32.mrf.mxu0
    %v3534 = vadd.f32 %v524, %v3533
    %3535 = vmatmul.bf16.gmra.mxu0 %v959
    %v3536 = vpop.f32.mrf.mxu0
    %v3537 = vadd.f32 %v524, %v3536
    %v3538 = vpop.f32.mrf.mxu0
    %v3539 = vadd.f32 %v524, %v3538
    %3540 = vmatmul.bf16.gmra.mxu0 %v966
    %v3541 = vpop.f32.mrf.mxu0
    %v3542 = vadd.f32 %v524, %v3541
    %v3543 = vpop.f32.mrf.mxu0
    %v3544 = vadd.f32 %v524, %v3543
    %3545 = vmatmul.bf16.gmra.mxu0 %v973
    %v3546 = vpop.f32.mrf.mxu0
    %v3547 = vadd.f32 %v524, %v3546
    %v3548 = vpop.f32.mrf.mxu0
    %v3549 = vadd.f32 %v524, %v3548
    %3550 = vmatmul.bf16.gmra.mxu0 %v980
    %v3551 = vpop.f32.mrf.mxu0
    %v3552 = vadd.f32 %v524, %v3551
    %v3553 = vpop.f32.mrf.mxu0
    %v3554 = vadd.f32 %v524, %v3553
    %3555 = vmatmul.bf16.gmra.mxu0 %v987
    %v3556 = vpop.f32.mrf.mxu0
    %v3557 = vadd.f32 %v524, %v3556
    %v3558 = vpop.f32.mrf.mxu0
    %v3559 = vadd.f32 %v524, %v3558
    %3560 = vdwg.mxu0
    %3561 = vmatpush.bf16.msra.mxu0 %v1840
    %3562 = vmatpush.bf16.msra.mxu0 %v1836
    %3563 = vmatpush.bf16.msra.mxu0 %v1832
    %3564 = vmatpush.bf16.msra.mxu0 %v1828
    %3565 = vmatpush.bf16.msra.mxu0 %v1824
    %3566 = vmatpush.bf16.msra.mxu0 %v1820
    %3567 = vmatpush.bf16.msra.mxu0 %v1816
    %3568 = vmatpush.bf16.msra.mxu0 %v1812
    %3569 = vmatmul.bf16.gmra.mxu0 %v883
    %v3570 = vpop.f32.mrf.mxu0
    %v3571 = vadd.f32 %v3482, %v3570
    %v3572 = vpop.f32.mrf.mxu0
    %v3573 = vadd.f32 %v3484, %v3572
    %3574 = vmatmul.bf16.gmra.mxu0 %v890
    %v3575 = vpop.f32.mrf.mxu0
    %v3576 = vadd.f32 %v3487, %v3575
    %v3577 = vpop.f32.mrf.mxu0
    %v3578 = vadd.f32 %v3489, %v3577
    %3579 = vmatmul.bf16.gmra.mxu0 %v897
    %v3580 = vpop.f32.mrf.mxu0
    %v3581 = vadd.f32 %v3492, %v3580
    %v3582 = vpop.f32.mrf.mxu0
    %v3583 = vadd.f32 %v3494, %v3582
    %3584 = vmatmul.bf16.gmra.mxu0 %v904
    %v3585 = vpop.f32.mrf.mxu0
    %v3586 = vadd.f32 %v3497, %v3585
    %v3587 = vpop.f32.mrf.mxu0
    %v3588 = vadd.f32 %v3499, %v3587
    %3589 = vmatmul.bf16.gmra.mxu0 %v911
    %v3590 = vpop.f32.mrf.mxu0
    %v3591 = vadd.f32 %v3502, %v3590
    %v3592 = vpop.f32.mrf.mxu0
    %v3593 = vadd.f32 %v3504, %v3592
    %3594 = vmatmul.bf16.gmra.mxu0 %v918
    %v3595 = vpop.f32.mrf.mxu0
    %v3596 = vadd.f32 %v3507, %v3595
    %v3597 = vpop.f32.mrf.mxu0
    %v3598 = vadd.f32 %v3509, %v3597
    %3599 = vmatmul.bf16.gmra.mxu0 %v925
    %v3600 = vpop.f32.mrf.mxu0
    %v3601 = vadd.f32 %v3512, %v3600
    %v3602 = vpop.f32.mrf.mxu0
    %v3603 = vadd.f32 %v3514, %v3602
    %3604 = vmatmul.bf16.gmra.mxu0 %v932
    %v3605 = vpop.f32.mrf.mxu0
    %v3606 = vadd.f32 %v3517, %v3605
    %v3607 = vpop.f32.mrf.mxu0
    %v3608 = vadd.f32 %v3519, %v3607
    %3609 = vmatmul.bf16.gmra.mxu0 %v939
    %v3610 = vpop.f32.mrf.mxu0
    %v3611 = vadd.f32 %v3522, %v3610
    %v3612 = vpop.f32.mrf.mxu0
    %v3613 = vadd.f32 %v3524, %v3612
    %3614 = vmatmul.bf16.gmra.mxu0 %v946
    %v3615 = vpop.f32.mrf.mxu0
    %v3616 = vadd.f32 %v3527, %v3615
    %v3617 = vpop.f32.mrf.mxu0
    %v3618 = vadd.f32 %v3529, %v3617
    %3619 = vmatmul.bf16.gmra.mxu0 %v953
    %v3620 = vpop.f32.mrf.mxu0
    %v3621 = vadd.f32 %v3532, %v3620
    %v3622 = vpop.f32.mrf.mxu0
    %v3623 = vadd.f32 %v3534, %v3622
    %3624 = vmatmul.bf16.gmra.mxu0 %v960
    %v3625 = vpop.f32.mrf.mxu0
    %v3626 = vadd.f32 %v3537, %v3625
    %v3627 = vpop.f32.mrf.mxu0
    %v3628 = vadd.f32 %v3539, %v3627
    %3629 = vmatmul.bf16.gmra.mxu0 %v967
    %v3630 = vpop.f32.mrf.mxu0
    %v3631 = vadd.f32 %v3542, %v3630
    %v3632 = vpop.f32.mrf.mxu0
    %v3633 = vadd.f32 %v3544, %v3632
    %3634 = vmatmul.bf16.gmra.mxu0 %v974
    %v3635 = vpop.f32.mrf.mxu0
    %v3636 = vadd.f32 %v3547, %v3635
    %v3637 = vpop.f32.mrf.mxu0
    %v3638 = vadd.f32 %v3549, %v3637
    %3639 = vmatmul.bf16.gmra.mxu0 %v981
    %v3640 = vpop.f32.mrf.mxu0
    %v3641 = vadd.f32 %v3552, %v3640
    %v3642 = vpop.f32.mrf.mxu0
    %v3643 = vadd.f32 %v3554, %v3642
    %3644 = vmatmul.bf16.gmra.mxu0 %v988
    %v3645 = vpop.f32.mrf.mxu0
    %v3646 = vadd.f32 %v3557, %v3645
    %v3647 = vpop.f32.mrf.mxu0
    %v3648 = vadd.f32 %v3559, %v3647
    %3649 = vdwg.mxu0
    %3650 = vmatpush.bf16.msra.mxu0 %v1872
    %3651 = vmatpush.bf16.msra.mxu0 %v1868
    %3652 = vmatpush.bf16.msra.mxu0 %v1864
    %3653 = vmatpush.bf16.msra.mxu0 %v1860
    %3654 = vmatpush.bf16.msra.mxu0 %v1856
    %3655 = vmatpush.bf16.msra.mxu0 %v1852
    %3656 = vmatpush.bf16.msra.mxu0 %v1848
    %3657 = vmatpush.bf16.msra.mxu0 %v1844
    %3658 = vmatmul.bf16.gmra.mxu0 %v884
    %v3659 = vpop.f32.mrf.mxu0
    %v3660 = vadd.f32 %v3571, %v3659
    %v3661 = vpop.f32.mrf.mxu0
    %v3662 = vadd.f32 %v3573, %v3661
    %3663 = vmatmul.bf16.gmra.mxu0 %v891
    %v3664 = vpop.f32.mrf.mxu0
    %v3665 = vadd.f32 %v3576, %v3664
    %v3666 = vpop.f32.mrf.mxu0
    %v3667 = vadd.f32 %v3578, %v3666
    %3668 = vmatmul.bf16.gmra.mxu0 %v898
    %v3669 = vpop.f32.mrf.mxu0
    %v3670 = vadd.f32 %v3581, %v3669
    %v3671 = vpop.f32.mrf.mxu0
    %v3672 = vadd.f32 %v3583, %v3671
    %3673 = vmatmul.bf16.gmra.mxu0 %v905
    %v3674 = vpop.f32.mrf.mxu0
    %v3675 = vadd.f32 %v3586, %v3674
    %v3676 = vpop.f32.mrf.mxu0
    %v3677 = vadd.f32 %v3588, %v3676
    %3678 = vmatmul.bf16.gmra.mxu0 %v912
    %v3679 = vpop.f32.mrf.mxu0
    %v3680 = vadd.f32 %v3591, %v3679
    %v3681 = vpop.f32.mrf.mxu0
    %v3682 = vadd.f32 %v3593, %v3681
    %3683 = vmatmul.bf16.gmra.mxu0 %v919
    %v3684 = vpop.f32.mrf.mxu0
    %v3685 = vadd.f32 %v3596, %v3684
    %v3686 = vpop.f32.mrf.mxu0
    %v3687 = vadd.f32 %v3598, %v3686
    %3688 = vmatmul.bf16.gmra.mxu0 %v926
    %v3689 = vpop.f32.mrf.mxu0
    %v3690 = vadd.f32 %v3601, %v3689
    %v3691 = vpop.f32.mrf.mxu0
    %v3692 = vadd.f32 %v3603, %v3691
    %3693 = vmatmul.bf16.gmra.mxu0 %v933
    %v3694 = vpop.f32.mrf.mxu0
    %v3695 = vadd.f32 %v3606, %v3694
    %v3696 = vpop.f32.mrf.mxu0
    %v3697 = vadd.f32 %v3608, %v3696
    %3698 = vmatmul.bf16.gmra.mxu0 %v940
    %v3699 = vpop.f32.mrf.mxu0
    %v3700 = vadd.f32 %v3611, %v3699
    %v3701 = vpop.f32.mrf.mxu0
    %v3702 = vadd.f32 %v3613, %v3701
    %3703 = vmatmul.bf16.gmra.mxu0 %v947
    %v3704 = vpop.f32.mrf.mxu0
    %v3705 = vadd.f32 %v3616, %v3704
    %v3706 = vpop.f32.mrf.mxu0
    %v3707 = vadd.f32 %v3618, %v3706
    %3708 = vmatmul.bf16.gmra.mxu0 %v954
    %v3709 = vpop.f32.mrf.mxu0
    %v3710 = vadd.f32 %v3621, %v3709
    %v3711 = vpop.f32.mrf.mxu0
    %v3712 = vadd.f32 %v3623, %v3711
    %3713 = vmatmul.bf16.gmra.mxu0 %v961
    %v3714 = vpop.f32.mrf.mxu0
    %v3715 = vadd.f32 %v3626, %v3714
    %v3716 = vpop.f32.mrf.mxu0
    %v3717 = vadd.f32 %v3628, %v3716
    %3718 = vmatmul.bf16.gmra.mxu0 %v968
    %v3719 = vpop.f32.mrf.mxu0
    %v3720 = vadd.f32 %v3631, %v3719
    %v3721 = vpop.f32.mrf.mxu0
    %v3722 = vadd.f32 %v3633, %v3721
    %3723 = vmatmul.bf16.gmra.mxu0 %v975
    %v3724 = vpop.f32.mrf.mxu0
    %v3725 = vadd.f32 %v3636, %v3724
    %v3726 = vpop.f32.mrf.mxu0
    %v3727 = vadd.f32 %v3638, %v3726
    %3728 = vmatmul.bf16.gmra.mxu0 %v982
    %v3729 = vpop.f32.mrf.mxu0
    %v3730 = vadd.f32 %v3641, %v3729
    %v3731 = vpop.f32.mrf.mxu0
    %v3732 = vadd.f32 %v3643, %v3731
    %3733 = vmatmul.bf16.gmra.mxu0 %v989
    %v3734 = vpop.f32.mrf.mxu0
    %v3735 = vadd.f32 %v3646, %v3734
    %v3736 = vpop.f32.mrf.mxu0
    %v3737 = vadd.f32 %v3648, %v3736
    %3738 = vdwg.mxu0
    %3739 = vmatpush.bf16.msra.mxu0 %v1904
    %3740 = vmatpush.bf16.msra.mxu0 %v1900
    %3741 = vmatpush.bf16.msra.mxu0 %v1896
    %3742 = vmatpush.bf16.msra.mxu0 %v1892
    %3743 = vmatpush.bf16.msra.mxu0 %v1888
    %3744 = vmatpush.bf16.msra.mxu0 %v1884
    %3745 = vmatpush.bf16.msra.mxu0 %v1880
    %3746 = vmatpush.bf16.msra.mxu0 %v1876
    %3747 = vmatmul.bf16.gmra.mxu0 %v885
    %v3748 = vpop.f32.mrf.mxu0
    %v3749 = vadd.f32 %v3660, %v3748
    %v3750 = vpop.f32.mrf.mxu0
    %v3751 = vadd.f32 %v3662, %v3750
    %3752 = vmatmul.bf16.gmra.mxu0 %v892
    %v3753 = vpop.f32.mrf.mxu0
    %v3754 = vadd.f32 %v3665, %v3753
    %v3755 = vpop.f32.mrf.mxu0
    %v3756 = vadd.f32 %v3667, %v3755
    %3757 = vmatmul.bf16.gmra.mxu0 %v899
    %v3758 = vpop.f32.mrf.mxu0
    %v3759 = vadd.f32 %v3670, %v3758
    %v3760 = vpop.f32.mrf.mxu0
    %v3761 = vadd.f32 %v3672, %v3760
    %3762 = vmatmul.bf16.gmra.mxu0 %v906
    %v3763 = vpop.f32.mrf.mxu0
    %v3764 = vadd.f32 %v3675, %v3763
    %v3765 = vpop.f32.mrf.mxu0
    %v3766 = vadd.f32 %v3677, %v3765
    %3767 = vmatmul.bf16.gmra.mxu0 %v913
    %v3768 = vpop.f32.mrf.mxu0
    %v3769 = vadd.f32 %v3680, %v3768
    %v3770 = vpop.f32.mrf.mxu0
    %v3771 = vadd.f32 %v3682, %v3770
    %3772 = vmatmul.bf16.gmra.mxu0 %v920
    %v3773 = vpop.f32.mrf.mxu0
    %v3774 = vadd.f32 %v3685, %v3773
    %v3775 = vpop.f32.mrf.mxu0
    %v3776 = vadd.f32 %v3687, %v3775
    %3777 = vmatmul.bf16.gmra.mxu0 %v927
    %v3778 = vpop.f32.mrf.mxu0
    %v3779 = vadd.f32 %v3690, %v3778
    %v3780 = vpop.f32.mrf.mxu0
    %v3781 = vadd.f32 %v3692, %v3780
    %3782 = vmatmul.bf16.gmra.mxu0 %v934
    %v3783 = vpop.f32.mrf.mxu0
    %v3784 = vadd.f32 %v3695, %v3783
    %v3785 = vpop.f32.mrf.mxu0
    %v3786 = vadd.f32 %v3697, %v3785
    %3787 = vmatmul.bf16.gmra.mxu0 %v941
    %v3788 = vpop.f32.mrf.mxu0
    %v3789 = vadd.f32 %v3700, %v3788
    %v3790 = vpop.f32.mrf.mxu0
    %v3791 = vadd.f32 %v3702, %v3790
    %3792 = vmatmul.bf16.gmra.mxu0 %v948
    %v3793 = vpop.f32.mrf.mxu0
    %v3794 = vadd.f32 %v3705, %v3793
    %v3795 = vpop.f32.mrf.mxu0
    %v3796 = vadd.f32 %v3707, %v3795
    %3797 = vmatmul.bf16.gmra.mxu0 %v955
    %v3798 = vpop.f32.mrf.mxu0
    %v3799 = vadd.f32 %v3710, %v3798
    %v3800 = vpop.f32.mrf.mxu0
    %v3801 = vadd.f32 %v3712, %v3800
    %3802 = vmatmul.bf16.gmra.mxu0 %v962
    %v3803 = vpop.f32.mrf.mxu0
    %v3804 = vadd.f32 %v3715, %v3803
    %v3805 = vpop.f32.mrf.mxu0
    %v3806 = vadd.f32 %v3717, %v3805
    %3807 = vmatmul.bf16.gmra.mxu0 %v969
    %v3808 = vpop.f32.mrf.mxu0
    %v3809 = vadd.f32 %v3720, %v3808
    %v3810 = vpop.f32.mrf.mxu0
    %v3811 = vadd.f32 %v3722, %v3810
    %3812 = vmatmul.bf16.gmra.mxu0 %v976
    %v3813 = vpop.f32.mrf.mxu0
    %v3814 = vadd.f32 %v3725, %v3813
    %v3815 = vpop.f32.mrf.mxu0
    %v3816 = vadd.f32 %v3727, %v3815
    %3817 = vmatmul.bf16.gmra.mxu0 %v983
    %v3818 = vpop.f32.mrf.mxu0
    %v3819 = vadd.f32 %v3730, %v3818
    %v3820 = vpop.f32.mrf.mxu0
    %v3821 = vadd.f32 %v3732, %v3820
    %3822 = vmatmul.bf16.gmra.mxu0 %v990
    %v3823 = vpop.f32.mrf.mxu0
    %v3824 = vadd.f32 %v3735, %v3823
    %v3825 = vpop.f32.mrf.mxu0
    %v3826 = vadd.f32 %v3737, %v3825
    %3827 = vdwg.mxu0
    %3828 = vmatpush.bf16.msra.mxu0 %v1936
    %3829 = vmatpush.bf16.msra.mxu0 %v1932
    %3830 = vmatpush.bf16.msra.mxu0 %v1928
    %3831 = vmatpush.bf16.msra.mxu0 %v1924
    %3832 = vmatpush.bf16.msra.mxu0 %v1920
    %3833 = vmatpush.bf16.msra.mxu0 %v1916
    %3834 = vmatpush.bf16.msra.mxu0 %v1912
    %3835 = vmatpush.bf16.msra.mxu0 %v1908
    %3836 = vmatmul.bf16.gmra.mxu0 %v886
    %v3837 = vpop.f32.mrf.mxu0
    %v3838 = vadd.f32 %v3749, %v3837
    %v3839 = vpop.f32.mrf.mxu0
    %v3840 = vadd.f32 %v3751, %v3839
    %3841 = vmatmul.bf16.gmra.mxu0 %v893
    %v3842 = vpop.f32.mrf.mxu0
    %v3843 = vadd.f32 %v3754, %v3842
    %v3844 = vpop.f32.mrf.mxu0
    %v3845 = vadd.f32 %v3756, %v3844
    %3846 = vmatmul.bf16.gmra.mxu0 %v900
    %v3847 = vpop.f32.mrf.mxu0
    %v3848 = vadd.f32 %v3759, %v3847
    %v3849 = vpop.f32.mrf.mxu0
    %v3850 = vadd.f32 %v3761, %v3849
    %3851 = vmatmul.bf16.gmra.mxu0 %v907
    %v3852 = vpop.f32.mrf.mxu0
    %v3853 = vadd.f32 %v3764, %v3852
    %v3854 = vpop.f32.mrf.mxu0
    %v3855 = vadd.f32 %v3766, %v3854
    %3856 = vmatmul.bf16.gmra.mxu0 %v914
    %v3857 = vpop.f32.mrf.mxu0
    %v3858 = vadd.f32 %v3769, %v3857
    %v3859 = vpop.f32.mrf.mxu0
    %v3860 = vadd.f32 %v3771, %v3859
    %3861 = vmatmul.bf16.gmra.mxu0 %v921
    %v3862 = vpop.f32.mrf.mxu0
    %v3863 = vadd.f32 %v3774, %v3862
    %v3864 = vpop.f32.mrf.mxu0
    %v3865 = vadd.f32 %v3776, %v3864
    %3866 = vmatmul.bf16.gmra.mxu0 %v928
    %v3867 = vpop.f32.mrf.mxu0
    %v3868 = vadd.f32 %v3779, %v3867
    %v3869 = vpop.f32.mrf.mxu0
    %v3870 = vadd.f32 %v3781, %v3869
    %3871 = vmatmul.bf16.gmra.mxu0 %v935
    %v3872 = vpop.f32.mrf.mxu0
    %v3873 = vadd.f32 %v3784, %v3872
    %v3874 = vpop.f32.mrf.mxu0
    %v3875 = vadd.f32 %v3786, %v3874
    %3876 = vmatmul.bf16.gmra.mxu0 %v942
    %v3877 = vpop.f32.mrf.mxu0
    %v3878 = vadd.f32 %v3789, %v3877
    %v3879 = vpop.f32.mrf.mxu0
    %v3880 = vadd.f32 %v3791, %v3879
    %3881 = vmatmul.bf16.gmra.mxu0 %v949
    %v3882 = vpop.f32.mrf.mxu0
    %v3883 = vadd.f32 %v3794, %v3882
    %v3884 = vpop.f32.mrf.mxu0
    %v3885 = vadd.f32 %v3796, %v3884
    %3886 = vmatmul.bf16.gmra.mxu0 %v956
    %v3887 = vpop.f32.mrf.mxu0
    %v3888 = vadd.f32 %v3799, %v3887
    %v3889 = vpop.f32.mrf.mxu0
    %v3890 = vadd.f32 %v3801, %v3889
    %3891 = vmatmul.bf16.gmra.mxu0 %v963
    %v3892 = vpop.f32.mrf.mxu0
    %v3893 = vadd.f32 %v3804, %v3892
    %v3894 = vpop.f32.mrf.mxu0
    %v3895 = vadd.f32 %v3806, %v3894
    %3896 = vmatmul.bf16.gmra.mxu0 %v970
    %v3897 = vpop.f32.mrf.mxu0
    %v3898 = vadd.f32 %v3809, %v3897
    %v3899 = vpop.f32.mrf.mxu0
    %v3900 = vadd.f32 %v3811, %v3899
    %3901 = vmatmul.bf16.gmra.mxu0 %v977
    %v3902 = vpop.f32.mrf.mxu0
    %v3903 = vadd.f32 %v3814, %v3902
    %v3904 = vpop.f32.mrf.mxu0
    %v3905 = vadd.f32 %v3816, %v3904
    %3906 = vmatmul.bf16.gmra.mxu0 %v984
    %v3907 = vpop.f32.mrf.mxu0
    %v3908 = vadd.f32 %v3819, %v3907
    %v3909 = vpop.f32.mrf.mxu0
    %v3910 = vadd.f32 %v3821, %v3909
    %3911 = vmatmul.bf16.gmra.mxu0 %v991
    %v3912 = vpop.f32.mrf.mxu0
    %v3913 = vadd.f32 %v3824, %v3912
    %v3914 = vpop.f32.mrf.mxu0
    %v3915 = vadd.f32 %v3826, %v3914
    %3916 = vdwg.mxu0
    %3917 = vmatpush.bf16.msra.mxu0 %v1968
    %3918 = vmatpush.bf16.msra.mxu0 %v1964
    %3919 = vmatpush.bf16.msra.mxu0 %v1960
    %3920 = vmatpush.bf16.msra.mxu0 %v1956
    %3921 = vmatpush.bf16.msra.mxu0 %v1952
    %3922 = vmatpush.bf16.msra.mxu0 %v1948
    %3923 = vmatpush.bf16.msra.mxu0 %v1944
    %3924 = vmatpush.bf16.msra.mxu0 %v1940
    %3925 = vmatmul.bf16.gmra.mxu0 %v887
    %v3926 = vpop.f32.mrf.mxu0
    %v3927 = vadd.f32 %v3838, %v3926
    %v3928 = vpop.f32.mrf.mxu0
    %v3929 = vadd.f32 %v3840, %v3928
    %3930 = vmatmul.bf16.gmra.mxu0 %v894
    %v3931 = vpop.f32.mrf.mxu0
    %v3932 = vadd.f32 %v3843, %v3931
    %v3933 = vpop.f32.mrf.mxu0
    %v3934 = vadd.f32 %v3845, %v3933
    %3935 = vmatmul.bf16.gmra.mxu0 %v901
    %v3936 = vpop.f32.mrf.mxu0
    %v3937 = vadd.f32 %v3848, %v3936
    %v3938 = vpop.f32.mrf.mxu0
    %v3939 = vadd.f32 %v3850, %v3938
    %3940 = vmatmul.bf16.gmra.mxu0 %v908
    %v3941 = vpop.f32.mrf.mxu0
    %v3942 = vadd.f32 %v3853, %v3941
    %v3943 = vpop.f32.mrf.mxu0
    %v3944 = vadd.f32 %v3855, %v3943
    %3945 = vmatmul.bf16.gmra.mxu0 %v915
    %v3946 = vpop.f32.mrf.mxu0
    %v3947 = vadd.f32 %v3858, %v3946
    %v3948 = vpop.f32.mrf.mxu0
    %v3949 = vadd.f32 %v3860, %v3948
    %3950 = vmatmul.bf16.gmra.mxu0 %v922
    %v3951 = vpop.f32.mrf.mxu0
    %v3952 = vadd.f32 %v3863, %v3951
    %v3953 = vpop.f32.mrf.mxu0
    %v3954 = vadd.f32 %v3865, %v3953
    %3955 = vmatmul.bf16.gmra.mxu0 %v929
    %v3956 = vpop.f32.mrf.mxu0
    %v3957 = vadd.f32 %v3868, %v3956
    %v3958 = vpop.f32.mrf.mxu0
    %v3959 = vadd.f32 %v3870, %v3958
    %3960 = vmatmul.bf16.gmra.mxu0 %v936
    %v3961 = vpop.f32.mrf.mxu0
    %v3962 = vadd.f32 %v3873, %v3961
    %v3963 = vpop.f32.mrf.mxu0
    %v3964 = vadd.f32 %v3875, %v3963
    %3965 = vmatmul.bf16.gmra.mxu0 %v943
    %v3966 = vpop.f32.mrf.mxu0
    %v3967 = vadd.f32 %v3878, %v3966
    %v3968 = vpop.f32.mrf.mxu0
    %v3969 = vadd.f32 %v3880, %v3968
    %3970 = vmatmul.bf16.gmra.mxu0 %v950
    %v3971 = vpop.f32.mrf.mxu0
    %v3972 = vadd.f32 %v3883, %v3971
    %v3973 = vpop.f32.mrf.mxu0
    %v3974 = vadd.f32 %v3885, %v3973
    %3975 = vmatmul.bf16.gmra.mxu0 %v957
    %v3976 = vpop.f32.mrf.mxu0
    %v3977 = vadd.f32 %v3888, %v3976
    %v3978 = vpop.f32.mrf.mxu0
    %v3979 = vadd.f32 %v3890, %v3978
    %3980 = vmatmul.bf16.gmra.mxu0 %v964
    %v3981 = vpop.f32.mrf.mxu0
    %v3982 = vadd.f32 %v3893, %v3981
    %v3983 = vpop.f32.mrf.mxu0
    %v3984 = vadd.f32 %v3895, %v3983
    %3985 = vmatmul.bf16.gmra.mxu0 %v971
    %v3986 = vpop.f32.mrf.mxu0
    %v3987 = vadd.f32 %v3898, %v3986
    %v3988 = vpop.f32.mrf.mxu0
    %v3989 = vadd.f32 %v3900, %v3988
    %3990 = vmatmul.bf16.gmra.mxu0 %v978
    %v3991 = vpop.f32.mrf.mxu0
    %v3992 = vadd.f32 %v3903, %v3991
    %v3993 = vpop.f32.mrf.mxu0
    %v3994 = vadd.f32 %v3905, %v3993
    %3995 = vmatmul.bf16.gmra.mxu0 %v985
    %v3996 = vpop.f32.mrf.mxu0
    %v3997 = vadd.f32 %v3908, %v3996
    %v3998 = vpop.f32.mrf.mxu0
    %v3999 = vadd.f32 %v3910, %v3998
    %4000 = vmatmul.bf16.gmra.mxu0 %v992
    %v4001 = vpop.f32.mrf.mxu0
    %v4002 = vadd.f32 %v3913, %v4001
    %v4003 = vpop.f32.mrf.mxu0
    %v4004 = vadd.f32 %v3915, %v4003
    %4005 = vdwg.mxu0
    %4006 = vmatpush.bf16.msra.mxu0 %v2000
    %4007 = vmatpush.bf16.msra.mxu0 %v1996
    %4008 = vmatpush.bf16.msra.mxu0 %v1992
    %4009 = vmatpush.bf16.msra.mxu0 %v1988
    %4010 = vmatpush.bf16.msra.mxu0 %v1984
    %4011 = vmatpush.bf16.msra.mxu0 %v1980
    %4012 = vmatpush.bf16.msra.mxu0 %v1976
    %4013 = vmatpush.bf16.msra.mxu0 %v1972
    %4014 = vmatmul.bf16.gmra.mxu0 %v888
    %v4015 = vpop.f32.mrf.mxu0
    %v4016 = vadd.f32 %v3927, %v4015
    %v4017 = vpop.f32.mrf.mxu0
    %v4018 = vadd.f32 %v3929, %v4017
    %4019 = vmatmul.bf16.gmra.mxu0 %v895
    %v4020 = vpop.f32.mrf.mxu0
    %v4021 = vadd.f32 %v3932, %v4020
    %v4022 = vpop.f32.mrf.mxu0
    %v4023 = vadd.f32 %v3934, %v4022
    %4024 = vmatmul.bf16.gmra.mxu0 %v902
    %v4025 = vpop.f32.mrf.mxu0
    %v4026 = vadd.f32 %v3937, %v4025
    %v4027 = vpop.f32.mrf.mxu0
    %v4028 = vadd.f32 %v3939, %v4027
    %4029 = vmatmul.bf16.gmra.mxu0 %v909
    %v4030 = vpop.f32.mrf.mxu0
    %v4031 = vadd.f32 %v3942, %v4030
    %v4032 = vpop.f32.mrf.mxu0
    %v4033 = vadd.f32 %v3944, %v4032
    %4034 = vmatmul.bf16.gmra.mxu0 %v916
    %v4035 = vpop.f32.mrf.mxu0
    %v4036 = vadd.f32 %v3947, %v4035
    %v4037 = vpop.f32.mrf.mxu0
    %v4038 = vadd.f32 %v3949, %v4037
    %4039 = vmatmul.bf16.gmra.mxu0 %v923
    %v4040 = vpop.f32.mrf.mxu0
    %v4041 = vadd.f32 %v3952, %v4040
    %v4042 = vpop.f32.mrf.mxu0
    %v4043 = vadd.f32 %v3954, %v4042
    %4044 = vmatmul.bf16.gmra.mxu0 %v930
    %v4045 = vpop.f32.mrf.mxu0
    %v4046 = vadd.f32 %v3957, %v4045
    %v4047 = vpop.f32.mrf.mxu0
    %v4048 = vadd.f32 %v3959, %v4047
    %4049 = vmatmul.bf16.gmra.mxu0 %v937
    %v4050 = vpop.f32.mrf.mxu0
    %v4051 = vadd.f32 %v3962, %v4050
    %v4052 = vpop.f32.mrf.mxu0
    %v4053 = vadd.f32 %v3964, %v4052
    %4054 = vmatmul.bf16.gmra.mxu0 %v944
    %v4055 = vpop.f32.mrf.mxu0
    %v4056 = vadd.f32 %v3967, %v4055
    %v4057 = vpop.f32.mrf.mxu0
    %v4058 = vadd.f32 %v3969, %v4057
    %4059 = vmatmul.bf16.gmra.mxu0 %v951
    %v4060 = vpop.f32.mrf.mxu0
    %v4061 = vadd.f32 %v3972, %v4060
    %v4062 = vpop.f32.mrf.mxu0
    %v4063 = vadd.f32 %v3974, %v4062
    %4064 = vmatmul.bf16.gmra.mxu0 %v958
    %v4065 = vpop.f32.mrf.mxu0
    %v4066 = vadd.f32 %v3977, %v4065
    %v4067 = vpop.f32.mrf.mxu0
    %v4068 = vadd.f32 %v3979, %v4067
    %4069 = vmatmul.bf16.gmra.mxu0 %v965
    %v4070 = vpop.f32.mrf.mxu0
    %v4071 = vadd.f32 %v3982, %v4070
    %v4072 = vpop.f32.mrf.mxu0
    %v4073 = vadd.f32 %v3984, %v4072
    %4074 = vmatmul.bf16.gmra.mxu0 %v972
    %v4075 = vpop.f32.mrf.mxu0
    %v4076 = vadd.f32 %v3987, %v4075
    %v4077 = vpop.f32.mrf.mxu0
    %v4078 = vadd.f32 %v3989, %v4077
    %4079 = vmatmul.bf16.gmra.mxu0 %v979
    %v4080 = vpop.f32.mrf.mxu0
    %v4081 = vadd.f32 %v3992, %v4080
    %v4082 = vpop.f32.mrf.mxu0
    %v4083 = vadd.f32 %v3994, %v4082
    %4084 = vmatmul.bf16.gmra.mxu0 %v986
    %v4085 = vpop.f32.mrf.mxu0
    %v4086 = vadd.f32 %v3997, %v4085
    %v4087 = vpop.f32.mrf.mxu0
    %v4088 = vadd.f32 %v3999, %v4087
    %4089 = vmatmul.bf16.gmra.mxu0 %v993
    %v4090 = vpop.f32.mrf.mxu0
    %v4091 = vadd.f32 %v4002, %v4090
    %v4092 = vpop.f32.mrf.mxu0
    %v4093 = vadd.f32 %v4004, %v4092
    %4094 = vdwg.mxu0
    %4095 = vmatpush.bf16.msra.mxu0 %v1809
    %4096 = vmatpush.bf16.msra.mxu0 %v1805
    %4097 = vmatpush.bf16.msra.mxu0 %v1801
    %4098 = vmatpush.bf16.msra.mxu0 %v1797
    %4099 = vmatpush.bf16.msra.mxu0 %v1793
    %4100 = vmatpush.bf16.msra.mxu0 %v1789
    %4101 = vmatpush.bf16.msra.mxu0 %v1785
    %4102 = vmatpush.bf16.msra.mxu0 %v1781
    %4103 = vmatmul.bf16.gmra.mxu0 %v882
    %v4104 = vpop.f32.mrf.mxu0
    %v4105 = vadd.f32 %v525, %v4104
    %v4106 = vpop.f32.mrf.mxu0
    %v4107 = vadd.f32 %v525, %v4106
    %4108 = vmatmul.bf16.gmra.mxu0 %v889
    %v4109 = vpop.f32.mrf.mxu0
    %v4110 = vadd.f32 %v525, %v4109
    %v4111 = vpop.f32.mrf.mxu0
    %v4112 = vadd.f32 %v525, %v4111
    %4113 = vmatmul.bf16.gmra.mxu0 %v896
    %v4114 = vpop.f32.mrf.mxu0
    %v4115 = vadd.f32 %v525, %v4114
    %v4116 = vpop.f32.mrf.mxu0
    %v4117 = vadd.f32 %v525, %v4116
    %4118 = vmatmul.bf16.gmra.mxu0 %v903
    %v4119 = vpop.f32.mrf.mxu0
    %v4120 = vadd.f32 %v525, %v4119
    %v4121 = vpop.f32.mrf.mxu0
    %v4122 = vadd.f32 %v525, %v4121
    %4123 = vmatmul.bf16.gmra.mxu0 %v910
    %v4124 = vpop.f32.mrf.mxu0
    %v4125 = vadd.f32 %v525, %v4124
    %v4126 = vpop.f32.mrf.mxu0
    %v4127 = vadd.f32 %v525, %v4126
    %4128 = vmatmul.bf16.gmra.mxu0 %v917
    %v4129 = vpop.f32.mrf.mxu0
    %v4130 = vadd.f32 %v525, %v4129
    %v4131 = vpop.f32.mrf.mxu0
    %v4132 = vadd.f32 %v525, %v4131
    %4133 = vmatmul.bf16.gmra.mxu0 %v924
    %v4134 = vpop.f32.mrf.mxu0
    %v4135 = vadd.f32 %v525, %v4134
    %v4136 = vpop.f32.mrf.mxu0
    %v4137 = vadd.f32 %v525, %v4136
    %4138 = vmatmul.bf16.gmra.mxu0 %v931
    %v4139 = vpop.f32.mrf.mxu0
    %v4140 = vadd.f32 %v525, %v4139
    %v4141 = vpop.f32.mrf.mxu0
    %v4142 = vadd.f32 %v525, %v4141
    %4143 = vmatmul.bf16.gmra.mxu0 %v938
    %v4144 = vpop.f32.mrf.mxu0
    %v4145 = vadd.f32 %v525, %v4144
    %v4146 = vpop.f32.mrf.mxu0
    %v4147 = vadd.f32 %v525, %v4146
    %4148 = vmatmul.bf16.gmra.mxu0 %v945
    %v4149 = vpop.f32.mrf.mxu0
    %v4150 = vadd.f32 %v525, %v4149
    %v4151 = vpop.f32.mrf.mxu0
    %v4152 = vadd.f32 %v525, %v4151
    %4153 = vmatmul.bf16.gmra.mxu0 %v952
    %v4154 = vpop.f32.mrf.mxu0
    %v4155 = vadd.f32 %v525, %v4154
    %v4156 = vpop.f32.mrf.mxu0
    %v4157 = vadd.f32 %v525, %v4156
    %4158 = vmatmul.bf16.gmra.mxu0 %v959
    %v4159 = vpop.f32.mrf.mxu0
    %v4160 = vadd.f32 %v525, %v4159
    %v4161 = vpop.f32.mrf.mxu0
    %v4162 = vadd.f32 %v525, %v4161
    %4163 = vmatmul.bf16.gmra.mxu0 %v966
    %v4164 = vpop.f32.mrf.mxu0
    %v4165 = vadd.f32 %v525, %v4164
    %v4166 = vpop.f32.mrf.mxu0
    %v4167 = vadd.f32 %v525, %v4166
    %4168 = vmatmul.bf16.gmra.mxu0 %v973
    %v4169 = vpop.f32.mrf.mxu0
    %v4170 = vadd.f32 %v525, %v4169
    %v4171 = vpop.f32.mrf.mxu0
    %v4172 = vadd.f32 %v525, %v4171
    %4173 = vmatmul.bf16.gmra.mxu0 %v980
    %v4174 = vpop.f32.mrf.mxu0
    %v4175 = vadd.f32 %v525, %v4174
    %v4176 = vpop.f32.mrf.mxu0
    %v4177 = vadd.f32 %v525, %v4176
    %4178 = vmatmul.bf16.gmra.mxu0 %v987
    %v4179 = vpop.f32.mrf.mxu0
    %v4180 = vadd.f32 %v525, %v4179
    %v4181 = vpop.f32.mrf.mxu0
    %v4182 = vadd.f32 %v525, %v4181
    %4183 = vdwg.mxu0
    %4184 = vmatpush.bf16.msra.mxu0 %v1841
    %4185 = vmatpush.bf16.msra.mxu0 %v1837
    %4186 = vmatpush.bf16.msra.mxu0 %v1833
    %4187 = vmatpush.bf16.msra.mxu0 %v1829
    %4188 = vmatpush.bf16.msra.mxu0 %v1825
    %4189 = vmatpush.bf16.msra.mxu0 %v1821
    %4190 = vmatpush.bf16.msra.mxu0 %v1817
    %4191 = vmatpush.bf16.msra.mxu0 %v1813
    %4192 = vmatmul.bf16.gmra.mxu0 %v883
    %v4193 = vpop.f32.mrf.mxu0
    %v4194 = vadd.f32 %v4105, %v4193
    %v4195 = vpop.f32.mrf.mxu0
    %v4196 = vadd.f32 %v4107, %v4195
    %4197 = vmatmul.bf16.gmra.mxu0 %v890
    %v4198 = vpop.f32.mrf.mxu0
    %v4199 = vadd.f32 %v4110, %v4198
    %v4200 = vpop.f32.mrf.mxu0
    %v4201 = vadd.f32 %v4112, %v4200
    %4202 = vmatmul.bf16.gmra.mxu0 %v897
    %v4203 = vpop.f32.mrf.mxu0
    %v4204 = vadd.f32 %v4115, %v4203
    %v4205 = vpop.f32.mrf.mxu0
    %v4206 = vadd.f32 %v4117, %v4205
    %4207 = vmatmul.bf16.gmra.mxu0 %v904
    %v4208 = vpop.f32.mrf.mxu0
    %v4209 = vadd.f32 %v4120, %v4208
    %v4210 = vpop.f32.mrf.mxu0
    %v4211 = vadd.f32 %v4122, %v4210
    %4212 = vmatmul.bf16.gmra.mxu0 %v911
    %v4213 = vpop.f32.mrf.mxu0
    %v4214 = vadd.f32 %v4125, %v4213
    %v4215 = vpop.f32.mrf.mxu0
    %v4216 = vadd.f32 %v4127, %v4215
    %4217 = vmatmul.bf16.gmra.mxu0 %v918
    %v4218 = vpop.f32.mrf.mxu0
    %v4219 = vadd.f32 %v4130, %v4218
    %v4220 = vpop.f32.mrf.mxu0
    %v4221 = vadd.f32 %v4132, %v4220
    %4222 = vmatmul.bf16.gmra.mxu0 %v925
    %v4223 = vpop.f32.mrf.mxu0
    %v4224 = vadd.f32 %v4135, %v4223
    %v4225 = vpop.f32.mrf.mxu0
    %v4226 = vadd.f32 %v4137, %v4225
    %4227 = vmatmul.bf16.gmra.mxu0 %v932
    %v4228 = vpop.f32.mrf.mxu0
    %v4229 = vadd.f32 %v4140, %v4228
    %v4230 = vpop.f32.mrf.mxu0
    %v4231 = vadd.f32 %v4142, %v4230
    %4232 = vmatmul.bf16.gmra.mxu0 %v939
    %v4233 = vpop.f32.mrf.mxu0
    %v4234 = vadd.f32 %v4145, %v4233
    %v4235 = vpop.f32.mrf.mxu0
    %v4236 = vadd.f32 %v4147, %v4235
    %4237 = vmatmul.bf16.gmra.mxu0 %v946
    %v4238 = vpop.f32.mrf.mxu0
    %v4239 = vadd.f32 %v4150, %v4238
    %v4240 = vpop.f32.mrf.mxu0
    %v4241 = vadd.f32 %v4152, %v4240
    %4242 = vmatmul.bf16.gmra.mxu0 %v953
    %v4243 = vpop.f32.mrf.mxu0
    %v4244 = vadd.f32 %v4155, %v4243
    %v4245 = vpop.f32.mrf.mxu0
    %v4246 = vadd.f32 %v4157, %v4245
    %4247 = vmatmul.bf16.gmra.mxu0 %v960
    %v4248 = vpop.f32.mrf.mxu0
    %v4249 = vadd.f32 %v4160, %v4248
    %v4250 = vpop.f32.mrf.mxu0
    %v4251 = vadd.f32 %v4162, %v4250
    %4252 = vmatmul.bf16.gmra.mxu0 %v967
    %v4253 = vpop.f32.mrf.mxu0
    %v4254 = vadd.f32 %v4165, %v4253
    %v4255 = vpop.f32.mrf.mxu0
    %v4256 = vadd.f32 %v4167, %v4255
    %4257 = vmatmul.bf16.gmra.mxu0 %v974
    %v4258 = vpop.f32.mrf.mxu0
    %v4259 = vadd.f32 %v4170, %v4258
    %v4260 = vpop.f32.mrf.mxu0
    %v4261 = vadd.f32 %v4172, %v4260
    %4262 = vmatmul.bf16.gmra.mxu0 %v981
    %v4263 = vpop.f32.mrf.mxu0
    %v4264 = vadd.f32 %v4175, %v4263
    %v4265 = vpop.f32.mrf.mxu0
    %v4266 = vadd.f32 %v4177, %v4265
    %4267 = vmatmul.bf16.gmra.mxu0 %v988
    %v4268 = vpop.f32.mrf.mxu0
    %v4269 = vadd.f32 %v4180, %v4268
    %v4270 = vpop.f32.mrf.mxu0
    %v4271 = vadd.f32 %v4182, %v4270
    %4272 = vdwg.mxu0
    %4273 = vmatpush.bf16.msra.mxu0 %v1873
    %4274 = vmatpush.bf16.msra.mxu0 %v1869
    %4275 = vmatpush.bf16.msra.mxu0 %v1865
    %4276 = vmatpush.bf16.msra.mxu0 %v1861
    %4277 = vmatpush.bf16.msra.mxu0 %v1857
    %4278 = vmatpush.bf16.msra.mxu0 %v1853
    %4279 = vmatpush.bf16.msra.mxu0 %v1849
    %4280 = vmatpush.bf16.msra.mxu0 %v1845
    %4281 = vmatmul.bf16.gmra.mxu0 %v884
    %v4282 = vpop.f32.mrf.mxu0
    %v4283 = vadd.f32 %v4194, %v4282
    %v4284 = vpop.f32.mrf.mxu0
    %v4285 = vadd.f32 %v4196, %v4284
    %4286 = vmatmul.bf16.gmra.mxu0 %v891
    %v4287 = vpop.f32.mrf.mxu0
    %v4288 = vadd.f32 %v4199, %v4287
    %v4289 = vpop.f32.mrf.mxu0
    %v4290 = vadd.f32 %v4201, %v4289
    %4291 = vmatmul.bf16.gmra.mxu0 %v898
    %v4292 = vpop.f32.mrf.mxu0
    %v4293 = vadd.f32 %v4204, %v4292
    %v4294 = vpop.f32.mrf.mxu0
    %v4295 = vadd.f32 %v4206, %v4294
    %4296 = vmatmul.bf16.gmra.mxu0 %v905
    %v4297 = vpop.f32.mrf.mxu0
    %v4298 = vadd.f32 %v4209, %v4297
    %v4299 = vpop.f32.mrf.mxu0
    %v4300 = vadd.f32 %v4211, %v4299
    %4301 = vmatmul.bf16.gmra.mxu0 %v912
    %v4302 = vpop.f32.mrf.mxu0
    %v4303 = vadd.f32 %v4214, %v4302
    %v4304 = vpop.f32.mrf.mxu0
    %v4305 = vadd.f32 %v4216, %v4304
    %4306 = vmatmul.bf16.gmra.mxu0 %v919
    %v4307 = vpop.f32.mrf.mxu0
    %v4308 = vadd.f32 %v4219, %v4307
    %v4309 = vpop.f32.mrf.mxu0
    %v4310 = vadd.f32 %v4221, %v4309
    %4311 = vmatmul.bf16.gmra.mxu0 %v926
    %v4312 = vpop.f32.mrf.mxu0
    %v4313 = vadd.f32 %v4224, %v4312
    %v4314 = vpop.f32.mrf.mxu0
    %v4315 = vadd.f32 %v4226, %v4314
    %4316 = vmatmul.bf16.gmra.mxu0 %v933
    %v4317 = vpop.f32.mrf.mxu0
    %v4318 = vadd.f32 %v4229, %v4317
    %v4319 = vpop.f32.mrf.mxu0
    %v4320 = vadd.f32 %v4231, %v4319
    %4321 = vmatmul.bf16.gmra.mxu0 %v940
    %v4322 = vpop.f32.mrf.mxu0
    %v4323 = vadd.f32 %v4234, %v4322
    %v4324 = vpop.f32.mrf.mxu0
    %v4325 = vadd.f32 %v4236, %v4324
    %4326 = vmatmul.bf16.gmra.mxu0 %v947
    %v4327 = vpop.f32.mrf.mxu0
    %v4328 = vadd.f32 %v4239, %v4327
    %v4329 = vpop.f32.mrf.mxu0
    %v4330 = vadd.f32 %v4241, %v4329
    %4331 = vmatmul.bf16.gmra.mxu0 %v954
    %v4332 = vpop.f32.mrf.mxu0
    %v4333 = vadd.f32 %v4244, %v4332
    %v4334 = vpop.f32.mrf.mxu0
    %v4335 = vadd.f32 %v4246, %v4334
    %4336 = vmatmul.bf16.gmra.mxu0 %v961
    %v4337 = vpop.f32.mrf.mxu0
    %v4338 = vadd.f32 %v4249, %v4337
    %v4339 = vpop.f32.mrf.mxu0
    %v4340 = vadd.f32 %v4251, %v4339
    %4341 = vmatmul.bf16.gmra.mxu0 %v968
    %v4342 = vpop.f32.mrf.mxu0
    %v4343 = vadd.f32 %v4254, %v4342
    %v4344 = vpop.f32.mrf.mxu0
    %v4345 = vadd.f32 %v4256, %v4344
    %4346 = vmatmul.bf16.gmra.mxu0 %v975
    %v4347 = vpop.f32.mrf.mxu0
    %v4348 = vadd.f32 %v4259, %v4347
    %v4349 = vpop.f32.mrf.mxu0
    %v4350 = vadd.f32 %v4261, %v4349
    %4351 = vmatmul.bf16.gmra.mxu0 %v982
    %v4352 = vpop.f32.mrf.mxu0
    %v4353 = vadd.f32 %v4264, %v4352
    %v4354 = vpop.f32.mrf.mxu0
    %v4355 = vadd.f32 %v4266, %v4354
    %4356 = vmatmul.bf16.gmra.mxu0 %v989
    %v4357 = vpop.f32.mrf.mxu0
    %v4358 = vadd.f32 %v4269, %v4357
    %v4359 = vpop.f32.mrf.mxu0
    %v4360 = vadd.f32 %v4271, %v4359
    %4361 = vdwg.mxu0
    %4362 = vmatpush.bf16.msra.mxu0 %v1905
    %4363 = vmatpush.bf16.msra.mxu0 %v1901
    %4364 = vmatpush.bf16.msra.mxu0 %v1897
    %4365 = vmatpush.bf16.msra.mxu0 %v1893
    %4366 = vmatpush.bf16.msra.mxu0 %v1889
    %4367 = vmatpush.bf16.msra.mxu0 %v1885
    %4368 = vmatpush.bf16.msra.mxu0 %v1881
    %4369 = vmatpush.bf16.msra.mxu0 %v1877
    %4370 = vmatmul.bf16.gmra.mxu0 %v885
    %v4371 = vpop.f32.mrf.mxu0
    %v4372 = vadd.f32 %v4283, %v4371
    %v4373 = vpop.f32.mrf.mxu0
    %v4374 = vadd.f32 %v4285, %v4373
    %4375 = vmatmul.bf16.gmra.mxu0 %v892
    %v4376 = vpop.f32.mrf.mxu0
    %v4377 = vadd.f32 %v4288, %v4376
    %v4378 = vpop.f32.mrf.mxu0
    %v4379 = vadd.f32 %v4290, %v4378
    %4380 = vmatmul.bf16.gmra.mxu0 %v899
    %v4381 = vpop.f32.mrf.mxu0
    %v4382 = vadd.f32 %v4293, %v4381
    %v4383 = vpop.f32.mrf.mxu0
    %v4384 = vadd.f32 %v4295, %v4383
    %4385 = vmatmul.bf16.gmra.mxu0 %v906
    %v4386 = vpop.f32.mrf.mxu0
    %v4387 = vadd.f32 %v4298, %v4386
    %v4388 = vpop.f32.mrf.mxu0
    %v4389 = vadd.f32 %v4300, %v4388
    %4390 = vmatmul.bf16.gmra.mxu0 %v913
    %v4391 = vpop.f32.mrf.mxu0
    %v4392 = vadd.f32 %v4303, %v4391
    %v4393 = vpop.f32.mrf.mxu0
    %v4394 = vadd.f32 %v4305, %v4393
    %4395 = vmatmul.bf16.gmra.mxu0 %v920
    %v4396 = vpop.f32.mrf.mxu0
    %v4397 = vadd.f32 %v4308, %v4396
    %v4398 = vpop.f32.mrf.mxu0
    %v4399 = vadd.f32 %v4310, %v4398
    %4400 = vmatmul.bf16.gmra.mxu0 %v927
    %v4401 = vpop.f32.mrf.mxu0
    %v4402 = vadd.f32 %v4313, %v4401
    %v4403 = vpop.f32.mrf.mxu0
    %v4404 = vadd.f32 %v4315, %v4403
    %4405 = vmatmul.bf16.gmra.mxu0 %v934
    %v4406 = vpop.f32.mrf.mxu0
    %v4407 = vadd.f32 %v4318, %v4406
    %v4408 = vpop.f32.mrf.mxu0
    %v4409 = vadd.f32 %v4320, %v4408
    %4410 = vmatmul.bf16.gmra.mxu0 %v941
    %v4411 = vpop.f32.mrf.mxu0
    %v4412 = vadd.f32 %v4323, %v4411
    %v4413 = vpop.f32.mrf.mxu0
    %v4414 = vadd.f32 %v4325, %v4413
    %4415 = vmatmul.bf16.gmra.mxu0 %v948
    %v4416 = vpop.f32.mrf.mxu0
    %v4417 = vadd.f32 %v4328, %v4416
    %v4418 = vpop.f32.mrf.mxu0
    %v4419 = vadd.f32 %v4330, %v4418
    %4420 = vmatmul.bf16.gmra.mxu0 %v955
    %v4421 = vpop.f32.mrf.mxu0
    %v4422 = vadd.f32 %v4333, %v4421
    %v4423 = vpop.f32.mrf.mxu0
    %v4424 = vadd.f32 %v4335, %v4423
    %4425 = vmatmul.bf16.gmra.mxu0 %v962
    %v4426 = vpop.f32.mrf.mxu0
    %v4427 = vadd.f32 %v4338, %v4426
    %v4428 = vpop.f32.mrf.mxu0
    %v4429 = vadd.f32 %v4340, %v4428
    %4430 = vmatmul.bf16.gmra.mxu0 %v969
    %v4431 = vpop.f32.mrf.mxu0
    %v4432 = vadd.f32 %v4343, %v4431
    %v4433 = vpop.f32.mrf.mxu0
    %v4434 = vadd.f32 %v4345, %v4433
    %4435 = vmatmul.bf16.gmra.mxu0 %v976
    %v4436 = vpop.f32.mrf.mxu0
    %v4437 = vadd.f32 %v4348, %v4436
    %v4438 = vpop.f32.mrf.mxu0
    %v4439 = vadd.f32 %v4350, %v4438
    %4440 = vmatmul.bf16.gmra.mxu0 %v983
    %v4441 = vpop.f32.mrf.mxu0
    %v4442 = vadd.f32 %v4353, %v4441
    %v4443 = vpop.f32.mrf.mxu0
    %v4444 = vadd.f32 %v4355, %v4443
    %4445 = vmatmul.bf16.gmra.mxu0 %v990
    %v4446 = vpop.f32.mrf.mxu0
    %v4447 = vadd.f32 %v4358, %v4446
    %v4448 = vpop.f32.mrf.mxu0
    %v4449 = vadd.f32 %v4360, %v4448
    %4450 = vdwg.mxu0
    %4451 = vmatpush.bf16.msra.mxu0 %v1937
    %4452 = vmatpush.bf16.msra.mxu0 %v1933
    %4453 = vmatpush.bf16.msra.mxu0 %v1929
    %4454 = vmatpush.bf16.msra.mxu0 %v1925
    %4455 = vmatpush.bf16.msra.mxu0 %v1921
    %4456 = vmatpush.bf16.msra.mxu0 %v1917
    %4457 = vmatpush.bf16.msra.mxu0 %v1913
    %4458 = vmatpush.bf16.msra.mxu0 %v1909
    %4459 = vmatmul.bf16.gmra.mxu0 %v886
    %v4460 = vpop.f32.mrf.mxu0
    %v4461 = vadd.f32 %v4372, %v4460
    %v4462 = vpop.f32.mrf.mxu0
    %v4463 = vadd.f32 %v4374, %v4462
    %4464 = vmatmul.bf16.gmra.mxu0 %v893
    %v4465 = vpop.f32.mrf.mxu0
    %v4466 = vadd.f32 %v4377, %v4465
    %v4467 = vpop.f32.mrf.mxu0
    %v4468 = vadd.f32 %v4379, %v4467
    %4469 = vmatmul.bf16.gmra.mxu0 %v900
    %v4470 = vpop.f32.mrf.mxu0
    %v4471 = vadd.f32 %v4382, %v4470
    %v4472 = vpop.f32.mrf.mxu0
    %v4473 = vadd.f32 %v4384, %v4472
    %4474 = vmatmul.bf16.gmra.mxu0 %v907
    %v4475 = vpop.f32.mrf.mxu0
    %v4476 = vadd.f32 %v4387, %v4475
    %v4477 = vpop.f32.mrf.mxu0
    %v4478 = vadd.f32 %v4389, %v4477
    %4479 = vmatmul.bf16.gmra.mxu0 %v914
    %v4480 = vpop.f32.mrf.mxu0
    %v4481 = vadd.f32 %v4392, %v4480
    %v4482 = vpop.f32.mrf.mxu0
    %v4483 = vadd.f32 %v4394, %v4482
    %4484 = vmatmul.bf16.gmra.mxu0 %v921
    %v4485 = vpop.f32.mrf.mxu0
    %v4486 = vadd.f32 %v4397, %v4485
    %v4487 = vpop.f32.mrf.mxu0
    %v4488 = vadd.f32 %v4399, %v4487
    %4489 = vmatmul.bf16.gmra.mxu0 %v928
    %v4490 = vpop.f32.mrf.mxu0
    %v4491 = vadd.f32 %v4402, %v4490
    %v4492 = vpop.f32.mrf.mxu0
    %v4493 = vadd.f32 %v4404, %v4492
    %4494 = vmatmul.bf16.gmra.mxu0 %v935
    %v4495 = vpop.f32.mrf.mxu0
    %v4496 = vadd.f32 %v4407, %v4495
    %v4497 = vpop.f32.mrf.mxu0
    %v4498 = vadd.f32 %v4409, %v4497
    %4499 = vmatmul.bf16.gmra.mxu0 %v942
    %v4500 = vpop.f32.mrf.mxu0
    %v4501 = vadd.f32 %v4412, %v4500
    %v4502 = vpop.f32.mrf.mxu0
    %v4503 = vadd.f32 %v4414, %v4502
    %4504 = vmatmul.bf16.gmra.mxu0 %v949
    %v4505 = vpop.f32.mrf.mxu0
    %v4506 = vadd.f32 %v4417, %v4505
    %v4507 = vpop.f32.mrf.mxu0
    %v4508 = vadd.f32 %v4419, %v4507
    %4509 = vmatmul.bf16.gmra.mxu0 %v956
    %v4510 = vpop.f32.mrf.mxu0
    %v4511 = vadd.f32 %v4422, %v4510
    %v4512 = vpop.f32.mrf.mxu0
    %v4513 = vadd.f32 %v4424, %v4512
    %4514 = vmatmul.bf16.gmra.mxu0 %v963
    %v4515 = vpop.f32.mrf.mxu0
    %v4516 = vadd.f32 %v4427, %v4515
    %v4517 = vpop.f32.mrf.mxu0
    %v4518 = vadd.f32 %v4429, %v4517
    %4519 = vmatmul.bf16.gmra.mxu0 %v970
    %v4520 = vpop.f32.mrf.mxu0
    %v4521 = vadd.f32 %v4432, %v4520
    %v4522 = vpop.f32.mrf.mxu0
    %v4523 = vadd.f32 %v4434, %v4522
    %4524 = vmatmul.bf16.gmra.mxu0 %v977
    %v4525 = vpop.f32.mrf.mxu0
    %v4526 = vadd.f32 %v4437, %v4525
    %v4527 = vpop.f32.mrf.mxu0
    %v4528 = vadd.f32 %v4439, %v4527
    %4529 = vmatmul.bf16.gmra.mxu0 %v984
    %v4530 = vpop.f32.mrf.mxu0
    %v4531 = vadd.f32 %v4442, %v4530
    %v4532 = vpop.f32.mrf.mxu0
    %v4533 = vadd.f32 %v4444, %v4532
    %4534 = vmatmul.bf16.gmra.mxu0 %v991
    %v4535 = vpop.f32.mrf.mxu0
    %v4536 = vadd.f32 %v4447, %v4535
    %v4537 = vpop.f32.mrf.mxu0
    %v4538 = vadd.f32 %v4449, %v4537
    %4539 = vdwg.mxu0
    %4540 = vmatpush.bf16.msra.mxu0 %v1969
    %4541 = vmatpush.bf16.msra.mxu0 %v1965
    %4542 = vmatpush.bf16.msra.mxu0 %v1961
    %4543 = vmatpush.bf16.msra.mxu0 %v1957
    %4544 = vmatpush.bf16.msra.mxu0 %v1953
    %4545 = vmatpush.bf16.msra.mxu0 %v1949
    %4546 = vmatpush.bf16.msra.mxu0 %v1945
    %4547 = vmatpush.bf16.msra.mxu0 %v1941
    %4548 = vmatmul.bf16.gmra.mxu0 %v887
    %v4549 = vpop.f32.mrf.mxu0
    %v4550 = vadd.f32 %v4461, %v4549
    %v4551 = vpop.f32.mrf.mxu0
    %v4552 = vadd.f32 %v4463, %v4551
    %4553 = vmatmul.bf16.gmra.mxu0 %v894
    %v4554 = vpop.f32.mrf.mxu0
    %v4555 = vadd.f32 %v4466, %v4554
    %v4556 = vpop.f32.mrf.mxu0
    %v4557 = vadd.f32 %v4468, %v4556
    %4558 = vmatmul.bf16.gmra.mxu0 %v901
    %v4559 = vpop.f32.mrf.mxu0
    %v4560 = vadd.f32 %v4471, %v4559
    %v4561 = vpop.f32.mrf.mxu0
    %v4562 = vadd.f32 %v4473, %v4561
    %4563 = vmatmul.bf16.gmra.mxu0 %v908
    %v4564 = vpop.f32.mrf.mxu0
    %v4565 = vadd.f32 %v4476, %v4564
    %v4566 = vpop.f32.mrf.mxu0
    %v4567 = vadd.f32 %v4478, %v4566
    %4568 = vmatmul.bf16.gmra.mxu0 %v915
    %v4569 = vpop.f32.mrf.mxu0
    %v4570 = vadd.f32 %v4481, %v4569
    %v4571 = vpop.f32.mrf.mxu0
    %v4572 = vadd.f32 %v4483, %v4571
    %4573 = vmatmul.bf16.gmra.mxu0 %v922
    %v4574 = vpop.f32.mrf.mxu0
    %v4575 = vadd.f32 %v4486, %v4574
    %v4576 = vpop.f32.mrf.mxu0
    %v4577 = vadd.f32 %v4488, %v4576
    %4578 = vmatmul.bf16.gmra.mxu0 %v929
    %v4579 = vpop.f32.mrf.mxu0
    %v4580 = vadd.f32 %v4491, %v4579
    %v4581 = vpop.f32.mrf.mxu0
    %v4582 = vadd.f32 %v4493, %v4581
    %4583 = vmatmul.bf16.gmra.mxu0 %v936
    %v4584 = vpop.f32.mrf.mxu0
    %v4585 = vadd.f32 %v4496, %v4584
    %v4586 = vpop.f32.mrf.mxu0
    %v4587 = vadd.f32 %v4498, %v4586
    %4588 = vmatmul.bf16.gmra.mxu0 %v943
    %v4589 = vpop.f32.mrf.mxu0
    %v4590 = vadd.f32 %v4501, %v4589
    %v4591 = vpop.f32.mrf.mxu0
    %v4592 = vadd.f32 %v4503, %v4591
    %4593 = vmatmul.bf16.gmra.mxu0 %v950
    %v4594 = vpop.f32.mrf.mxu0
    %v4595 = vadd.f32 %v4506, %v4594
    %v4596 = vpop.f32.mrf.mxu0
    %v4597 = vadd.f32 %v4508, %v4596
    %4598 = vmatmul.bf16.gmra.mxu0 %v957
    %v4599 = vpop.f32.mrf.mxu0
    %v4600 = vadd.f32 %v4511, %v4599
    %v4601 = vpop.f32.mrf.mxu0
    %v4602 = vadd.f32 %v4513, %v4601
    %4603 = vmatmul.bf16.gmra.mxu0 %v964
    %v4604 = vpop.f32.mrf.mxu0
    %v4605 = vadd.f32 %v4516, %v4604
    %v4606 = vpop.f32.mrf.mxu0
    %v4607 = vadd.f32 %v4518, %v4606
    %4608 = vmatmul.bf16.gmra.mxu0 %v971
    %v4609 = vpop.f32.mrf.mxu0
    %v4610 = vadd.f32 %v4521, %v4609
    %v4611 = vpop.f32.mrf.mxu0
    %v4612 = vadd.f32 %v4523, %v4611
    %4613 = vmatmul.bf16.gmra.mxu0 %v978
    %v4614 = vpop.f32.mrf.mxu0
    %v4615 = vadd.f32 %v4526, %v4614
    %v4616 = vpop.f32.mrf.mxu0
    %v4617 = vadd.f32 %v4528, %v4616
    %4618 = vmatmul.bf16.gmra.mxu0 %v985
    %v4619 = vpop.f32.mrf.mxu0
    %v4620 = vadd.f32 %v4531, %v4619
    %v4621 = vpop.f32.mrf.mxu0
    %v4622 = vadd.f32 %v4533, %v4621
    %4623 = vmatmul.bf16.gmra.mxu0 %v992
    %v4624 = vpop.f32.mrf.mxu0
    %v4625 = vadd.f32 %v4536, %v4624
    %v4626 = vpop.f32.mrf.mxu0
    %v4627 = vadd.f32 %v4538, %v4626
    %4628 = vdwg.mxu0
    %4629 = vmatpush.bf16.msra.mxu0 %v2001
    %4630 = vmatpush.bf16.msra.mxu0 %v1997
    %4631 = vmatpush.bf16.msra.mxu0 %v1993
    %4632 = vmatpush.bf16.msra.mxu0 %v1989
    %4633 = vmatpush.bf16.msra.mxu0 %v1985
    %4634 = vmatpush.bf16.msra.mxu0 %v1981
    %4635 = vmatpush.bf16.msra.mxu0 %v1977
    %4636 = vmatpush.bf16.msra.mxu0 %v1973
    %4637 = vmatmul.bf16.gmra.mxu0 %v888
    %v4638 = vpop.f32.mrf.mxu0
    %v4639 = vadd.f32 %v4550, %v4638
    %v4640 = vpop.f32.mrf.mxu0
    %v4641 = vadd.f32 %v4552, %v4640
    %4642 = vmatmul.bf16.gmra.mxu0 %v895
    %v4643 = vpop.f32.mrf.mxu0
    %v4644 = vadd.f32 %v4555, %v4643
    %v4645 = vpop.f32.mrf.mxu0
    %v4646 = vadd.f32 %v4557, %v4645
    %4647 = vmatmul.bf16.gmra.mxu0 %v902
    %v4648 = vpop.f32.mrf.mxu0
    %v4649 = vadd.f32 %v4560, %v4648
    %v4650 = vpop.f32.mrf.mxu0
    %v4651 = vadd.f32 %v4562, %v4650
    %4652 = vmatmul.bf16.gmra.mxu0 %v909
    %v4653 = vpop.f32.mrf.mxu0
    %v4654 = vadd.f32 %v4565, %v4653
    %v4655 = vpop.f32.mrf.mxu0
    %v4656 = vadd.f32 %v4567, %v4655
    %4657 = vmatmul.bf16.gmra.mxu0 %v916
    %v4658 = vpop.f32.mrf.mxu0
    %v4659 = vadd.f32 %v4570, %v4658
    %v4660 = vpop.f32.mrf.mxu0
    %v4661 = vadd.f32 %v4572, %v4660
    %4662 = vmatmul.bf16.gmra.mxu0 %v923
    %v4663 = vpop.f32.mrf.mxu0
    %v4664 = vadd.f32 %v4575, %v4663
    %v4665 = vpop.f32.mrf.mxu0
    %v4666 = vadd.f32 %v4577, %v4665
    %4667 = vmatmul.bf16.gmra.mxu0 %v930
    %v4668 = vpop.f32.mrf.mxu0
    %v4669 = vadd.f32 %v4580, %v4668
    %v4670 = vpop.f32.mrf.mxu0
    %v4671 = vadd.f32 %v4582, %v4670
    %4672 = vmatmul.bf16.gmra.mxu0 %v937
    %v4673 = vpop.f32.mrf.mxu0
    %v4674 = vadd.f32 %v4585, %v4673
    %v4675 = vpop.f32.mrf.mxu0
    %v4676 = vadd.f32 %v4587, %v4675
    %4677 = vmatmul.bf16.gmra.mxu0 %v944
    %v4678 = vpop.f32.mrf.mxu0
    %v4679 = vadd.f32 %v4590, %v4678
    %v4680 = vpop.f32.mrf.mxu0
    %v4681 = vadd.f32 %v4592, %v4680
    %4682 = vmatmul.bf16.gmra.mxu0 %v951
    %v4683 = vpop.f32.mrf.mxu0
    %v4684 = vadd.f32 %v4595, %v4683
    %v4685 = vpop.f32.mrf.mxu0
    %v4686 = vadd.f32 %v4597, %v4685
    %4687 = vmatmul.bf16.gmra.mxu0 %v958
    %v4688 = vpop.f32.mrf.mxu0
    %v4689 = vadd.f32 %v4600, %v4688
    %v4690 = vpop.f32.mrf.mxu0
    %v4691 = vadd.f32 %v4602, %v4690
    %4692 = vmatmul.bf16.gmra.mxu0 %v965
    %v4693 = vpop.f32.mrf.mxu0
    %v4694 = vadd.f32 %v4605, %v4693
    %v4695 = vpop.f32.mrf.mxu0
    %v4696 = vadd.f32 %v4607, %v4695
    %4697 = vmatmul.bf16.gmra.mxu0 %v972
    %v4698 = vpop.f32.mrf.mxu0
    %v4699 = vadd.f32 %v4610, %v4698
    %v4700 = vpop.f32.mrf.mxu0
    %v4701 = vadd.f32 %v4612, %v4700
    %4702 = vmatmul.bf16.gmra.mxu0 %v979
    %v4703 = vpop.f32.mrf.mxu0
    %v4704 = vadd.f32 %v4615, %v4703
    %v4705 = vpop.f32.mrf.mxu0
    %v4706 = vadd.f32 %v4617, %v4705
    %4707 = vmatmul.bf16.gmra.mxu0 %v986
    %v4708 = vpop.f32.mrf.mxu0
    %v4709 = vadd.f32 %v4620, %v4708
    %v4710 = vpop.f32.mrf.mxu0
    %v4711 = vadd.f32 %v4622, %v4710
    %4712 = vmatmul.bf16.gmra.mxu0 %v993
    %v4713 = vpop.f32.mrf.mxu0
    %v4714 = vadd.f32 %v4625, %v4713
    %v4715 = vpop.f32.mrf.mxu0
    %v4716 = vadd.f32 %v4627, %v4715
    %4717 = vdwg.mxu0
    %v4718 = vmax.f32 %v2770, 0.0
    %v4719 = vmax.f32 %v3393, 0.0
    %v4720 = vmax.f32 %v4016, 0.0
    %v4721 = vmax.f32 %v4639, 0.0
    %v4722 = vmax.f32 %v2772, 0.0
    %v4723 = vmax.f32 %v3395, 0.0
    %v4724 = vmax.f32 %v4018, 0.0
    %v4725 = vmax.f32 %v4641, 0.0
    %v4726 = vmax.f32 %v2775, 0.0
    %v4727 = vmax.f32 %v3398, 0.0
    %v4728 = vmax.f32 %v4021, 0.0
    %v4729 = vmax.f32 %v4644, 0.0
    %v4730 = vmax.f32 %v2777, 0.0
    %v4731 = vmax.f32 %v3400, 0.0
    %v4732 = vmax.f32 %v4023, 0.0
    %v4733 = vmax.f32 %v4646, 0.0
    %v4734 = vmax.f32 %v2780, 0.0
    %v4735 = vmax.f32 %v3403, 0.0
    %v4736 = vmax.f32 %v4026, 0.0
    %v4737 = vmax.f32 %v4649, 0.0
    %v4738 = vmax.f32 %v2782, 0.0
    %v4739 = vmax.f32 %v3405, 0.0
    %v4740 = vmax.f32 %v4028, 0.0
    %v4741 = vmax.f32 %v4651, 0.0
    %v4742 = vmax.f32 %v2785, 0.0
    %v4743 = vmax.f32 %v3408, 0.0
    %v4744 = vmax.f32 %v4031, 0.0
    %v4745 = vmax.f32 %v4654, 0.0
    %v4746 = vmax.f32 %v2787, 0.0
    %v4747 = vmax.f32 %v3410, 0.0
    %v4748 = vmax.f32 %v4033, 0.0
    %v4749 = vmax.f32 %v4656, 0.0
    %v4750 = vmax.f32 %v2790, 0.0
    %v4751 = vmax.f32 %v3413, 0.0
    %v4752 = vmax.f32 %v4036, 0.0
    %v4753 = vmax.f32 %v4659, 0.0
    %v4754 = vmax.f32 %v2792, 0.0
    %v4755 = vmax.f32 %v3415, 0.0
    %v4756 = vmax.f32 %v4038, 0.0
    %v4757 = vmax.f32 %v4661, 0.0
    %v4758 = vmax.f32 %v2795, 0.0
    %v4759 = vmax.f32 %v3418, 0.0
    %v4760 = vmax.f32 %v4041, 0.0
    %v4761 = vmax.f32 %v4664, 0.0
    %v4762 = vmax.f32 %v2797, 0.0
    %v4763 = vmax.f32 %v3420, 0.0
    %v4764 = vmax.f32 %v4043, 0.0
    %v4765 = vmax.f32 %v4666, 0.0
    %v4766 = vmax.f32 %v2800, 0.0
    %v4767 = vmax.f32 %v3423, 0.0
    %v4768 = vmax.f32 %v4046, 0.0
    %v4769 = vmax.f32 %v4669, 0.0
    %v4770 = vmax.f32 %v2802, 0.0
    %v4771 = vmax.f32 %v3425, 0.0
    %v4772 = vmax.f32 %v4048, 0.0
    %v4773 = vmax.f32 %v4671, 0.0
    %v4774 = vmax.f32 %v2805, 0.0
    %v4775 = vmax.f32 %v3428, 0.0
    %v4776 = vmax.f32 %v4051, 0.0
    %v4777 = vmax.f32 %v4674, 0.0
    %v4778 = vmax.f32 %v2807, 0.0
    %v4779 = vmax.f32 %v3430, 0.0
    %v4780 = vmax.f32 %v4053, 0.0
    %v4781 = vmax.f32 %v4676, 0.0
    %v4782 = vmax.f32 %v2810, 0.0
    %v4783 = vmax.f32 %v3433, 0.0
    %v4784 = vmax.f32 %v4056, 0.0
    %v4785 = vmax.f32 %v4679, 0.0
    %v4786 = vmax.f32 %v2812, 0.0
    %v4787 = vmax.f32 %v3435, 0.0
    %v4788 = vmax.f32 %v4058, 0.0
    %v4789 = vmax.f32 %v4681, 0.0
    %v4790 = vmax.f32 %v2815, 0.0
    %v4791 = vmax.f32 %v3438, 0.0
    %v4792 = vmax.f32 %v4061, 0.0
    %v4793 = vmax.f32 %v4684, 0.0
    %v4794 = vmax.f32 %v2817, 0.0
    %v4795 = vmax.f32 %v3440, 0.0
    %v4796 = vmax.f32 %v4063, 0.0
    %v4797 = vmax.f32 %v4686, 0.0
    %v4798 = vmax.f32 %v2820, 0.0
    %v4799 = vmax.f32 %v3443, 0.0
    %v4800 = vmax.f32 %v4066, 0.0
    %v4801 = vmax.f32 %v4689, 0.0
    %v4802 = vmax.f32 %v2822, 0.0
    %v4803 = vmax.f32 %v3445, 0.0
    %v4804 = vmax.f32 %v4068, 0.0
    %v4805 = vmax.f32 %v4691, 0.0
    %v4806 = vmax.f32 %v2825, 0.0
    %v4807 = vmax.f32 %v3448, 0.0
    %v4808 = vmax.f32 %v4071, 0.0
    %v4809 = vmax.f32 %v4694, 0.0
    %v4810 = vmax.f32 %v2827, 0.0
    %v4811 = vmax.f32 %v3450, 0.0
    %v4812 = vmax.f32 %v4073, 0.0
    %v4813 = vmax.f32 %v4696, 0.0
    %v4814 = vmax.f32 %v2830, 0.0
    %v4815 = vmax.f32 %v3453, 0.0
    %v4816 = vmax.f32 %v4076, 0.0
    %v4817 = vmax.f32 %v4699, 0.0
    %v4818 = vmax.f32 %v2832, 0.0
    %v4819 = vmax.f32 %v3455, 0.0
    %v4820 = vmax.f32 %v4078, 0.0
    %v4821 = vmax.f32 %v4701, 0.0
    %v4822 = vmax.f32 %v2835, 0.0
    %v4823 = vmax.f32 %v3458, 0.0
    %v4824 = vmax.f32 %v4081, 0.0
    %v4825 = vmax.f32 %v4704, 0.0
    %v4826 = vmax.f32 %v2837, 0.0
    %v4827 = vmax.f32 %v3460, 0.0
    %v4828 = vmax.f32 %v4083, 0.0
    %v4829 = vmax.f32 %v4706, 0.0
    %v4830 = vmax.f32 %v2840, 0.0
    %v4831 = vmax.f32 %v3463, 0.0
    %v4832 = vmax.f32 %v4086, 0.0
    %v4833 = vmax.f32 %v4709, 0.0
    %v4834 = vmax.f32 %v2842, 0.0
    %v4835 = vmax.f32 %v3465, 0.0
    %v4836 = vmax.f32 %v4088, 0.0
    %v4837 = vmax.f32 %v4711, 0.0
    %v4838 = vmax.f32 %v2845, 0.0
    %v4839 = vmax.f32 %v3468, 0.0
    %v4840 = vmax.f32 %v4091, 0.0
    %v4841 = vmax.f32 %v4714, 0.0
    %v4842 = vmax.f32 %v2847, 0.0
    %v4843 = vmax.f32 %v3470, 0.0
    %v4844 = vmax.f32 %v4093, 0.0
    %v4845 = vmax.f32 %v4716, 0.0
    %v4846 = vpack.c.bf16 %v4722, %v4718
    %v4847 = vpack.c.bf16 %v4723, %v4719
    %v4848 = vpack.c.bf16 %v4724, %v4720
    %v4849 = vpack.c.bf16 %v4725, %v4721
    %v4850 = vpack.c.bf16 %v4730, %v4726
    %v4851 = vpack.c.bf16 %v4731, %v4727
    %v4852 = vpack.c.bf16 %v4732, %v4728
    %v4853 = vpack.c.bf16 %v4733, %v4729
    %v4854 = vpack.c.bf16 %v4738, %v4734
    %v4855 = vpack.c.bf16 %v4739, %v4735
    %v4856 = vpack.c.bf16 %v4740, %v4736
    %v4857 = vpack.c.bf16 %v4741, %v4737
    %v4858 = vpack.c.bf16 %v4746, %v4742
    %v4859 = vpack.c.bf16 %v4747, %v4743
    %v4860 = vpack.c.bf16 %v4748, %v4744
    %v4861 = vpack.c.bf16 %v4749, %v4745
    %v4862 = vpack.c.bf16 %v4754, %v4750
    %v4863 = vpack.c.bf16 %v4755, %v4751
    %v4864 = vpack.c.bf16 %v4756, %v4752
    %v4865 = vpack.c.bf16 %v4757, %v4753
    %v4866 = vpack.c.bf16 %v4762, %v4758
    %v4867 = vpack.c.bf16 %v4763, %v4759
    %v4868 = vpack.c.bf16 %v4764, %v4760
    %v4869 = vpack.c.bf16 %v4765, %v4761
    %v4870 = vpack.c.bf16 %v4770, %v4766
    %v4871 = vpack.c.bf16 %v4771, %v4767
    %v4872 = vpack.c.bf16 %v4772, %v4768
    %v4873 = vpack.c.bf16 %v4773, %v4769
    %v4874 = vpack.c.bf16 %v4778, %v4774
    %v4875 = vpack.c.bf16 %v4779, %v4775
    %v4876 = vpack.c.bf16 %v4780, %v4776
    %v4877 = vpack.c.bf16 %v4781, %v4777
    %v4878 = vpack.c.bf16 %v4786, %v4782
    %v4879 = vpack.c.bf16 %v4787, %v4783
    %v4880 = vpack.c.bf16 %v4788, %v4784
    %v4881 = vpack.c.bf16 %v4789, %v4785
    %v4882 = vpack.c.bf16 %v4794, %v4790
    %v4883 = vpack.c.bf16 %v4795, %v4791
    %v4884 = vpack.c.bf16 %v4796, %v4792
    %v4885 = vpack.c.bf16 %v4797, %v4793
    %v4886 = vpack.c.bf16 %v4802, %v4798
    %v4887 = vpack.c.bf16 %v4803, %v4799
    %v4888 = vpack.c.bf16 %v4804, %v4800
    %v4889 = vpack.c.bf16 %v4805, %v4801
    %v4890 = vpack.c.bf16 %v4810, %v4806
    %v4891 = vpack.c.bf16 %v4811, %v4807
    %v4892 = vpack.c.bf16 %v4812, %v4808
    %v4893 = vpack.c.bf16 %v4813, %v4809
    %v4894 = vpack.c.bf16 %v4818, %v4814
    %v4895 = vpack.c.bf16 %v4819, %v4815
    %v4896 = vpack.c.bf16 %v4820, %v4816
    %v4897 = vpack.c.bf16 %v4821, %v4817
    %v4898 = vpack.c.bf16 %v4826, %v4822
    %v4899 = vpack.c.bf16 %v4827, %v4823
    %v4900 = vpack.c.bf16 %v4828, %v4824
    %v4901 = vpack.c.bf16 %v4829, %v4825
    %v4902 = vpack.c.bf16 %v4834, %v4830
    %v4903 = vpack.c.bf16 %v4835, %v4831
    %v4904 = vpack.c.bf16 %v4836, %v4832
    %v4905 = vpack.c.bf16 %v4837, %v4833
    %v4906 = vpack.c.bf16 %v4842, %v4838
    %v4907 = vpack.c.bf16 %v4843, %v4839
    %v4908 = vpack.c.bf16 %v4844, %v4840
    %v4909 = vpack.c.bf16 %v4845, %v4841
    %v4910 = vld [vmem:[#allocation8] sm:$0xff]
    %v4911 = vld [vmem:[#allocation8 + $0x8] sm:$0xff]
    %v4912 = vld [vmem:[#allocation8 + $0x10] sm:$0xff]
    %v4913 = vld [vmem:[#allocation8 + $0x18] sm:$0xff]
    %v4914 = vld [vmem:[#allocation8 + $0x20] sm:$0xff]
    %v4915 = vld [vmem:[#allocation8 + $0x28] sm:$0xff]
    %v4916 = vld [vmem:[#allocation8 + $0x30] sm:$0xff]
    %v4917 = vld [vmem:[#allocation8 + $0x38] sm:$0xff]
    %v4918 = vld [vmem:[#allocation8 + $0x40] sm:$0xff]
    %v4919 = vld [vmem:[#allocation8 + $0x48] sm:$0xff]
    %v4920 = vld [vmem:[#allocation8 + $0x50] sm:$0xff]
    %v4921 = vld [vmem:[#allocation8 + $0x58] sm:$0xff]
    %v4922 = vld [vmem:[#allocation8 + $0x60] sm:$0xff]
    %v4923 = vld [vmem:[#allocation8 + $0x68] sm:$0xff]
    %v4924 = vld [vmem:[#allocation8 + $0x70] sm:$0xff]
    %v4925 = vld [vmem:[#allocation8 + $0x78] sm:$0xff]
    %v4926 = vld [vmem:[#allocation8 + $0x80] sm:$0xff]
    %v4927 = vld [vmem:[#allocation8 + $0x88] sm:$0xff]
    %v4928 = vld [vmem:[#allocation8 + $0x90] sm:$0xff]
    %v4929 = vld [vmem:[#allocation8 + $0x98] sm:$0xff]
    %v4930 = vld [vmem:[#allocation8 + $0xa0] sm:$0xff]
    %v4931 = vld [vmem:[#allocation8 + $0xa8] sm:$0xff]
    %v4932 = vld [vmem:[#allocation8 + $0xb0] sm:$0xff]
    %v4933 = vld [vmem:[#allocation8 + $0xb8] sm:$0xff]
    %v4934 = vld [vmem:[#allocation8 + $0xc0] sm:$0xff]
    %v4935 = vld [vmem:[#allocation8 + $0xc8] sm:$0xff]
    %v4936 = vld [vmem:[#allocation8 + $0xd0] sm:$0xff]
    %v4937 = vld [vmem:[#allocation8 + $0xd8] sm:$0xff]
    %v4938 = vld [vmem:[#allocation8 + $0xe0] sm:$0xff]
    %v4939 = vld [vmem:[#allocation8 + $0xe8] sm:$0xff]
    %v4940 = vld [vmem:[#allocation8 + $0xf0] sm:$0xff]
    %v4941 = vld [vmem:[#allocation8 + $0xf8] sm:$0xff]
    %v4942 = vld [vmem:[#allocation8 + $0x100] sm:$0xff]
    %v4943 = vld [vmem:[#allocation8 + $0x108] sm:$0xff]
    %v4944 = vld [vmem:[#allocation8 + $0x110] sm:$0xff]
    %v4945 = vld [vmem:[#allocation8 + $0x118] sm:$0xff]
    %v4946 = vld [vmem:[#allocation8 + $0x120] sm:$0xff]
    %v4947 = vld [vmem:[#allocation8 + $0x128] sm:$0xff]
    %v4948 = vld [vmem:[#allocation8 + $0x130] sm:$0xff]
    %v4949 = vld [vmem:[#allocation8 + $0x138] sm:$0xff]
    %v4950 = vld [vmem:[#allocation8 + $0x140] sm:$0xff]
    %v4951 = vld [vmem:[#allocation8 + $0x148] sm:$0xff]
    %v4952 = vld [vmem:[#allocation8 + $0x150] sm:$0xff]
    %v4953 = vld [vmem:[#allocation8 + $0x158] sm:$0xff]
    %v4954 = vld [vmem:[#allocation8 + $0x160] sm:$0xff]
    %v4955 = vld [vmem:[#allocation8 + $0x168] sm:$0xff]
    %v4956 = vld [vmem:[#allocation8 + $0x170] sm:$0xff]
    %v4957 = vld [vmem:[#allocation8 + $0x178] sm:$0xff]
    %v4958 = vld [vmem:[#allocation8 + $0x180] sm:$0xff]
    %v4959 = vld [vmem:[#allocation8 + $0x188] sm:$0xff]
    %v4960 = vld [vmem:[#allocation8 + $0x190] sm:$0xff]
    %v4961 = vld [vmem:[#allocation8 + $0x198] sm:$0xff]
    %v4962 = vld [vmem:[#allocation8 + $0x1a0] sm:$0xff]
    %v4963 = vld [vmem:[#allocation8 + $0x1a8] sm:$0xff]
    %v4964 = vld [vmem:[#allocation8 + $0x1b0] sm:$0xff]
    %v4965 = vld [vmem:[#allocation8 + $0x1b8] sm:$0xff]
    %v4966 = vld [vmem:[#allocation8 + $0x1c0] sm:$0xff]
    %v4967 = vld [vmem:[#allocation8 + $0x1c8] sm:$0xff]
    %v4968 = vld [vmem:[#allocation8 + $0x1d0] sm:$0xff]
    %v4969 = vld [vmem:[#allocation8 + $0x1d8] sm:$0xff]
    %v4970 = vld [vmem:[#allocation8 + $0x1e0] sm:$0xff]
    %v4971 = vld [vmem:[#allocation8 + $0x1e8] sm:$0xff]
    %v4972 = vld [vmem:[#allocation8 + $0x1f0] sm:$0xff]
    %v4973 = vld [vmem:[#allocation8 + $0x1f8] sm:$0xff]
    %v4974 = vld [vmem:[%s4] sm:$0x3]
    %v4976 = vperm.slane %v4974, 0
    %v4977 = vperm.slane %v4974, 1
    %v5044 = vunpack.c.l.b16 %v4910
    %v5045 = vunpack.c.h.b16 %v4910
    %v5046 = vunpack.c.l.b16 %v4911
    %v5047 = vunpack.c.h.b16 %v4911
    %v5048 = vunpack.c.l.b16 %v4912
    %v5049 = vunpack.c.h.b16 %v4912
    %v5050 = vunpack.c.l.b16 %v4913
    %v5051 = vunpack.c.h.b16 %v4913
    %v5052 = vunpack.c.l.b16 %v4914
    %v5053 = vunpack.c.h.b16 %v4914
    %v5054 = vunpack.c.l.b16 %v4915
    %v5055 = vunpack.c.h.b16 %v4915
    %v5056 = vunpack.c.l.b16 %v4916
    %v5057 = vunpack.c.h.b16 %v4916
    %v5058 = vunpack.c.l.b16 %v4917
    %v5059 = vunpack.c.h.b16 %v4917
    %v5060 = vunpack.c.l.b16 %v4918
    %v5061 = vunpack.c.h.b16 %v4918
    %v5062 = vunpack.c.l.b16 %v4919
    %v5063 = vunpack.c.h.b16 %v4919
    %v5064 = vunpack.c.l.b16 %v4920
    %v5065 = vunpack.c.h.b16 %v4920
    %v5066 = vunpack.c.l.b16 %v4921
    %v5067 = vunpack.c.h.b16 %v4921
    %v5068 = vunpack.c.l.b16 %v4922
    %v5069 = vunpack.c.h.b16 %v4922
    %v5070 = vunpack.c.l.b16 %v4923
    %v5071 = vunpack.c.h.b16 %v4923
    %v5072 = vunpack.c.l.b16 %v4924
    %v5073 = vunpack.c.h.b16 %v4924
    %v5074 = vunpack.c.l.b16 %v4925
    %v5075 = vunpack.c.h.b16 %v4925
    %v5076 = vunpack.c.l.b16 %v4926
    %v5077 = vunpack.c.h.b16 %v4926
    %v5078 = vunpack.c.l.b16 %v4927
    %v5079 = vunpack.c.h.b16 %v4927
    %v5080 = vunpack.c.l.b16 %v4928
    %v5081 = vunpack.c.h.b16 %v4928
    %v5082 = vunpack.c.l.b16 %v4929
    %v5083 = vunpack.c.h.b16 %v4929
    %v5084 = vunpack.c.l.b16 %v4930
    %v5085 = vunpack.c.h.b16 %v4930
    %v5086 = vunpack.c.l.b16 %v4931
    %v5087 = vunpack.c.h.b16 %v4931
    %v5088 = vunpack.c.l.b16 %v4932
    %v5089 = vunpack.c.h.b16 %v4932
    %v5090 = vunpack.c.l.b16 %v4933
    %v5091 = vunpack.c.h.b16 %v4933
    %v5092 = vunpack.c.l.b16 %v4934
    %v5093 = vunpack.c.h.b16 %v4934
    %v5094 = vunpack.c.l.b16 %v4935
    %v5095 = vunpack.c.h.b16 %v4935
    %v5096 = vunpack.c.l.b16 %v4936
    %v5097 = vunpack.c.h.b16 %v4936
    %v5098 = vunpack.c.l.b16 %v4937
    %v5099 = vunpack.c.h.b16 %v4937
    %v5100 = vunpack.c.l.b16 %v4938
    %v5101 = vunpack.c.h.b16 %v4938
    %v5102 = vunpack.c.l.b16 %v4939
    %v5103 = vunpack.c.h.b16 %v4939
    %v5104 = vunpack.c.l.b16 %v4940
    %v5105 = vunpack.c.h.b16 %v4940
    %v5106 = vunpack.c.l.b16 %v4941
    %v5107 = vunpack.c.h.b16 %v4941
    %v5108 = vunpack.c.l.b16 %v4942
    %v5109 = vunpack.c.h.b16 %v4942
    %v5110 = vunpack.c.l.b16 %v4943
    %v5111 = vunpack.c.h.b16 %v4943
    %v5112 = vunpack.c.l.b16 %v4944
    %v5113 = vunpack.c.h.b16 %v4944
    %v5114 = vunpack.c.l.b16 %v4945
    %v5115 = vunpack.c.h.b16 %v4945
    %v5116 = vunpack.c.l.b16 %v4946
    %v5117 = vunpack.c.h.b16 %v4946
    %v5118 = vunpack.c.l.b16 %v4947
    %v5119 = vunpack.c.h.b16 %v4947
    %v5120 = vunpack.c.l.b16 %v4948
    %v5121 = vunpack.c.h.b16 %v4948
    %v5122 = vunpack.c.l.b16 %v4949
    %v5123 = vunpack.c.h.b16 %v4949
    %v5124 = vunpack.c.l.b16 %v4950
    %v5125 = vunpack.c.h.b16 %v4950
    %v5126 = vunpack.c.l.b16 %v4951
    %v5127 = vunpack.c.h.b16 %v4951
    %v5128 = vunpack.c.l.b16 %v4952
    %v5129 = vunpack.c.h.b16 %v4952
    %v5130 = vunpack.c.l.b16 %v4953
    %v5131 = vunpack.c.h.b16 %v4953
    %v5132 = vunpack.c.l.b16 %v4954
    %v5133 = vunpack.c.h.b16 %v4954
    %v5134 = vunpack.c.l.b16 %v4955
    %v5135 = vunpack.c.h.b16 %v4955
    %v5136 = vunpack.c.l.b16 %v4956
    %v5137 = vunpack.c.h.b16 %v4956
    %v5138 = vunpack.c.l.b16 %v4957
    %v5139 = vunpack.c.h.b16 %v4957
    %v5140 = vunpack.c.l.b16 %v4958
    %v5141 = vunpack.c.h.b16 %v4958
    %v5142 = vunpack.c.l.b16 %v4959
    %v5143 = vunpack.c.h.b16 %v4959
    %v5144 = vunpack.c.l.b16 %v4960
    %v5145 = vunpack.c.h.b16 %v4960
    %v5146 = vunpack.c.l.b16 %v4961
    %v5147 = vunpack.c.h.b16 %v4961
    %v5148 = vunpack.c.l.b16 %v4962
    %v5149 = vunpack.c.h.b16 %v4962
    %v5150 = vunpack.c.l.b16 %v4963
    %v5151 = vunpack.c.h.b16 %v4963
    %v5152 = vunpack.c.l.b16 %v4964
    %v5153 = vunpack.c.h.b16 %v4964
    %v5154 = vunpack.c.l.b16 %v4965
    %v5155 = vunpack.c.h.b16 %v4965
    %v5156 = vunpack.c.l.b16 %v4966
    %v5157 = vunpack.c.h.b16 %v4966
    %v5158 = vunpack.c.l.b16 %v4967
    %v5159 = vunpack.c.h.b16 %v4967
    %v5160 = vunpack.c.l.b16 %v4968
    %v5161 = vunpack.c.h.b16 %v4968
    %v5162 = vunpack.c.l.b16 %v4969
    %v5163 = vunpack.c.h.b16 %v4969
    %v5164 = vunpack.c.l.b16 %v4970
    %v5165 = vunpack.c.h.b16 %v4970
    %v5166 = vunpack.c.l.b16 %v4971
    %v5167 = vunpack.c.h.b16 %v4971
    %v5168 = vunpack.c.l.b16 %v4972
    %v5169 = vunpack.c.h.b16 %v4972
    %v5170 = vunpack.c.l.b16 %v4973
    %v5171 = vunpack.c.h.b16 %v4973
    %v5172 = vpack.c.b16 %v5046, %v5044
    %v5173 = vpack.c.b16 %v5047, %v5045
    %v5174 = vpack.c.b16 %v5050, %v5048
    %v5175 = vpack.c.b16 %v5051, %v5049
    %v5176 = vpack.c.b16 %v5054, %v5052
    %v5177 = vpack.c.b16 %v5055, %v5053
    %v5178 = vpack.c.b16 %v5058, %v5056
    %v5179 = vpack.c.b16 %v5059, %v5057
    %v5180 = vpack.c.b16 %v5062, %v5060
    %v5181 = vpack.c.b16 %v5063, %v5061
    %v5182 = vpack.c.b16 %v5066, %v5064
    %v5183 = vpack.c.b16 %v5067, %v5065
    %v5184 = vpack.c.b16 %v5070, %v5068
    %v5185 = vpack.c.b16 %v5071, %v5069
    %v5186 = vpack.c.b16 %v5074, %v5072
    %v5187 = vpack.c.b16 %v5075, %v5073
    %v5188 = vpack.c.b16 %v5078, %v5076
    %v5189 = vpack.c.b16 %v5079, %v5077
    %v5190 = vpack.c.b16 %v5082, %v5080
    %v5191 = vpack.c.b16 %v5083, %v5081
    %v5192 = vpack.c.b16 %v5086, %v5084
    %v5193 = vpack.c.b16 %v5087, %v5085
    %v5194 = vpack.c.b16 %v5090, %v5088
    %v5195 = vpack.c.b16 %v5091, %v5089
    %v5196 = vpack.c.b16 %v5094, %v5092
    %v5197 = vpack.c.b16 %v5095, %v5093
    %v5198 = vpack.c.b16 %v5098, %v5096
    %v5199 = vpack.c.b16 %v5099, %v5097
    %v5200 = vpack.c.b16 %v5102, %v5100
    %v5201 = vpack.c.b16 %v5103, %v5101
    %v5202 = vpack.c.b16 %v5106, %v5104
    %v5203 = vpack.c.b16 %v5107, %v5105
    %v5204 = vpack.c.b16 %v5110, %v5108
    %v5205 = vpack.c.b16 %v5111, %v5109
    %v5206 = vpack.c.b16 %v5114, %v5112
    %v5207 = vpack.c.b16 %v5115, %v5113
    %v5208 = vpack.c.b16 %v5118, %v5116
    %v5209 = vpack.c.b16 %v5119, %v5117
    %v5210 = vpack.c.b16 %v5122, %v5120
    %v5211 = vpack.c.b16 %v5123, %v5121
    %v5212 = vpack.c.b16 %v5126, %v5124
    %v5213 = vpack.c.b16 %v5127, %v5125
    %v5214 = vpack.c.b16 %v5130, %v5128
    %v5215 = vpack.c.b16 %v5131, %v5129
    %v5216 = vpack.c.b16 %v5134, %v5132
    %v5217 = vpack.c.b16 %v5135, %v5133
    %v5218 = vpack.c.b16 %v5138, %v5136
    %v5219 = vpack.c.b16 %v5139, %v5137
    %v5220 = vpack.c.b16 %v5142, %v5140
    %v5221 = vpack.c.b16 %v5143, %v5141
    %v5222 = vpack.c.b16 %v5146, %v5144
    %v5223 = vpack.c.b16 %v5147, %v5145
    %v5224 = vpack.c.b16 %v5150, %v5148
    %v5225 = vpack.c.b16 %v5151, %v5149
    %v5226 = vpack.c.b16 %v5154, %v5152
    %v5227 = vpack.c.b16 %v5155, %v5153
    %v5228 = vpack.c.b16 %v5158, %v5156
    %v5229 = vpack.c.b16 %v5159, %v5157
    %v5230 = vpack.c.b16 %v5162, %v5160
    %v5231 = vpack.c.b16 %v5163, %v5161
    %v5232 = vpack.c.b16 %v5166, %v5164
    %v5233 = vpack.c.b16 %v5167, %v5165
    %v5234 = vpack.c.b16 %v5170, %v5168
    %v5235 = vpack.c.b16 %v5171, %v5169
    %5300 = vmatpush.bf16.msra.mxu0 %v5186
    %5301 = vmatpush.bf16.msra.mxu0 %v5184
    %5302 = vmatpush.bf16.msra.mxu0 %v5182
    %5303 = vmatpush.bf16.msra.mxu0 %v5180
    %5304 = vmatpush.bf16.msra.mxu0 %v5178
    %5305 = vmatpush.bf16.msra.mxu0 %v5176
    %5306 = vmatpush.bf16.msra.mxu0 %v5174
    %5307 = vmatpush.bf16.msra.mxu0 %v5172
    %5308 = vmatmul.bf16.gmra.mxu0 %v4846
    %v5309 = vpop.f32.mrf.mxu0
    %v5310 = vadd.f32 %v4976, %v5309
    %v5311 = vpop.f32.mrf.mxu0
    %v5312 = vadd.f32 %v4976, %v5311
    %5313 = vmatmul.bf16.gmra.mxu0 %v4850
    %v5314 = vpop.f32.mrf.mxu0
    %v5315 = vadd.f32 %v4976, %v5314
    %v5316 = vpop.f32.mrf.mxu0
    %v5317 = vadd.f32 %v4976, %v5316
    %5318 = vmatmul.bf16.gmra.mxu0 %v4854
    %v5319 = vpop.f32.mrf.mxu0
    %v5320 = vadd.f32 %v4976, %v5319
    %v5321 = vpop.f32.mrf.mxu0
    %v5322 = vadd.f32 %v4976, %v5321
    %5323 = vmatmul.bf16.gmra.mxu0 %v4858
    %v5324 = vpop.f32.mrf.mxu0
    %v5325 = vadd.f32 %v4976, %v5324
    %v5326 = vpop.f32.mrf.mxu0
    %v5327 = vadd.f32 %v4976, %v5326
    %5328 = vmatmul.bf16.gmra.mxu0 %v4862
    %v5329 = vpop.f32.mrf.mxu0
    %v5330 = vadd.f32 %v4976, %v5329
    %v5331 = vpop.f32.mrf.mxu0
    %v5332 = vadd.f32 %v4976, %v5331
    %5333 = vmatmul.bf16.gmra.mxu0 %v4866
    %v5334 = vpop.f32.mrf.mxu0
    %v5335 = vadd.f32 %v4976, %v5334
    %v5336 = vpop.f32.mrf.mxu0
    %v5337 = vadd.f32 %v4976, %v5336
    %5338 = vmatmul.bf16.gmra.mxu0 %v4870
    %v5339 = vpop.f32.mrf.mxu0
    %v5340 = vadd.f32 %v4976, %v5339
    %v5341 = vpop.f32.mrf.mxu0
    %v5342 = vadd.f32 %v4976, %v5341
    %5343 = vmatmul.bf16.gmra.mxu0 %v4874
    %v5344 = vpop.f32.mrf.mxu0
    %v5345 = vadd.f32 %v4976, %v5344
    %v5346 = vpop.f32.mrf.mxu0
    %v5347 = vadd.f32 %v4976, %v5346
    %5348 = vmatmul.bf16.gmra.mxu0 %v4878
    %v5349 = vpop.f32.mrf.mxu0
    %v5350 = vadd.f32 %v4976, %v5349
    %v5351 = vpop.f32.mrf.mxu0
    %v5352 = vadd.f32 %v4976, %v5351
    %5353 = vmatmul.bf16.gmra.mxu0 %v4882
    %v5354 = vpop.f32.mrf.mxu0
    %v5355 = vadd.f32 %v4976, %v5354
    %v5356 = vpop.f32.mrf.mxu0
    %v5357 = vadd.f32 %v4976, %v5356
    %5358 = vmatmul.bf16.gmra.mxu0 %v4886
    %v5359 = vpop.f32.mrf.mxu0
    %v5360 = vadd.f32 %v4976, %v5359
    %v5361 = vpop.f32.mrf.mxu0
    %v5362 = vadd.f32 %v4976, %v5361
    %5363 = vmatmul.bf16.gmra.mxu0 %v4890
    %v5364 = vpop.f32.mrf.mxu0
    %v5365 = vadd.f32 %v4976, %v5364
    %v5366 = vpop.f32.mrf.mxu0
    %v5367 = vadd.f32 %v4976, %v5366
    %5368 = vmatmul.bf16.gmra.mxu0 %v4894
    %v5369 = vpop.f32.mrf.mxu0
    %v5370 = vadd.f32 %v4976, %v5369
    %v5371 = vpop.f32.mrf.mxu0
    %v5372 = vadd.f32 %v4976, %v5371
    %5373 = vmatmul.bf16.gmra.mxu0 %v4898
    %v5374 = vpop.f32.mrf.mxu0
    %v5375 = vadd.f32 %v4976, %v5374
    %v5376 = vpop.f32.mrf.mxu0
    %v5377 = vadd.f32 %v4976, %v5376
    %5378 = vmatmul.bf16.gmra.mxu0 %v4902
    %v5379 = vpop.f32.mrf.mxu0
    %v5380 = vadd.f32 %v4976, %v5379
    %v5381 = vpop.f32.mrf.mxu0
    %v5382 = vadd.f32 %v4976, %v5381
    %5383 = vmatmul.bf16.gmra.mxu0 %v4906
    %v5384 = vpop.f32.mrf.mxu0
    %v5385 = vadd.f32 %v4976, %v5384
    %v5386 = vpop.f32.mrf.mxu0
    %v5387 = vadd.f32 %v4976, %v5386
    %5388 = vdwg.mxu0
    %5389 = vmatpush.bf16.msra.mxu0 %v5202
    %5390 = vmatpush.bf16.msra.mxu0 %v5200
    %5391 = vmatpush.bf16.msra.mxu0 %v5198
    %5392 = vmatpush.bf16.msra.mxu0 %v5196
    %5393 = vmatpush.bf16.msra.mxu0 %v5194
    %5394 = vmatpush.bf16.msra.mxu0 %v5192
    %5395 = vmatpush.bf16.msra.mxu0 %v5190
    %5396 = vmatpush.bf16.msra.mxu0 %v5188
    %5397 = vmatmul.bf16.gmra.mxu0 %v4847
    %v5398 = vpop.f32.mrf.mxu0
    %v5399 = vadd.f32 %v5310, %v5398
    %v5400 = vpop.f32.mrf.mxu0
    %v5401 = vadd.f32 %v5312, %v5400
    %5402 = vmatmul.bf16.gmra.mxu0 %v4851
    %v5403 = vpop.f32.mrf.mxu0
    %v5404 = vadd.f32 %v5315, %v5403
    %v5405 = vpop.f32.mrf.mxu0
    %v5406 = vadd.f32 %v5317, %v5405
    %5407 = vmatmul.bf16.gmra.mxu0 %v4855
    %v5408 = vpop.f32.mrf.mxu0
    %v5409 = vadd.f32 %v5320, %v5408
    %v5410 = vpop.f32.mrf.mxu0
    %v5411 = vadd.f32 %v5322, %v5410
    %5412 = vmatmul.bf16.gmra.mxu0 %v4859
    %v5413 = vpop.f32.mrf.mxu0
    %v5414 = vadd.f32 %v5325, %v5413
    %v5415 = vpop.f32.mrf.mxu0
    %v5416 = vadd.f32 %v5327, %v5415
    %5417 = vmatmul.bf16.gmra.mxu0 %v4863
    %v5418 = vpop.f32.mrf.mxu0
    %v5419 = vadd.f32 %v5330, %v5418
    %v5420 = vpop.f32.mrf.mxu0
    %v5421 = vadd.f32 %v5332, %v5420
    %5422 = vmatmul.bf16.gmra.mxu0 %v4867
    %v5423 = vpop.f32.mrf.mxu0
    %v5424 = vadd.f32 %v5335, %v5423
    %v5425 = vpop.f32.mrf.mxu0
    %v5426 = vadd.f32 %v5337, %v5425
    %5427 = vmatmul.bf16.gmra.mxu0 %v4871
    %v5428 = vpop.f32.mrf.mxu0
    %v5429 = vadd.f32 %v5340, %v5428
    %v5430 = vpop.f32.mrf.mxu0
    %v5431 = vadd.f32 %v5342, %v5430
    %5432 = vmatmul.bf16.gmra.mxu0 %v4875
    %v5433 = vpop.f32.mrf.mxu0
    %v5434 = vadd.f32 %v5345, %v5433
    %v5435 = vpop.f32.mrf.mxu0
    %v5436 = vadd.f32 %v5347, %v5435
    %5437 = vmatmul.bf16.gmra.mxu0 %v4879
    %v5438 = vpop.f32.mrf.mxu0
    %v5439 = vadd.f32 %v5350, %v5438
    %v5440 = vpop.f32.mrf.mxu0
    %v5441 = vadd.f32 %v5352, %v5440
    %5442 = vmatmul.bf16.gmra.mxu0 %v4883
    %v5443 = vpop.f32.mrf.mxu0
    %v5444 = vadd.f32 %v5355, %v5443
    %v5445 = vpop.f32.mrf.mxu0
    %v5446 = vadd.f32 %v5357, %v5445
    %5447 = vmatmul.bf16.gmra.mxu0 %v4887
    %v5448 = vpop.f32.mrf.mxu0
    %v5449 = vadd.f32 %v5360, %v5448
    %v5450 = vpop.f32.mrf.mxu0
    %v5451 = vadd.f32 %v5362, %v5450
    %5452 = vmatmul.bf16.gmra.mxu0 %v4891
    %v5453 = vpop.f32.mrf.mxu0
    %v5454 = vadd.f32 %v5365, %v5453
    %v5455 = vpop.f32.mrf.mxu0
    %v5456 = vadd.f32 %v5367, %v5455
    %5457 = vmatmul.bf16.gmra.mxu0 %v4895
    %v5458 = vpop.f32.mrf.mxu0
    %v5459 = vadd.f32 %v5370, %v5458
    %v5460 = vpop.f32.mrf.mxu0
    %v5461 = vadd.f32 %v5372, %v5460
    %5462 = vmatmul.bf16.gmra.mxu0 %v4899
    %v5463 = vpop.f32.mrf.mxu0
    %v5464 = vadd.f32 %v5375, %v5463
    %v5465 = vpop.f32.mrf.mxu0
    %v5466 = vadd.f32 %v5377, %v5465
    %5467 = vmatmul.bf16.gmra.mxu0 %v4903
    %v5468 = vpop.f32.mrf.mxu0
    %v5469 = vadd.f32 %v5380, %v5468
    %v5470 = vpop.f32.mrf.mxu0
    %v5471 = vadd.f32 %v5382, %v5470
    %5472 = vmatmul.bf16.gmra.mxu0 %v4907
    %v5473 = vpop.f32.mrf.mxu0
    %v5474 = vadd.f32 %v5385, %v5473
    %v5475 = vpop.f32.mrf.mxu0
    %v5476 = vadd.f32 %v5387, %v5475
    %5477 = vdwg.mxu0
    %5478 = vmatpush.bf16.msra.mxu0 %v5218
    %5479 = vmatpush.bf16.msra.mxu0 %v5216
    %5480 = vmatpush.bf16.msra.mxu0 %v5214
    %5481 = vmatpush.bf16.msra.mxu0 %v5212
    %5482 = vmatpush.bf16.msra.mxu0 %v5210
    %5483 = vmatpush.bf16.msra.mxu0 %v5208
    %5484 = vmatpush.bf16.msra.mxu0 %v5206
    %5485 = vmatpush.bf16.msra.mxu0 %v5204
    %5486 = vmatmul.bf16.gmra.mxu0 %v4848
    %v5487 = vpop.f32.mrf.mxu0
    %v5488 = vadd.f32 %v5399, %v5487
    %v5489 = vpop.f32.mrf.mxu0
    %v5490 = vadd.f32 %v5401, %v5489
    %5491 = vmatmul.bf16.gmra.mxu0 %v4852
    %v5492 = vpop.f32.mrf.mxu0
    %v5493 = vadd.f32 %v5404, %v5492
    %v5494 = vpop.f32.mrf.mxu0
    %v5495 = vadd.f32 %v5406, %v5494
    %5496 = vmatmul.bf16.gmra.mxu0 %v4856
    %v5497 = vpop.f32.mrf.mxu0
    %v5498 = vadd.f32 %v5409, %v5497
    %v5499 = vpop.f32.mrf.mxu0
    %v5500 = vadd.f32 %v5411, %v5499
    %5501 = vmatmul.bf16.gmra.mxu0 %v4860
    %v5502 = vpop.f32.mrf.mxu0
    %v5503 = vadd.f32 %v5414, %v5502
    %v5504 = vpop.f32.mrf.mxu0
    %v5505 = vadd.f32 %v5416, %v5504
    %5506 = vmatmul.bf16.gmra.mxu0 %v4864
    %v5507 = vpop.f32.mrf.mxu0
    %v5508 = vadd.f32 %v5419, %v5507
    %v5509 = vpop.f32.mrf.mxu0
    %v5510 = vadd.f32 %v5421, %v5509
    %5511 = vmatmul.bf16.gmra.mxu0 %v4868
    %v5512 = vpop.f32.mrf.mxu0
    %v5513 = vadd.f32 %v5424, %v5512
    %v5514 = vpop.f32.mrf.mxu0
    %v5515 = vadd.f32 %v5426, %v5514
    %5516 = vmatmul.bf16.gmra.mxu0 %v4872
    %v5517 = vpop.f32.mrf.mxu0
    %v5518 = vadd.f32 %v5429, %v5517
    %v5519 = vpop.f32.mrf.mxu0
    %v5520 = vadd.f32 %v5431, %v5519
    %5521 = vmatmul.bf16.gmra.mxu0 %v4876
    %v5522 = vpop.f32.mrf.mxu0
    %v5523 = vadd.f32 %v5434, %v5522
    %v5524 = vpop.f32.mrf.mxu0
    %v5525 = vadd.f32 %v5436, %v5524
    %5526 = vmatmul.bf16.gmra.mxu0 %v4880
    %v5527 = vpop.f32.mrf.mxu0
    %v5528 = vadd.f32 %v5439, %v5527
    %v5529 = vpop.f32.mrf.mxu0
    %v5530 = vadd.f32 %v5441, %v5529
    %5531 = vmatmul.bf16.gmra.mxu0 %v4884
    %v5532 = vpop.f32.mrf.mxu0
    %v5533 = vadd.f32 %v5444, %v5532
    %v5534 = vpop.f32.mrf.mxu0
    %v5535 = vadd.f32 %v5446, %v5534
    %5536 = vmatmul.bf16.gmra.mxu0 %v4888
    %v5537 = vpop.f32.mrf.mxu0
    %v5538 = vadd.f32 %v5449, %v5537
    %v5539 = vpop.f32.mrf.mxu0
    %v5540 = vadd.f32 %v5451, %v5539
    %5541 = vmatmul.bf16.gmra.mxu0 %v4892
    %v5542 = vpop.f32.mrf.mxu0
    %v5543 = vadd.f32 %v5454, %v5542
    %v5544 = vpop.f32.mrf.mxu0
    %v5545 = vadd.f32 %v5456, %v5544
    %5546 = vmatmul.bf16.gmra.mxu0 %v4896
    %v5547 = vpop.f32.mrf.mxu0
    %v5548 = vadd.f32 %v5459, %v5547
    %v5549 = vpop.f32.mrf.mxu0
    %v5550 = vadd.f32 %v5461, %v5549
    %5551 = vmatmul.bf16.gmra.mxu0 %v4900
    %v5552 = vpop.f32.mrf.mxu0
    %v5553 = vadd.f32 %v5464, %v5552
    %v5554 = vpop.f32.mrf.mxu0
    %v5555 = vadd.f32 %v5466, %v5554
    %5556 = vmatmul.bf16.gmra.mxu0 %v4904
    %v5557 = vpop.f32.mrf.mxu0
    %v5558 = vadd.f32 %v5469, %v5557
    %v5559 = vpop.f32.mrf.mxu0
    %v5560 = vadd.f32 %v5471, %v5559
    %5561 = vmatmul.bf16.gmra.mxu0 %v4908
    %v5562 = vpop.f32.mrf.mxu0
    %v5563 = vadd.f32 %v5474, %v5562
    %v5564 = vpop.f32.mrf.mxu0
    %v5565 = vadd.f32 %v5476, %v5564
    %5566 = vdwg.mxu0
    %5567 = vmatpush.bf16.msra.mxu0 %v5234
    %5568 = vmatpush.bf16.msra.mxu0 %v5232
    %5569 = vmatpush.bf16.msra.mxu0 %v5230
    %5570 = vmatpush.bf16.msra.mxu0 %v5228
    %5571 = vmatpush.bf16.msra.mxu0 %v5226
    %5572 = vmatpush.bf16.msra.mxu0 %v5224
    %5573 = vmatpush.bf16.msra.mxu0 %v5222
    %5574 = vmatpush.bf16.msra.mxu0 %v5220
    %5575 = vmatmul.bf16.gmra.mxu0 %v4849
    %v5576 = vpop.f32.mrf.mxu0
    %v5577 = vadd.f32 %v5488, %v5576
    %v5578 = vpop.f32.mrf.mxu0
    %v5579 = vadd.f32 %v5490, %v5578
    %5580 = vmatmul.bf16.gmra.mxu0 %v4853
    %v5581 = vpop.f32.mrf.mxu0
    %v5582 = vadd.f32 %v5493, %v5581
    %v5583 = vpop.f32.mrf.mxu0
    %v5584 = vadd.f32 %v5495, %v5583
    %5585 = vmatmul.bf16.gmra.mxu0 %v4857
    %v5586 = vpop.f32.mrf.mxu0
    %v5587 = vadd.f32 %v5498, %v5586
    %v5588 = vpop.f32.mrf.mxu0
    %v5589 = vadd.f32 %v5500, %v5588
    %5590 = vmatmul.bf16.gmra.mxu0 %v4861
    %v5591 = vpop.f32.mrf.mxu0
    %v5592 = vadd.f32 %v5503, %v5591
    %v5593 = vpop.f32.mrf.mxu0
    %v5594 = vadd.f32 %v5505, %v5593
    %5595 = vmatmul.bf16.gmra.mxu0 %v4865
    %v5596 = vpop.f32.mrf.mxu0
    %v5597 = vadd.f32 %v5508, %v5596
    %v5598 = vpop.f32.mrf.mxu0
    %v5599 = vadd.f32 %v5510, %v5598
    %5600 = vmatmul.bf16.gmra.mxu0 %v4869
    %v5601 = vpop.f32.mrf.mxu0
    %v5602 = vadd.f32 %v5513, %v5601
    %v5603 = vpop.f32.mrf.mxu0
    %v5604 = vadd.f32 %v5515, %v5603
    %5605 = vmatmul.bf16.gmra.mxu0 %v4873
    %v5606 = vpop.f32.mrf.mxu0
    %v5607 = vadd.f32 %v5518, %v5606
    %v5608 = vpop.f32.mrf.mxu0
    %v5609 = vadd.f32 %v5520, %v5608
    %5610 = vmatmul.bf16.gmra.mxu0 %v4877
    %v5611 = vpop.f32.mrf.mxu0
    %v5612 = vadd.f32 %v5523, %v5611
    %v5613 = vpop.f32.mrf.mxu0
    %v5614 = vadd.f32 %v5525, %v5613
    %5615 = vmatmul.bf16.gmra.mxu0 %v4881
    %v5616 = vpop.f32.mrf.mxu0
    %v5617 = vadd.f32 %v5528, %v5616
    %v5618 = vpop.f32.mrf.mxu0
    %v5619 = vadd.f32 %v5530, %v5618
    %5620 = vmatmul.bf16.gmra.mxu0 %v4885
    %v5621 = vpop.f32.mrf.mxu0
    %v5622 = vadd.f32 %v5533, %v5621
    %v5623 = vpop.f32.mrf.mxu0
    %v5624 = vadd.f32 %v5535, %v5623
    %5625 = vmatmul.bf16.gmra.mxu0 %v4889
    %v5626 = vpop.f32.mrf.mxu0
    %v5627 = vadd.f32 %v5538, %v5626
    %v5628 = vpop.f32.mrf.mxu0
    %v5629 = vadd.f32 %v5540, %v5628
    %5630 = vmatmul.bf16.gmra.mxu0 %v4893
    %v5631 = vpop.f32.mrf.mxu0
    %v5632 = vadd.f32 %v5543, %v5631
    %v5633 = vpop.f32.mrf.mxu0
    %v5634 = vadd.f32 %v5545, %v5633
    %5635 = vmatmul.bf16.gmra.mxu0 %v4897
    %v5636 = vpop.f32.mrf.mxu0
    %v5637 = vadd.f32 %v5548, %v5636
    %v5638 = vpop.f32.mrf.mxu0
    %v5639 = vadd.f32 %v5550, %v5638
    %5640 = vmatmul.bf16.gmra.mxu0 %v4901
    %v5641 = vpop.f32.mrf.mxu0
    %v5642 = vadd.f32 %v5553, %v5641
    %v5643 = vpop.f32.mrf.mxu0
    %v5644 = vadd.f32 %v5555, %v5643
    %5645 = vmatmul.bf16.gmra.mxu0 %v4905
    %v5646 = vpop.f32.mrf.mxu0
    %v5647 = vadd.f32 %v5558, %v5646
    %v5648 = vpop.f32.mrf.mxu0
    %v5649 = vadd.f32 %v5560, %v5648
    %5650 = vmatmul.bf16.gmra.mxu0 %v4909
    %v5651 = vpop.f32.mrf.mxu0
    %v5652 = vadd.f32 %v5563, %v5651
    %v5653 = vpop.f32.mrf.mxu0
    %v5654 = vadd.f32 %v5565, %v5653
    %5655 = vdwg.mxu0
    %5656 = vmatpush.bf16.msra.mxu0 %v5187
    %5657 = vmatpush.bf16.msra.mxu0 %v5185
    %5658 = vmatpush.bf16.msra.mxu0 %v5183
    %5659 = vmatpush.bf16.msra.mxu0 %v5181
    %5660 = vmatpush.bf16.msra.mxu0 %v5179
    %5661 = vmatpush.bf16.msra.mxu0 %v5177
    %5662 = vmatpush.bf16.msra.mxu0 %v5175
    %5663 = vmatpush.bf16.msra.mxu0 %v5173
    %5664 = vmatmul.bf16.gmra.mxu0 %v4846
    %v5665 = vpop.f32.mrf.mxu0
    %v5666 = vadd.f32 %v4977, %v5665
    %v5667 = vpop.f32.mrf.mxu0
    %v5668 = vadd.f32 %v4977, %v5667
    %5669 = vmatmul.bf16.gmra.mxu0 %v4850
    %v5670 = vpop.f32.mrf.mxu0
    %v5671 = vadd.f32 %v4977, %v5670
    %v5672 = vpop.f32.mrf.mxu0
    %v5673 = vadd.f32 %v4977, %v5672
    %5674 = vmatmul.bf16.gmra.mxu0 %v4854
    %v5675 = vpop.f32.mrf.mxu0
    %v5676 = vadd.f32 %v4977, %v5675
    %v5677 = vpop.f32.mrf.mxu0
    %v5678 = vadd.f32 %v4977, %v5677
    %5679 = vmatmul.bf16.gmra.mxu0 %v4858
    %v5680 = vpop.f32.mrf.mxu0
    %v5681 = vadd.f32 %v4977, %v5680
    %v5682 = vpop.f32.mrf.mxu0
    %v5683 = vadd.f32 %v4977, %v5682
    %5684 = vmatmul.bf16.gmra.mxu0 %v4862
    %v5685 = vpop.f32.mrf.mxu0
    %v5686 = vadd.f32 %v4977, %v5685
    %v5687 = vpop.f32.mrf.mxu0
    %v5688 = vadd.f32 %v4977, %v5687
    %5689 = vmatmul.bf16.gmra.mxu0 %v4866
    %v5690 = vpop.f32.mrf.mxu0
    %v5691 = vadd.f32 %v4977, %v5690
    %v5692 = vpop.f32.mrf.mxu0
    %v5693 = vadd.f32 %v4977, %v5692
    %5694 = vmatmul.bf16.gmra.mxu0 %v4870
    %v5695 = vpop.f32.mrf.mxu0
    %v5696 = vadd.f32 %v4977, %v5695
    %v5697 = vpop.f32.mrf.mxu0
    %v5698 = vadd.f32 %v4977, %v5697
    %5699 = vmatmul.bf16.gmra.mxu0 %v4874
    %v5700 = vpop.f32.mrf.mxu0
    %v5701 = vadd.f32 %v4977, %v5700
    %v5702 = vpop.f32.mrf.mxu0
    %v5703 = vadd.f32 %v4977, %v5702
    %5704 = vmatmul.bf16.gmra.mxu0 %v4878
    %v5705 = vpop.f32.mrf.mxu0
    %v5706 = vadd.f32 %v4977, %v5705
    %v5707 = vpop.f32.mrf.mxu0
    %v5708 = vadd.f32 %v4977, %v5707
    %5709 = vmatmul.bf16.gmra.mxu0 %v4882
    %v5710 = vpop.f32.mrf.mxu0
    %v5711 = vadd.f32 %v4977, %v5710
    %v5712 = vpop.f32.mrf.mxu0
    %v5713 = vadd.f32 %v4977, %v5712
    %5714 = vmatmul.bf16.gmra.mxu0 %v4886
    %v5715 = vpop.f32.mrf.mxu0
    %v5716 = vadd.f32 %v4977, %v5715
    %v5717 = vpop.f32.mrf.mxu0
    %v5718 = vadd.f32 %v4977, %v5717
    %5719 = vmatmul.bf16.gmra.mxu0 %v4890
    %v5720 = vpop.f32.mrf.mxu0
    %v5721 = vadd.f32 %v4977, %v5720
    %v5722 = vpop.f32.mrf.mxu0
    %v5723 = vadd.f32 %v4977, %v5722
    %5724 = vmatmul.bf16.gmra.mxu0 %v4894
    %v5725 = vpop.f32.mrf.mxu0
    %v5726 = vadd.f32 %v4977, %v5725
    %v5727 = vpop.f32.mrf.mxu0
    %v5728 = vadd.f32 %v4977, %v5727
    %5729 = vmatmul.bf16.gmra.mxu0 %v4898
    %v5730 = vpop.f32.mrf.mxu0
    %v5731 = vadd.f32 %v4977, %v5730
    %v5732 = vpop.f32.mrf.mxu0
    %v5733 = vadd.f32 %v4977, %v5732
    %5734 = vmatmul.bf16.gmra.mxu0 %v4902
    %v5735 = vpop.f32.mrf.mxu0
    %v5736 = vadd.f32 %v4977, %v5735
    %v5737 = vpop.f32.mrf.mxu0
    %v5738 = vadd.f32 %v4977, %v5737
    %5739 = vmatmul.bf16.gmra.mxu0 %v4906
    %v5740 = vpop.f32.mrf.mxu0
    %v5741 = vadd.f32 %v4977, %v5740
    %v5742 = vpop.f32.mrf.mxu0
    %v5743 = vadd.f32 %v4977, %v5742
    %5744 = vdwg.mxu0
    %5745 = vmatpush.bf16.msra.mxu0 %v5203
    %5746 = vmatpush.bf16.msra.mxu0 %v5201
    %5747 = vmatpush.bf16.msra.mxu0 %v5199
    %5748 = vmatpush.bf16.msra.mxu0 %v5197
    %5749 = vmatpush.bf16.msra.mxu0 %v5195
    %5750 = vmatpush.bf16.msra.mxu0 %v5193
    %5751 = vmatpush.bf16.msra.mxu0 %v5191
    %5752 = vmatpush.bf16.msra.mxu0 %v5189
    %5753 = vmatmul.bf16.gmra.mxu0 %v4847
    %v5754 = vpop.f32.mrf.mxu0
    %v5755 = vadd.f32 %v5666, %v5754
    %v5756 = vpop.f32.mrf.mxu0
    %v5757 = vadd.f32 %v5668, %v5756
    %5758 = vmatmul.bf16.gmra.mxu0 %v4851
    %v5759 = vpop.f32.mrf.mxu0
    %v5760 = vadd.f32 %v5671, %v5759
    %v5761 = vpop.f32.mrf.mxu0
    %v5762 = vadd.f32 %v5673, %v5761
    %5763 = vmatmul.bf16.gmra.mxu0 %v4855
    %v5764 = vpop.f32.mrf.mxu0
    %v5765 = vadd.f32 %v5676, %v5764
    %v5766 = vpop.f32.mrf.mxu0
    %v5767 = vadd.f32 %v5678, %v5766
    %5768 = vmatmul.bf16.gmra.mxu0 %v4859
    %v5769 = vpop.f32.mrf.mxu0
    %v5770 = vadd.f32 %v5681, %v5769
    %v5771 = vpop.f32.mrf.mxu0
    %v5772 = vadd.f32 %v5683, %v5771
    %5773 = vmatmul.bf16.gmra.mxu0 %v4863
    %v5774 = vpop.f32.mrf.mxu0
    %v5775 = vadd.f32 %v5686, %v5774
    %v5776 = vpop.f32.mrf.mxu0
    %v5777 = vadd.f32 %v5688, %v5776
    %5778 = vmatmul.bf16.gmra.mxu0 %v4867
    %v5779 = vpop.f32.mrf.mxu0
    %v5780 = vadd.f32 %v5691, %v5779
    %v5781 = vpop.f32.mrf.mxu0
    %v5782 = vadd.f32 %v5693, %v5781
    %5783 = vmatmul.bf16.gmra.mxu0 %v4871
    %v5784 = vpop.f32.mrf.mxu0
    %v5785 = vadd.f32 %v5696, %v5784
    %v5786 = vpop.f32.mrf.mxu0
    %v5787 = vadd.f32 %v5698, %v5786
    %5788 = vmatmul.bf16.gmra.mxu0 %v4875
    %v5789 = vpop.f32.mrf.mxu0
    %v5790 = vadd.f32 %v5701, %v5789
    %v5791 = vpop.f32.mrf.mxu0
    %v5792 = vadd.f32 %v5703, %v5791
    %5793 = vmatmul.bf16.gmra.mxu0 %v4879
    %v5794 = vpop.f32.mrf.mxu0
    %v5795 = vadd.f32 %v5706, %v5794
    %v5796 = vpop.f32.mrf.mxu0
    %v5797 = vadd.f32 %v5708, %v5796
    %5798 = vmatmul.bf16.gmra.mxu0 %v4883
    %v5799 = vpop.f32.mrf.mxu0
    %v5800 = vadd.f32 %v5711, %v5799
    %v5801 = vpop.f32.mrf.mxu0
    %v5802 = vadd.f32 %v5713, %v5801
    %5803 = vmatmul.bf16.gmra.mxu0 %v4887
    %v5804 = vpop.f32.mrf.mxu0
    %v5805 = vadd.f32 %v5716, %v5804
    %v5806 = vpop.f32.mrf.mxu0
    %v5807 = vadd.f32 %v5718, %v5806
    %5808 = vmatmul.bf16.gmra.mxu0 %v4891
    %v5809 = vpop.f32.mrf.mxu0
    %v5810 = vadd.f32 %v5721, %v5809
    %v5811 = vpop.f32.mrf.mxu0
    %v5812 = vadd.f32 %v5723, %v5811
    %5813 = vmatmul.bf16.gmra.mxu0 %v4895
    %v5814 = vpop.f32.mrf.mxu0
    %v5815 = vadd.f32 %v5726, %v5814
    %v5816 = vpop.f32.mrf.mxu0
    %v5817 = vadd.f32 %v5728, %v5816
    %5818 = vmatmul.bf16.gmra.mxu0 %v4899
    %v5819 = vpop.f32.mrf.mxu0
    %v5820 = vadd.f32 %v5731, %v5819
    %v5821 = vpop.f32.mrf.mxu0
    %v5822 = vadd.f32 %v5733, %v5821
    %5823 = vmatmul.bf16.gmra.mxu0 %v4903
    %v5824 = vpop.f32.mrf.mxu0
    %v5825 = vadd.f32 %v5736, %v5824
    %v5826 = vpop.f32.mrf.mxu0
    %v5827 = vadd.f32 %v5738, %v5826
    %5828 = vmatmul.bf16.gmra.mxu0 %v4907
    %v5829 = vpop.f32.mrf.mxu0
    %v5830 = vadd.f32 %v5741, %v5829
    %v5831 = vpop.f32.mrf.mxu0
    %v5832 = vadd.f32 %v5743, %v5831
    %5833 = vdwg.mxu0
    %5834 = vmatpush.bf16.msra.mxu0 %v5219
    %5835 = vmatpush.bf16.msra.mxu0 %v5217
    %5836 = vmatpush.bf16.msra.mxu0 %v5215
    %5837 = vmatpush.bf16.msra.mxu0 %v5213
    %5838 = vmatpush.bf16.msra.mxu0 %v5211
    %5839 = vmatpush.bf16.msra.mxu0 %v5209
    %5840 = vmatpush.bf16.msra.mxu0 %v5207
    %5841 = vmatpush.bf16.msra.mxu0 %v5205
    %5842 = vmatmul.bf16.gmra.mxu0 %v4848
    %v5843 = vpop.f32.mrf.mxu0
    %v5844 = vadd.f32 %v5755, %v5843
    %v5845 = vpop.f32.mrf.mxu0
    %v5846 = vadd.f32 %v5757, %v5845
    %5847 = vmatmul.bf16.gmra.mxu0 %v4852
    %v5848 = vpop.f32.mrf.mxu0
    %v5849 = vadd.f32 %v5760, %v5848
    %v5850 = vpop.f32.mrf.mxu0
    %v5851 = vadd.f32 %v5762, %v5850
    %5852 = vmatmul.bf16.gmra.mxu0 %v4856
    %v5853 = vpop.f32.mrf.mxu0
    %v5854 = vadd.f32 %v5765, %v5853
    %v5855 = vpop.f32.mrf.mxu0
    %v5856 = vadd.f32 %v5767, %v5855
    %5857 = vmatmul.bf16.gmra.mxu0 %v4860
    %v5858 = vpop.f32.mrf.mxu0
    %v5859 = vadd.f32 %v5770, %v5858
    %v5860 = vpop.f32.mrf.mxu0
    %v5861 = vadd.f32 %v5772, %v5860
    %5862 = vmatmul.bf16.gmra.mxu0 %v4864
    %v5863 = vpop.f32.mrf.mxu0
    %v5864 = vadd.f32 %v5775, %v5863
    %v5865 = vpop.f32.mrf.mxu0
    %v5866 = vadd.f32 %v5777, %v5865
    %5867 = vmatmul.bf16.gmra.mxu0 %v4868
    %v5868 = vpop.f32.mrf.mxu0
    %v5869 = vadd.f32 %v5780, %v5868
    %v5870 = vpop.f32.mrf.mxu0
    %v5871 = vadd.f32 %v5782, %v5870
    %5872 = vmatmul.bf16.gmra.mxu0 %v4872
    %v5873 = vpop.f32.mrf.mxu0
    %v5874 = vadd.f32 %v5785, %v5873
    %v5875 = vpop.f32.mrf.mxu0
    %v5876 = vadd.f32 %v5787, %v5875
    %5877 = vmatmul.bf16.gmra.mxu0 %v4876
    %v5878 = vpop.f32.mrf.mxu0
    %v5879 = vadd.f32 %v5790, %v5878
    %v5880 = vpop.f32.mrf.mxu0
    %v5881 = vadd.f32 %v5792, %v5880
    %5882 = vmatmul.bf16.gmra.mxu0 %v4880
    %v5883 = vpop.f32.mrf.mxu0
    %v5884 = vadd.f32 %v5795, %v5883
    %v5885 = vpop.f32.mrf.mxu0
    %v5886 = vadd.f32 %v5797, %v5885
    %5887 = vmatmul.bf16.gmra.mxu0 %v4884
    %v5888 = vpop.f32.mrf.mxu0
    %v5889 = vadd.f32 %v5800, %v5888
    %v5890 = vpop.f32.mrf.mxu0
    %v5891 = vadd.f32 %v5802, %v5890
    %5892 = vmatmul.bf16.gmra.mxu0 %v4888
    %v5893 = vpop.f32.mrf.mxu0
    %v5894 = vadd.f32 %v5805, %v5893
    %v5895 = vpop.f32.mrf.mxu0
    %v5896 = vadd.f32 %v5807, %v5895
    %5897 = vmatmul.bf16.gmra.mxu0 %v4892
    %v5898 = vpop.f32.mrf.mxu0
    %v5899 = vadd.f32 %v5810, %v5898
    %v5900 = vpop.f32.mrf.mxu0
    %v5901 = vadd.f32 %v5812, %v5900
    %5902 = vmatmul.bf16.gmra.mxu0 %v4896
    %v5903 = vpop.f32.mrf.mxu0
    %v5904 = vadd.f32 %v5815, %v5903
    %v5905 = vpop.f32.mrf.mxu0
    %v5906 = vadd.f32 %v5817, %v5905
    %5907 = vmatmul.bf16.gmra.mxu0 %v4900
    %v5908 = vpop.f32.mrf.mxu0
    %v5909 = vadd.f32 %v5820, %v5908
    %v5910 = vpop.f32.mrf.mxu0
    %v5911 = vadd.f32 %v5822, %v5910
    %5912 = vmatmul.bf16.gmra.mxu0 %v4904
    %v5913 = vpop.f32.mrf.mxu0
    %v5914 = vadd.f32 %v5825, %v5913
    %v5915 = vpop.f32.mrf.mxu0
    %v5916 = vadd.f32 %v5827, %v5915
    %5917 = vmatmul.bf16.gmra.mxu0 %v4908
    %v5918 = vpop.f32.mrf.mxu0
    %v5919 = vadd.f32 %v5830, %v5918
    %v5920 = vpop.f32.mrf.mxu0
    %v5921 = vadd.f32 %v5832, %v5920
    %5922 = vdwg.mxu0
    %5923 = vmatpush.bf16.msra.mxu0 %v5235
    %5924 = vmatpush.bf16.msra.mxu0 %v5233
    %5925 = vmatpush.bf16.msra.mxu0 %v5231
    %5926 = vmatpush.bf16.msra.mxu0 %v5229
    %5927 = vmatpush.bf16.msra.mxu0 %v5227
    %5928 = vmatpush.bf16.msra.mxu0 %v5225
    %5929 = vmatpush.bf16.msra.mxu0 %v5223
    %5930 = vmatpush.bf16.msra.mxu0 %v5221
    %5931 = vmatmul.bf16.gmra.mxu0 %v4849
    %v5932 = vpop.f32.mrf.mxu0
    %v5933 = vadd.f32 %v5844, %v5932
    %v5934 = vpop.f32.mrf.mxu0
    %v5935 = vadd.f32 %v5846, %v5934
    %5936 = vmatmul.bf16.gmra.mxu0 %v4853
    %v5937 = vpop.f32.mrf.mxu0
    %v5938 = vadd.f32 %v5849, %v5937
    %v5939 = vpop.f32.mrf.mxu0
    %v5940 = vadd.f32 %v5851, %v5939
    %5941 = vmatmul.bf16.gmra.mxu0 %v4857
    %v5942 = vpop.f32.mrf.mxu0
    %v5943 = vadd.f32 %v5854, %v5942
    %v5944 = vpop.f32.mrf.mxu0
    %v5945 = vadd.f32 %v5856, %v5944
    %5946 = vmatmul.bf16.gmra.mxu0 %v4861
    %v5947 = vpop.f32.mrf.mxu0
    %v5948 = vadd.f32 %v5859, %v5947
    %v5949 = vpop.f32.mrf.mxu0
    %v5950 = vadd.f32 %v5861, %v5949
    %5951 = vmatmul.bf16.gmra.mxu0 %v4865
    %v5952 = vpop.f32.mrf.mxu0
    %v5953 = vadd.f32 %v5864, %v5952
    %v5954 = vpop.f32.mrf.mxu0
    %v5955 = vadd.f32 %v5866, %v5954
    %5956 = vmatmul.bf16.gmra.mxu0 %v4869
    %v5957 = vpop.f32.mrf.mxu0
    %v5958 = vadd.f32 %v5869, %v5957
    %v5959 = vpop.f32.mrf.mxu0
    %v5960 = vadd.f32 %v5871, %v5959
    %5961 = vmatmul.bf16.gmra.mxu0 %v4873
    %v5962 = vpop.f32.mrf.mxu0
    %v5963 = vadd.f32 %v5874, %v5962
    %v5964 = vpop.f32.mrf.mxu0
    %v5965 = vadd.f32 %v5876, %v5964
    %5966 = vmatmul.bf16.gmra.mxu0 %v4877
    %v5967 = vpop.f32.mrf.mxu0
    %v5968 = vadd.f32 %v5879, %v5967
    %v5969 = vpop.f32.mrf.mxu0
    %v5970 = vadd.f32 %v5881, %v5969
    %5971 = vmatmul.bf16.gmra.mxu0 %v4881
    %v5972 = vpop.f32.mrf.mxu0
    %v5973 = vadd.f32 %v5884, %v5972
    %v5974 = vpop.f32.mrf.mxu0
    %v5975 = vadd.f32 %v5886, %v5974
    %5976 = vmatmul.bf16.gmra.mxu0 %v4885
    %v5977 = vpop.f32.mrf.mxu0
    %v5978 = vadd.f32 %v5889, %v5977
    %v5979 = vpop.f32.mrf.mxu0
    %v5980 = vadd.f32 %v5891, %v5979
    %5981 = vmatmul.bf16.gmra.mxu0 %v4889
    %v5982 = vpop.f32.mrf.mxu0
    %v5983 = vadd.f32 %v5894, %v5982
    %v5984 = vpop.f32.mrf.mxu0
    %v5985 = vadd.f32 %v5896, %v5984
    %5986 = vmatmul.bf16.gmra.mxu0 %v4893
    %v5987 = vpop.f32.mrf.mxu0
    %v5988 = vadd.f32 %v5899, %v5987
    %v5989 = vpop.f32.mrf.mxu0
    %v5990 = vadd.f32 %v5901, %v5989
    %5991 = vmatmul.bf16.gmra.mxu0 %v4897
    %v5992 = vpop.f32.mrf.mxu0
    %v5993 = vadd.f32 %v5904, %v5992
    %v5994 = vpop.f32.mrf.mxu0
    %v5995 = vadd.f32 %v5906, %v5994
    %5996 = vmatmul.bf16.gmra.mxu0 %v4901
    %v5997 = vpop.f32.mrf.mxu0
    %v5998 = vadd.f32 %v5909, %v5997
    %v5999 = vpop.f32.mrf.mxu0
    %v6000 = vadd.f32 %v5911, %v5999
    %6001 = vmatmul.bf16.gmra.mxu0 %v4905
    %v6002 = vpop.f32.mrf.mxu0
    %v6003 = vadd.f32 %v5914, %v6002
    %v6004 = vpop.f32.mrf.mxu0
    %v6005 = vadd.f32 %v5916, %v6004
    %6006 = vmatmul.bf16.gmra.mxu0 %v4909
    %v6007 = vpop.f32.mrf.mxu0
    %v6008 = vadd.f32 %v5919, %v6007
    %v6009 = vpop.f32.mrf.mxu0
    %v6010 = vadd.f32 %v5921, %v6009
    %6011 = vdwg.mxu0
    %v6012 = vmax.f32 %v5577, 0.0
    %v6013 = vmax.f32 %v5933, 0.0
    %v6014 = vmax.f32 %v5579, 0.0
    %v6015 = vmax.f32 %v5935, 0.0
    %v6016 = vmax.f32 %v5582, 0.0
    %v6017 = vmax.f32 %v5938, 0.0
    %v6018 = vmax.f32 %v5584, 0.0
    %v6019 = vmax.f32 %v5940, 0.0
    %v6020 = vmax.f32 %v5587, 0.0
    %v6021 = vmax.f32 %v5943, 0.0
    %v6022 = vmax.f32 %v5589, 0.0
    %v6023 = vmax.f32 %v5945, 0.0
    %v6024 = vmax.f32 %v5592, 0.0
    %v6025 = vmax.f32 %v5948, 0.0
    %v6026 = vmax.f32 %v5594, 0.0
    %v6027 = vmax.f32 %v5950, 0.0
    %v6028 = vmax.f32 %v5597, 0.0
    %v6029 = vmax.f32 %v5953, 0.0
    %v6030 = vmax.f32 %v5599, 0.0
    %v6031 = vmax.f32 %v5955, 0.0
    %v6032 = vmax.f32 %v5602, 0.0
    %v6033 = vmax.f32 %v5958, 0.0
    %v6034 = vmax.f32 %v5604, 0.0
    %v6035 = vmax.f32 %v5960, 0.0
    %v6036 = vmax.f32 %v5607, 0.0
    %v6037 = vmax.f32 %v5963, 0.0
    %v6038 = vmax.f32 %v5609, 0.0
    %v6039 = vmax.f32 %v5965, 0.0
    %v6040 = vmax.f32 %v5612, 0.0
    %v6041 = vmax.f32 %v5968, 0.0
    %v6042 = vmax.f32 %v5614, 0.0
    %v6043 = vmax.f32 %v5970, 0.0
    %v6044 = vmax.f32 %v5617, 0.0
    %v6045 = vmax.f32 %v5973, 0.0
    %v6046 = vmax.f32 %v5619, 0.0
    %v6047 = vmax.f32 %v5975, 0.0
    %v6048 = vmax.f32 %v5622, 0.0
    %v6049 = vmax.f32 %v5978, 0.0
    %v6050 = vmax.f32 %v5624, 0.0
    %v6051 = vmax.f32 %v5980, 0.0
    %v6052 = vmax.f32 %v5627, 0.0
    %v6053 = vmax.f32 %v5983, 0.0
    %v6054 = vmax.f32 %v5629, 0.0
    %v6055 = vmax.f32 %v5985, 0.0
    %v6056 = vmax.f32 %v5632, 0.0
    %v6057 = vmax.f32 %v5988, 0.0
    %v6058 = vmax.f32 %v5634, 0.0
    %v6059 = vmax.f32 %v5990, 0.0
    %v6060 = vmax.f32 %v5637, 0.0
    %v6061 = vmax.f32 %v5993, 0.0
    %v6062 = vmax.f32 %v5639, 0.0
    %v6063 = vmax.f32 %v5995, 0.0
    %v6064 = vmax.f32 %v5642, 0.0
    %v6065 = vmax.f32 %v5998, 0.0
    %v6066 = vmax.f32 %v5644, 0.0
    %v6067 = vmax.f32 %v6000, 0.0
    %v6068 = vmax.f32 %v5647, 0.0
    %v6069 = vmax.f32 %v6003, 0.0
    %v6070 = vmax.f32 %v5649, 0.0
    %v6071 = vmax.f32 %v6005, 0.0
    %v6072 = vmax.f32 %v5652, 0.0
    %v6073 = vmax.f32 %v6008, 0.0
    %v6074 = vmax.f32 %v5654, 0.0
    %v6075 = vmax.f32 %v6010, 0.0
    %v6076 = vpack.c.bf16 %v6014, %v6012
    %v6077 = vpack.c.bf16 %v6015, %v6013
    %v6078 = vpack.c.bf16 %v6018, %v6016
    %v6079 = vpack.c.bf16 %v6019, %v6017
    %v6080 = vpack.c.bf16 %v6022, %v6020
    %v6081 = vpack.c.bf16 %v6023, %v6021
    %v6082 = vpack.c.bf16 %v6026, %v6024
    %v6083 = vpack.c.bf16 %v6027, %v6025
    %v6084 = vpack.c.bf16 %v6030, %v6028
    %v6085 = vpack.c.bf16 %v6031, %v6029
    %v6086 = vpack.c.bf16 %v6034, %v6032
    %v6087 = vpack.c.bf16 %v6035, %v6033
    %v6088 = vpack.c.bf16 %v6038, %v6036
    %v6089 = vpack.c.bf16 %v6039, %v6037
    %v6090 = vpack.c.bf16 %v6042, %v6040
    %v6091 = vpack.c.bf16 %v6043, %v6041
    %v6092 = vpack.c.bf16 %v6046, %v6044
    %v6093 = vpack.c.bf16 %v6047, %v6045
    %v6094 = vpack.c.bf16 %v6050, %v6048
    %v6095 = vpack.c.bf16 %v6051, %v6049
    %v6096 = vpack.c.bf16 %v6054, %v6052
    %v6097 = vpack.c.bf16 %v6055, %v6053
    %v6098 = vpack.c.bf16 %v6058, %v6056
    %v6099 = vpack.c.bf16 %v6059, %v6057
    %v6100 = vpack.c.bf16 %v6062, %v6060
    %v6101 = vpack.c.bf16 %v6063, %v6061
    %v6102 = vpack.c.bf16 %v6066, %v6064
    %v6103 = vpack.c.bf16 %v6067, %v6065
    %v6104 = vpack.c.bf16 %v6070, %v6068
    %v6105 = vpack.c.bf16 %v6071, %v6069
    %v6106 = vpack.c.bf16 %v6074, %v6072
    %v6107 = vpack.c.bf16 %v6075, %v6073
    %v6108 = vld [vmem:[#allocation10] sm:$0xff]
    %v6109 = vld [vmem:[#allocation10 + $0x8] sm:$0xff]
    %v6110 = vld [vmem:[#allocation10 + $0x10] sm:$0xff]
    %v6111 = vld [vmem:[#allocation10 + $0x18] sm:$0xff]
    %v6112 = vld [vmem:[#allocation10 + $0x20] sm:$0xff]
    %v6113 = vld [vmem:[#allocation10 + $0x28] sm:$0xff]
    %v6114 = vld [vmem:[#allocation10 + $0x30] sm:$0xff]
    %v6115 = vld [vmem:[#allocation10 + $0x38] sm:$0xff]
    %v6116 = vld [vmem:[#allocation10 + $0x40] sm:$0xff]
    %v6117 = vld [vmem:[#allocation10 + $0x48] sm:$0xff]
    %v6118 = vld [vmem:[#allocation10 + $0x50] sm:$0xff]
    %v6119 = vld [vmem:[#allocation10 + $0x58] sm:$0xff]
    %v6120 = vld [vmem:[#allocation10 + $0x60] sm:$0xff]
    %v6121 = vld [vmem:[#allocation10 + $0x68] sm:$0xff]
    %v6122 = vld [vmem:[#allocation10 + $0x70] sm:$0xff]
    %v6123 = vld [vmem:[#allocation10 + $0x78] sm:$0xff]
    %v6124 = vld [vmem:[#allocation10 + $0x80] sm:$0xff]
    %v6125 = vld [vmem:[#allocation10 + $0x88] sm:$0xff]
    %v6126 = vld [vmem:[#allocation10 + $0x90] sm:$0xff]
    %v6127 = vld [vmem:[#allocation10 + $0x98] sm:$0xff]
    %v6128 = vld [vmem:[#allocation10 + $0xa0] sm:$0xff]
    %v6129 = vld [vmem:[#allocation10 + $0xa8] sm:$0xff]
    %v6130 = vld [vmem:[#allocation10 + $0xb0] sm:$0xff]
    %v6131 = vld [vmem:[#allocation10 + $0xb8] sm:$0xff]
    %v6132 = vld [vmem:[#allocation10 + $0xc0] sm:$0xff]
    %v6133 = vld [vmem:[#allocation10 + $0xc8] sm:$0xff]
    %v6134 = vld [vmem:[#allocation10 + $0xd0] sm:$0xff]
    %v6135 = vld [vmem:[#allocation10 + $0xd8] sm:$0xff]
    %v6136 = vld [vmem:[#allocation10 + $0xe0] sm:$0xff]
    %v6137 = vld [vmem:[#allocation10 + $0xe8] sm:$0xff]
    %v6138 = vld [vmem:[#allocation10 + $0xf0] sm:$0xff]
    %v6139 = vld [vmem:[#allocation10 + $0xf8] sm:$0xff]
    %v6140 = vld [vmem:[%s6] sm:$0x3]
    %v6142 = vperm.slane %v6140, 0
    %v6143 = vperm.slane %v6140, 1
    %v6178 = vunpack.c.l.b16 %v6108
    %v6179 = vunpack.c.h.b16 %v6108
    %v6180 = vunpack.c.l.b16 %v6109
    %v6181 = vunpack.c.h.b16 %v6109
    %v6182 = vunpack.c.l.b16 %v6110
    %v6183 = vunpack.c.h.b16 %v6110
    %v6184 = vunpack.c.l.b16 %v6111
    %v6185 = vunpack.c.h.b16 %v6111
    %v6186 = vunpack.c.l.b16 %v6112
    %v6187 = vunpack.c.h.b16 %v6112
    %v6188 = vunpack.c.l.b16 %v6113
    %v6189 = vunpack.c.h.b16 %v6113
    %v6190 = vunpack.c.l.b16 %v6114
    %v6191 = vunpack.c.h.b16 %v6114
    %v6192 = vunpack.c.l.b16 %v6115
    %v6193 = vunpack.c.h.b16 %v6115
    %v6194 = vunpack.c.l.b16 %v6116
    %v6195 = vunpack.c.h.b16 %v6116
    %v6196 = vunpack.c.l.b16 %v6117
    %v6197 = vunpack.c.h.b16 %v6117
    %v6198 = vunpack.c.l.b16 %v6118
    %v6199 = vunpack.c.h.b16 %v6118
    %v6200 = vunpack.c.l.b16 %v6119
    %v6201 = vunpack.c.h.b16 %v6119
    %v6202 = vunpack.c.l.b16 %v6120
    %v6203 = vunpack.c.h.b16 %v6120
    %v6204 = vunpack.c.l.b16 %v6121
    %v6205 = vunpack.c.h.b16 %v6121
    %v6206 = vunpack.c.l.b16 %v6122
    %v6207 = vunpack.c.h.b16 %v6122
    %v6208 = vunpack.c.l.b16 %v6123
    %v6209 = vunpack.c.h.b16 %v6123
    %v6210 = vunpack.c.l.b16 %v6124
    %v6211 = vunpack.c.h.b16 %v6124
    %v6212 = vunpack.c.l.b16 %v6125
    %v6213 = vunpack.c.h.b16 %v6125
    %v6214 = vunpack.c.l.b16 %v6126
    %v6215 = vunpack.c.h.b16 %v6126
    %v6216 = vunpack.c.l.b16 %v6127
    %v6217 = vunpack.c.h.b16 %v6127
    %v6218 = vunpack.c.l.b16 %v6128
    %v6219 = vunpack.c.h.b16 %v6128
    %v6220 = vunpack.c.l.b16 %v6129
    %v6221 = vunpack.c.h.b16 %v6129
    %v6222 = vunpack.c.l.b16 %v6130
    %v6223 = vunpack.c.h.b16 %v6130
    %v6224 = vunpack.c.l.b16 %v6131
    %v6225 = vunpack.c.h.b16 %v6131
    %v6226 = vunpack.c.l.b16 %v6132
    %v6227 = vunpack.c.h.b16 %v6132
    %v6228 = vunpack.c.l.b16 %v6133
    %v6229 = vunpack.c.h.b16 %v6133
    %v6230 = vunpack.c.l.b16 %v6134
    %v6231 = vunpack.c.h.b16 %v6134
    %v6232 = vunpack.c.l.b16 %v6135
    %v6233 = vunpack.c.h.b16 %v6135
    %v6234 = vunpack.c.l.b16 %v6136
    %v6235 = vunpack.c.h.b16 %v6136
    %v6236 = vunpack.c.l.b16 %v6137
    %v6237 = vunpack.c.h.b16 %v6137
    %v6238 = vunpack.c.l.b16 %v6138
    %v6239 = vunpack.c.h.b16 %v6138
    %v6240 = vunpack.c.l.b16 %v6139
    %v6241 = vunpack.c.h.b16 %v6139
    %v6242 = vpack.c.b16 %v6180, %v6178
    %v6243 = vpack.c.b16 %v6181, %v6179
    %v6244 = vpack.c.b16 %v6184, %v6182
    %v6245 = vpack.c.b16 %v6185, %v6183
    %v6246 = vpack.c.b16 %v6188, %v6186
    %v6247 = vpack.c.b16 %v6189, %v6187
    %v6248 = vpack.c.b16 %v6192, %v6190
    %v6249 = vpack.c.b16 %v6193, %v6191
    %v6250 = vpack.c.b16 %v6196, %v6194
    %v6251 = vpack.c.b16 %v6197, %v6195
    %v6252 = vpack.c.b16 %v6200, %v6198
    %v6253 = vpack.c.b16 %v6201, %v6199
    %v6254 = vpack.c.b16 %v6204, %v6202
    %v6255 = vpack.c.b16 %v6205, %v6203
    %v6256 = vpack.c.b16 %v6208, %v6206
    %v6257 = vpack.c.b16 %v6209, %v6207
    %v6258 = vpack.c.b16 %v6212, %v6210
    %v6259 = vpack.c.b16 %v6213, %v6211
    %v6260 = vpack.c.b16 %v6216, %v6214
    %v6261 = vpack.c.b16 %v6217, %v6215
    %v6262 = vpack.c.b16 %v6220, %v6218
    %v6263 = vpack.c.b16 %v6221, %v6219
    %v6264 = vpack.c.b16 %v6224, %v6222
    %v6265 = vpack.c.b16 %v6225, %v6223
    %v6266 = vpack.c.b16 %v6228, %v6226
    %v6267 = vpack.c.b16 %v6229, %v6227
    %v6268 = vpack.c.b16 %v6232, %v6230
    %v6269 = vpack.c.b16 %v6233, %v6231
    %v6270 = vpack.c.b16 %v6236, %v6234
    %v6271 = vpack.c.b16 %v6237, %v6235
    %v6272 = vpack.c.b16 %v6240, %v6238
    %v6273 = vpack.c.b16 %v6241, %v6239
    %6306 = vmatpush.bf16.msra.mxu0 %v6256
    %6307 = vmatpush.bf16.msra.mxu0 %v6254
    %6308 = vmatpush.bf16.msra.mxu0 %v6252
    %6309 = vmatpush.bf16.msra.mxu0 %v6250
    %6310 = vmatpush.bf16.msra.mxu0 %v6248
    %6311 = vmatpush.bf16.msra.mxu0 %v6246
    %6312 = vmatpush.bf16.msra.mxu0 %v6244
    %6313 = vmatpush.bf16.msra.mxu0 %v6242
    %6314 = vmatmul.bf16.gmra.mxu0 %v6076
    %v6315 = vpop.f32.mrf.mxu0
    %v6316 = vadd.f32 %v6142, %v6315
    %v6317 = vpop.f32.mrf.mxu0
    %v6318 = vadd.f32 %v6142, %v6317
    %6319 = vmatmul.bf16.gmra.mxu0 %v6078
    %v6320 = vpop.f32.mrf.mxu0
    %v6321 = vadd.f32 %v6142, %v6320
    %v6322 = vpop.f32.mrf.mxu0
    %v6323 = vadd.f32 %v6142, %v6322
    %6324 = vmatmul.bf16.gmra.mxu0 %v6080
    %v6325 = vpop.f32.mrf.mxu0
    %v6326 = vadd.f32 %v6142, %v6325
    %v6327 = vpop.f32.mrf.mxu0
    %v6328 = vadd.f32 %v6142, %v6327
    %6329 = vmatmul.bf16.gmra.mxu0 %v6082
    %v6330 = vpop.f32.mrf.mxu0
    %v6331 = vadd.f32 %v6142, %v6330
    %v6332 = vpop.f32.mrf.mxu0
    %v6333 = vadd.f32 %v6142, %v6332
    %6334 = vmatmul.bf16.gmra.mxu0 %v6084
    %v6335 = vpop.f32.mrf.mxu0
    %v6336 = vadd.f32 %v6142, %v6335
    %v6337 = vpop.f32.mrf.mxu0
    %v6338 = vadd.f32 %v6142, %v6337
    %6339 = vmatmul.bf16.gmra.mxu0 %v6086
    %v6340 = vpop.f32.mrf.mxu0
    %v6341 = vadd.f32 %v6142, %v6340
    %v6342 = vpop.f32.mrf.mxu0
    %v6343 = vadd.f32 %v6142, %v6342
    %6344 = vmatmul.bf16.gmra.mxu0 %v6088
    %v6345 = vpop.f32.mrf.mxu0
    %v6346 = vadd.f32 %v6142, %v6345
    %v6347 = vpop.f32.mrf.mxu0
    %v6348 = vadd.f32 %v6142, %v6347
    %6349 = vmatmul.bf16.gmra.mxu0 %v6090
    %v6350 = vpop.f32.mrf.mxu0
    %v6351 = vadd.f32 %v6142, %v6350
    %v6352 = vpop.f32.mrf.mxu0
    %v6353 = vadd.f32 %v6142, %v6352
    %6354 = vmatmul.bf16.gmra.mxu0 %v6092
    %v6355 = vpop.f32.mrf.mxu0
    %v6356 = vadd.f32 %v6142, %v6355
    %v6357 = vpop.f32.mrf.mxu0
    %v6358 = vadd.f32 %v6142, %v6357
    %6359 = vmatmul.bf16.gmra.mxu0 %v6094
    %v6360 = vpop.f32.mrf.mxu0
    %v6361 = vadd.f32 %v6142, %v6360
    %v6362 = vpop.f32.mrf.mxu0
    %v6363 = vadd.f32 %v6142, %v6362
    %6364 = vmatmul.bf16.gmra.mxu0 %v6096
    %v6365 = vpop.f32.mrf.mxu0
    %v6366 = vadd.f32 %v6142, %v6365
    %v6367 = vpop.f32.mrf.mxu0
    %v6368 = vadd.f32 %v6142, %v6367
    %6369 = vmatmul.bf16.gmra.mxu0 %v6098
    %v6370 = vpop.f32.mrf.mxu0
    %v6371 = vadd.f32 %v6142, %v6370
    %v6372 = vpop.f32.mrf.mxu0
    %v6373 = vadd.f32 %v6142, %v6372
    %6374 = vmatmul.bf16.gmra.mxu0 %v6100
    %v6375 = vpop.f32.mrf.mxu0
    %v6376 = vadd.f32 %v6142, %v6375
    %v6377 = vpop.f32.mrf.mxu0
    %v6378 = vadd.f32 %v6142, %v6377
    %6379 = vmatmul.bf16.gmra.mxu0 %v6102
    %v6380 = vpop.f32.mrf.mxu0
    %v6381 = vadd.f32 %v6142, %v6380
    %v6382 = vpop.f32.mrf.mxu0
    %v6383 = vadd.f32 %v6142, %v6382
    %6384 = vmatmul.bf16.gmra.mxu0 %v6104
    %v6385 = vpop.f32.mrf.mxu0
    %v6386 = vadd.f32 %v6142, %v6385
    %v6387 = vpop.f32.mrf.mxu0
    %v6388 = vadd.f32 %v6142, %v6387
    %6389 = vmatmul.bf16.gmra.mxu0 %v6106
    %v6390 = vpop.f32.mrf.mxu0
    %v6391 = vadd.f32 %v6142, %v6390
    %v6392 = vpop.f32.mrf.mxu0
    %v6393 = vadd.f32 %v6142, %v6392
    %6394 = vdwg.mxu0
    %6395 = vmatpush.bf16.msra.mxu0 %v6272
    %6396 = vmatpush.bf16.msra.mxu0 %v6270
    %6397 = vmatpush.bf16.msra.mxu0 %v6268
    %6398 = vmatpush.bf16.msra.mxu0 %v6266
    %6399 = vmatpush.bf16.msra.mxu0 %v6264
    %6400 = vmatpush.bf16.msra.mxu0 %v6262
    %6401 = vmatpush.bf16.msra.mxu0 %v6260
    %6402 = vmatpush.bf16.msra.mxu0 %v6258
    %6403 = vmatmul.bf16.gmra.mxu0 %v6077
    %v6404 = vpop.f32.mrf.mxu0
    %v6405 = vadd.f32 %v6316, %v6404
    %v6406 = vpop.f32.mrf.mxu0
    %v6407 = vadd.f32 %v6318, %v6406
    %6408 = vmatmul.bf16.gmra.mxu0 %v6079
    %v6409 = vpop.f32.mrf.mxu0
    %v6410 = vadd.f32 %v6321, %v6409
    %v6411 = vpop.f32.mrf.mxu0
    %v6412 = vadd.f32 %v6323, %v6411
    %6413 = vmatmul.bf16.gmra.mxu0 %v6081
    %v6414 = vpop.f32.mrf.mxu0
    %v6415 = vadd.f32 %v6326, %v6414
    %v6416 = vpop.f32.mrf.mxu0
    %v6417 = vadd.f32 %v6328, %v6416
    %6418 = vmatmul.bf16.gmra.mxu0 %v6083
    %v6419 = vpop.f32.mrf.mxu0
    %v6420 = vadd.f32 %v6331, %v6419
    %v6421 = vpop.f32.mrf.mxu0
    %v6422 = vadd.f32 %v6333, %v6421
    %6423 = vmatmul.bf16.gmra.mxu0 %v6085
    %v6424 = vpop.f32.mrf.mxu0
    %v6425 = vadd.f32 %v6336, %v6424
    %v6426 = vpop.f32.mrf.mxu0
    %v6427 = vadd.f32 %v6338, %v6426
    %6428 = vmatmul.bf16.gmra.mxu0 %v6087
    %v6429 = vpop.f32.mrf.mxu0
    %v6430 = vadd.f32 %v6341, %v6429
    %v6431 = vpop.f32.mrf.mxu0
    %v6432 = vadd.f32 %v6343, %v6431
    %6433 = vmatmul.bf16.gmra.mxu0 %v6089
    %v6434 = vpop.f32.mrf.mxu0
    %v6435 = vadd.f32 %v6346, %v6434
    %v6436 = vpop.f32.mrf.mxu0
    %v6437 = vadd.f32 %v6348, %v6436
    %6438 = vmatmul.bf16.gmra.mxu0 %v6091
    %v6439 = vpop.f32.mrf.mxu0
    %v6440 = vadd.f32 %v6351, %v6439
    %v6441 = vpop.f32.mrf.mxu0
    %v6442 = vadd.f32 %v6353, %v6441
    %6443 = vmatmul.bf16.gmra.mxu0 %v6093
    %v6444 = vpop.f32.mrf.mxu0
    %v6445 = vadd.f32 %v6356, %v6444
    %v6446 = vpop.f32.mrf.mxu0
    %v6447 = vadd.f32 %v6358, %v6446
    %6448 = vmatmul.bf16.gmra.mxu0 %v6095
    %v6449 = vpop.f32.mrf.mxu0
    %v6450 = vadd.f32 %v6361, %v6449
    %v6451 = vpop.f32.mrf.mxu0
    %v6452 = vadd.f32 %v6363, %v6451
    %6453 = vmatmul.bf16.gmra.mxu0 %v6097
    %v6454 = vpop.f32.mrf.mxu0
    %v6455 = vadd.f32 %v6366, %v6454
    %v6456 = vpop.f32.mrf.mxu0
    %v6457 = vadd.f32 %v6368, %v6456
    %6458 = vmatmul.bf16.gmra.mxu0 %v6099
    %v6459 = vpop.f32.mrf.mxu0
    %v6460 = vadd.f32 %v6371, %v6459
    %v6461 = vpop.f32.mrf.mxu0
    %v6462 = vadd.f32 %v6373, %v6461
    %6463 = vmatmul.bf16.gmra.mxu0 %v6101
    %v6464 = vpop.f32.mrf.mxu0
    %v6465 = vadd.f32 %v6376, %v6464
    %v6466 = vpop.f32.mrf.mxu0
    %v6467 = vadd.f32 %v6378, %v6466
    %6468 = vmatmul.bf16.gmra.mxu0 %v6103
    %v6469 = vpop.f32.mrf.mxu0
    %v6470 = vadd.f32 %v6381, %v6469
    %v6471 = vpop.f32.mrf.mxu0
    %v6472 = vadd.f32 %v6383, %v6471
    %6473 = vmatmul.bf16.gmra.mxu0 %v6105
    %v6474 = vpop.f32.mrf.mxu0
    %v6475 = vadd.f32 %v6386, %v6474
    %v6476 = vpop.f32.mrf.mxu0
    %v6477 = vadd.f32 %v6388, %v6476
    %6478 = vmatmul.bf16.gmra.mxu0 %v6107
    %v6479 = vpop.f32.mrf.mxu0
    %v6480 = vadd.f32 %v6391, %v6479
    %v6481 = vpop.f32.mrf.mxu0
    %v6482 = vadd.f32 %v6393, %v6481
    %6483 = vdwg.mxu0
    %6484 = vmatpush.bf16.msra.mxu0 %v6257
    %6485 = vmatpush.bf16.msra.mxu0 %v6255
    %6486 = vmatpush.bf16.msra.mxu0 %v6253
    %6487 = vmatpush.bf16.msra.mxu0 %v6251
    %6488 = vmatpush.bf16.msra.mxu0 %v6249
    %6489 = vmatpush.bf16.msra.mxu0 %v6247
    %6490 = vmatpush.bf16.msra.mxu0 %v6245
    %6491 = vmatpush.bf16.msra.mxu0 %v6243
    %6492 = vmatmul.bf16.gmra.mxu0 %v6076
    %v6493 = vpop.f32.mrf.mxu0
    %v6494 = vadd.f32 %v6143, %v6493
    %v6495 = vpop.f32.mrf.mxu0
    %v6496 = vadd.f32 %v6143, %v6495
    %6497 = vmatmul.bf16.gmra.mxu0 %v6078
    %v6498 = vpop.f32.mrf.mxu0
    %v6499 = vadd.f32 %v6143, %v6498
    %v6500 = vpop.f32.mrf.mxu0
    %v6501 = vadd.f32 %v6143, %v6500
    %6502 = vmatmul.bf16.gmra.mxu0 %v6080
    %v6503 = vpop.f32.mrf.mxu0
    %v6504 = vadd.f32 %v6143, %v6503
    %v6505 = vpop.f32.mrf.mxu0
    %v6506 = vadd.f32 %v6143, %v6505
    %6507 = vmatmul.bf16.gmra.mxu0 %v6082
    %v6508 = vpop.f32.mrf.mxu0
    %v6509 = vadd.f32 %v6143, %v6508
    %v6510 = vpop.f32.mrf.mxu0
    %v6511 = vadd.f32 %v6143, %v6510
    %6512 = vmatmul.bf16.gmra.mxu0 %v6084
    %v6513 = vpop.f32.mrf.mxu0
    %v6514 = vadd.f32 %v6143, %v6513
    %v6515 = vpop.f32.mrf.mxu0
    %v6516 = vadd.f32 %v6143, %v6515
    %6517 = vmatmul.bf16.gmra.mxu0 %v6086
    %v6518 = vpop.f32.mrf.mxu0
    %v6519 = vadd.f32 %v6143, %v6518
    %v6520 = vpop.f32.mrf.mxu0
    %v6521 = vadd.f32 %v6143, %v6520
    %6522 = vmatmul.bf16.gmra.mxu0 %v6088
    %v6523 = vpop.f32.mrf.mxu0
    %v6524 = vadd.f32 %v6143, %v6523
    %v6525 = vpop.f32.mrf.mxu0
    %v6526 = vadd.f32 %v6143, %v6525
    %6527 = vmatmul.bf16.gmra.mxu0 %v6090
    %v6528 = vpop.f32.mrf.mxu0
    %v6529 = vadd.f32 %v6143, %v6528
    %v6530 = vpop.f32.mrf.mxu0
    %v6531 = vadd.f32 %v6143, %v6530
    %6532 = vmatmul.bf16.gmra.mxu0 %v6092
    %v6533 = vpop.f32.mrf.mxu0
    %v6534 = vadd.f32 %v6143, %v6533
    %v6535 = vpop.f32.mrf.mxu0
    %v6536 = vadd.f32 %v6143, %v6535
    %6537 = vmatmul.bf16.gmra.mxu0 %v6094
    %v6538 = vpop.f32.mrf.mxu0
    %v6539 = vadd.f32 %v6143, %v6538
    %v6540 = vpop.f32.mrf.mxu0
    %v6541 = vadd.f32 %v6143, %v6540
    %6542 = vmatmul.bf16.gmra.mxu0 %v6096
    %v6543 = vpop.f32.mrf.mxu0
    %v6544 = vadd.f32 %v6143, %v6543
    %v6545 = vpop.f32.mrf.mxu0
    %v6546 = vadd.f32 %v6143, %v6545
    %6547 = vmatmul.bf16.gmra.mxu0 %v6098
    %v6548 = vpop.f32.mrf.mxu0
    %v6549 = vadd.f32 %v6143, %v6548
    %v6550 = vpop.f32.mrf.mxu0
    %v6551 = vadd.f32 %v6143, %v6550
    %6552 = vmatmul.bf16.gmra.mxu0 %v6100
    %v6553 = vpop.f32.mrf.mxu0
    %v6554 = vadd.f32 %v6143, %v6553
    %v6555 = vpop.f32.mrf.mxu0
    %v6556 = vadd.f32 %v6143, %v6555
    %6557 = vmatmul.bf16.gmra.mxu0 %v6102
    %v6558 = vpop.f32.mrf.mxu0
    %v6559 = vadd.f32 %v6143, %v6558
    %v6560 = vpop.f32.mrf.mxu0
    %v6561 = vadd.f32 %v6143, %v6560
    %6562 = vmatmul.bf16.gmra.mxu0 %v6104
    %v6563 = vpop.f32.mrf.mxu0
    %v6564 = vadd.f32 %v6143, %v6563
    %v6565 = vpop.f32.mrf.mxu0
    %v6566 = vadd.f32 %v6143, %v6565
    %6567 = vmatmul.bf16.gmra.mxu0 %v6106
    %v6568 = vpop.f32.mrf.mxu0
    %v6569 = vadd.f32 %v6143, %v6568
    %v6570 = vpop.f32.mrf.mxu0
    %v6571 = vadd.f32 %v6143, %v6570
    %6572 = vdwg.mxu0
    %6573 = vmatpush.bf16.msra.mxu0 %v6273
    %6574 = vmatpush.bf16.msra.mxu0 %v6271
    %6575 = vmatpush.bf16.msra.mxu0 %v6269
    %6576 = vmatpush.bf16.msra.mxu0 %v6267
    %6577 = vmatpush.bf16.msra.mxu0 %v6265
    %6578 = vmatpush.bf16.msra.mxu0 %v6263
    %6579 = vmatpush.bf16.msra.mxu0 %v6261
    %6580 = vmatpush.bf16.msra.mxu0 %v6259
    %6581 = vmatmul.bf16.gmra.mxu0 %v6077
    %v6582 = vpop.f32.mrf.mxu0
    %v6583 = vadd.f32 %v6494, %v6582
    %v6584 = vpop.f32.mrf.mxu0
    %v6585 = vadd.f32 %v6496, %v6584
    %6586 = vmatmul.bf16.gmra.mxu0 %v6079
    %v6587 = vpop.f32.mrf.mxu0
    %v6588 = vadd.f32 %v6499, %v6587
    %v6589 = vpop.f32.mrf.mxu0
    %v6590 = vadd.f32 %v6501, %v6589
    %6591 = vmatmul.bf16.gmra.mxu0 %v6081
    %v6592 = vpop.f32.mrf.mxu0
    %v6593 = vadd.f32 %v6504, %v6592
    %v6594 = vpop.f32.mrf.mxu0
    %v6595 = vadd.f32 %v6506, %v6594
    %6596 = vmatmul.bf16.gmra.mxu0 %v6083
    %v6597 = vpop.f32.mrf.mxu0
    %v6598 = vadd.f32 %v6509, %v6597
    %v6599 = vpop.f32.mrf.mxu0
    %v6600 = vadd.f32 %v6511, %v6599
    %6601 = vmatmul.bf16.gmra.mxu0 %v6085
    %v6602 = vpop.f32.mrf.mxu0
    %v6603 = vadd.f32 %v6514, %v6602
    %v6604 = vpop.f32.mrf.mxu0
    %v6605 = vadd.f32 %v6516, %v6604
    %6606 = vmatmul.bf16.gmra.mxu0 %v6087
    %v6607 = vpop.f32.mrf.mxu0
    %v6608 = vadd.f32 %v6519, %v6607
    %v6609 = vpop.f32.mrf.mxu0
    %v6610 = vadd.f32 %v6521, %v6609
    %6611 = vmatmul.bf16.gmra.mxu0 %v6089
    %v6612 = vpop.f32.mrf.mxu0
    %v6613 = vadd.f32 %v6524, %v6612
    %v6614 = vpop.f32.mrf.mxu0
    %v6615 = vadd.f32 %v6526, %v6614
    %6616 = vmatmul.bf16.gmra.mxu0 %v6091
    %v6617 = vpop.f32.mrf.mxu0
    %v6618 = vadd.f32 %v6529, %v6617
    %v6619 = vpop.f32.mrf.mxu0
    %v6620 = vadd.f32 %v6531, %v6619
    %6621 = vmatmul.bf16.gmra.mxu0 %v6093
    %v6622 = vpop.f32.mrf.mxu0
    %v6623 = vadd.f32 %v6534, %v6622
    %v6624 = vpop.f32.mrf.mxu0
    %v6625 = vadd.f32 %v6536, %v6624
    %6626 = vmatmul.bf16.gmra.mxu0 %v6095
    %v6627 = vpop.f32.mrf.mxu0
    %v6628 = vadd.f32 %v6539, %v6627
    %v6629 = vpop.f32.mrf.mxu0
    %v6630 = vadd.f32 %v6541, %v6629
    %6631 = vmatmul.bf16.gmra.mxu0 %v6097
    %v6632 = vpop.f32.mrf.mxu0
    %v6633 = vadd.f32 %v6544, %v6632
    %v6634 = vpop.f32.mrf.mxu0
    %v6635 = vadd.f32 %v6546, %v6634
    %6636 = vmatmul.bf16.gmra.mxu0 %v6099
    %v6637 = vpop.f32.mrf.mxu0
    %v6638 = vadd.f32 %v6549, %v6637
    %v6639 = vpop.f32.mrf.mxu0
    %v6640 = vadd.f32 %v6551, %v6639
    %6641 = vmatmul.bf16.gmra.mxu0 %v6101
    %v6642 = vpop.f32.mrf.mxu0
    %v6643 = vadd.f32 %v6554, %v6642
    %v6644 = vpop.f32.mrf.mxu0
    %v6645 = vadd.f32 %v6556, %v6644
    %6646 = vmatmul.bf16.gmra.mxu0 %v6103
    %v6647 = vpop.f32.mrf.mxu0
    %v6648 = vadd.f32 %v6559, %v6647
    %v6649 = vpop.f32.mrf.mxu0
    %v6650 = vadd.f32 %v6561, %v6649
    %6651 = vmatmul.bf16.gmra.mxu0 %v6105
    %v6652 = vpop.f32.mrf.mxu0
    %v6653 = vadd.f32 %v6564, %v6652
    %v6654 = vpop.f32.mrf.mxu0
    %v6655 = vadd.f32 %v6566, %v6654
    %6656 = vmatmul.bf16.gmra.mxu0 %v6107
    %v6657 = vpop.f32.mrf.mxu0
    %v6658 = vadd.f32 %v6569, %v6657
    %v6659 = vpop.f32.mrf.mxu0
    %v6660 = vadd.f32 %v6571, %v6659
    %6661 = vdwg.mxu0
    %v6662 = vmax.f32 %v6405, 0.0
    %v6663 = vmax.f32 %v6583, 0.0
    %v6664 = vmax.f32 %v6407, 0.0
    %v6665 = vmax.f32 %v6585, 0.0
    %v6666 = vmax.f32 %v6410, 0.0
    %v6667 = vmax.f32 %v6588, 0.0
    %v6668 = vmax.f32 %v6412, 0.0
    %v6669 = vmax.f32 %v6590, 0.0
    %v6670 = vmax.f32 %v6415, 0.0
    %v6671 = vmax.f32 %v6593, 0.0
    %v6672 = vmax.f32 %v6417, 0.0
    %v6673 = vmax.f32 %v6595, 0.0
    %v6674 = vmax.f32 %v6420, 0.0
    %v6675 = vmax.f32 %v6598, 0.0
    %v6676 = vmax.f32 %v6422, 0.0
    %v6677 = vmax.f32 %v6600, 0.0
    %v6678 = vmax.f32 %v6425, 0.0
    %v6679 = vmax.f32 %v6603, 0.0
    %v6680 = vmax.f32 %v6427, 0.0
    %v6681 = vmax.f32 %v6605, 0.0
    %v6682 = vmax.f32 %v6430, 0.0
    %v6683 = vmax.f32 %v6608, 0.0
    %v6684 = vmax.f32 %v6432, 0.0
    %v6685 = vmax.f32 %v6610, 0.0
    %v6686 = vmax.f32 %v6435, 0.0
    %v6687 = vmax.f32 %v6613, 0.0
    %v6688 = vmax.f32 %v6437, 0.0
    %v6689 = vmax.f32 %v6615, 0.0
    %v6690 = vmax.f32 %v6440, 0.0
    %v6691 = vmax.f32 %v6618, 0.0
    %v6692 = vmax.f32 %v6442, 0.0
    %v6693 = vmax.f32 %v6620, 0.0
    %v6694 = vmax.f32 %v6445, 0.0
    %v6695 = vmax.f32 %v6623, 0.0
    %v6696 = vmax.f32 %v6447, 0.0
    %v6697 = vmax.f32 %v6625, 0.0
    %v6698 = vmax.f32 %v6450, 0.0
    %v6699 = vmax.f32 %v6628, 0.0
    %v6700 = vmax.f32 %v6452, 0.0
    %v6701 = vmax.f32 %v6630, 0.0
    %v6702 = vmax.f32 %v6455, 0.0
    %v6703 = vmax.f32 %v6633, 0.0
    %v6704 = vmax.f32 %v6457, 0.0
    %v6705 = vmax.f32 %v6635, 0.0
    %v6706 = vmax.f32 %v6460, 0.0
    %v6707 = vmax.f32 %v6638, 0.0
    %v6708 = vmax.f32 %v6462, 0.0
    %v6709 = vmax.f32 %v6640, 0.0
    %v6710 = vmax.f32 %v6465, 0.0
    %v6711 = vmax.f32 %v6643, 0.0
    %v6712 = vmax.f32 %v6467, 0.0
    %v6713 = vmax.f32 %v6645, 0.0
    %v6714 = vmax.f32 %v6470, 0.0
    %v6715 = vmax.f32 %v6648, 0.0
    %v6716 = vmax.f32 %v6472, 0.0
    %v6717 = vmax.f32 %v6650, 0.0
    %v6718 = vmax.f32 %v6475, 0.0
    %v6719 = vmax.f32 %v6653, 0.0
    %v6720 = vmax.f32 %v6477, 0.0
    %v6721 = vmax.f32 %v6655, 0.0
    %v6722 = vmax.f32 %v6480, 0.0
    %v6723 = vmax.f32 %v6658, 0.0
    %v6724 = vmax.f32 %v6482, 0.0
    %v6725 = vmax.f32 %v6660, 0.0
    %v6726 = vpack.c.bf16 %v6664, %v6662
    %v6727 = vpack.c.bf16 %v6665, %v6663
    %v6728 = vpack.c.bf16 %v6668, %v6666
    %v6729 = vpack.c.bf16 %v6669, %v6667
    %v6730 = vpack.c.bf16 %v6672, %v6670
    %v6731 = vpack.c.bf16 %v6673, %v6671
    %v6732 = vpack.c.bf16 %v6676, %v6674
    %v6733 = vpack.c.bf16 %v6677, %v6675
    %v6734 = vpack.c.bf16 %v6680, %v6678
    %v6735 = vpack.c.bf16 %v6681, %v6679
    %v6736 = vpack.c.bf16 %v6684, %v6682
    %v6737 = vpack.c.bf16 %v6685, %v6683
    %v6738 = vpack.c.bf16 %v6688, %v6686
    %v6739 = vpack.c.bf16 %v6689, %v6687
    %v6740 = vpack.c.bf16 %v6692, %v6690
    %v6741 = vpack.c.bf16 %v6693, %v6691
    %v6742 = vpack.c.bf16 %v6696, %v6694
    %v6743 = vpack.c.bf16 %v6697, %v6695
    %v6744 = vpack.c.bf16 %v6700, %v6698
    %v6745 = vpack.c.bf16 %v6701, %v6699
    %v6746 = vpack.c.bf16 %v6704, %v6702
    %v6747 = vpack.c.bf16 %v6705, %v6703
    %v6748 = vpack.c.bf16 %v6708, %v6706
    %v6749 = vpack.c.bf16 %v6709, %v6707
    %v6750 = vpack.c.bf16 %v6712, %v6710
    %v6751 = vpack.c.bf16 %v6713, %v6711
    %v6752 = vpack.c.bf16 %v6716, %v6714
    %v6753 = vpack.c.bf16 %v6717, %v6715
    %v6754 = vpack.c.bf16 %v6720, %v6718
    %v6755 = vpack.c.bf16 %v6721, %v6719
    %v6756 = vpack.c.bf16 %v6724, %v6722
    %v6757 = vpack.c.bf16 %v6725, %v6723
    %v6758 = vld [vmem:[#allocation11] sm:$0xf]
    %v6759 = vld [vmem:[#allocation11 + $0x4] sm:$0xf]
    %v6760 = vld [vmem:[#allocation11 + $0x8] sm:$0xf]
    %v6761 = vld [vmem:[#allocation11 + $0xc] sm:$0xf]
    %v6762 = vld [vmem:[#allocation11 + $0x10] sm:$0xf]
    %v6763 = vld [vmem:[#allocation11 + $0x14] sm:$0xf]
    %v6764 = vld [vmem:[#allocation11 + $0x18] sm:$0xf]
    %v6765 = vld [vmem:[#allocation11 + $0x1c] sm:$0xf]
    %v6766 = vld [vmem:[#allocation11 + $0x20] sm:$0xf]
    %v6767 = vld [vmem:[#allocation11 + $0x24] sm:$0xf]
    %v6768 = vld [vmem:[#allocation11 + $0x28] sm:$0xf]
    %v6769 = vld [vmem:[#allocation11 + $0x2c] sm:$0xf]
    %v6770 = vld [vmem:[#allocation11 + $0x30] sm:$0xf]
    %v6771 = vld [vmem:[#allocation11 + $0x34] sm:$0xf]
    %v6772 = vld [vmem:[#allocation11 + $0x38] sm:$0xf]
    %v6773 = vld [vmem:[#allocation11 + $0x3c] sm:$0xf]
    %v6774 = vld [vmem:[#allocation11 + $0x40] sm:$0xf]
    %v6775 = vld [vmem:[#allocation11 + $0x44] sm:$0xf]
    %v6776 = vld [vmem:[#allocation11 + $0x48] sm:$0xf]
    %v6777 = vld [vmem:[#allocation11 + $0x4c] sm:$0xf]
    %v6778 = vld [vmem:[#allocation11 + $0x50] sm:$0xf]
    %v6779 = vld [vmem:[#allocation11 + $0x54] sm:$0xf]
    %v6780 = vld [vmem:[#allocation11 + $0x58] sm:$0xf]
    %v6781 = vld [vmem:[#allocation11 + $0x5c] sm:$0xf]
    %v6782 = vld [vmem:[#allocation11 + $0x60] sm:$0xf]
    %v6783 = vld [vmem:[#allocation11 + $0x64] sm:$0xf]
    %v6784 = vld [vmem:[#allocation11 + $0x68] sm:$0xf]
    %v6785 = vld [vmem:[#allocation11 + $0x6c] sm:$0xf]
    %v6786 = vld [vmem:[#allocation11 + $0x70] sm:$0xf]
    %v6787 = vld [vmem:[#allocation11 + $0x74] sm:$0xf]
    %v6788 = vld [vmem:[#allocation11 + $0x78] sm:$0xf]
    %v6789 = vld [vmem:[#allocation11 + $0x7c] sm:$0xf]
    %v6790 = vld [vmem:[%s8] sm:$0x1]
    %v6792 = vperm.slane %v6790, 0
    %v6826 = vunpack.c.l.b16 %v6758
    %v6827 = vunpack.c.l.b16 %v6759
    %v6828 = vunpack.c.l.b16 %v6760
    %v6829 = vunpack.c.l.b16 %v6761
    %v6830 = vunpack.c.l.b16 %v6762
    %v6831 = vunpack.c.l.b16 %v6763
    %v6832 = vunpack.c.l.b16 %v6764
    %v6833 = vunpack.c.l.b16 %v6765
    %v6834 = vunpack.c.l.b16 %v6766
    %v6835 = vunpack.c.l.b16 %v6767
    %v6836 = vunpack.c.l.b16 %v6768
    %v6837 = vunpack.c.l.b16 %v6769
    %v6838 = vunpack.c.l.b16 %v6770
    %v6839 = vunpack.c.l.b16 %v6771
    %v6840 = vunpack.c.l.b16 %v6772
    %v6841 = vunpack.c.l.b16 %v6773
    %v6842 = vunpack.c.l.b16 %v6774
    %v6843 = vunpack.c.l.b16 %v6775
    %v6844 = vunpack.c.l.b16 %v6776
    %v6845 = vunpack.c.l.b16 %v6777
    %v6846 = vunpack.c.l.b16 %v6778
    %v6847 = vunpack.c.l.b16 %v6779
    %v6848 = vunpack.c.l.b16 %v6780
    %v6849 = vunpack.c.l.b16 %v6781
    %v6850 = vunpack.c.l.b16 %v6782
    %v6851 = vunpack.c.l.b16 %v6783
    %v6852 = vunpack.c.l.b16 %v6784
    %v6853 = vunpack.c.l.b16 %v6785
    %v6854 = vunpack.c.l.b16 %v6786
    %v6855 = vunpack.c.l.b16 %v6787
    %v6856 = vunpack.c.l.b16 %v6788
    %v6857 = vunpack.c.l.b16 %v6789
    %v6858 = vpack.c.b16 %v6827, %v6826
    %v6859 = vpack.c.b16 %v6829, %v6828
    %v6860 = vpack.c.b16 %v6831, %v6830
    %v6861 = vpack.c.b16 %v6833, %v6832
    %v6862 = vpack.c.b16 %v6835, %v6834
    %v6863 = vpack.c.b16 %v6837, %v6836
    %v6864 = vpack.c.b16 %v6839, %v6838
    %v6865 = vpack.c.b16 %v6841, %v6840
    %v6866 = vpack.c.b16 %v6843, %v6842
    %v6867 = vpack.c.b16 %v6845, %v6844
    %v6868 = vpack.c.b16 %v6847, %v6846
    %v6869 = vpack.c.b16 %v6849, %v6848
    %v6870 = vpack.c.b16 %v6851, %v6850
    %v6871 = vpack.c.b16 %v6853, %v6852
    %v6872 = vpack.c.b16 %v6855, %v6854
    %v6873 = vpack.c.b16 %v6857, %v6856
    %6890 = vmatpush.bf16.msra.mxu0 %v6865
    %6891 = vmatpush.bf16.msra.mxu0 %v6864
    %6892 = vmatpush.bf16.msra.mxu0 %v6863
    %6893 = vmatpush.bf16.msra.mxu0 %v6862
    %6894 = vmatpush.bf16.msra.mxu0 %v6861
    %6895 = vmatpush.bf16.msra.mxu0 %v6860
    %6896 = vmatpush.bf16.msra.mxu0 %v6859
    %6897 = vmatpush.bf16.msra.mxu0 %v6858
    %6898 = vmatmul.bf16.gmra.mxu0 %v6726
    %v6899 = vpop.f32.mrf.mxu0
    %v6900 = vadd.f32 %v6792, %v6899
    %v6901 = vpop.f32.mrf.mxu0
    %v6902 = vadd.f32 %v6792, %v6901
    %6903 = vmatmul.bf16.gmra.mxu0 %v6728
    %v6904 = vpop.f32.mrf.mxu0
    %v6905 = vadd.f32 %v6792, %v6904
    %v6906 = vpop.f32.mrf.mxu0
    %v6907 = vadd.f32 %v6792, %v6906
    %6908 = vmatmul.bf16.gmra.mxu0 %v6730
    %v6909 = vpop.f32.mrf.mxu0
    %v6910 = vadd.f32 %v6792, %v6909
    %v6911 = vpop.f32.mrf.mxu0
    %v6912 = vadd.f32 %v6792, %v6911
    %6913 = vmatmul.bf16.gmra.mxu0 %v6732
    %v6914 = vpop.f32.mrf.mxu0
    %v6915 = vadd.f32 %v6792, %v6914
    %v6916 = vpop.f32.mrf.mxu0
    %v6917 = vadd.f32 %v6792, %v6916
    %6918 = vmatmul.bf16.gmra.mxu0 %v6734
    %v6919 = vpop.f32.mrf.mxu0
    %v6920 = vadd.f32 %v6792, %v6919
    %v6921 = vpop.f32.mrf.mxu0
    %v6922 = vadd.f32 %v6792, %v6921
    %6923 = vmatmul.bf16.gmra.mxu0 %v6736
    %v6924 = vpop.f32.mrf.mxu0
    %v6925 = vadd.f32 %v6792, %v6924
    %v6926 = vpop.f32.mrf.mxu0
    %v6927 = vadd.f32 %v6792, %v6926
    %6928 = vmatmul.bf16.gmra.mxu0 %v6738
    %v6929 = vpop.f32.mrf.mxu0
    %v6930 = vadd.f32 %v6792, %v6929
    %v6931 = vpop.f32.mrf.mxu0
    %v6932 = vadd.f32 %v6792, %v6931
    %6933 = vmatmul.bf16.gmra.mxu0 %v6740
    %v6934 = vpop.f32.mrf.mxu0
    %v6935 = vadd.f32 %v6792, %v6934
    %v6936 = vpop.f32.mrf.mxu0
    %v6937 = vadd.f32 %v6792, %v6936
    %6938 = vmatmul.bf16.gmra.mxu0 %v6742
    %v6939 = vpop.f32.mrf.mxu0
    %v6940 = vadd.f32 %v6792, %v6939
    %v6941 = vpop.f32.mrf.mxu0
    %v6942 = vadd.f32 %v6792, %v6941
    %6943 = vmatmul.bf16.gmra.mxu0 %v6744
    %v6944 = vpop.f32.mrf.mxu0
    %v6945 = vadd.f32 %v6792, %v6944
    %v6946 = vpop.f32.mrf.mxu0
    %v6947 = vadd.f32 %v6792, %v6946
    %6948 = vmatmul.bf16.gmra.mxu0 %v6746
    %v6949 = vpop.f32.mrf.mxu0
    %v6950 = vadd.f32 %v6792, %v6949
    %v6951 = vpop.f32.mrf.mxu0
    %v6952 = vadd.f32 %v6792, %v6951
    %6953 = vmatmul.bf16.gmra.mxu0 %v6748
    %v6954 = vpop.f32.mrf.mxu0
    %v6955 = vadd.f32 %v6792, %v6954
    %v6956 = vpop.f32.mrf.mxu0
    %v6957 = vadd.f32 %v6792, %v6956
    %6958 = vmatmul.bf16.gmra.mxu0 %v6750
    %v6959 = vpop.f32.mrf.mxu0
    %v6960 = vadd.f32 %v6792, %v6959
    %v6961 = vpop.f32.mrf.mxu0
    %v6962 = vadd.f32 %v6792, %v6961
    %6963 = vmatmul.bf16.gmra.mxu0 %v6752
    %v6964 = vpop.f32.mrf.mxu0
    %v6965 = vadd.f32 %v6792, %v6964
    %v6966 = vpop.f32.mrf.mxu0
    %v6967 = vadd.f32 %v6792, %v6966
    %6968 = vmatmul.bf16.gmra.mxu0 %v6754
    %v6969 = vpop.f32.mrf.mxu0
    %v6970 = vadd.f32 %v6792, %v6969
    %v6971 = vpop.f32.mrf.mxu0
    %v6972 = vadd.f32 %v6792, %v6971
    %6973 = vmatmul.bf16.gmra.mxu0 %v6756
    %v6974 = vpop.f32.mrf.mxu0
    %v6975 = vadd.f32 %v6792, %v6974
    %v6976 = vpop.f32.mrf.mxu0
    %v6977 = vadd.f32 %v6792, %v6976
    %6978 = vdwg.mxu0
    %6979 = vmatpush.bf16.msra.mxu0 %v6873
    %6980 = vmatpush.bf16.msra.mxu0 %v6872
    %6981 = vmatpush.bf16.msra.mxu0 %v6871
    %6982 = vmatpush.bf16.msra.mxu0 %v6870
    %6983 = vmatpush.bf16.msra.mxu0 %v6869
    %6984 = vmatpush.bf16.msra.mxu0 %v6868
    %6985 = vmatpush.bf16.msra.mxu0 %v6867
    %6986 = vmatpush.bf16.msra.mxu0 %v6866
    %6987 = vmatmul.bf16.gmra.mxu0 %v6727
    %v6988 = vpop.f32.mrf.mxu0
    %v6989 = vadd.f32 %v6900, %v6988
    %v6990 = vpop.f32.mrf.mxu0
    %v6991 = vadd.f32 %v6902, %v6990
    %6992 = vmatmul.bf16.gmra.mxu0 %v6729
    %v6993 = vpop.f32.mrf.mxu0
    %v6994 = vadd.f32 %v6905, %v6993
    %v6995 = vpop.f32.mrf.mxu0
    %v6996 = vadd.f32 %v6907, %v6995
    %6997 = vmatmul.bf16.gmra.mxu0 %v6731
    %v6998 = vpop.f32.mrf.mxu0
    %v6999 = vadd.f32 %v6910, %v6998
    %v7000 = vpop.f32.mrf.mxu0
    %v7001 = vadd.f32 %v6912, %v7000
    %7002 = vmatmul.bf16.gmra.mxu0 %v6733
    %v7003 = vpop.f32.mrf.mxu0
    %v7004 = vadd.f32 %v6915, %v7003
    %v7005 = vpop.f32.mrf.mxu0
    %v7006 = vadd.f32 %v6917, %v7005
    %7007 = vmatmul.bf16.gmra.mxu0 %v6735
    %v7008 = vpop.f32.mrf.mxu0
    %v7009 = vadd.f32 %v6920, %v7008
    %v7010 = vpop.f32.mrf.mxu0
    %v7011 = vadd.f32 %v6922, %v7010
    %7012 = vmatmul.bf16.gmra.mxu0 %v6737
    %v7013 = vpop.f32.mrf.mxu0
    %v7014 = vadd.f32 %v6925, %v7013
    %v7015 = vpop.f32.mrf.mxu0
    %v7016 = vadd.f32 %v6927, %v7015
    %7017 = vmatmul.bf16.gmra.mxu0 %v6739
    %v7018 = vpop.f32.mrf.mxu0
    %v7019 = vadd.f32 %v6930, %v7018
    %v7020 = vpop.f32.mrf.mxu0
    %v7021 = vadd.f32 %v6932, %v7020
    %7022 = vmatmul.bf16.gmra.mxu0 %v6741
    %v7023 = vpop.f32.mrf.mxu0
    %v7024 = vadd.f32 %v6935, %v7023
    %v7025 = vpop.f32.mrf.mxu0
    %v7026 = vadd.f32 %v6937, %v7025
    %7027 = vmatmul.bf16.gmra.mxu0 %v6743
    %v7028 = vpop.f32.mrf.mxu0
    %v7029 = vadd.f32 %v6940, %v7028
    %v7030 = vpop.f32.mrf.mxu0
    %v7031 = vadd.f32 %v6942, %v7030
    %7032 = vmatmul.bf16.gmra.mxu0 %v6745
    %v7033 = vpop.f32.mrf.mxu0
    %v7034 = vadd.f32 %v6945, %v7033
    %v7035 = vpop.f32.mrf.mxu0
    %v7036 = vadd.f32 %v6947, %v7035
    %7037 = vmatmul.bf16.gmra.mxu0 %v6747
    %v7038 = vpop.f32.mrf.mxu0
    %v7039 = vadd.f32 %v6950, %v7038
    %v7040 = vpop.f32.mrf.mxu0
    %v7041 = vadd.f32 %v6952, %v7040
    %7042 = vmatmul.bf16.gmra.mxu0 %v6749
    %v7043 = vpop.f32.mrf.mxu0
    %v7044 = vadd.f32 %v6955, %v7043
    %v7045 = vpop.f32.mrf.mxu0
    %v7046 = vadd.f32 %v6957, %v7045
    %7047 = vmatmul.bf16.gmra.mxu0 %v6751
    %v7048 = vpop.f32.mrf.mxu0
    %v7049 = vadd.f32 %v6960, %v7048
    %v7050 = vpop.f32.mrf.mxu0
    %v7051 = vadd.f32 %v6962, %v7050
    %7052 = vmatmul.bf16.gmra.mxu0 %v6753
    %v7053 = vpop.f32.mrf.mxu0
    %v7054 = vadd.f32 %v6965, %v7053
    %v7055 = vpop.f32.mrf.mxu0
    %v7056 = vadd.f32 %v6967, %v7055
    %7057 = vmatmul.bf16.gmra.mxu0 %v6755
    %v7058 = vpop.f32.mrf.mxu0
    %v7059 = vadd.f32 %v6970, %v7058
    %v7060 = vpop.f32.mrf.mxu0
    %v7061 = vadd.f32 %v6972, %v7060
    %7062 = vmatmul.bf16.gmra.mxu0 %v6757
    %v7063 = vpop.f32.mrf.mxu0
    %v7064 = vadd.f32 %v6975, %v7063
    %v7065 = vpop.f32.mrf.mxu0
    %v7066 = vadd.f32 %v6977, %v7065
    %7067 = vdwg.mxu0
    %v7068 = vmax.f32 %v6989, 0.0
    %v7069 = vmax.f32 %v6991, 0.0
    %v7070 = vmax.f32 %v6994, 0.0
    %v7071 = vmax.f32 %v6996, 0.0
    %v7072 = vmax.f32 %v6999, 0.0
    %v7073 = vmax.f32 %v7001, 0.0
    %v7074 = vmax.f32 %v7004, 0.0
    %v7075 = vmax.f32 %v7006, 0.0
    %v7076 = vmax.f32 %v7009, 0.0
    %v7077 = vmax.f32 %v7011, 0.0
    %v7078 = vmax.f32 %v7014, 0.0
    %v7079 = vmax.f32 %v7016, 0.0
    %v7080 = vmax.f32 %v7019, 0.0
    %v7081 = vmax.f32 %v7021, 0.0
    %v7082 = vmax.f32 %v7024, 0.0
    %v7083 = vmax.f32 %v7026, 0.0
    %v7084 = vmax.f32 %v7029, 0.0
    %v7085 = vmax.f32 %v7031, 0.0
    %v7086 = vmax.f32 %v7034, 0.0
    %v7087 = vmax.f32 %v7036, 0.0
    %v7088 = vmax.f32 %v7039, 0.0
    %v7089 = vmax.f32 %v7041, 0.0
    %v7090 = vmax.f32 %v7044, 0.0
    %v7091 = vmax.f32 %v7046, 0.0
    %v7092 = vmax.f32 %v7049, 0.0
    %v7093 = vmax.f32 %v7051, 0.0
    %v7094 = vmax.f32 %v7054, 0.0
    %v7095 = vmax.f32 %v7056, 0.0
    %v7096 = vmax.f32 %v7059, 0.0
    %v7097 = vmax.f32 %v7061, 0.0
    %v7098 = vmax.f32 %v7064, 0.0
    %v7099 = vmax.f32 %v7066, 0.0
    %v7100 = vpack.c.bf16 %v7069, %v7068
    %v7101 = vpack.c.bf16 %v7071, %v7070
    %v7102 = vpack.c.bf16 %v7073, %v7072
    %v7103 = vpack.c.bf16 %v7075, %v7074
    %v7104 = vpack.c.bf16 %v7077, %v7076
    %v7105 = vpack.c.bf16 %v7079, %v7078
    %v7106 = vpack.c.bf16 %v7081, %v7080
    %v7107 = vpack.c.bf16 %v7083, %v7082
    %v7108 = vpack.c.bf16 %v7085, %v7084
    %v7109 = vpack.c.bf16 %v7087, %v7086
    %v7110 = vpack.c.bf16 %v7089, %v7088
    %v7111 = vpack.c.bf16 %v7091, %v7090
    %v7112 = vpack.c.bf16 %v7093, %v7092
    %v7113 = vpack.c.bf16 %v7095, %v7094
    %v7114 = vpack.c.bf16 %v7097, %v7096
    %v7115 = vpack.c.bf16 %v7099, %v7098
    %v7116 = vld [vmem:[#allocation13] sm:$0xf]
    %v7117 = vld [vmem:[#allocation13 + $0x4] sm:$0xf]
    %v7118 = vld [vmem:[#allocation13 + $0x8] sm:$0xf]
    %v7119 = vld [vmem:[#allocation13 + $0xc] sm:$0xf]
    %v7120 = vld [vmem:[#allocation13 + $0x10] sm:$0xf]
    %v7121 = vld [vmem:[#allocation13 + $0x14] sm:$0xf]
    %v7122 = vld [vmem:[#allocation13 + $0x18] sm:$0xf]
    %v7123 = vld [vmem:[#allocation13 + $0x1c] sm:$0xf]
    %v7124 = vld [vmem:[#allocation13 + $0x20] sm:$0xf]
    %v7125 = vld [vmem:[#allocation13 + $0x24] sm:$0xf]
    %v7126 = vld [vmem:[#allocation13 + $0x28] sm:$0xf]
    %v7127 = vld [vmem:[#allocation13 + $0x2c] sm:$0xf]
    %v7128 = vld [vmem:[#allocation13 + $0x30] sm:$0xf]
    %v7129 = vld [vmem:[#allocation13 + $0x34] sm:$0xf]
    %v7130 = vld [vmem:[#allocation13 + $0x38] sm:$0xf]
    %v7131 = vld [vmem:[#allocation13 + $0x3c] sm:$0xf]
    %v7132 = vld [vmem:[%s10] sm:$0x1]
    %v7134 = vperm.slane %v7132, 0
    %v7152 = vunpack.c.l.b16 %v7116
    %v7153 = vunpack.c.l.b16 %v7117
    %v7154 = vunpack.c.l.b16 %v7118
    %v7155 = vunpack.c.l.b16 %v7119
    %v7156 = vunpack.c.l.b16 %v7120
    %v7157 = vunpack.c.l.b16 %v7121
    %v7158 = vunpack.c.l.b16 %v7122
    %v7159 = vunpack.c.l.b16 %v7123
    %v7160 = vunpack.c.l.b16 %v7124
    %v7161 = vunpack.c.l.b16 %v7125
    %v7162 = vunpack.c.l.b16 %v7126
    %v7163 = vunpack.c.l.b16 %v7127
    %v7164 = vunpack.c.l.b16 %v7128
    %v7165 = vunpack.c.l.b16 %v7129
    %v7166 = vunpack.c.l.b16 %v7130
    %v7167 = vunpack.c.l.b16 %v7131
    %v7168 = vpack.c.b16 %v7153, %v7152
    %v7169 = vpack.c.b16 %v7155, %v7154
    %v7170 = vpack.c.b16 %v7157, %v7156
    %v7171 = vpack.c.b16 %v7159, %v7158
    %v7172 = vpack.c.b16 %v7161, %v7160
    %v7173 = vpack.c.b16 %v7163, %v7162
    %v7174 = vpack.c.b16 %v7165, %v7164
    %v7175 = vpack.c.b16 %v7167, %v7166
    %7184 = vmatpush.bf16.msra.mxu0 %v7175
    %7185 = vmatpush.bf16.msra.mxu0 %v7174
    %7186 = vmatpush.bf16.msra.mxu0 %v7173
    %7187 = vmatpush.bf16.msra.mxu0 %v7172
    %7188 = vmatpush.bf16.msra.mxu0 %v7171
    %7189 = vmatpush.bf16.msra.mxu0 %v7170
    %7190 = vmatpush.bf16.msra.mxu0 %v7169
    %7191 = vmatpush.bf16.msra.mxu0 %v7168
    %7192 = vmatmul.bf16.gmra.mxu0 %v7100
    %v7193 = vpop.f32.mrf.mxu0
    %v7194 = vadd.f32 %v7134, %v7193
    %v7195 = vpop.f32.mrf.mxu0
    %v7196 = vadd.f32 %v7134, %v7195
    %7197 = vmatmul.bf16.gmra.mxu0 %v7101
    %v7198 = vpop.f32.mrf.mxu0
    %v7199 = vadd.f32 %v7134, %v7198
    %v7200 = vpop.f32.mrf.mxu0
    %v7201 = vadd.f32 %v7134, %v7200
    %7202 = vmatmul.bf16.gmra.mxu0 %v7102
    %v7203 = vpop.f32.mrf.mxu0
    %v7204 = vadd.f32 %v7134, %v7203
    %v7205 = vpop.f32.mrf.mxu0
    %v7206 = vadd.f32 %v7134, %v7205
    %7207 = vmatmul.bf16.gmra.mxu0 %v7103
    %v7208 = vpop.f32.mrf.mxu0
    %v7209 = vadd.f32 %v7134, %v7208
    %v7210 = vpop.f32.mrf.mxu0
    %v7211 = vadd.f32 %v7134, %v7210
    %7212 = vmatmul.bf16.gmra.mxu0 %v7104
    %v7213 = vpop.f32.mrf.mxu0
    %v7214 = vadd.f32 %v7134, %v7213
    %v7215 = vpop.f32.mrf.mxu0
    %v7216 = vadd.f32 %v7134, %v7215
    %7217 = vmatmul.bf16.gmra.mxu0 %v7105
    %v7218 = vpop.f32.mrf.mxu0
    %v7219 = vadd.f32 %v7134, %v7218
    %v7220 = vpop.f32.mrf.mxu0
    %v7221 = vadd.f32 %v7134, %v7220
    %7222 = vmatmul.bf16.gmra.mxu0 %v7106
    %v7223 = vpop.f32.mrf.mxu0
    %v7224 = vadd.f32 %v7134, %v7223
    %v7225 = vpop.f32.mrf.mxu0
    %v7226 = vadd.f32 %v7134, %v7225
    %7227 = vmatmul.bf16.gmra.mxu0 %v7107
    %v7228 = vpop.f32.mrf.mxu0
    %v7229 = vadd.f32 %v7134, %v7228
    %v7230 = vpop.f32.mrf.mxu0
    %v7231 = vadd.f32 %v7134, %v7230
    %7232 = vmatmul.bf16.gmra.mxu0 %v7108
    %v7233 = vpop.f32.mrf.mxu0
    %v7234 = vadd.f32 %v7134, %v7233
    %v7235 = vpop.f32.mrf.mxu0
    %v7236 = vadd.f32 %v7134, %v7235
    %7237 = vmatmul.bf16.gmra.mxu0 %v7109
    %v7238 = vpop.f32.mrf.mxu0
    %v7239 = vadd.f32 %v7134, %v7238
    %v7240 = vpop.f32.mrf.mxu0
    %v7241 = vadd.f32 %v7134, %v7240
    %7242 = vmatmul.bf16.gmra.mxu0 %v7110
    %v7243 = vpop.f32.mrf.mxu0
    %v7244 = vadd.f32 %v7134, %v7243
    %v7245 = vpop.f32.mrf.mxu0
    %v7246 = vadd.f32 %v7134, %v7245
    %7247 = vmatmul.bf16.gmra.mxu0 %v7111
    %v7248 = vpop.f32.mrf.mxu0
    %v7249 = vadd.f32 %v7134, %v7248
    %v7250 = vpop.f32.mrf.mxu0
    %v7251 = vadd.f32 %v7134, %v7250
    %7252 = vmatmul.bf16.gmra.mxu0 %v7112
    %v7253 = vpop.f32.mrf.mxu0
    %v7254 = vadd.f32 %v7134, %v7253
    %v7255 = vpop.f32.mrf.mxu0
    %v7256 = vadd.f32 %v7134, %v7255
    %7257 = vmatmul.bf16.gmra.mxu0 %v7113
    %v7258 = vpop.f32.mrf.mxu0
    %v7259 = vadd.f32 %v7134, %v7258
    %v7260 = vpop.f32.mrf.mxu0
    %v7261 = vadd.f32 %v7134, %v7260
    %7262 = vmatmul.bf16.gmra.mxu0 %v7114
    %v7263 = vpop.f32.mrf.mxu0
    %v7264 = vadd.f32 %v7134, %v7263
    %v7265 = vpop.f32.mrf.mxu0
    %v7266 = vadd.f32 %v7134, %v7265
    %7267 = vmatmul.bf16.gmra.mxu0 %v7115
    %v7268 = vpop.f32.mrf.mxu0
    %v7269 = vadd.f32 %v7134, %v7268
    %v7270 = vpop.f32.mrf.mxu0
    %v7271 = vadd.f32 %v7134, %v7270
    %7272 = vdwg.mxu0
    %v7273 = vmax.f32 %v7194, 0.0
    %v7274 = vmax.f32 %v7196, 0.0
    %v7275 = vmax.f32 %v7199, 0.0
    %v7276 = vmax.f32 %v7201, 0.0
    %v7277 = vmax.f32 %v7204, 0.0
    %v7278 = vmax.f32 %v7206, 0.0
    %v7279 = vmax.f32 %v7209, 0.0
    %v7280 = vmax.f32 %v7211, 0.0
    %v7281 = vmax.f32 %v7214, 0.0
    %v7282 = vmax.f32 %v7216, 0.0
    %v7283 = vmax.f32 %v7219, 0.0
    %v7284 = vmax.f32 %v7221, 0.0
    %v7285 = vmax.f32 %v7224, 0.0
    %v7286 = vmax.f32 %v7226, 0.0
    %v7287 = vmax.f32 %v7229, 0.0
    %v7288 = vmax.f32 %v7231, 0.0
    %v7289 = vmax.f32 %v7234, 0.0
    %v7290 = vmax.f32 %v7236, 0.0
    %v7291 = vmax.f32 %v7239, 0.0
    %v7292 = vmax.f32 %v7241, 0.0
    %v7293 = vmax.f32 %v7244, 0.0
    %v7294 = vmax.f32 %v7246, 0.0
    %v7295 = vmax.f32 %v7249, 0.0
    %v7296 = vmax.f32 %v7251, 0.0
    %v7297 = vmax.f32 %v7254, 0.0
    %v7298 = vmax.f32 %v7256, 0.0
    %v7299 = vmax.f32 %v7259, 0.0
    %v7300 = vmax.f32 %v7261, 0.0
    %v7301 = vmax.f32 %v7264, 0.0
    %v7302 = vmax.f32 %v7266, 0.0
    %v7303 = vmax.f32 %v7269, 0.0
    %v7304 = vmax.f32 %v7271, 0.0
    %v7305 = vpack.c.bf16 %v7274, %v7273
    %v7306 = vpack.c.bf16 %v7276, %v7275
    %v7307 = vpack.c.bf16 %v7278, %v7277
    %v7308 = vpack.c.bf16 %v7280, %v7279
    %v7309 = vpack.c.bf16 %v7282, %v7281
    %v7310 = vpack.c.bf16 %v7284, %v7283
    %v7311 = vpack.c.bf16 %v7286, %v7285
    %v7312 = vpack.c.bf16 %v7288, %v7287
    %v7313 = vpack.c.bf16 %v7290, %v7289
    %v7314 = vpack.c.bf16 %v7292, %v7291
    %v7315 = vpack.c.bf16 %v7294, %v7293
    %v7316 = vpack.c.bf16 %v7296, %v7295
    %v7317 = vpack.c.bf16 %v7298, %v7297
    %v7318 = vpack.c.bf16 %v7300, %v7299
    %v7319 = vpack.c.bf16 %v7302, %v7301
    %v7320 = vpack.c.bf16 %v7304, %v7303
    %v7321 = vld [vmem:[#allocation14] sm:$0xf]
    %v7322 = vld [vmem:[#allocation14 + $0x4] sm:$0xf]
    %v7323 = vld [vmem:[#allocation14 + $0x8] sm:$0xf]
    %v7324 = vld [vmem:[#allocation14 + $0xc] sm:$0xf]
    %v7325 = vld [vmem:[#allocation14 + $0x10] sm:$0xf]
    %v7326 = vld [vmem:[#allocation14 + $0x14] sm:$0xf]
    %v7327 = vld [vmem:[#allocation14 + $0x18] sm:$0xf]
    %v7328 = vld [vmem:[#allocation14 + $0x1c] sm:$0xf]
    %v7329 = vld [vmem:[#allocation14 + $0x20] sm:$0xf]
    %v7330 = vld [vmem:[#allocation14 + $0x24] sm:$0xf]
    %v7331 = vld [vmem:[#allocation14 + $0x28] sm:$0xf]
    %v7332 = vld [vmem:[#allocation14 + $0x2c] sm:$0xf]
    %v7333 = vld [vmem:[#allocation14 + $0x30] sm:$0xf]
    %v7334 = vld [vmem:[#allocation14 + $0x34] sm:$0xf]
    %v7335 = vld [vmem:[#allocation14 + $0x38] sm:$0xf]
    %v7336 = vld [vmem:[#allocation14 + $0x3c] sm:$0xf]
    %v7337 = vld [vmem:[%s12] sm:$0x1]
    %v7339 = vperm.slane %v7337, 0
    %v7357 = vunpack.c.l.b16 %v7321
    %v7358 = vunpack.c.l.b16 %v7322
    %v7359 = vunpack.c.l.b16 %v7323
    %v7360 = vunpack.c.l.b16 %v7324
    %v7361 = vunpack.c.l.b16 %v7325
    %v7362 = vunpack.c.l.b16 %v7326
    %v7363 = vunpack.c.l.b16 %v7327
    %v7364 = vunpack.c.l.b16 %v7328
    %v7365 = vunpack.c.l.b16 %v7329
    %v7366 = vunpack.c.l.b16 %v7330
    %v7367 = vunpack.c.l.b16 %v7331
    %v7368 = vunpack.c.l.b16 %v7332
    %v7369 = vunpack.c.l.b16 %v7333
    %v7370 = vunpack.c.l.b16 %v7334
    %v7371 = vunpack.c.l.b16 %v7335
    %v7372 = vunpack.c.l.b16 %v7336
    %v7373 = vpack.c.b16 %v7358, %v7357
    %v7374 = vpack.c.b16 %v7360, %v7359
    %v7375 = vpack.c.b16 %v7362, %v7361
    %v7376 = vpack.c.b16 %v7364, %v7363
    %v7377 = vpack.c.b16 %v7366, %v7365
    %v7378 = vpack.c.b16 %v7368, %v7367
    %v7379 = vpack.c.b16 %v7370, %v7369
    %v7380 = vpack.c.b16 %v7372, %v7371
    %7389 = vmatpush.bf16.msra.mxu0 %v7380
    %7390 = vmatpush.bf16.msra.mxu0 %v7379
    %7391 = vmatpush.bf16.msra.mxu0 %v7378
    %7392 = vmatpush.bf16.msra.mxu0 %v7377
    %7393 = vmatpush.bf16.msra.mxu0 %v7376
    %7394 = vmatpush.bf16.msra.mxu0 %v7375
    %7395 = vmatpush.bf16.msra.mxu0 %v7374
    %7396 = vmatpush.bf16.msra.mxu0 %v7373
    %7397 = vmatmul.bf16.gmra.mxu0 %v7305
    %v7398 = vpop.f32.mrf.mxu0
    %v7399 = vadd.f32 %v7339, %v7398
    %v7400 = vpop.f32.mrf.mxu0
    %v7401 = vadd.f32 %v7339, %v7400
    %7402 = vmatmul.bf16.gmra.mxu0 %v7306
    %v7403 = vpop.f32.mrf.mxu0
    %v7404 = vadd.f32 %v7339, %v7403
    %v7405 = vpop.f32.mrf.mxu0
    %v7406 = vadd.f32 %v7339, %v7405
    %7407 = vmatmul.bf16.gmra.mxu0 %v7307
    %v7408 = vpop.f32.mrf.mxu0
    %v7409 = vadd.f32 %v7339, %v7408
    %v7410 = vpop.f32.mrf.mxu0
    %v7411 = vadd.f32 %v7339, %v7410
    %7412 = vmatmul.bf16.gmra.mxu0 %v7308
    %v7413 = vpop.f32.mrf.mxu0
    %v7414 = vadd.f32 %v7339, %v7413
    %v7415 = vpop.f32.mrf.mxu0
    %v7416 = vadd.f32 %v7339, %v7415
    %7417 = vmatmul.bf16.gmra.mxu0 %v7309
    %v7418 = vpop.f32.mrf.mxu0
    %v7419 = vadd.f32 %v7339, %v7418
    %v7420 = vpop.f32.mrf.mxu0
    %v7421 = vadd.f32 %v7339, %v7420
    %7422 = vmatmul.bf16.gmra.mxu0 %v7310
    %v7423 = vpop.f32.mrf.mxu0
    %v7424 = vadd.f32 %v7339, %v7423
    %v7425 = vpop.f32.mrf.mxu0
    %v7426 = vadd.f32 %v7339, %v7425
    %7427 = vmatmul.bf16.gmra.mxu0 %v7311
    %v7428 = vpop.f32.mrf.mxu0
    %v7429 = vadd.f32 %v7339, %v7428
    %v7430 = vpop.f32.mrf.mxu0
    %v7431 = vadd.f32 %v7339, %v7430
    %7432 = vmatmul.bf16.gmra.mxu0 %v7312
    %v7433 = vpop.f32.mrf.mxu0
    %v7434 = vadd.f32 %v7339, %v7433
    %v7435 = vpop.f32.mrf.mxu0
    %v7436 = vadd.f32 %v7339, %v7435
    %7437 = vmatmul.bf16.gmra.mxu0 %v7313
    %v7438 = vpop.f32.mrf.mxu0
    %v7439 = vadd.f32 %v7339, %v7438
    %v7440 = vpop.f32.mrf.mxu0
    %v7441 = vadd.f32 %v7339, %v7440
    %7442 = vmatmul.bf16.gmra.mxu0 %v7314
    %v7443 = vpop.f32.mrf.mxu0
    %v7444 = vadd.f32 %v7339, %v7443
    %v7445 = vpop.f32.mrf.mxu0
    %v7446 = vadd.f32 %v7339, %v7445
    %7447 = vmatmul.bf16.gmra.mxu0 %v7315
    %v7448 = vpop.f32.mrf.mxu0
    %v7449 = vadd.f32 %v7339, %v7448
    %v7450 = vpop.f32.mrf.mxu0
    %v7451 = vadd.f32 %v7339, %v7450
    %7452 = vmatmul.bf16.gmra.mxu0 %v7316
    %v7453 = vpop.f32.mrf.mxu0
    %v7454 = vadd.f32 %v7339, %v7453
    %v7455 = vpop.f32.mrf.mxu0
    %v7456 = vadd.f32 %v7339, %v7455
    %7457 = vmatmul.bf16.gmra.mxu0 %v7317
    %v7458 = vpop.f32.mrf.mxu0
    %v7459 = vadd.f32 %v7339, %v7458
    %v7460 = vpop.f32.mrf.mxu0
    %v7461 = vadd.f32 %v7339, %v7460
    %7462 = vmatmul.bf16.gmra.mxu0 %v7318
    %v7463 = vpop.f32.mrf.mxu0
    %v7464 = vadd.f32 %v7339, %v7463
    %v7465 = vpop.f32.mrf.mxu0
    %v7466 = vadd.f32 %v7339, %v7465
    %7467 = vmatmul.bf16.gmra.mxu0 %v7319
    %v7468 = vpop.f32.mrf.mxu0
    %v7469 = vadd.f32 %v7339, %v7468
    %v7470 = vpop.f32.mrf.mxu0
    %v7471 = vadd.f32 %v7339, %v7470
    %7472 = vmatmul.bf16.gmra.mxu0 %v7320
    %v7473 = vpop.f32.mrf.mxu0
    %v7474 = vadd.f32 %v7339, %v7473
    %v7475 = vpop.f32.mrf.mxu0
    %v7476 = vadd.f32 %v7339, %v7475
    %7477 = vdwg.mxu0
    %v7478 = vmax.f32 %v7399, 0.0
    %v7479 = vmax.f32 %v7401, 0.0
    %v7480 = vmax.f32 %v7404, 0.0
    %v7481 = vmax.f32 %v7406, 0.0
    %v7482 = vmax.f32 %v7409, 0.0
    %v7483 = vmax.f32 %v7411, 0.0
    %v7484 = vmax.f32 %v7414, 0.0
    %v7485 = vmax.f32 %v7416, 0.0
    %v7486 = vmax.f32 %v7419, 0.0
    %v7487 = vmax.f32 %v7421, 0.0
    %v7488 = vmax.f32 %v7424, 0.0
    %v7489 = vmax.f32 %v7426, 0.0
    %v7490 = vmax.f32 %v7429, 0.0
    %v7491 = vmax.f32 %v7431, 0.0
    %v7492 = vmax.f32 %v7434, 0.0
    %v7493 = vmax.f32 %v7436, 0.0
    %v7494 = vmax.f32 %v7439, 0.0
    %v7495 = vmax.f32 %v7441, 0.0
    %v7496 = vmax.f32 %v7444, 0.0
    %v7497 = vmax.f32 %v7446, 0.0
    %v7498 = vmax.f32 %v7449, 0.0
    %v7499 = vmax.f32 %v7451, 0.0
    %v7500 = vmax.f32 %v7454, 0.0
    %v7501 = vmax.f32 %v7456, 0.0
    %v7502 = vmax.f32 %v7459, 0.0
    %v7503 = vmax.f32 %v7461, 0.0
    %v7504 = vmax.f32 %v7464, 0.0
    %v7505 = vmax.f32 %v7466, 0.0
    %v7506 = vmax.f32 %v7469, 0.0
    %v7507 = vmax.f32 %v7471, 0.0
    %v7508 = vmax.f32 %v7474, 0.0
    %v7509 = vmax.f32 %v7476, 0.0
    %7510 = vst [vmem:[#allocation16] sm:$0xff] %v7478
    %7511 = vst [vmem:[#allocation16 + $0x8] sm:$0xff] %v7479
    %7512 = vst [vmem:[#allocation16 + $0x10] sm:$0xff] %v7480
    %7513 = vst [vmem:[#allocation16 + $0x18] sm:$0xff] %v7481
    %7514 = vst [vmem:[#allocation16 + $0x20] sm:$0xff] %v7482
    %7515 = vst [vmem:[#allocation16 + $0x28] sm:$0xff] %v7483
    %7516 = vst [vmem:[#allocation16 + $0x30] sm:$0xff] %v7484
    %7517 = vst [vmem:[#allocation16 + $0x38] sm:$0xff] %v7485
    %7518 = vst [vmem:[#allocation16 + $0x40] sm:$0xff] %v7486
    %7519 = vst [vmem:[#allocation16 + $0x48] sm:$0xff] %v7487
    %7520 = vst [vmem:[#allocation16 + $0x50] sm:$0xff] %v7488
    %7521 = vst [vmem:[#allocation16 + $0x58] sm:$0xff] %v7489
    %7522 = vst [vmem:[#allocation16 + $0x60] sm:$0xff] %v7490
    %7523 = vst [vmem:[#allocation16 + $0x68] sm:$0xff] %v7491
    %7524 = vst [vmem:[#allocation16 + $0x70] sm:$0xff] %v7492
    %7525 = vst [vmem:[#allocation16 + $0x78] sm:$0xff] %v7493
    %7526 = vst [vmem:[#allocation16 + $0x80] sm:$0xff] %v7494
    %7527 = vst [vmem:[#allocation16 + $0x88] sm:$0xff] %v7495
    %7528 = vst [vmem:[#allocation16 + $0x90] sm:$0xff] %v7496
    %7529 = vst [vmem:[#allocation16 + $0x98] sm:$0xff] %v7497
    %7530 = vst [vmem:[#allocation16 + $0xa0] sm:$0xff] %v7498
    %7531 = vst [vmem:[#allocation16 + $0xa8] sm:$0xff] %v7499
    %7532 = vst [vmem:[#allocation16 + $0xb0] sm:$0xff] %v7500
    %7533 = vst [vmem:[#allocation16 + $0xb8] sm:$0xff] %v7501
    %7534 = vst [vmem:[#allocation16 + $0xc0] sm:$0xff] %v7502
    %7535 = vst [vmem:[#allocation16 + $0xc8] sm:$0xff] %v7503
    %7536 = vst [vmem:[#allocation16 + $0xd0] sm:$0xff] %v7504
    %7537 = vst [vmem:[#allocation16 + $0xd8] sm:$0xff] %v7505
    %7538 = vst [vmem:[#allocation16 + $0xe0] sm:$0xff] %v7506
    %7539 = vst [vmem:[#allocation16 + $0xe8] sm:$0xff] %v7507
    %7540 = vst [vmem:[#allocation16 + $0xf0] sm:$0xff] %v7508
    %7541 = vst [vmem:[#allocation16 + $0xf8] sm:$0xff] %v7509
    // Predicated region
    $region86: #{tpu_custom_call.1} parent=1 // pred_check
      _
    $region87: #{tpu_custom_call.1} parent=1 // pred_check_branch
      %7543 = sbr.rel (0) target = $region89
    $region88: #{tpu_custom_call.1} parent=1 // pred_region
      %7545 = vsyncadd [#allocation4], 0
      %s7546 = sshll.u32 [#allocation16], 4
      %s7547 = int_to_ptr.vmem [resolvable:$true] %s7546
      %s7548 = sshll.u32 %s13, 4
      %s7549 = int_to_ptr.hbm [resolvable:$true] %s7548
      %7554 = dma.vmem_to_hbm [thread:$0]  %s7547, 4096, %s7549, [#allocation4], 128, 128, 8
    $region89: #{tpu_custom_call.1} parent=1 // pred_fallthru
      _
    // Predicated region
    $region90: #{tpu_custom_call.1} parent=1 // pred_check
      _
    $region91: #{tpu_custom_call.1} parent=1 // pred_check_branch
      %7556 = sbr.rel (0) target = $region93
    $region92: #{tpu_custom_call.1} parent=1 // pred_region
      %7558 = dma.done [#allocation4], 4096
    $region93: #{tpu_custom_call.1} parent=1 // pred_fallthru
      _
    %7559 = vsyncpa [#allocation3], 1
    %7560 = vsyncpa [#allocation6], 1
    %7561 = vsyncpa [#allocation9], 1
    %7562 = vsyncpa [#allocation12], 1
    %7563 = vsyncpa [#allocation15], 1
    %7564 = vsyncpa [#allocation4], 1

</llo_original>
